<compile_context>
chip_gen: v6e
topology: v6e:2x2x1
jax: 0.10.0
libtpu: 0.0.40
codegen_flags: <defaults>
</compile_context>

<pallas_src>
import jax
import jax.numpy as jnp
from jax import lax
from jax.experimental import pallas as pl
from jax.experimental.pallas import tpu as pltpu


def _round_up(x, m):
    return ((x + m - 1) // m) * m


def _interp_matrix(out_size, in_size):
    """Bilinear (align_corners=True) 1-D interpolation matrix (out_size, in_size)."""
    if out_size == 1:
        src = jnp.zeros((1,), jnp.float32)
    else:
        src = jnp.arange(out_size, dtype=jnp.float32) * ((in_size - 1) / (out_size - 1))
    i0 = jnp.clip(jnp.floor(src).astype(jnp.int32), 0, in_size - 1)
    i1 = jnp.minimum(i0 + 1, in_size - 1)
    w1 = src - i0.astype(jnp.float32)
    w0 = 1.0 - w1
    rows = jnp.arange(out_size)
    R = jnp.zeros((out_size, in_size), jnp.float32)
    R = R.at[rows, i0].add(w0)
    R = R.at[rows, i1].add(w1)
    return R


def _decoder_kernel(x_ref, ll_ref, rh_ref, rw_ref,
                    w1_ref, b1_ref,
                    wa_ref, ba_ref,
                    wb_ref, bb_ref,
                    wf_ref, bf_ref,
                    out_ref,
                    pad1_ref, pad2_ref):
    f32 = jnp.float32
    _, H, W, ncp = out_ref.shape
    h_in = rh_ref.shape[1]
    w_in = rw_ref.shape[1]
    cll = ll_ref.shape[3]
    c48 = w1_ref.shape[1]
    cin_pad = pad1_ref.shape[2]
    cmid = pad2_ref.shape[2]
    ca = x_ref.shape[2] // w_in
    cin = ca + c48

    # ---- low-level branch: 1x1 conv (BN scale pre-folded) + bias + ReLU ------
    ll = ll_ref[0].reshape(H * W, cll)
    low = jnp.dot(ll, w1_ref[...], preferred_element_type=f32) + b1_ref[...]
    low = jnp.maximum(low, 0.0).reshape(H, W, c48)           # (H, W, 48)

    # ---- bilinear upsample (align_corners=True) as two MXU matmuls -----------
    # H direction: rh (H, h) @ x (h, w*ca)  -> (H, w*ca)
    t = jnp.dot(rh_ref[...], x_ref[0], preferred_element_type=f32)
    t = t.reshape(H, w_in, ca)                               # (H, w, ca)
    # W direction: batched matmul over H  (flash-attention einsum form)
    rwb = jnp.broadcast_to(rw_ref[...][None, :, :], (H, W, w_in))
    xup = jnp.einsum('bqk,bkd->bqd', rwb, t,
                     preferred_element_type=f32)             # (H, W, ca)

    # ---- build zero-padded conv-1 input (halo + lane-pad zeroed; interior ----
    # ---- written once; no lane-axis concatenate of the two branches) ---------
    pad1_ref[0:1, :, :] = jnp.zeros((1, W + 2, cin_pad), f32)
    pad1_ref[H + 1:H + 2, :, :] = jnp.zeros((1, W + 2, cin_pad), f32)
    pad1_ref[:, 0:1, :] = jnp.zeros((H + 2, 1, cin_pad), f32)
    pad1_ref[:, W + 1:W + 2, :] = jnp.zeros((H + 2, 1, cin_pad), f32)
    pad1_ref[1:H + 1, 1:W + 1, 0:ca] = xup
    pad1_ref[1:H + 1, 1:W + 1, ca:cin] = low
    if cin_pad > cin:
        pad1_ref[1:H + 1, 1:W + 1, cin:cin_pad] = jnp.zeros((H, W, cin_pad - cin), f32)

    # ---- conv3x3 #1: dx via one lane-aligned im2col concat, dy via 3 slabs ----
    cat1 = jnp.concatenate(
        [pad1_ref[:, 0:W, :], pad1_ref[:, 1:W + 1, :], pad1_ref[:, 2:W + 2, :]],
        axis=-1)                                             # (H+2, W, 3*cin_pad)
    acc = jnp.dot(cat1[0:H].reshape(H * W, 3 * cin_pad), wa_ref[0],
                  preferred_element_type=f32)
    acc = acc + jnp.dot(cat1[1:H + 1].reshape(H * W, 3 * cin_pad), wa_ref[1],
                        preferred_element_type=f32)
    acc = acc + jnp.dot(cat1[2:H + 2].reshape(H * W, 3 * cin_pad), wa_ref[2],
                        preferred_element_type=f32)
    h1 = jnp.maximum(acc + ba_ref[...], 0.0)                 # (H*W, cmid)
    # Dropout2d(0.5) is identity in eval mode.

    # ---- conv3x3 #2 ----------------------------------------------------------
    pad2_ref[0:1, :, :] = jnp.zeros((1, W + 2, cmid), f32)
    pad2_ref[H + 1:H + 2, :, :] = jnp.zeros((1, W + 2, cmid), f32)
    pad2_ref[:, 0:1, :] = jnp.zeros((H + 2, 1, cmid), f32)
    pad2_ref[:, W + 1:W + 2, :] = jnp.zeros((H + 2, 1, cmid), f32)
    pad2_ref[1:H + 1, 1:W + 1, :] = h1.reshape(H, W, cmid)

    cat2 = jnp.concatenate(
        [pad2_ref[:, 0:W, :], pad2_ref[:, 1:W + 1, :], pad2_ref[:, 2:W + 2, :]],
        axis=-1)                                             # (H+2, W, 3*cmid)
    acc2 = jnp.dot(cat2[0:H].reshape(H * W, 3 * cmid), wb_ref[0],
                   preferred_element_type=f32)
    acc2 = acc2 + jnp.dot(cat2[1:H + 1].reshape(H * W, 3 * cmid), wb_ref[1],
                          preferred_element_type=f32)
    acc2 = acc2 + jnp.dot(cat2[2:H + 2].reshape(H * W, 3 * cmid), wb_ref[2],
                          preferred_element_type=f32)
    h2 = jnp.maximum(acc2 + bb_ref[...], 0.0)                # (H*W, cmid)
    # Dropout2d(0.1) is identity in eval mode.

    # ---- final 1x1 conv (classes zero-padded to a lane multiple) -------------
    out = jnp.dot(h2, wf_ref[...], preferred_element_type=f32) + bf_ref[...]
    out_ref[0] = out.reshape(H, W, ncp).astype(out_ref.dtype)


def decoder_forward(x, low_level_feat, params, num_classes):
    """x: (N, h, w, Ca) ASPP features; low_level_feat: (N, H, W, Cll)."""
    N, h_in, w_in, ca = x.shape
    _, H, W, cll = low_level_feat.shape
    (w1, s1, b1, w3a, s3a, b3a, w3b, s3b, b3b, wf, bf) = params
    c48 = w1.shape[1]
    cmid = w3b.shape[-1]
    cin = ca + c48
    cin_pad = _round_up(cin, 128)
    ncp = _round_up(num_classes, 128)

    # ---- host-side prep: fold BN scales, zero-pad channels, im2col per dy ----
    w1f = (w1 * s1).astype(jnp.float32)                              # (cll, 48)
    wa = (w3a * s3a).astype(jnp.float32)                             # (9, cin, cmid)
    wa_p = jnp.zeros((9, cin_pad, cmid), jnp.float32).at[:, :cin, :].set(wa)
    wa_im = wa_p.reshape(3, 3, cin_pad, cmid).reshape(3, 3 * cin_pad, cmid)
    wb = (w3b * s3b).astype(jnp.float32)                             # (9, cmid, cmid)
    wb_im = wb.reshape(3, 3, cmid, cmid).reshape(3, 3 * cmid, cmid)
    wf_p = jnp.zeros((cmid, ncp), jnp.float32).at[:, :num_classes].set(wf)
    bf_p = jnp.zeros((1, ncp), jnp.float32).at[:, :num_classes].set(bf)

    rh = _interp_matrix(H, h_in)
    rw = _interp_matrix(W, w_in)
    x_flat = x.reshape(N, h_in, w_in * ca)   # lane-flat spatial for the H-interp matmul

    kernel = pl.pallas_call(
        _decoder_kernel,
        out_shape=jax.ShapeDtypeStruct((N, H, W, ncp), jnp.float32),
        grid_spec=pltpu.PrefetchScalarGridSpec(
            num_scalar_prefetch=0,
            grid=(N,),
            in_specs=[
                pl.BlockSpec((1, h_in, w_in * ca), lambda n: (n, 0, 0)),   # x (flattened)
                pl.BlockSpec((1, H, W, cll), lambda n: (n, 0, 0, 0)),      # low_level_feat
                pl.BlockSpec((H, h_in), lambda n: (0, 0)),                 # rh
                pl.BlockSpec((W, w_in), lambda n: (0, 0)),                 # rw
                pl.BlockSpec((cll, c48), lambda n: (0, 0)),                # conv1 (folded)
                pl.BlockSpec((1, c48), lambda n: (0, 0)),                  # bn1 bias
                pl.BlockSpec((3, 3 * cin_pad, cmid), lambda n: (0, 0, 0)), # conv3x3 #1
                pl.BlockSpec((1, cmid), lambda n: (0, 0)),                 # bias #1
                pl.BlockSpec((3, 3 * cmid, cmid), lambda n: (0, 0, 0)),    # conv3x3 #2
                pl.BlockSpec((1, cmid), lambda n: (0, 0)),                 # bias #2
                pl.BlockSpec((cmid, ncp), lambda n: (0, 0)),               # final 1x1
                pl.BlockSpec((1, ncp), lambda n: (0, 0)),                  # final bias
            ],
            out_specs=pl.BlockSpec((1, H, W, ncp), lambda n: (n, 0, 0, 0)),
            scratch_shapes=[
                pltpu.VMEM((H + 2, W + 2, cin_pad), jnp.float32),
                pltpu.VMEM((H + 2, W + 2, cmid), jnp.float32),
            ],
        ),
        compiler_params=pltpu.CompilerParams(
            dimension_semantics=("parallel",),
            vmem_limit_bytes=32 * 1024 * 1024),
    )
    out = kernel(x_flat, low_level_feat, rh, rw, w1f, b1,
                 wa_im, b3a, wb_im, b3b, wf_p, bf_p)
    return out[..., :num_classes]


def init_params(key, cll, ca, num_classes, cmid=256, eps=1e-5):
    cin = ca + 48
    ks = jax.random.split(key, 20)

    def conv_w(k, shape, fan_in):
        return jax.random.normal(k, shape, jnp.float32) / jnp.sqrt(float(fan_in))

    def bn_fold(k4, c):
        kg, kb, km, kv = jax.random.split(k4, 4)
        gamma = 1.0 + 0.1 * jax.random.normal(kg, (c,), jnp.float32)
        beta = 0.1 * jax.random.normal(kb, (c,), jnp.float32)
        mean = 0.1 * jax.random.normal(km, (c,), jnp.float32)
        var = jnp.abs(jax.random.normal(kv, (c,), jnp.float32)) + 0.5
        scale = gamma / jnp.sqrt(var + eps)
        bias = beta - mean * scale
        return scale.reshape(1, c), bias.reshape(1, c)

    w1 = conv_w(ks[0], (cll, 48), cll)                   # conv1 1x1
    s1, b1 = bn_fold(ks[1], 48)                          # bn1
    w3a = conv_w(ks[2], (9, cin, cmid), 9 * cin)         # last_conv[0] 3x3
    s3a, b3a = bn_fold(ks[3], cmid)                      # last_conv[1]
    w3b = conv_w(ks[4], (9, cmid, cmid), 9 * cmid)       # last_conv[4] 3x3
    s3b, b3b = bn_fold(ks[5], cmid)                      # last_conv[5]
    wf = conv_w(ks[6], (cmid, num_classes), cmid)        # last_conv[8] 1x1
    bf = 0.1 * jax.random.normal(ks[7], (1, num_classes), jnp.float32)
    return (w1, s1, b1, w3a, s3a, b3a, w3b, s3b, b3b, wf, bf)


def decoder_reference(x, ll, params, num_classes):
    """Pure-JAX (non-Pallas) reference with identical layout/semantics."""
    w1, s1, b1, w3a, s3a, b3a, w3b, s3b, b3b, wf, bf = params
    _, h_in, w_in, _ = x.shape
    _, H, W, _ = ll.shape
    low = jnp.einsum('nhwc,cd->nhwd', ll, w1)
    low = jnp.maximum(low * s1 + b1, 0.0)
    rh = _interp_matrix(H, h_in)
    rw = _interp_matrix(W, w_in)
    xup = jnp.einsum('Hh,Ww,nhwc->nHWc', rh, rw, x)
    xcat = jnp.concatenate([xup, low], axis=-1)

    def conv3(inp, w_taps, s, b):
        hwio = w_taps.reshape(3, 3, inp.shape[-1], w_taps.shape[-1])
        y = lax.conv_general_dilated(inp, hwio, (1, 1), 'SAME',
                                     dimension_numbers=('NHWC', 'HWIO', 'NHWC'))
        return jnp.maximum(y * s + b, 0.0)

    y = conv3(xcat, w3a, s3a, b3a)
    y = conv3(y, w3b, s3b, b3b)
    return jnp.einsum('nhwc,cd->nhwd', y, wf) + bf


if __name__ == "__main__":
    key = jax.random.PRNGKey(0)
    N = 2
    CA = 32           # aspp_outplanes (channels of x)
    CLL = 32          # inplanes (channels of low_level_feat)
    NC = 8            # num_classes
    H, W = 16, 16     # low-level spatial size (output size)
    h, w = 8, 8       # ASPP feature spatial size (upsampled 2x)

    kx, kl, kp = jax.random.split(key, 3)
    x = jax.random.normal(kx, (N, h, w, CA), jnp.float32)
    low_level_feat = jax.random.normal(kl, (N, H, W, CLL), jnp.float32)
    params = init_params(kp, CLL, CA, NC)

    out = decoder_forward(x, low_level_feat, params, NC)
    out = jax.block_until_ready(out)
    assert out.shape == (N, H, W, NC)

    ref = jax.block_until_ready(decoder_reference(x, low_level_feat, params, NC))
    err = float(jnp.max(jnp.abs(out - ref)))
    scale = float(jnp.max(jnp.abs(ref))) + 1e-6
    assert err <= 5e-2 * scale + 5e-3, f"mismatch: max|diff|={err}, max|ref|={scale}"

    print("KERNEL_OK")
</pallas_src>

<mosaic_0001>
module attributes {stable_mosaic.version = 11 : i64} {
  func.func @_decoder_kernel(%arg0: i32, %arg1: memref<1x8x256xf32, #tpu.memory_space<vmem>>, %arg2: memref<1x16x16x32xf32, #tpu.memory_space<vmem>>, %arg3: memref<16x8xf32, #tpu.memory_space<vmem>>, %arg4: memref<16x8xf32, #tpu.memory_space<vmem>>, %arg5: memref<32x48xf32, #tpu.memory_space<vmem>>, %arg6: memref<1x48xf32, #tpu.memory_space<vmem>>, %arg7: memref<3x384x256xf32, #tpu.memory_space<vmem>>, %arg8: memref<1x256xf32, #tpu.memory_space<vmem>>, %arg9: memref<3x768x256xf32, #tpu.memory_space<vmem>>, %arg10: memref<1x256xf32, #tpu.memory_space<vmem>>, %arg11: memref<256x128xf32, #tpu.memory_space<vmem>>, %arg12: memref<1x128xf32, #tpu.memory_space<vmem>>, %arg13: memref<1x16x16x128xf32, #tpu.memory_space<vmem>>, %arg14: memref<18x18x128xf32, #tpu.memory_space<vmem>>, %arg15: memref<18x18x256xf32, #tpu.memory_space<vmem>>) attributes {dimension_semantics = [#tpu.dimension_semantics<parallel>], iteration_bounds = array<i64: 2>, scalar_prefetch = 0 : i64, scratch_operands = 2 : i64, tpu.core_type = #tpu.core_type<tc>, window_params = [{transform_indices = @transform_0, window_bounds = array<i64: 1, 8, 256>}, {transform_indices = @transform_1, window_bounds = array<i64: 1, 16, 16, 32>}, {pipeline_mode = #tpu.pipeline_mode<synchronous>, transform_indices = @transform_2, window_bounds = array<i64: 16, 8>}, {pipeline_mode = #tpu.pipeline_mode<synchronous>, transform_indices = @transform_3, window_bounds = array<i64: 16, 8>}, {pipeline_mode = #tpu.pipeline_mode<synchronous>, transform_indices = @transform_4, window_bounds = array<i64: 32, 48>}, {pipeline_mode = #tpu.pipeline_mode<synchronous>, transform_indices = @transform_5, window_bounds = array<i64: 1, 48>}, {pipeline_mode = #tpu.pipeline_mode<synchronous>, transform_indices = @transform_6, window_bounds = array<i64: 3, 384, 256>}, {pipeline_mode = #tpu.pipeline_mode<synchronous>, transform_indices = @transform_7, window_bounds = array<i64: 1, 256>}, {pipeline_mode = #tpu.pipeline_mode<synchronous>, transform_indices = @transform_8, window_bounds = array<i64: 3, 768, 256>}, {pipeline_mode = #tpu.pipeline_mode<synchronous>, transform_indices = @transform_9, window_bounds = array<i64: 1, 256>}, {pipeline_mode = #tpu.pipeline_mode<synchronous>, transform_indices = @transform_10, window_bounds = array<i64: 256, 128>}, {pipeline_mode = #tpu.pipeline_mode<synchronous>, transform_indices = @transform_11, window_bounds = array<i64: 1, 128>}, {transform_indices = @transform_12, window_bounds = array<i64: 1, 16, 16, 128>}]} {
    %c0 = arith.constant 0 : index
    %c0_0 = arith.constant 0 : index
    %c0_1 = arith.constant 0 : index
    %c0_2 = arith.constant 0 : index
    %0 = vector.load %arg2[%c0, %c0_0, %c0_1, %c0_2] : memref<1x16x16x32xf32, #tpu.memory_space<vmem>>, vector<1x16x16x32xf32>
    %1 = vector.shape_cast %0 : vector<1x16x16x32xf32> to vector<16x16x32xf32>
    %2 = vector.shape_cast %1 : vector<16x16x32xf32> to vector<256x32xf32>
    %c0_3 = arith.constant 0 : index
    %c0_4 = arith.constant 0 : index
    %3 = vector.load %arg5[%c0_3, %c0_4] : memref<32x48xf32, #tpu.memory_space<vmem>>, vector<32x48xf32>
    %cst = arith.constant dense<0.000000e+00> : vector<256x48xf32>
    %4 = tpu.matmul %2, %3, %cst {dimension_numbers = #tpu.dot_dimension_numbers<[1], [0], [0], [1], [0, 0, 1, 1], [], []>} : vector<256x32xf32>, vector<32x48xf32>, vector<256x48xf32> -> vector<256x48xf32>
    %c0_5 = arith.constant 0 : index
    %c0_6 = arith.constant 0 : index
    %5 = vector.load %arg6[%c0_5, %c0_6] : memref<1x48xf32, #tpu.memory_space<vmem>>, vector<1x48xf32>
    %6 = vector.broadcast %5 : vector<1x48xf32> to vector<256x48xf32>
    %7 = arith.addf %4, %6 : vector<256x48xf32>
    %cst_7 = arith.constant 0.000000e+00 : f32
    %8 = vector.broadcast %cst_7 : f32 to vector<256x48xf32>
    %9 = arith.maximumf %7, %8 : vector<256x48xf32>
    %10 = vector.shape_cast %9 : vector<256x48xf32> to vector<16x16x48xf32>
    %c0_8 = arith.constant 0 : index
    %c0_9 = arith.constant 0 : index
    %11 = vector.load %arg3[%c0_8, %c0_9] : memref<16x8xf32, #tpu.memory_space<vmem>>, vector<16x8xf32>
    %c0_10 = arith.constant 0 : index
    %c0_11 = arith.constant 0 : index
    %c0_12 = arith.constant 0 : index
    %12 = vector.load %arg1[%c0_10, %c0_11, %c0_12] : memref<1x8x256xf32, #tpu.memory_space<vmem>>, vector<1x8x256xf32>
    %13 = vector.shape_cast %12 : vector<1x8x256xf32> to vector<8x256xf32>
    %cst_13 = arith.constant dense<0.000000e+00> : vector<16x256xf32>
    %14 = tpu.matmul %11, %13, %cst_13 {dimension_numbers = #tpu.dot_dimension_numbers<[1], [0], [0], [1], [0, 0, 1, 1], [], []>} : vector<16x8xf32>, vector<8x256xf32>, vector<16x256xf32> -> vector<16x256xf32>
    %15 = vector.shape_cast %14 : vector<16x256xf32> to vector<16x8x32xf32>
    %c0_14 = arith.constant 0 : index
    %c0_15 = arith.constant 0 : index
    %16 = vector.load %arg4[%c0_14, %c0_15] : memref<16x8xf32, #tpu.memory_space<vmem>>, vector<16x8xf32>
    %17 = vector.shape_cast %16 : vector<16x8xf32> to vector<1x16x8xf32>
    %18 = vector.shape_cast %17 : vector<1x16x8xf32> to vector<1x16x8xf32>
    %19 = vector.broadcast %18 : vector<1x16x8xf32> to vector<16x16x8xf32>
    "tpu.trace_start"() <{level = 10 : i32, message = "bqk,bkd->bqd"}> : () -> ()
    %cst_16 = arith.constant dense<0.000000e+00> : vector<16x16x32xf32>
    %20 = tpu.matmul %19, %15, %cst_16 {dimension_numbers = #tpu.dot_dimension_numbers<[2], [1], [1], [2], [0, 0, 0, 1, 1, 2], [0], [0]>} : vector<16x16x8xf32>, vector<16x8x32xf32>, vector<16x16x32xf32> -> vector<16x16x32xf32>
    %cst_17 = arith.constant 0.000000e+00 : f32
    "tpu.trace_stop"() : () -> ()
    %21 = vector.broadcast %cst_17 : f32 to vector<1x18x128xf32>
    %c0_18 = arith.constant 0 : index
    %c0_19 = arith.constant 0 : index
    %c0_20 = arith.constant 0 : index
    %22 = vector.load %arg14[%c0_18, %c0_19, %c0_20] : memref<18x18x128xf32, #tpu.memory_space<vmem>>, vector<1x18x128xf32>
    tpu.vector_store %arg14[%c0_18, %c0_19, %c0_20], %21 {strides = array<i32>} : memref<18x18x128xf32, #tpu.memory_space<vmem>>, vector<1x18x128xf32>,
    %cst_21 = arith.constant 0.000000e+00 : f32
    %23 = vector.broadcast %cst_21 : f32 to vector<1x18x128xf32>
    %c17 = arith.constant 17 : index
    %c0_22 = arith.constant 0 : index
    %c0_23 = arith.constant 0 : index
    %24 = vector.load %arg14[%c17, %c0_22, %c0_23] : memref<18x18x128xf32, #tpu.memory_space<vmem>>, vector<1x18x128xf32>
    tpu.vector_store %arg14[%c17, %c0_22, %c0_23], %23 {strides = array<i32>} : memref<18x18x128xf32, #tpu.memory_space<vmem>>, vector<1x18x128xf32>,
    %cst_24 = arith.constant 0.000000e+00 : f32
    %25 = vector.broadcast %cst_24 : f32 to vector<18x1x128xf32>
    %c0_25 = arith.constant 0 : index
    %c0_26 = arith.constant 0 : index
    %c0_27 = arith.constant 0 : index
    %26 = vector.load %arg14[%c0_25, %c0_26, %c0_27] : memref<18x18x128xf32, #tpu.memory_space<vmem>>, vector<18x1x128xf32>
    tpu.vector_store %arg14[%c0_25, %c0_26, %c0_27], %25 {strides = array<i32>} : memref<18x18x128xf32, #tpu.memory_space<vmem>>, vector<18x1x128xf32>,
    %cst_28 = arith.constant 0.000000e+00 : f32
    %27 = vector.broadcast %cst_28 : f32 to vector<18x1x128xf32>
    %c0_29 = arith.constant 0 : index
    %c17_30 = arith.constant 17 : index
    %c0_31 = arith.constant 0 : index
    %28 = vector.load %arg14[%c0_29, %c17_30, %c0_31] : memref<18x18x128xf32, #tpu.memory_space<vmem>>, vector<18x1x128xf32>
    tpu.vector_store %arg14[%c0_29, %c17_30, %c0_31], %27 {strides = array<i32>} : memref<18x18x128xf32, #tpu.memory_space<vmem>>, vector<18x1x128xf32>,
    %c1 = arith.constant 1 : index
    %c1_32 = arith.constant 1 : index
    %c0_33 = arith.constant 0 : index
    %29 = vector.load %arg14[%c1, %c1_32, %c0_33] : memref<18x18x128xf32, #tpu.memory_space<vmem>>, vector<16x16x32xf32>
    tpu.vector_store %arg14[%c1, %c1_32, %c0_33], %20 {strides = array<i32>} : memref<18x18x128xf32, #tpu.memory_space<vmem>>, vector<16x16x32xf32>,
    %c1_34 = arith.constant 1 : index
    %c1_35 = arith.constant 1 : index
    %c32 = arith.constant 32 : index
    %30 = vector.load %arg14[%c1_34, %c1_35, %c32] : memref<18x18x128xf32, #tpu.memory_space<vmem>>, vector<16x16x48xf32>
    tpu.vector_store %arg14[%c1_34, %c1_35, %c32], %10 {strides = array<i32>} : memref<18x18x128xf32, #tpu.memory_space<vmem>>, vector<16x16x48xf32>,
    %cst_36 = arith.constant 0.000000e+00 : f32
    %31 = vector.broadcast %cst_36 : f32 to vector<16x16x48xf32>
    %c1_37 = arith.constant 1 : index
    %c1_38 = arith.constant 1 : index
    %c80 = arith.constant 80 : index
    %32 = vector.load %arg14[%c1_37, %c1_38, %c80] : memref<18x18x128xf32, #tpu.memory_space<vmem>>, vector<16x16x48xf32>
    tpu.vector_store %arg14[%c1_37, %c1_38, %c80], %31 {strides = array<i32>} : memref<18x18x128xf32, #tpu.memory_space<vmem>>, vector<16x16x48xf32>,
    %c0_39 = arith.constant 0 : index
    %c0_40 = arith.constant 0 : index
    %c0_41 = arith.constant 0 : index
    %33 = vector.load %arg14[%c0_39, %c0_40, %c0_41] : memref<18x18x128xf32, #tpu.memory_space<vmem>>, vector<18x16x128xf32>
    %c0_42 = arith.constant 0 : index
    %c1_43 = arith.constant 1 : index
    %c0_44 = arith.constant 0 : index
    %34 = vector.load %arg14[%c0_42, %c1_43, %c0_44] : memref<18x18x128xf32, #tpu.memory_space<vmem>>, vector<18x16x128xf32>
    %c0_45 = arith.constant 0 : index
    %c2 = arith.constant 2 : index
    %c0_46 = arith.constant 0 : index
    %35 = vector.load %arg14[%c0_45, %c2, %c0_46] : memref<18x18x128xf32, #tpu.memory_space<vmem>>, vector<18x16x128xf32>
    %36 = tpu.concatenate %33, %34, %35 in 2 : vector<18x16x128xf32>, vector<18x16x128xf32>, vector<18x16x128xf32> -> vector<18x16x384xf32>
    %37 = vector.extract_strided_slice %36 {offsets = [0, 0, 0], sizes = [16, 16, 384], strides = [1, 1, 1]} : vector<18x16x384xf32> to vector<16x16x384xf32>
    %38 = vector.shape_cast %37 : vector<16x16x384xf32> to vector<256x384xf32>
    %c0_47 = arith.constant 0 : index
    %c0_48 = arith.constant 0 : index
    %c0_49 = arith.constant 0 : index
    %39 = vector.load %arg7[%c0_47, %c0_48, %c0_49] : memref<3x384x256xf32, #tpu.memory_space<vmem>>, vector<1x384x256xf32>
    %40 = vector.shape_cast %39 : vector<1x384x256xf32> to vector<384x256xf32>
    %cst_50 = arith.constant dense<0.000000e+00> : vector<256x256xf32>
    %41 = tpu.matmul %38, %40, %cst_50 {dimension_numbers = #tpu.dot_dimension_numbers<[1], [0], [0], [1], [0, 0, 1, 1], [], []>} : vector<256x384xf32>, vector<384x256xf32>, vector<256x256xf32> -> vector<256x256xf32>
    %42 = vector.extract_strided_slice %36 {offsets = [1, 0, 0], sizes = [16, 16, 384], strides = [1, 1, 1]} : vector<18x16x384xf32> to vector<16x16x384xf32>
    %43 = vector.shape_cast %42 : vector<16x16x384xf32> to vector<256x384xf32>
    %c1_51 = arith.constant 1 : index
    %c0_52 = arith.constant 0 : index
    %c0_53 = arith.constant 0 : index
    %44 = vector.load %arg7[%c1_51, %c0_52, %c0_53] : memref<3x384x256xf32, #tpu.memory_space<vmem>>, vector<1x384x256xf32>
    %45 = vector.shape_cast %44 : vector<1x384x256xf32> to vector<384x256xf32>
    %cst_54 = arith.constant dense<0.000000e+00> : vector<256x256xf32>
    %46 = tpu.matmul %43, %45, %cst_54 {dimension_numbers = #tpu.dot_dimension_numbers<[1], [0], [0], [1], [0, 0, 1, 1], [], []>} : vector<256x384xf32>, vector<384x256xf32>, vector<256x256xf32> -> vector<256x256xf32>
    %47 = arith.addf %41, %46 : vector<256x256xf32>
    %48 = vector.extract_strided_slice %36 {offsets = [2, 0, 0], sizes = [16, 16, 384], strides = [1, 1, 1]} : vector<18x16x384xf32> to vector<16x16x384xf32>
    %49 = vector.shape_cast %48 : vector<16x16x384xf32> to vector<256x384xf32>
    %c2_55 = arith.constant 2 : index
    %c0_56 = arith.constant 0 : index
    %c0_57 = arith.constant 0 : index
    %50 = vector.load %arg7[%c2_55, %c0_56, %c0_57] : memref<3x384x256xf32, #tpu.memory_space<vmem>>, vector<1x384x256xf32>
    %51 = vector.shape_cast %50 : vector<1x384x256xf32> to vector<384x256xf32>
    %cst_58 = arith.constant dense<0.000000e+00> : vector<256x256xf32>
    %52 = tpu.matmul %49, %51, %cst_58 {dimension_numbers = #tpu.dot_dimension_numbers<[1], [0], [0], [1], [0, 0, 1, 1], [], []>} : vector<256x384xf32>, vector<384x256xf32>, vector<256x256xf32> -> vector<256x256xf32>
    %53 = arith.addf %47, %52 : vector<256x256xf32>
    %c0_59 = arith.constant 0 : index
    %c0_60 = arith.constant 0 : index
    %54 = vector.load %arg8[%c0_59, %c0_60] : memref<1x256xf32, #tpu.memory_space<vmem>>, vector<1x256xf32>
    %55 = vector.broadcast %54 : vector<1x256xf32> to vector<256x256xf32>
    %56 = arith.addf %53, %55 : vector<256x256xf32>
    %cst_61 = arith.constant 0.000000e+00 : f32
    %57 = vector.broadcast %cst_61 : f32 to vector<256x256xf32>
    %58 = arith.maximumf %56, %57 : vector<256x256xf32>
    %cst_62 = arith.constant 0.000000e+00 : f32
    %59 = vector.broadcast %cst_62 : f32 to vector<1x18x256xf32>
    %c0_63 = arith.constant 0 : index
    %c0_64 = arith.constant 0 : index
    %c0_65 = arith.constant 0 : index
    %60 = vector.load %arg15[%c0_63, %c0_64, %c0_65] : memref<18x18x256xf32, #tpu.memory_space<vmem>>, vector<1x18x256xf32>
    tpu.vector_store %arg15[%c0_63, %c0_64, %c0_65], %59 {strides = array<i32>} : memref<18x18x256xf32, #tpu.memory_space<vmem>>, vector<1x18x256xf32>,
    %cst_66 = arith.constant 0.000000e+00 : f32
    %61 = vector.broadcast %cst_66 : f32 to vector<1x18x256xf32>
    %c17_67 = arith.constant 17 : index
    %c0_68 = arith.constant 0 : index
    %c0_69 = arith.constant 0 : index
    %62 = vector.load %arg15[%c17_67, %c0_68, %c0_69] : memref<18x18x256xf32, #tpu.memory_space<vmem>>, vector<1x18x256xf32>
    tpu.vector_store %arg15[%c17_67, %c0_68, %c0_69], %61 {strides = array<i32>} : memref<18x18x256xf32, #tpu.memory_space<vmem>>, vector<1x18x256xf32>,
    %cst_70 = arith.constant 0.000000e+00 : f32
    %63 = vector.broadcast %cst_70 : f32 to vector<18x1x256xf32>
    %c0_71 = arith.constant 0 : index
    %c0_72 = arith.constant 0 : index
    %c0_73 = arith.constant 0 : index
    %64 = vector.load %arg15[%c0_71, %c0_72, %c0_73] : memref<18x18x256xf32, #tpu.memory_space<vmem>>, vector<18x1x256xf32>
    tpu.vector_store %arg15[%c0_71, %c0_72, %c0_73], %63 {strides = array<i32>} : memref<18x18x256xf32, #tpu.memory_space<vmem>>, vector<18x1x256xf32>,
    %cst_74 = arith.constant 0.000000e+00 : f32
    %65 = vector.broadcast %cst_74 : f32 to vector<18x1x256xf32>
    %c0_75 = arith.constant 0 : index
    %c17_76 = arith.constant 17 : index
    %c0_77 = arith.constant 0 : index
    %66 = vector.load %arg15[%c0_75, %c17_76, %c0_77] : memref<18x18x256xf32, #tpu.memory_space<vmem>>, vector<18x1x256xf32>
    tpu.vector_store %arg15[%c0_75, %c17_76, %c0_77], %65 {strides = array<i32>} : memref<18x18x256xf32, #tpu.memory_space<vmem>>, vector<18x1x256xf32>,
    %67 = vector.shape_cast %58 : vector<256x256xf32> to vector<16x16x256xf32>
    %c1_78 = arith.constant 1 : index
    %c1_79 = arith.constant 1 : index
    %c0_80 = arith.constant 0 : index
    %68 = vector.load %arg15[%c1_78, %c1_79, %c0_80] : memref<18x18x256xf32, #tpu.memory_space<vmem>>, vector<16x16x256xf32>
    tpu.vector_store %arg15[%c1_78, %c1_79, %c0_80], %67 {strides = array<i32>} : memref<18x18x256xf32, #tpu.memory_space<vmem>>, vector<16x16x256xf32>,
    %c0_81 = arith.constant 0 : index
    %c0_82 = arith.constant 0 : index
    %c0_83 = arith.constant 0 : index
    %69 = vector.load %arg15[%c0_81, %c0_82, %c0_83] : memref<18x18x256xf32, #tpu.memory_space<vmem>>, vector<18x16x256xf32>
    %c0_84 = arith.constant 0 : index
    %c1_85 = arith.constant 1 : index
    %c0_86 = arith.constant 0 : index
    %70 = vector.load %arg15[%c0_84, %c1_85, %c0_86] : memref<18x18x256xf32, #tpu.memory_space<vmem>>, vector<18x16x256xf32>
    %c0_87 = arith.constant 0 : index
    %c2_88 = arith.constant 2 : index
    %c0_89 = arith.constant 0 : index
    %71 = vector.load %arg15[%c0_87, %c2_88, %c0_89] : memref<18x18x256xf32, #tpu.memory_space<vmem>>, vector<18x16x256xf32>
    %72 = tpu.concatenate %69, %70, %71 in 2 : vector<18x16x256xf32>, vector<18x16x256xf32>, vector<18x16x256xf32> -> vector<18x16x768xf32>
    %73 = vector.extract_strided_slice %72 {offsets = [0, 0, 0], sizes = [16, 16, 768], strides = [1, 1, 1]} : vector<18x16x768xf32> to vector<16x16x768xf32>
    %74 = vector.shape_cast %73 : vector<16x16x768xf32> to vector<256x768xf32>
    %c0_90 = arith.constant 0 : index
    %c0_91 = arith.constant 0 : index
    %c0_92 = arith.constant 0 : index
    %75 = vector.load %arg9[%c0_90, %c0_91, %c0_92] : memref<3x768x256xf32, #tpu.memory_space<vmem>>, vector<1x768x256xf32>
    %76 = vector.shape_cast %75 : vector<1x768x256xf32> to vector<768x256xf32>
    %cst_93 = arith.constant dense<0.000000e+00> : vector<256x256xf32>
    %77 = tpu.matmul %74, %76, %cst_93 {dimension_numbers = #tpu.dot_dimension_numbers<[1], [0], [0], [1], [0, 0, 1, 1], [], []>} : vector<256x768xf32>, vector<768x256xf32>, vector<256x256xf32> -> vector<256x256xf32>
    %78 = vector.extract_strided_slice %72 {offsets = [1, 0, 0], sizes = [16, 16, 768], strides = [1, 1, 1]} : vector<18x16x768xf32> to vector<16x16x768xf32>
    %79 = vector.shape_cast %78 : vector<16x16x768xf32> to vector<256x768xf32>
    %c1_94 = arith.constant 1 : index
    %c0_95 = arith.constant 0 : index
    %c0_96 = arith.constant 0 : index
    %80 = vector.load %arg9[%c1_94, %c0_95, %c0_96] : memref<3x768x256xf32, #tpu.memory_space<vmem>>, vector<1x768x256xf32>
    %81 = vector.shape_cast %80 : vector<1x768x256xf32> to vector<768x256xf32>
    %cst_97 = arith.constant dense<0.000000e+00> : vector<256x256xf32>
    %82 = tpu.matmul %79, %81, %cst_97 {dimension_numbers = #tpu.dot_dimension_numbers<[1], [0], [0], [1], [0, 0, 1, 1], [], []>} : vector<256x768xf32>, vector<768x256xf32>, vector<256x256xf32> -> vector<256x256xf32>
    %83 = arith.addf %77, %82 : vector<256x256xf32>
    %84 = vector.extract_strided_slice %72 {offsets = [2, 0, 0], sizes = [16, 16, 768], strides = [1, 1, 1]} : vector<18x16x768xf32> to vector<16x16x768xf32>
    %85 = vector.shape_cast %84 : vector<16x16x768xf32> to vector<256x768xf32>
    %c2_98 = arith.constant 2 : index
    %c0_99 = arith.constant 0 : index
    %c0_100 = arith.constant 0 : index
    %86 = vector.load %arg9[%c2_98, %c0_99, %c0_100] : memref<3x768x256xf32, #tpu.memory_space<vmem>>, vector<1x768x256xf32>
    %87 = vector.shape_cast %86 : vector<1x768x256xf32> to vector<768x256xf32>
    %cst_101 = arith.constant dense<0.000000e+00> : vector<256x256xf32>
    %88 = tpu.matmul %85, %87, %cst_101 {dimension_numbers = #tpu.dot_dimension_numbers<[1], [0], [0], [1], [0, 0, 1, 1], [], []>} : vector<256x768xf32>, vector<768x256xf32>, vector<256x256xf32> -> vector<256x256xf32>
    %89 = arith.addf %83, %88 : vector<256x256xf32>
    %c0_102 = arith.constant 0 : index
    %c0_103 = arith.constant 0 : index
    %90 = vector.load %arg10[%c0_102, %c0_103] : memref<1x256xf32, #tpu.memory_space<vmem>>, vector<1x256xf32>
    %91 = vector.broadcast %90 : vector<1x256xf32> to vector<256x256xf32>
    %92 = arith.addf %89, %91 : vector<256x256xf32>
    %cst_104 = arith.constant 0.000000e+00 : f32
    %93 = vector.broadcast %cst_104 : f32 to vector<256x256xf32>
    %94 = arith.maximumf %92, %93 : vector<256x256xf32>
    %c0_105 = arith.constant 0 : index
    %c0_106 = arith.constant 0 : index
    %95 = vector.load %arg11[%c0_105, %c0_106] : memref<256x128xf32, #tpu.memory_space<vmem>>, vector<256x128xf32>
    %cst_107 = arith.constant dense<0.000000e+00> : vector<256x128xf32>
    %96 = tpu.matmul %94, %95, %cst_107 {dimension_numbers = #tpu.dot_dimension_numbers<[1], [0], [0], [1], [0, 0, 1, 1], [], []>} : vector<256x256xf32>, vector<256x128xf32>, vector<256x128xf32> -> vector<256x128xf32>
    %c0_108 = arith.constant 0 : index
    %c0_109 = arith.constant 0 : index
    %97 = vector.load %arg12[%c0_108, %c0_109] : memref<1x128xf32, #tpu.memory_space<vmem>>, vector<1x128xf32>
    %98 = vector.broadcast %97 : vector<1x128xf32> to vector<256x128xf32>
    %99 = arith.addf %96, %98 : vector<256x128xf32>
    %100 = vector.shape_cast %99 : vector<256x128xf32> to vector<16x16x128xf32>
    %c0_110 = arith.constant 0 : index
    %c0_111 = arith.constant 0 : index
    %c0_112 = arith.constant 0 : index
    %c0_113 = arith.constant 0 : index
    %101 = vector.load %arg13[%c0_110, %c0_111, %c0_112, %c0_113] : memref<1x16x16x128xf32, #tpu.memory_space<vmem>>, vector<1x16x16x128xf32>
    %102 = vector.shape_cast %101 : vector<1x16x16x128xf32> to vector<16x16x128xf32>
    %103 = vector.shape_cast %100 : vector<16x16x128xf32> to vector<1x16x16x128xf32>
    tpu.vector_store %arg13[%c0_110, %c0_111, %c0_112, %c0_113], %103 {strides = array<i32>} : memref<1x16x16x128xf32, #tpu.memory_space<vmem>>, vector<1x16x16x128xf32>,
    return
  }
  func.func @transform_0(%arg0: i32) -> (i32, i32, i32) {
    %c0_i32 = arith.constant 0 : i32
    %c0_i32_0 = arith.constant 0 : i32
    %c0_i32_1 = arith.constant 0 : i32
    return %arg0, %c0_i32, %c0_i32_0 : i32, i32, i32
  }
  func.func @transform_1(%arg0: i32) -> (i32, i32, i32, i32) {
    %c0_i32 = arith.constant 0 : i32
    %c0_i32_0 = arith.constant 0 : i32
    %c0_i32_1 = arith.constant 0 : i32
    %c0_i32_2 = arith.constant 0 : i32
    return %arg0, %c0_i32, %c0_i32_0, %c0_i32_1 : i32, i32, i32, i32
  }
  func.func @transform_2(%arg0: i32) -> (i32, i32) {
    %c0_i32 = arith.constant 0 : i32
    %c0_i32_0 = arith.constant 0 : i32
    %c0_i32_1 = arith.constant 0 : i32
    return %c0_i32, %c0_i32_0 : i32, i32
  }
  func.func @transform_3(%arg0: i32) -> (i32, i32) {
    %c0_i32 = arith.constant 0 : i32
    %c0_i32_0 = arith.constant 0 : i32
    %c0_i32_1 = arith.constant 0 : i32
    return %c0_i32, %c0_i32_0 : i32, i32
  }
  func.func @transform_4(%arg0: i32) -> (i32, i32) {
    %c0_i32 = arith.constant 0 : i32
    %c0_i32_0 = arith.constant 0 : i32
    %c0_i32_1 = arith.constant 0 : i32
    return %c0_i32, %c0_i32_0 : i32, i32
  }
  func.func @transform_5(%arg0: i32) -> (i32, i32) {
    %c0_i32 = arith.constant 0 : i32
    %c0_i32_0 = arith.constant 0 : i32
    %c0_i32_1 = arith.constant 0 : i32
    return %c0_i32, %c0_i32_0 : i32, i32
  }
  func.func @transform_6(%arg0: i32) -> (i32, i32, i32) {
    %c0_i32 = arith.constant 0 : i32
    %c0_i32_0 = arith.constant 0 : i32
    %c0_i32_1 = arith.constant 0 : i32
    %c0_i32_2 = arith.constant 0 : i32
    return %c0_i32, %c0_i32_0, %c0_i32_1 : i32, i32, i32
  }
  func.func @transform_7(%arg0: i32) -> (i32, i32) {
    %c0_i32 = arith.constant 0 : i32
    %c0_i32_0 = arith.constant 0 : i32
    %c0_i32_1 = arith.constant 0 : i32
    return %c0_i32, %c0_i32_0 : i32, i32
  }
  func.func @transform_8(%arg0: i32) -> (i32, i32, i32) {
    %c0_i32 = arith.constant 0 : i32
    %c0_i32_0 = arith.constant 0 : i32
    %c0_i32_1 = arith.constant 0 : i32
    %c0_i32_2 = arith.constant 0 : i32
    return %c0_i32, %c0_i32_0, %c0_i32_1 : i32, i32, i32
  }
  func.func @transform_9(%arg0: i32) -> (i32, i32) {
    %c0_i32 = arith.constant 0 : i32
    %c0_i32_0 = arith.constant 0 : i32
    %c0_i32_1 = arith.constant 0 : i32
    return %c0_i32, %c0_i32_0 : i32, i32
  }
  func.func @transform_10(%arg0: i32) -> (i32, i32) {
    %c0_i32 = arith.constant 0 : i32
    %c0_i32_0 = arith.constant 0 : i32
    %c0_i32_1 = arith.constant 0 : i32
    return %c0_i32, %c0_i32_0 : i32, i32
  }
  func.func @transform_11(%arg0: i32) -> (i32, i32) {
    %c0_i32 = arith.constant 0 : i32
    %c0_i32_0 = arith.constant 0 : i32
    %c0_i32_1 = arith.constant 0 : i32
    return %c0_i32, %c0_i32_0 : i32, i32
  }
  func.func @transform_12(%arg0: i32) -> (i32, i32, i32, i32) {
    %c0_i32 = arith.constant 0 : i32
    %c0_i32_0 = arith.constant 0 : i32
    %c0_i32_1 = arith.constant 0 : i32
    %c0_i32_2 = arith.constant 0 : i32
    return %arg0, %c0_i32, %c0_i32_0, %c0_i32_1 : i32, i32, i32, i32
  }
}

</mosaic_0001>

<llo_original>
// kernel: tpu_custom_call.1
$region0: #{tpu_custom_call.1}
  #allocation0 [shape = 'u32[]', space=smem, size = 0x4, offset = 0x4, fixed_abs, tag = 'smem constant byte address 0x4 - core index']
  #allocation1 [shape = 'u32[144,128]{1,0:T(1,128)}', space=vmem, size = 0x12000, scoped, tag = 'internal scratch']
  #allocation2 [shape = 'f32[18,18,128]{2,1,0:T(8,128)}', space=vmem, size = 0x36000, scoped, tag = 'scratch operand']
  #allocation3 [shape = 'f32[18,18,256]{2,1,0:T(8,128)}', space=vmem, size = 0x6c000, scoped, tag = 'scratch operand']
  %s0 = inlined_call_operand.hbm [shape: f32[2,8,256], index: 0, kind: input, shape index: {}]
  %s1 = inlined_call_operand.hbm [shape: f32[2,16,16,32], index: 1, kind: input, shape index: {}]
  %s2 = inlined_call_operand.vmem [shape: f32[16,8], index: 2, kind: input, shape index: {}]
  %s3 = inlined_call_operand.vmem [shape: f32[16,8], index: 3, kind: input, shape index: {}]
  %s4 = inlined_call_operand.hbm [shape: f32[32,48], index: 4, kind: input, shape index: {}]
  %s5 = inlined_call_operand.hbm [shape: f32[1,48], index: 5, kind: input, shape index: {}]
  %s6 = inlined_call_operand.hbm [shape: f32[3,384,256], index: 6, kind: input, shape index: {}]
  %s7 = inlined_call_operand.hbm [shape: f32[1,256], index: 7, kind: input, shape index: {}]
  %s8 = inlined_call_operand.hbm [shape: f32[3,768,256], index: 8, kind: input, shape index: {}]
  %s9 = inlined_call_operand.hbm [shape: f32[1,256], index: 9, kind: input, shape index: {}]
  %s10 = inlined_call_operand.hbm [shape: f32[256,128], index: 10, kind: input, shape index: {}]
  %s11 = inlined_call_operand.hbm [shape: f32[1,128], index: 11, kind: input, shape index: {}]
  %s12 = inlined_call_operand.hbm [shape: f32[2,16,16,128], index: 12, kind: output, shape index: {}]
  %s13 = sld [smem:[#allocation0]]
  $region121: #{tpu_custom_call.1} parent=0
    _
  %s15 = ssub.s32 1, %s13
  %s16 = scalar_select 0, %s15, %s13
  $region1: #{tpu_custom_call.1} parent=0
    #allocation4 [shape = 'u8[16384]{0}', space=vmem, size = 0x4000, scoped, tag = 'input window, operand 0']
    #allocation5 [shape = 's32[2]{0}', space=sflag, size = 0x8, scoped, tag = 'scoped memory for tpu_custom_call.1']
    #allocation6 [shape = 's32[2]{0}', space=sflag, size = 0x8, scoped, tag = 'scoped memory for tpu_custom_call.1']
    #allocation7 [shape = 'u8[262144]{0}', space=vmem, size = 0x40000, scoped, tag = 'input window, operand 1']
    #allocation8 [shape = 's32[2]{0}', space=sflag, size = 0x8, scoped, tag = 'scoped memory for tpu_custom_call.1']
    #allocation9 [shape = 'u8[16384]{0}', space=vmem, size = 0x4000, scoped, tag = 'input window, operand 4, single buffered']
    #allocation10 [shape = 'u8[512]{0}', space=vmem, size = 0x400, scoped, tag = 'input window, operand 5, single buffered']
    #allocation11 [shape = 's32[1]{0}', space=sflag, size = 0x4, scoped, tag = 'scoped memory for tpu_custom_call.1']
    #allocation12 [shape = 'u8[1179648]{0}', space=vmem, size = 0x120000, scoped, tag = 'input window, operand 6, single buffered']
    #allocation13 [shape = 'u8[1024]{0}', space=vmem, size = 0x400, scoped, tag = 'input window, operand 7, single buffered']
    #allocation14 [shape = 's32[1]{0}', space=sflag, size = 0x4, scoped, tag = 'scoped memory for tpu_custom_call.1']
    #allocation15 [shape = 'u8[2359296]{0}', space=vmem, size = 0x240000, scoped, tag = 'input window, operand 8, single buffered']
    #allocation16 [shape = 'u8[1024]{0}', space=vmem, size = 0x400, scoped, tag = 'input window, operand 9, single buffered']
    #allocation17 [shape = 's32[1]{0}', space=sflag, size = 0x4, scoped, tag = 'scoped memory for tpu_custom_call.1']
    #allocation18 [shape = 'u8[131072]{0}', space=vmem, size = 0x20000, scoped, tag = 'input window, operand 10, single buffered']
    #allocation19 [shape = 'u8[512]{0}', space=vmem, size = 0x400, scoped, tag = 'input window, operand 11, single buffered']
    #allocation20 [shape = 's32[1]{0}', space=sflag, size = 0x4, scoped, tag = 'scoped memory for tpu_custom_call.1']
    #allocation21 [shape = 'u8[262144]{0}', space=vmem, size = 0x40000, scoped, tag = 'output window, operand 0']
    %17 = vsyncpa [#allocation5], 0
    %s18 = scalar_lea.sflag [#allocation5], 1
    %19 = vsyncpa %s18, 0
    %20 = vsyncpa [#allocation8], 0
    %s21 = scalar_lea.sflag [#allocation8], 1
    %22 = vsyncpa %s21, 0
    %23 = vsyncpa [#allocation11], 0
    %24 = vsyncpa [#allocation14], 0
    %25 = vsyncpa [#allocation17], 0
    %26 = vsyncpa [#allocation20], 0
    %27 = vsyncpa [#allocation6], 0
    %s28 = scalar_lea.sflag [#allocation6], 1
    %29 = vsyncpa %s28, 0
    loop: start=0, step=1, limit=4
    $region2: #{tpu_custom_call.1} parent=1 // loop_pre_header
      _
    $region3: #{tpu_custom_call.1} parent=1 // loop_header
      %s31 = sphi 0, %s35
      %p32 = scmp.ge.s32.totalorder %s31, 4
      %s41 = sphi 0, %s43
      %s44 = sphi 0, %s41
      %s45 = sphi 0, %s44
      %s61 = sphi 0, %s45
      %s67 = sphi 0, %s69
      %s70 = sphi 0, %s67
      %s71 = sphi 0, %s70
      %s87 = sphi 0, %s71
      %s91 = sphi 0, %s91
      %s93 = sphi 0, %s91
      %s94 = sphi 0, %s93
      %s108 = sphi 0, %s94
      %s112 = sphi 0, %s112
      %s114 = sphi 0, %s112
      %s115 = sphi 0, %s114
      %s129 = sphi 0, %s115
      %s133 = sphi 0, %s133
      %s135 = sphi 0, %s133
      %s136 = sphi 0, %s135
      %s150 = sphi 0, %s136
      %s154 = sphi 0, %s154
      %s156 = sphi 0, %s154
      %s157 = sphi 0, %s156
      %s171 = sphi 0, %s157
      %s175 = sphi 0, %s175
      %s177 = sphi 0, %s175
      %s178 = sphi 0, %s177
      %s192 = sphi 0, %s178
      %s196 = sphi 0, %s196
      %s198 = sphi 0, %s196
      %s199 = sphi 0, %s198
      %s213 = sphi 0, %s199
      %s217 = sphi 0, %s217
      %s219 = sphi 0, %s217
      %s220 = sphi 0, %s219
      %s234 = sphi 0, %s220
      %s238 = sphi 0, %s238
      %s240 = sphi 0, %s238
      %s241 = sphi 0, %s240
      %s255 = sphi 0, %s241
      %s259 = sphi 0, %s259
      %s261 = sphi 0, %s259
      %s262 = sphi 0, %s261
      %s276 = sphi 0, %s262
      %s280 = sphi 0, %s280
      %s282 = sphi 0, %s280
      %s283 = sphi 0, %s282
      %s297 = sphi 0, %s283
      %s303 = sphi 0, %s305
      %s306 = sphi 0, %s303
      %s307 = sphi 0, %s306
      %s323 = sphi 0, %s307
    $region4: #{tpu_custom_call.1} parent=1 // loop_header_branch
      %34 = sbr.rel (%p32) target = $region8
    $region5: #{tpu_custom_call.1} parent=1 // loop_body
      %s36 = ssub.s32 %s31, 1
      %s37 = ssub.s32 %s31, 2
      %s38 = sadd.s32 %s31, 1
      %s39 = ssub.s32 %s31, %s38
      %p40 = scmp.eq.s32.totalorder %s39, 0
      %s42 = sadd.s32 %s41, 1
      %s43 = scalar_select %p40, %s41, %s42
      %p46 = pneg %p40
      %p47 = scmp.eq.s32.totalorder %s31, 1
      %p48 = por %p46, %p47
      %p49 = scmp.ne.s32.totalorder %s41, %s44
      %p50 = scmp.eq.s32.totalorder %s31, 0
      %p51 = por %p49, %p50
      %p52 = scmp.ne.s32.totalorder %s41, %s44
      %p53 = scmp.eq.s32.totalorder %s36, 1
      %p54 = por %p52, %p53
      %p55 = scmp.ne.s32.totalorder %s44, %s45
      %p56 = scmp.eq.s32.totalorder %s36, 0
      %p57 = por %p55, %p56
      %p58 = scmp.ne.s32.totalorder %s44, %s45
      %p59 = scmp.eq.s32.totalorder %s37, 1
      %p60 = por %p58, %p59
      %p62 = scmp.ne.s32.totalorder %s45, %s61
      %p63 = scmp.eq.s32.totalorder %s37, 0
      %p64 = por %p62, %p63
      %s65 = ssub.s32 %s31, %s38
      %p66 = scmp.eq.s32.totalorder %s65, 0
      %s68 = sadd.s32 %s67, 1
      %s69 = scalar_select %p66, %s67, %s68
      %p72 = pneg %p66
      %p73 = scmp.eq.s32.totalorder %s31, 1
      %p74 = por %p72, %p73
      %p75 = scmp.ne.s32.totalorder %s67, %s70
      %p76 = scmp.eq.s32.totalorder %s31, 0
      %p77 = por %p75, %p76
      %p78 = scmp.ne.s32.totalorder %s67, %s70
      %p79 = scmp.eq.s32.totalorder %s36, 1
      %p80 = por %p78, %p79
      %p81 = scmp.ne.s32.totalorder %s70, %s71
      %p82 = scmp.eq.s32.totalorder %s36, 0
      %p83 = por %p81, %p82
      %p84 = scmp.ne.s32.totalorder %s70, %s71
      %p85 = scmp.eq.s32.totalorder %s37, 1
      %p86 = por %p84, %p85
      %p88 = scmp.ne.s32.totalorder %s71, %s87
      %p89 = scmp.eq.s32.totalorder %s37, 0
      %p90 = por %p88, %p89
      %s92 = sadd.s32 %s91, 1
      %p95 = scmp.eq.s32.totalorder %s31, 1
      %p96 = scmp.ne.s32.totalorder %s91, %s93
      %p97 = scmp.eq.s32.totalorder %s31, 0
      %p98 = por %p96, %p97
      %p99 = scmp.ne.s32.totalorder %s91, %s93
      %p100 = scmp.eq.s32.totalorder %s36, 1
      %p101 = por %p99, %p100
      %p102 = scmp.ne.s32.totalorder %s93, %s94
      %p103 = scmp.eq.s32.totalorder %s36, 0
      %p104 = por %p102, %p103
      %p105 = scmp.ne.s32.totalorder %s93, %s94
      %p106 = scmp.eq.s32.totalorder %s37, 1
      %p107 = por %p105, %p106
      %p109 = scmp.ne.s32.totalorder %s94, %s108
      %p110 = scmp.eq.s32.totalorder %s37, 0
      %p111 = por %p109, %p110
      %s113 = sadd.s32 %s112, 1
      %p116 = scmp.eq.s32.totalorder %s31, 1
      %p117 = scmp.ne.s32.totalorder %s112, %s114
      %p118 = scmp.eq.s32.totalorder %s31, 0
      %p119 = por %p117, %p118
      %p120 = scmp.ne.s32.totalorder %s112, %s114
      %p121 = scmp.eq.s32.totalorder %s36, 1
      %p122 = por %p120, %p121
      %p123 = scmp.ne.s32.totalorder %s114, %s115
      %p124 = scmp.eq.s32.totalorder %s36, 0
      %p125 = por %p123, %p124
      %p126 = scmp.ne.s32.totalorder %s114, %s115
      %p127 = scmp.eq.s32.totalorder %s37, 1
      %p128 = por %p126, %p127
      %p130 = scmp.ne.s32.totalorder %s115, %s129
      %p131 = scmp.eq.s32.totalorder %s37, 0
      %p132 = por %p130, %p131
      %s134 = sadd.s32 %s133, 1
      %p137 = scmp.eq.s32.totalorder %s31, 1
      %p138 = scmp.ne.s32.totalorder %s133, %s135
      %p139 = scmp.eq.s32.totalorder %s31, 0
      %p140 = por %p138, %p139
      %p141 = scmp.ne.s32.totalorder %s133, %s135
      %p142 = scmp.eq.s32.totalorder %s36, 1
      %p143 = por %p141, %p142
      %p144 = scmp.ne.s32.totalorder %s135, %s136
      %p145 = scmp.eq.s32.totalorder %s36, 0
      %p146 = por %p144, %p145
      %p147 = scmp.ne.s32.totalorder %s135, %s136
      %p148 = scmp.eq.s32.totalorder %s37, 1
      %p149 = por %p147, %p148
      %p151 = scmp.ne.s32.totalorder %s136, %s150
      %p152 = scmp.eq.s32.totalorder %s37, 0
      %p153 = por %p151, %p152
      %s155 = sadd.s32 %s154, 1
      %p158 = scmp.eq.s32.totalorder %s31, 1
      %p159 = scmp.ne.s32.totalorder %s154, %s156
      %p160 = scmp.eq.s32.totalorder %s31, 0
      %p161 = por %p159, %p160
      %p162 = scmp.ne.s32.totalorder %s154, %s156
      %p163 = scmp.eq.s32.totalorder %s36, 1
      %p164 = por %p162, %p163
      %p165 = scmp.ne.s32.totalorder %s156, %s157
      %p166 = scmp.eq.s32.totalorder %s36, 0
      %p167 = por %p165, %p166
      %p168 = scmp.ne.s32.totalorder %s156, %s157
      %p169 = scmp.eq.s32.totalorder %s37, 1
      %p170 = por %p168, %p169
      %p172 = scmp.ne.s32.totalorder %s157, %s171
      %p173 = scmp.eq.s32.totalorder %s37, 0
      %p174 = por %p172, %p173
      %s176 = sadd.s32 %s175, 1
      %p179 = scmp.eq.s32.totalorder %s31, 1
      %p180 = scmp.ne.s32.totalorder %s175, %s177
      %p181 = scmp.eq.s32.totalorder %s31, 0
      %p182 = por %p180, %p181
      %p183 = scmp.ne.s32.totalorder %s175, %s177
      %p184 = scmp.eq.s32.totalorder %s36, 1
      %p185 = por %p183, %p184
      %p186 = scmp.ne.s32.totalorder %s177, %s178
      %p187 = scmp.eq.s32.totalorder %s36, 0
      %p188 = por %p186, %p187
      %p189 = scmp.ne.s32.totalorder %s177, %s178
      %p190 = scmp.eq.s32.totalorder %s37, 1
      %p191 = por %p189, %p190
      %p193 = scmp.ne.s32.totalorder %s178, %s192
      %p194 = scmp.eq.s32.totalorder %s37, 0
      %p195 = por %p193, %p194
      %s197 = sadd.s32 %s196, 1
      %p200 = scmp.eq.s32.totalorder %s31, 1
      %p201 = scmp.ne.s32.totalorder %s196, %s198
      %p202 = scmp.eq.s32.totalorder %s31, 0
      %p203 = por %p201, %p202
      %p204 = scmp.ne.s32.totalorder %s196, %s198
      %p205 = scmp.eq.s32.totalorder %s36, 1
      %p206 = por %p204, %p205
      %p207 = scmp.ne.s32.totalorder %s198, %s199
      %p208 = scmp.eq.s32.totalorder %s36, 0
      %p209 = por %p207, %p208
      %p210 = scmp.ne.s32.totalorder %s198, %s199
      %p211 = scmp.eq.s32.totalorder %s37, 1
      %p212 = por %p210, %p211
      %p214 = scmp.ne.s32.totalorder %s199, %s213
      %p215 = scmp.eq.s32.totalorder %s37, 0
      %p216 = por %p214, %p215
      %s218 = sadd.s32 %s217, 1
      %p221 = scmp.eq.s32.totalorder %s31, 1
      %p222 = scmp.ne.s32.totalorder %s217, %s219
      %p223 = scmp.eq.s32.totalorder %s31, 0
      %p224 = por %p222, %p223
      %p225 = scmp.ne.s32.totalorder %s217, %s219
      %p226 = scmp.eq.s32.totalorder %s36, 1
      %p227 = por %p225, %p226
      %p228 = scmp.ne.s32.totalorder %s219, %s220
      %p229 = scmp.eq.s32.totalorder %s36, 0
      %p230 = por %p228, %p229
      %p231 = scmp.ne.s32.totalorder %s219, %s220
      %p232 = scmp.eq.s32.totalorder %s37, 1
      %p233 = por %p231, %p232
      %p235 = scmp.ne.s32.totalorder %s220, %s234
      %p236 = scmp.eq.s32.totalorder %s37, 0
      %p237 = por %p235, %p236
      %s239 = sadd.s32 %s238, 1
      %p242 = scmp.eq.s32.totalorder %s31, 1
      %p243 = scmp.ne.s32.totalorder %s238, %s240
      %p244 = scmp.eq.s32.totalorder %s31, 0
      %p245 = por %p243, %p244
      %p246 = scmp.ne.s32.totalorder %s238, %s240
      %p247 = scmp.eq.s32.totalorder %s36, 1
      %p248 = por %p246, %p247
      %p249 = scmp.ne.s32.totalorder %s240, %s241
      %p250 = scmp.eq.s32.totalorder %s36, 0
      %p251 = por %p249, %p250
      %p252 = scmp.ne.s32.totalorder %s240, %s241
      %p253 = scmp.eq.s32.totalorder %s37, 1
      %p254 = por %p252, %p253
      %p256 = scmp.ne.s32.totalorder %s241, %s255
      %p257 = scmp.eq.s32.totalorder %s37, 0
      %p258 = por %p256, %p257
      %s260 = sadd.s32 %s259, 1
      %p263 = scmp.eq.s32.totalorder %s31, 1
      %p264 = scmp.ne.s32.totalorder %s259, %s261
      %p265 = scmp.eq.s32.totalorder %s31, 0
      %p266 = por %p264, %p265
      %p267 = scmp.ne.s32.totalorder %s259, %s261
      %p268 = scmp.eq.s32.totalorder %s36, 1
      %p269 = por %p267, %p268
      %p270 = scmp.ne.s32.totalorder %s261, %s262
      %p271 = scmp.eq.s32.totalorder %s36, 0
      %p272 = por %p270, %p271
      %p273 = scmp.ne.s32.totalorder %s261, %s262
      %p274 = scmp.eq.s32.totalorder %s37, 1
      %p275 = por %p273, %p274
      %p277 = scmp.ne.s32.totalorder %s262, %s276
      %p278 = scmp.eq.s32.totalorder %s37, 0
      %p279 = por %p277, %p278
      %s281 = sadd.s32 %s280, 1
      %p284 = scmp.eq.s32.totalorder %s31, 1
      %p285 = scmp.ne.s32.totalorder %s280, %s282
      %p286 = scmp.eq.s32.totalorder %s31, 0
      %p287 = por %p285, %p286
      %p288 = scmp.ne.s32.totalorder %s280, %s282
      %p289 = scmp.eq.s32.totalorder %s36, 1
      %p290 = por %p288, %p289
      %p291 = scmp.ne.s32.totalorder %s282, %s283
      %p292 = scmp.eq.s32.totalorder %s36, 0
      %p293 = por %p291, %p292
      %p294 = scmp.ne.s32.totalorder %s282, %s283
      %p295 = scmp.eq.s32.totalorder %s37, 1
      %p296 = por %p294, %p295
      %p298 = scmp.ne.s32.totalorder %s283, %s297
      %p299 = scmp.eq.s32.totalorder %s37, 0
      %p300 = por %p298, %p299
      %s301 = ssub.s32 %s31, %s38
      %p302 = scmp.eq.s32.totalorder %s301, 0
      %s304 = sadd.s32 %s303, 1
      %s305 = scalar_select %p302, %s303, %s304
      %p308 = pneg %p302
      %p309 = scmp.eq.s32.totalorder %s31, 1
      %p310 = por %p308, %p309
      %p311 = scmp.ne.s32.totalorder %s303, %s306
      %p312 = scmp.eq.s32.totalorder %s31, 0
      %p313 = por %p311, %p312
      %p314 = scmp.ne.s32.totalorder %s303, %s306
      %p315 = scmp.eq.s32.totalorder %s36, 1
      %p316 = por %p314, %p315
      %p317 = scmp.ne.s32.totalorder %s306, %s307
      %p318 = scmp.eq.s32.totalorder %s36, 0
      %p319 = por %p317, %p318
      %p320 = scmp.ne.s32.totalorder %s306, %s307
      %p321 = scmp.eq.s32.totalorder %s37, 1
      %p322 = por %p320, %p321
      %p324 = scmp.ne.s32.totalorder %s307, %s323
      %p325 = scmp.eq.s32.totalorder %s37, 0
      %p326 = por %p324, %p325
      %p327 = scmp.le.s32.totalorder 1, %s31
      %p328 = scmp.lt.s32.totalorder %s31, 3
      %p329 = pnand %p327, %p328
      %p330 = pneg %p329
      // Predicated region
      $region9: #{tpu_custom_call.1} parent=5 // pred_check
        _
      $region10: #{tpu_custom_call.1} parent=5 // pred_check_branch
        %332 = sbr.rel (%p329) target = $region12
      $region11: #{tpu_custom_call.1} parent=5 // pred_region
        %s333 = ssub.s32 %s31, 1
        // Predicated region
        $region13: #{tpu_custom_call.1} parent=11 // pred_check
          %p334 = pneg %p104
        $region14: #{tpu_custom_call.1} parent=11 // pred_check_branch
          %336 = sbr.rel (%p334) target = $region16
        $region15: #{tpu_custom_call.1} parent=11 // pred_region
          _
        $region16: #{tpu_custom_call.1} parent=11 // pred_fallthru
          _
        // Predicated region
        $region17: #{tpu_custom_call.1} parent=11 // pred_check
          %p337 = pneg %p125
        $region18: #{tpu_custom_call.1} parent=11 // pred_check_branch
          %339 = sbr.rel (%p337) target = $region20
        $region19: #{tpu_custom_call.1} parent=11 // pred_region
          _
        $region20: #{tpu_custom_call.1} parent=11 // pred_fallthru
          _
        // Predicated region
        $region21: #{tpu_custom_call.1} parent=11 // pred_check
          %p340 = pneg %p146
        $region22: #{tpu_custom_call.1} parent=11 // pred_check_branch
          %342 = sbr.rel (%p340) target = $region24
        $region23: #{tpu_custom_call.1} parent=11 // pred_region
          %s344 = ssub.s32 512, 512
          %345 = vsyncadd [#allocation8], %s344
          %s346 = sshll.u32 [#allocation9], 4
          %s347 = int_to_ptr.vmem [resolvable:$true] %s346
          %352 = dma.hbm_to_vmem [thread:$0]  %s4, 512, %s347, [#allocation8], 128, 128, 8
        $region24: #{tpu_custom_call.1} parent=11 // pred_fallthru
          _
        // Predicated region
        $region25: #{tpu_custom_call.1} parent=11 // pred_check
          %p353 = pneg %p167
        $region26: #{tpu_custom_call.1} parent=11 // pred_check_branch
          %355 = sbr.rel (%p353) target = $region28
        $region27: #{tpu_custom_call.1} parent=11 // pred_region
          %s357 = ssub.s32 16, 16
          %358 = vsyncadd [#allocation11], %s357
          %s360 = sshll.u32 [#allocation10], 4
          %s361 = int_to_ptr.vmem [resolvable:$true] %s360
          %363 = dma.hbm_to_vmem [thread:$0]  %s5, 16, %s361, [#allocation11]
        $region28: #{tpu_custom_call.1} parent=11 // pred_fallthru
          _
        // Predicated region
        $region29: #{tpu_custom_call.1} parent=11 // pred_check
          %p364 = pneg %p188
        $region30: #{tpu_custom_call.1} parent=11 // pred_check_branch
          %366 = sbr.rel (%p364) target = $region32
        $region31: #{tpu_custom_call.1} parent=11 // pred_region
          %s368 = ssub.s32 36864, 36864
          %369 = vsyncadd [#allocation11], %s368
          %s370 = sshll.u32 [#allocation12], 4
          %s371 = int_to_ptr.vmem [resolvable:$true] %s370
          %376 = dma.hbm_to_vmem [thread:$0]  %s6, 36864, %s371, [#allocation11], 256, 256, 16
        $region32: #{tpu_custom_call.1} parent=11 // pred_fallthru
          _
        // Predicated region
        $region33: #{tpu_custom_call.1} parent=11 // pred_check
          %p377 = pneg %p209
        $region34: #{tpu_custom_call.1} parent=11 // pred_check_branch
          %379 = sbr.rel (%p377) target = $region36
        $region35: #{tpu_custom_call.1} parent=11 // pred_region
          %s381 = ssub.s32 32, 32
          %382 = vsyncadd [#allocation14], %s381
          %s384 = sshll.u32 [#allocation13], 4
          %s385 = int_to_ptr.vmem [resolvable:$true] %s384
          %387 = dma.hbm_to_vmem [thread:$0]  %s7, 32, %s385, [#allocation14]
        $region36: #{tpu_custom_call.1} parent=11 // pred_fallthru
          _
        // Predicated region
        $region37: #{tpu_custom_call.1} parent=11 // pred_check
          %p388 = pneg %p230
        $region38: #{tpu_custom_call.1} parent=11 // pred_check_branch
          %390 = sbr.rel (%p388) target = $region40
        $region39: #{tpu_custom_call.1} parent=11 // pred_region
          %s392 = ssub.s32 73728, 73728
          %393 = vsyncadd [#allocation14], %s392
          %s394 = sshll.u32 [#allocation15], 4
          %s395 = int_to_ptr.vmem [resolvable:$true] %s394
          %400 = dma.hbm_to_vmem [thread:$0]  %s8, 73728, %s395, [#allocation14], 256, 256, 16
        $region40: #{tpu_custom_call.1} parent=11 // pred_fallthru
          _
        // Predicated region
        $region41: #{tpu_custom_call.1} parent=11 // pred_check
          %p401 = pneg %p251
        $region42: #{tpu_custom_call.1} parent=11 // pred_check_branch
          %403 = sbr.rel (%p401) target = $region44
        $region43: #{tpu_custom_call.1} parent=11 // pred_region
          %s405 = ssub.s32 32, 32
          %406 = vsyncadd [#allocation17], %s405
          %s408 = sshll.u32 [#allocation16], 4
          %s409 = int_to_ptr.vmem [resolvable:$true] %s408
          %411 = dma.hbm_to_vmem [thread:$0]  %s9, 32, %s409, [#allocation17]
        $region44: #{tpu_custom_call.1} parent=11 // pred_fallthru
          _
        // Predicated region
        $region45: #{tpu_custom_call.1} parent=11 // pred_check
          %p412 = pneg %p272
        $region46: #{tpu_custom_call.1} parent=11 // pred_check_branch
          %414 = sbr.rel (%p412) target = $region48
        $region47: #{tpu_custom_call.1} parent=11 // pred_region
          %s416 = ssub.s32 4096, 4096
          %417 = vsyncadd [#allocation17], %s416
          %s418 = sshll.u32 [#allocation18], 4
          %s419 = int_to_ptr.vmem [resolvable:$true] %s418
          %424 = dma.hbm_to_vmem [thread:$0]  %s10, 4096, %s419, [#allocation17], 128, 128, 8
        $region48: #{tpu_custom_call.1} parent=11 // pred_fallthru
          _
        // Predicated region
        $region49: #{tpu_custom_call.1} parent=11 // pred_check
          %p425 = pneg %p293
        $region50: #{tpu_custom_call.1} parent=11 // pred_check_branch
          %427 = sbr.rel (%p425) target = $region52
        $region51: #{tpu_custom_call.1} parent=11 // pred_region
          %s429 = ssub.s32 16, 16
          %430 = vsyncadd [#allocation20], %s429
          %s432 = sshll.u32 [#allocation19], 4
          %s433 = int_to_ptr.vmem [resolvable:$true] %s432
          %435 = dma.hbm_to_vmem [thread:$0]  %s11, 16, %s433, [#allocation20]
        $region52: #{tpu_custom_call.1} parent=11 // pred_fallthru
          _
      $region12: #{tpu_custom_call.1} parent=5 // pred_fallthru
        _
      %p436 = scmp.lt.s32.totalorder %s31, 2
      // Predicated region
      $region53: #{tpu_custom_call.1} parent=5 // pred_check
        %p437 = pneg %p436
      $region54: #{tpu_custom_call.1} parent=5 // pred_check_branch
        %439 = sbr.rel (%p437) target = $region56
      $region55: #{tpu_custom_call.1} parent=5 // pred_region
        // Predicated region
        $region57: #{tpu_custom_call.1} parent=55 // pred_check
          %p440 = pneg %p51
        $region58: #{tpu_custom_call.1} parent=55 // pred_check_branch
          %442 = sbr.rel (%p440) target = $region60
        $region59: #{tpu_custom_call.1} parent=55 // pred_region
          %s443 = sand.u32 %s41, 1
          %s444 = scalar_lea.sflag [#allocation5], %s443
          %s445 = sand.u32 %s41, 1
          %s446 = smul.addr %s445, 16
          %s447 = scalar_lea.vmem [#allocation4], %s446
          %s449 = ssub.s32 256, 256
          %450 = vsyncadd %s444, %s449
          %s451 = smul.addr %s31, 2
          %s452 = smul.addr %s451, 128
          %s453 = scalar_lea.hbm %s0, %s452
          %s455 = sshll.u32 %s447, 4
          %s456 = int_to_ptr.vmem [resolvable:$true] %s455
          %458 = dma.hbm_to_vmem [thread:$0]  %s453, 256, %s456, %s444
        $region60: #{tpu_custom_call.1} parent=55 // pred_fallthru
          _
        // Predicated region
        $region61: #{tpu_custom_call.1} parent=55 // pred_check
          %p459 = pneg %p77
        $region62: #{tpu_custom_call.1} parent=55 // pred_check_branch
          %461 = sbr.rel (%p459) target = $region64
        $region63: #{tpu_custom_call.1} parent=55 // pred_region
          %s462 = sand.u32 %s31, 1
          %s463 = scalar_lea.sflag [#allocation8], %s462
          %s464 = sand.u32 %s67, 1
          %s465 = smul.addr %s464, 256
          %s466 = scalar_lea.vmem [#allocation7], %s465
          %s468 = ssub.s32 4096, 4096
          %469 = vsyncadd %s463, %s468
          %s470 = smul.addr %s31, 32
          %s471 = smul.addr %s470, 128
          %s472 = scalar_lea.hbm %s1, %s471
          %s473 = sshll.u32 %s466, 4
          %s474 = int_to_ptr.vmem [resolvable:$true] %s473
          %479 = dma.hbm_to_vmem [thread:$0]  %s472, 4096, %s474, %s463, 128, 128, 8
        $region64: #{tpu_custom_call.1} parent=55 // pred_fallthru
          _
      $region56: #{tpu_custom_call.1} parent=5 // pred_fallthru
        _
      %p480 = scmp.le.s32.totalorder 1, %s31
      %p481 = scmp.lt.s32.totalorder %s31, 3
      %p482 = pnand %p480, %p481
      %p483 = pneg %p482
      // Predicated region
      $region65: #{tpu_custom_call.1} parent=5 // pred_check
        _
      $region66: #{tpu_custom_call.1} parent=5 // pred_check_branch
        %485 = sbr.rel (%p482) target = $region68
      $region67: #{tpu_custom_call.1} parent=5 // pred_region
        %s486 = ssub.s32 %s31, 1
        %s487 = sand.u32 %s44, 1
        %s488 = scalar_lea.sflag [#allocation5], %s487
        %s489 = sand.u32 %s44, 1
        %s490 = smul.addr %s489, 16
        %s491 = scalar_lea.vmem [#allocation4], %s490
        // Predicated region
        $region69: #{tpu_custom_call.1} parent=67 // pred_check
          %p492 = pneg %p57
        $region70: #{tpu_custom_call.1} parent=67 // pred_check_branch
          %494 = sbr.rel (%p492) target = $region72
        $region71: #{tpu_custom_call.1} parent=67 // pred_region
          %495 = dma.done %s488, 256
        $region72: #{tpu_custom_call.1} parent=67 // pred_fallthru
          _
        %s496 = sand.u32 %s36, 1
        %s497 = scalar_lea.sflag [#allocation8], %s496
        %s498 = sand.u32 %s70, 1
        %s499 = smul.addr %s498, 256
        %s500 = scalar_lea.vmem [#allocation7], %s499
        // Predicated region
        $region73: #{tpu_custom_call.1} parent=67 // pred_check
          %p501 = pneg %p83
        $region74: #{tpu_custom_call.1} parent=67 // pred_check_branch
          %503 = sbr.rel (%p501) target = $region76
        $region75: #{tpu_custom_call.1} parent=67 // pred_region
          %504 = dma.done %s497, 4096
        $region76: #{tpu_custom_call.1} parent=67 // pred_fallthru
          _
        // Predicated region
        $region77: #{tpu_custom_call.1} parent=67 // pred_check
          %p505 = pneg %p146
        $region78: #{tpu_custom_call.1} parent=67 // pred_check_branch
          %507 = sbr.rel (%p505) target = $region80
        $region79: #{tpu_custom_call.1} parent=67 // pred_region
          %508 = dma.done [#allocation8], 512
        $region80: #{tpu_custom_call.1} parent=67 // pred_fallthru
          _
        // Predicated region
        $region81: #{tpu_custom_call.1} parent=67 // pred_check
          %p509 = pneg %p167
        $region82: #{tpu_custom_call.1} parent=67 // pred_check_branch
          %511 = sbr.rel (%p509) target = $region84
        $region83: #{tpu_custom_call.1} parent=67 // pred_region
          %512 = dma.done [#allocation11], 16
        $region84: #{tpu_custom_call.1} parent=67 // pred_fallthru
          _
        // Predicated region
        $region85: #{tpu_custom_call.1} parent=67 // pred_check
          %p513 = pneg %p188
        $region86: #{tpu_custom_call.1} parent=67 // pred_check_branch
          %515 = sbr.rel (%p513) target = $region88
        $region87: #{tpu_custom_call.1} parent=67 // pred_region
          %516 = dma.done [#allocation11], 36864
        $region88: #{tpu_custom_call.1} parent=67 // pred_fallthru
          _
        // Predicated region
        $region89: #{tpu_custom_call.1} parent=67 // pred_check
          %p517 = pneg %p209
        $region90: #{tpu_custom_call.1} parent=67 // pred_check_branch
          %519 = sbr.rel (%p517) target = $region92
        $region91: #{tpu_custom_call.1} parent=67 // pred_region
          %520 = dma.done [#allocation14], 32
        $region92: #{tpu_custom_call.1} parent=67 // pred_fallthru
          _
        // Predicated region
        $region93: #{tpu_custom_call.1} parent=67 // pred_check
          %p521 = pneg %p230
        $region94: #{tpu_custom_call.1} parent=67 // pred_check_branch
          %523 = sbr.rel (%p521) target = $region96
        $region95: #{tpu_custom_call.1} parent=67 // pred_region
          %524 = dma.done [#allocation14], 73728
        $region96: #{tpu_custom_call.1} parent=67 // pred_fallthru
          _
        // Predicated region
        $region97: #{tpu_custom_call.1} parent=67 // pred_check
          %p525 = pneg %p251
        $region98: #{tpu_custom_call.1} parent=67 // pred_check_branch
          %527 = sbr.rel (%p525) target = $region100
        $region99: #{tpu_custom_call.1} parent=67 // pred_region
          %528 = dma.done [#allocation17], 32
        $region100: #{tpu_custom_call.1} parent=67 // pred_fallthru
          _
        // Predicated region
        $region101: #{tpu_custom_call.1} parent=67 // pred_check
          %p529 = pneg %p272
        $region102: #{tpu_custom_call.1} parent=67 // pred_check_branch
          %531 = sbr.rel (%p529) target = $region104
        $region103: #{tpu_custom_call.1} parent=67 // pred_region
          %532 = dma.done [#allocation17], 4096
        $region104: #{tpu_custom_call.1} parent=67 // pred_fallthru
          _
        // Predicated region
        $region105: #{tpu_custom_call.1} parent=67 // pred_check
          %p533 = pneg %p293
        $region106: #{tpu_custom_call.1} parent=67 // pred_check_branch
          %535 = sbr.rel (%p533) target = $region108
        $region107: #{tpu_custom_call.1} parent=67 // pred_region
          %536 = dma.done [#allocation20], 16
        $region108: #{tpu_custom_call.1} parent=67 // pred_fallthru
          _
        %s537 = sand.u32 %s44, 1
        %s538 = scalar_lea.sflag [#allocation5], %s537
        %s539 = sand.u32 %s44, 1
        %s540 = smul.addr %s539, 16
        %s541 = scalar_lea.vmem [#allocation4], %s540
        %p542 = pneg %p57
        %p543 = pneg %p54
        %s544 = sand.u32 %s36, 1
        %s545 = scalar_lea.sflag [#allocation8], %s544
        %s546 = sand.u32 %s70, 1
        %s547 = smul.addr %s546, 256
        %s548 = scalar_lea.vmem [#allocation7], %s547
        %p549 = pneg %p83
        %p550 = pneg %p80
        %p551 = pneg %p104
        %p552 = pneg %p101
        %p553 = pneg %p125
        %p554 = pneg %p122
        %p555 = pneg %p146
        %p556 = pneg %p143
        %p557 = pneg %p167
        %p558 = pneg %p164
        %p559 = pneg %p188
        %p560 = pneg %p185
        %p561 = pneg %p209
        %p562 = pneg %p206
        %p563 = pneg %p230
        %p564 = pneg %p227
        %p565 = pneg %p251
        %p566 = pneg %p248
        %p567 = pneg %p272
        %p568 = pneg %p269
        %p569 = pneg %p293
        %p570 = pneg %p290
        %p571 = pneg %p319
        %p572 = pneg %p316
        %s573 = sand.u32 %s306, 1
        %s574 = scalar_lea.sflag [#allocation6], %s573
        %s575 = sand.u32 %s306, 1
        %s576 = smul.addr %s575, 256
        %s577 = scalar_lea.vmem [#allocation21], %s576
        %v578 = vld [vmem:[%s500] sm:$0xff]
        %v579 = vld [vmem:[%s500 + $0x8] sm:$0xff]
        %v580 = vld [vmem:[%s500 + $0x10] sm:$0xff]
        %v581 = vld [vmem:[%s500 + $0x18] sm:$0xff]
        %v582 = vld [vmem:[%s500 + $0x20] sm:$0xff]
        %v583 = vld [vmem:[%s500 + $0x28] sm:$0xff]
        %v584 = vld [vmem:[%s500 + $0x30] sm:$0xff]
        %v585 = vld [vmem:[%s500 + $0x38] sm:$0xff]
        %v586 = vld [vmem:[%s500 + $0x40] sm:$0xff]
        %v587 = vld [vmem:[%s500 + $0x48] sm:$0xff]
        %v588 = vld [vmem:[%s500 + $0x50] sm:$0xff]
        %v589 = vld [vmem:[%s500 + $0x58] sm:$0xff]
        %v590 = vld [vmem:[%s500 + $0x60] sm:$0xff]
        %v591 = vld [vmem:[%s500 + $0x68] sm:$0xff]
        %v592 = vld [vmem:[%s500 + $0x70] sm:$0xff]
        %v593 = vld [vmem:[%s500 + $0x78] sm:$0xff]
        %v594 = vld [vmem:[%s500 + $0x80] sm:$0xff]
        %v595 = vld [vmem:[%s500 + $0x88] sm:$0xff]
        %v596 = vld [vmem:[%s500 + $0x90] sm:$0xff]
        %v597 = vld [vmem:[%s500 + $0x98] sm:$0xff]
        %v598 = vld [vmem:[%s500 + $0xa0] sm:$0xff]
        %v599 = vld [vmem:[%s500 + $0xa8] sm:$0xff]
        %v600 = vld [vmem:[%s500 + $0xb0] sm:$0xff]
        %v601 = vld [vmem:[%s500 + $0xb8] sm:$0xff]
        %v602 = vld [vmem:[%s500 + $0xc0] sm:$0xff]
        %v603 = vld [vmem:[%s500 + $0xc8] sm:$0xff]
        %v604 = vld [vmem:[%s500 + $0xd0] sm:$0xff]
        %v605 = vld [vmem:[%s500 + $0xd8] sm:$0xff]
        %v606 = vld [vmem:[%s500 + $0xe0] sm:$0xff]
        %v607 = vld [vmem:[%s500 + $0xe8] sm:$0xff]
        %v608 = vld [vmem:[%s500 + $0xf0] sm:$0xff]
        %v609 = vld [vmem:[%s500 + $0xf8] sm:$0xff]
        %v610 = vld [vmem:[#allocation9] sm:$0xff]
        %v611 = vld [vmem:[#allocation9 + $0x8] sm:$0xff]
        %v612 = vld [vmem:[#allocation9 + $0x10] sm:$0xff]
        %v613 = vld [vmem:[#allocation9 + $0x18] sm:$0xff]
        %v614 = vld [vmem:[#allocation10] sm:$0x1]
        %v616 = vlaneseq
        %v617 = vshrl.u32 %v616, 7
        %v618 = vsub.s32 0, %v617
        %v619 = vrot.slane %v614, %v618
        %vm621 = vcmask 261120
        %v623 = vsel %vm621, %v578, 0
        %v626 = vsel %vm621, %v579, 0
        %v629 = vsel %vm621, %v580, 0
        %v632 = vsel %vm621, %v581, 0
        %v635 = vsel %vm621, %v582, 0
        %v638 = vsel %vm621, %v583, 0
        %v641 = vsel %vm621, %v584, 0
        %v644 = vsel %vm621, %v585, 0
        %v647 = vsel %vm621, %v586, 0
        %v650 = vsel %vm621, %v587, 0
        %v653 = vsel %vm621, %v588, 0
        %v656 = vsel %vm621, %v589, 0
        %v659 = vsel %vm621, %v590, 0
        %v662 = vsel %vm621, %v591, 0
        %v665 = vsel %vm621, %v592, 0
        %v668 = vsel %vm621, %v593, 0
        %v671 = vsel %vm621, %v594, 0
        %v674 = vsel %vm621, %v595, 0
        %v677 = vsel %vm621, %v596, 0
        %v680 = vsel %vm621, %v597, 0
        %v683 = vsel %vm621, %v598, 0
        %v686 = vsel %vm621, %v599, 0
        %v689 = vsel %vm621, %v600, 0
        %v692 = vsel %vm621, %v601, 0
        %v695 = vsel %vm621, %v602, 0
        %v698 = vsel %vm621, %v603, 0
        %v701 = vsel %vm621, %v604, 0
        %v704 = vsel %vm621, %v605, 0
        %v707 = vsel %vm621, %v606, 0
        %v710 = vsel %vm621, %v607, 0
        %v713 = vsel %vm621, %v608, 0
        %v716 = vsel %vm621, %v609, 0
        %718 = vmatprep.subr.mxu0 0.0
        %719 = vmatpush1.msra.mxu0 0.0
        %720 = vmatprep.subr.mxu0 0.0
        %721 = vmatpush1.msra.mxu0 0.0
        %722 = vmatprep.subr.mxu0 0.0
        %723 = vmatpush1.msra.mxu0 0.0
        %724 = vmatprep.subr.mxu0 0.0
        %725 = vmatpush1.msra.mxu0 0.0
        %726 = vmatprep.subr.mxu0 0.0
        %727 = vmatpush1.msra.mxu0 0.0
        %728 = vmatprep.subr.mxu0 0.0
        %729 = vmatpush1.msra.mxu0 0.0
        %730 = vmatprep.subr.mxu0 0.0
        %731 = vmatpush1.msra.mxu0 0.0
        %732 = vmatprep.subr.mxu0 0.0
        %733 = vmatpush1.msra.mxu0 0.0
        %734 = vmatprep.subr.mxu0 0.0
        %735 = vmatpush1.msra.mxu0 0.0
        %736 = vmatprep.subr.mxu0 0.0
        %737 = vmatpush1.msra.mxu0 0.0
        %738 = vmatprep.subr.mxu0 0.0
        %739 = vmatpush1.msra.mxu0 0.0
        %740 = vmatprep.subr.mxu0 0.0
        %741 = vmatpush1.msra.mxu0 0.0
        %742 = vmatprep.subr.mxu0 0.0
        %743 = vmatpush1.msra.mxu0 %v613
        %744 = vmatprep.subr.mxu0 0.0
        %745 = vmatpush1.msra.mxu0 %v612
        %746 = vmatprep.subr.mxu0 0.0
        %747 = vmatpush1.msra.mxu0 %v611
        %748 = vmatprep.subr.mxu0 0.0
        %749 = vmatpush1.msra.mxu0 %v610
        %750 = vmatprep.subr.mxu0 0.0
        %751 = vmatpush2.msra.mxu0 0.0
        %752 = vmatprep.subr.mxu0 0.0
        %753 = vmatpush2.msra.mxu0 0.0
        %754 = vmatprep.subr.mxu0 0.0
        %755 = vmatpush2.msra.mxu0 0.0
        %756 = vmatprep.subr.mxu0 0.0
        %757 = vmatpush2.msra.mxu0 0.0
        %758 = vmatprep.subr.mxu0 0.0
        %759 = vmatpush2.msra.mxu0 0.0
        %760 = vmatprep.subr.mxu0 0.0
        %761 = vmatpush2.msra.mxu0 0.0
        %762 = vmatprep.subr.mxu0 0.0
        %763 = vmatpush2.msra.mxu0 0.0
        %764 = vmatprep.subr.mxu0 0.0
        %765 = vmatpush2.msra.mxu0 0.0
        %766 = vmatprep.subr.mxu0 0.0
        %767 = vmatpush2.msra.mxu0 0.0
        %768 = vmatprep.subr.mxu0 0.0
        %769 = vmatpush2.msra.mxu0 0.0
        %770 = vmatprep.subr.mxu0 0.0
        %771 = vmatpush2.msra.mxu0 0.0
        %772 = vmatprep.subr.mxu0 0.0
        %773 = vmatpush2.msra.mxu0 0.0
        %774 = vmatprep.subr.mxu0 0.0
        %775 = vmatpush2.msra.mxu0 0.0
        %776 = vmatprep.subr.mxu0 0.0
        %777 = vmatpush2.msra.mxu0 0.0
        %778 = vmatprep.subr.mxu0 0.0
        %779 = vmatpush2.msra.mxu0 0.0
        %780 = vmatprep.subr.mxu0 0.0
        %781 = vmatpush2.msra.mxu0 0.0
        %782 = vmatprep.mubr.f32.mxu0 0.0
        %783 = vmatmul.mubr.f32.gmra.mxu0 %v623
        %v784 = vpop.f32.mrf.mxu0
        %v785 = vadd.f32 %v619, %v784
        %v786 = vpop.f32.mrf.mxu0
        %787 = vmatprep.mubr.f32.mxu0 0.0
        %788 = vmatmul.mubr.f32.gmra.mxu0 %v626
        %v789 = vpop.f32.mrf.mxu0
        %v790 = vadd.f32 %v619, %v789
        %v791 = vpop.f32.mrf.mxu0
        %792 = vmatprep.mubr.f32.mxu0 0.0
        %793 = vmatmul.mubr.f32.gmra.mxu0 %v629
        %v794 = vpop.f32.mrf.mxu0
        %v795 = vadd.f32 %v619, %v794
        %v796 = vpop.f32.mrf.mxu0
        %797 = vmatprep.mubr.f32.mxu0 0.0
        %798 = vmatmul.mubr.f32.gmra.mxu0 %v632
        %v799 = vpop.f32.mrf.mxu0
        %v800 = vadd.f32 %v619, %v799
        %v801 = vpop.f32.mrf.mxu0
        %802 = vmatprep.mubr.f32.mxu0 0.0
        %803 = vmatmul.mubr.f32.gmra.mxu0 %v635
        %v804 = vpop.f32.mrf.mxu0
        %v805 = vadd.f32 %v619, %v804
        %v806 = vpop.f32.mrf.mxu0
        %807 = vmatprep.mubr.f32.mxu0 0.0
        %808 = vmatmul.mubr.f32.gmra.mxu0 %v638
        %v809 = vpop.f32.mrf.mxu0
        %v810 = vadd.f32 %v619, %v809
        %v811 = vpop.f32.mrf.mxu0
        %812 = vmatprep.mubr.f32.mxu0 0.0
        %813 = vmatmul.mubr.f32.gmra.mxu0 %v641
        %v814 = vpop.f32.mrf.mxu0
        %v815 = vadd.f32 %v619, %v814
        %v816 = vpop.f32.mrf.mxu0
        %817 = vmatprep.mubr.f32.mxu0 0.0
        %818 = vmatmul.mubr.f32.gmra.mxu0 %v644
        %v819 = vpop.f32.mrf.mxu0
        %v820 = vadd.f32 %v619, %v819
        %v821 = vpop.f32.mrf.mxu0
        %822 = vmatprep.mubr.f32.mxu0 0.0
        %823 = vmatmul.mubr.f32.gmra.mxu0 %v647
        %v824 = vpop.f32.mrf.mxu0
        %v825 = vadd.f32 %v619, %v824
        %v826 = vpop.f32.mrf.mxu0
        %827 = vmatprep.mubr.f32.mxu0 0.0
        %828 = vmatmul.mubr.f32.gmra.mxu0 %v650
        %v829 = vpop.f32.mrf.mxu0
        %v830 = vadd.f32 %v619, %v829
        %v831 = vpop.f32.mrf.mxu0
        %832 = vmatprep.mubr.f32.mxu0 0.0
        %833 = vmatmul.mubr.f32.gmra.mxu0 %v653
        %v834 = vpop.f32.mrf.mxu0
        %v835 = vadd.f32 %v619, %v834
        %v836 = vpop.f32.mrf.mxu0
        %837 = vmatprep.mubr.f32.mxu0 0.0
        %838 = vmatmul.mubr.f32.gmra.mxu0 %v656
        %v839 = vpop.f32.mrf.mxu0
        %v840 = vadd.f32 %v619, %v839
        %v841 = vpop.f32.mrf.mxu0
        %842 = vmatprep.mubr.f32.mxu0 0.0
        %843 = vmatmul.mubr.f32.gmra.mxu0 %v659
        %v844 = vpop.f32.mrf.mxu0
        %v845 = vadd.f32 %v619, %v844
        %v846 = vpop.f32.mrf.mxu0
        %847 = vmatprep.mubr.f32.mxu0 0.0
        %848 = vmatmul.mubr.f32.gmra.mxu0 %v662
        %v849 = vpop.f32.mrf.mxu0
        %v850 = vadd.f32 %v619, %v849
        %v851 = vpop.f32.mrf.mxu0
        %852 = vmatprep.mubr.f32.mxu0 0.0
        %853 = vmatmul.mubr.f32.gmra.mxu0 %v665
        %v854 = vpop.f32.mrf.mxu0
        %v855 = vadd.f32 %v619, %v854
        %v856 = vpop.f32.mrf.mxu0
        %857 = vmatprep.mubr.f32.mxu0 0.0
        %858 = vmatmul.mubr.f32.gmra.mxu0 %v668
        %v859 = vpop.f32.mrf.mxu0
        %v860 = vadd.f32 %v619, %v859
        %v861 = vpop.f32.mrf.mxu0
        %862 = vmatprep.mubr.f32.mxu0 0.0
        %863 = vmatmul.mubr.f32.gmra.mxu0 %v671
        %v864 = vpop.f32.mrf.mxu0
        %v865 = vadd.f32 %v619, %v864
        %v866 = vpop.f32.mrf.mxu0
        %867 = vmatprep.mubr.f32.mxu0 0.0
        %868 = vmatmul.mubr.f32.gmra.mxu0 %v674
        %v869 = vpop.f32.mrf.mxu0
        %v870 = vadd.f32 %v619, %v869
        %v871 = vpop.f32.mrf.mxu0
        %872 = vmatprep.mubr.f32.mxu0 0.0
        %873 = vmatmul.mubr.f32.gmra.mxu0 %v677
        %v874 = vpop.f32.mrf.mxu0
        %v875 = vadd.f32 %v619, %v874
        %v876 = vpop.f32.mrf.mxu0
        %877 = vmatprep.mubr.f32.mxu0 0.0
        %878 = vmatmul.mubr.f32.gmra.mxu0 %v680
        %v879 = vpop.f32.mrf.mxu0
        %v880 = vadd.f32 %v619, %v879
        %v881 = vpop.f32.mrf.mxu0
        %882 = vmatprep.mubr.f32.mxu0 0.0
        %883 = vmatmul.mubr.f32.gmra.mxu0 %v683
        %v884 = vpop.f32.mrf.mxu0
        %v885 = vadd.f32 %v619, %v884
        %v886 = vpop.f32.mrf.mxu0
        %887 = vmatprep.mubr.f32.mxu0 0.0
        %888 = vmatmul.mubr.f32.gmra.mxu0 %v686
        %v889 = vpop.f32.mrf.mxu0
        %v890 = vadd.f32 %v619, %v889
        %v891 = vpop.f32.mrf.mxu0
        %892 = vmatprep.mubr.f32.mxu0 0.0
        %893 = vmatmul.mubr.f32.gmra.mxu0 %v689
        %v894 = vpop.f32.mrf.mxu0
        %v895 = vadd.f32 %v619, %v894
        %v896 = vpop.f32.mrf.mxu0
        %897 = vmatprep.mubr.f32.mxu0 0.0
        %898 = vmatmul.mubr.f32.gmra.mxu0 %v692
        %v899 = vpop.f32.mrf.mxu0
        %v900 = vadd.f32 %v619, %v899
        %v901 = vpop.f32.mrf.mxu0
        %902 = vmatprep.mubr.f32.mxu0 0.0
        %903 = vmatmul.mubr.f32.gmra.mxu0 %v695
        %v904 = vpop.f32.mrf.mxu0
        %v905 = vadd.f32 %v619, %v904
        %v906 = vpop.f32.mrf.mxu0
        %907 = vmatprep.mubr.f32.mxu0 0.0
        %908 = vmatmul.mubr.f32.gmra.mxu0 %v698
        %v909 = vpop.f32.mrf.mxu0
        %v910 = vadd.f32 %v619, %v909
        %v911 = vpop.f32.mrf.mxu0
        %912 = vmatprep.mubr.f32.mxu0 0.0
        %913 = vmatmul.mubr.f32.gmra.mxu0 %v701
        %v914 = vpop.f32.mrf.mxu0
        %v915 = vadd.f32 %v619, %v914
        %v916 = vpop.f32.mrf.mxu0
        %917 = vmatprep.mubr.f32.mxu0 0.0
        %918 = vmatmul.mubr.f32.gmra.mxu0 %v704
        %v919 = vpop.f32.mrf.mxu0
        %v920 = vadd.f32 %v619, %v919
        %v921 = vpop.f32.mrf.mxu0
        %922 = vmatprep.mubr.f32.mxu0 0.0
        %923 = vmatmul.mubr.f32.gmra.mxu0 %v707
        %v924 = vpop.f32.mrf.mxu0
        %v925 = vadd.f32 %v619, %v924
        %v926 = vpop.f32.mrf.mxu0
        %927 = vmatprep.mubr.f32.mxu0 0.0
        %928 = vmatmul.mubr.f32.gmra.mxu0 %v710
        %v929 = vpop.f32.mrf.mxu0
        %v930 = vadd.f32 %v619, %v929
        %v931 = vpop.f32.mrf.mxu0
        %932 = vmatprep.mubr.f32.mxu0 0.0
        %933 = vmatmul.mubr.f32.gmra.mxu0 %v713
        %v934 = vpop.f32.mrf.mxu0
        %v935 = vadd.f32 %v619, %v934
        %v936 = vpop.f32.mrf.mxu0
        %937 = vmatprep.mubr.f32.mxu0 0.0
        %938 = vmatmul.mubr.f32.gmra.mxu0 %v716
        %v939 = vpop.f32.mrf.mxu0
        %v940 = vadd.f32 %v619, %v939
        %v941 = vpop.f32.mrf.mxu0
        %942 = vdwg.mxu0
        %v943 = vmax.f32 %v785, 0.0
        %v944 = vmax.f32 %v790, 0.0
        %v945 = vmax.f32 %v795, 0.0
        %v946 = vmax.f32 %v800, 0.0
        %v947 = vmax.f32 %v805, 0.0
        %v948 = vmax.f32 %v810, 0.0
        %v949 = vmax.f32 %v815, 0.0
        %v950 = vmax.f32 %v820, 0.0
        %v951 = vmax.f32 %v825, 0.0
        %v952 = vmax.f32 %v830, 0.0
        %v953 = vmax.f32 %v835, 0.0
        %v954 = vmax.f32 %v840, 0.0
        %v955 = vmax.f32 %v845, 0.0
        %v956 = vmax.f32 %v850, 0.0
        %v957 = vmax.f32 %v855, 0.0
        %v958 = vmax.f32 %v860, 0.0
        %v959 = vmax.f32 %v865, 0.0
        %v960 = vmax.f32 %v870, 0.0
        %v961 = vmax.f32 %v875, 0.0
        %v962 = vmax.f32 %v880, 0.0
        %v963 = vmax.f32 %v885, 0.0
        %v964 = vmax.f32 %v890, 0.0
        %v965 = vmax.f32 %v895, 0.0
        %v966 = vmax.f32 %v900, 0.0
        %v967 = vmax.f32 %v905, 0.0
        %v968 = vmax.f32 %v910, 0.0
        %v969 = vmax.f32 %v915, 0.0
        %v970 = vmax.f32 %v920, 0.0
        %v971 = vmax.f32 %v925, 0.0
        %v972 = vmax.f32 %v930, 0.0
        %v973 = vmax.f32 %v935, 0.0
        %v974 = vmax.f32 %v940, 0.0
        %v975 = vld [vmem:[%s2] sm:$0xff]
        %v976 = vld [vmem:[%s2 + $0x8] sm:$0xff]
        %v977 = vld [vmem:[%s491] sm:$0xff]
        %v978 = vld [vmem:[%s491 + $0x8] sm:$0xff]
        %vm979 = vcmask 64512
        %v981 = vsel %vm979, %v975, 0
        %v984 = vsel %vm979, %v976, 0
        %986 = vmatprep.subr.mxu0 0.0
        %987 = vmatpush1.msra.mxu0 0.0
        %988 = vmatprep.subr.mxu0 0.0
        %989 = vmatpush1.msra.mxu0 0.0
        %990 = vmatprep.subr.mxu0 0.0
        %991 = vmatpush1.msra.mxu0 0.0
        %992 = vmatprep.subr.mxu0 0.0
        %993 = vmatpush1.msra.mxu0 0.0
        %994 = vmatprep.subr.mxu0 0.0
        %995 = vmatpush1.msra.mxu0 0.0
        %996 = vmatprep.subr.mxu0 0.0
        %997 = vmatpush1.msra.mxu0 0.0
        %998 = vmatprep.subr.mxu0 0.0
        %999 = vmatpush1.msra.mxu0 0.0
        %1000 = vmatprep.subr.mxu0 0.0
        %1001 = vmatpush1.msra.mxu0 0.0
        %1002 = vmatprep.subr.mxu0 0.0
        %1003 = vmatpush1.msra.mxu0 0.0
        %1004 = vmatprep.subr.mxu0 0.0
        %1005 = vmatpush1.msra.mxu0 0.0
        %1006 = vmatprep.subr.mxu0 0.0
        %1007 = vmatpush1.msra.mxu0 0.0
        %1008 = vmatprep.subr.mxu0 0.0
        %1009 = vmatpush1.msra.mxu0 0.0
        %1010 = vmatprep.subr.mxu0 0.0
        %1011 = vmatpush1.msra.mxu0 0.0
        %1012 = vmatprep.subr.mxu0 0.0
        %1013 = vmatpush1.msra.mxu0 0.0
        %1014 = vmatprep.subr.mxu0 0.0
        %1015 = vmatpush1.msra.mxu0 0.0
        %1016 = vmatprep.subr.mxu0 %v978
        %1017 = vmatpush1.msra.mxu0 %v977
        %1018 = vmatprep.subr.mxu0 0.0
        %1019 = vmatpush2.msra.mxu0 0.0
        %1020 = vmatprep.subr.mxu0 0.0
        %1021 = vmatpush2.msra.mxu0 0.0
        %1022 = vmatprep.subr.mxu0 0.0
        %1023 = vmatpush2.msra.mxu0 0.0
        %1024 = vmatprep.subr.mxu0 0.0
        %1025 = vmatpush2.msra.mxu0 0.0
        %1026 = vmatprep.subr.mxu0 0.0
        %1027 = vmatpush2.msra.mxu0 0.0
        %1028 = vmatprep.subr.mxu0 0.0
        %1029 = vmatpush2.msra.mxu0 0.0
        %1030 = vmatprep.subr.mxu0 0.0
        %1031 = vmatpush2.msra.mxu0 0.0
        %1032 = vmatprep.subr.mxu0 0.0
        %1033 = vmatpush2.msra.mxu0 0.0
        %1034 = vmatprep.subr.mxu0 0.0
        %1035 = vmatpush2.msra.mxu0 0.0
        %1036 = vmatprep.subr.mxu0 0.0
        %1037 = vmatpush2.msra.mxu0 0.0
        %1038 = vmatprep.subr.mxu0 0.0
        %1039 = vmatpush2.msra.mxu0 0.0
        %1040 = vmatprep.subr.mxu0 0.0
        %1041 = vmatpush2.msra.mxu0 0.0
        %1042 = vmatprep.subr.mxu0 0.0
        %1043 = vmatpush2.msra.mxu0 0.0
        %1044 = vmatprep.subr.mxu0 0.0
        %1045 = vmatpush2.msra.mxu0 0.0
        %1046 = vmatprep.subr.mxu0 0.0
        %1047 = vmatpush2.msra.mxu0 0.0
        %1048 = vmatprep.subr.mxu0 0.0
        %1049 = vmatpush2.msra.mxu0 0.0
        %1050 = vmatprep.mubr.f32.mxu0 0.0
        %1051 = vmatmul.mubr.f32.gmra.mxu0 %v981
        %v1052 = vpop.f32.mrf.mxu0
        %v1053 = vadd.f32 0.0, %v1052
        %v1054 = vpop.f32.mrf.mxu0
        %v1055 = vadd.f32 0.0, %v1054
        %1056 = vmatprep.mubr.f32.mxu0 0.0
        %1057 = vmatmul.mubr.f32.gmra.mxu0 %v984
        %v1058 = vpop.f32.mrf.mxu0
        %v1059 = vadd.f32 0.0, %v1058
        %v1060 = vpop.f32.mrf.mxu0
        %v1061 = vadd.f32 0.0, %v1060
        %1062 = vdwg.mxu0
        %1065 = vrot.lane.b32.xlu0 %v1053, 96
        %v1066 = vpop.permute.xlu0 %1065
        %1067 = vrot.lane.b32.xlu0 %v1059, 96
        %v1068 = vpop.permute.xlu0 %1067
        %1071 = vrot.lane.b32.xlu0 %v1053, 64
        %v1072 = vpop.permute.xlu0 %1071
        %1073 = vrot.lane.b32.xlu0 %v1059, 64
        %v1074 = vpop.permute.xlu0 %1073
        %1077 = vrot.lane.b32.xlu0 %v1053, 32
        %v1078 = vpop.permute.xlu0 %1077
        %1079 = vrot.lane.b32.xlu0 %v1059, 32
        %v1080 = vpop.permute.xlu0 %1079
        %1085 = vrot.lane.b32.xlu0 %v1055, 96
        %v1086 = vpop.permute.xlu0 %1085
        %1087 = vrot.lane.b32.xlu0 %v1061, 96
        %v1088 = vpop.permute.xlu0 %1087
        %1091 = vrot.lane.b32.xlu0 %v1055, 64
        %v1092 = vpop.permute.xlu0 %1091
        %1093 = vrot.lane.b32.xlu0 %v1061, 64
        %v1094 = vpop.permute.xlu0 %1093
        %1097 = vrot.lane.b32.xlu0 %v1055, 32
        %v1098 = vpop.permute.xlu0 %1097
        %1099 = vrot.lane.b32.xlu0 %v1061, 32
        %v1100 = vpop.permute.xlu0 %1099
        %v1103 = vcombine.low %v1053, %v1072
        %v1104 = vcombine.high %v1053, %v1072
        %v1106 = vunpack.c.l.s4 1983009808
        %v1107 = vunpack.c.0.s8 %v1106
        %v1108 = vlaneseq
        %v1109 = vshrl.u32 %v1108, 7
        %v1110 = vsub.s32 %v1107, %v1109
        %v1111 = vrot.slane %v1103, %v1110
        %v1113 = vunpack.c.l.s4 1983009808
        %v1114 = vunpack.c.0.s8 %v1113
        %v1115 = vlaneseq
        %v1116 = vshrl.u32 %v1115, 7
        %v1117 = vsub.s32 %v1114, %v1116
        %v1118 = vrot.slane %v1104, %v1117
        %v1119 = vcombine.low %v1066, %v1078
        %v1120 = vcombine.high %v1066, %v1078
        %v1122 = vunpack.c.l.s4 1983009808
        %v1123 = vunpack.c.0.s8 %v1122
        %v1124 = vlaneseq
        %v1125 = vshrl.u32 %v1124, 7
        %v1126 = vsub.s32 %v1123, %v1125
        %v1127 = vrot.slane %v1119, %v1126
        %v1129 = vunpack.c.l.s4 1983009808
        %v1130 = vunpack.c.0.s8 %v1129
        %v1131 = vlaneseq
        %v1132 = vshrl.u32 %v1131, 7
        %v1133 = vsub.s32 %v1130, %v1132
        %v1134 = vrot.slane %v1120, %v1133
        %v1135 = vcombine.low %v1055, %v1092
        %v1136 = vcombine.high %v1055, %v1092
        %v1138 = vunpack.c.l.s4 1983009808
        %v1139 = vunpack.c.0.s8 %v1138
        %v1140 = vlaneseq
        %v1141 = vshrl.u32 %v1140, 7
        %v1142 = vsub.s32 %v1139, %v1141
        %v1143 = vrot.slane %v1135, %v1142
        %v1145 = vunpack.c.l.s4 1983009808
        %v1146 = vunpack.c.0.s8 %v1145
        %v1147 = vlaneseq
        %v1148 = vshrl.u32 %v1147, 7
        %v1149 = vsub.s32 %v1146, %v1148
        %v1150 = vrot.slane %v1136, %v1149
        %v1151 = vcombine.low %v1086, %v1098
        %v1152 = vcombine.high %v1086, %v1098
        %v1154 = vunpack.c.l.s4 1983009808
        %v1155 = vunpack.c.0.s8 %v1154
        %v1156 = vlaneseq
        %v1157 = vshrl.u32 %v1156, 7
        %v1158 = vsub.s32 %v1155, %v1157
        %v1159 = vrot.slane %v1151, %v1158
        %v1161 = vunpack.c.l.s4 1983009808
        %v1162 = vunpack.c.0.s8 %v1161
        %v1163 = vlaneseq
        %v1164 = vshrl.u32 %v1163, 7
        %v1165 = vsub.s32 %v1162, %v1164
        %v1166 = vrot.slane %v1152, %v1165
        %v1167 = vcombine.low %v1111, %v1127
        %v1168 = vcombine.high %v1111, %v1127
        %v1170 = vunpack.c.l.s4 1934713408
        %v1171 = vunpack.c.0.s8 %v1170
        %v1172 = vlaneseq
        %v1173 = vshrl.u32 %v1172, 7
        %v1174 = vsub.s32 %v1171, %v1173
        %v1175 = vrot.slane %v1167, %v1174
        %v1177 = vunpack.c.l.s4 1934713408
        %v1178 = vunpack.c.0.s8 %v1177
        %v1179 = vlaneseq
        %v1180 = vshrl.u32 %v1179, 7
        %v1181 = vsub.s32 %v1178, %v1180
        %v1182 = vrot.slane %v1168, %v1181
        %v1183 = vcombine.low %v1118, %v1134
        %v1184 = vcombine.high %v1118, %v1134
        %v1186 = vunpack.c.l.s4 1934713408
        %v1187 = vunpack.c.0.s8 %v1186
        %v1188 = vlaneseq
        %v1189 = vshrl.u32 %v1188, 7
        %v1190 = vsub.s32 %v1187, %v1189
        %v1191 = vrot.slane %v1183, %v1190
        %v1193 = vunpack.c.l.s4 1934713408
        %v1194 = vunpack.c.0.s8 %v1193
        %v1195 = vlaneseq
        %v1196 = vshrl.u32 %v1195, 7
        %v1197 = vsub.s32 %v1194, %v1196
        %v1198 = vrot.slane %v1184, %v1197
        %v1199 = vcombine.low %v1143, %v1159
        %v1200 = vcombine.high %v1143, %v1159
        %v1202 = vunpack.c.l.s4 1934713408
        %v1203 = vunpack.c.0.s8 %v1202
        %v1204 = vlaneseq
        %v1205 = vshrl.u32 %v1204, 7
        %v1206 = vsub.s32 %v1203, %v1205
        %v1207 = vrot.slane %v1199, %v1206
        %v1209 = vunpack.c.l.s4 1934713408
        %v1210 = vunpack.c.0.s8 %v1209
        %v1211 = vlaneseq
        %v1212 = vshrl.u32 %v1211, 7
        %v1213 = vsub.s32 %v1210, %v1212
        %v1214 = vrot.slane %v1200, %v1213
        %v1215 = vcombine.low %v1150, %v1166
        %v1216 = vcombine.high %v1150, %v1166
        %v1218 = vunpack.c.l.s4 1934713408
        %v1219 = vunpack.c.0.s8 %v1218
        %v1220 = vlaneseq
        %v1221 = vshrl.u32 %v1220, 7
        %v1222 = vsub.s32 %v1219, %v1221
        %v1223 = vrot.slane %v1215, %v1222
        %v1225 = vunpack.c.l.s4 1934713408
        %v1226 = vunpack.c.0.s8 %v1225
        %v1227 = vlaneseq
        %v1228 = vshrl.u32 %v1227, 7
        %v1229 = vsub.s32 %v1226, %v1228
        %v1230 = vrot.slane %v1216, %v1229
        %v1231 = vcombine.low %v1175, %v1207
        %v1232 = vcombine.high %v1175, %v1207
        %v1233 = vcombine.low %v1182, %v1214
        %v1234 = vcombine.high %v1182, %v1214
        %v1235 = vcombine.low %v1191, %v1223
        %v1236 = vcombine.high %v1191, %v1223
        %v1237 = vcombine.low %v1198, %v1230
        %v1238 = vcombine.high %v1198, %v1230
        %v1239 = vcombine.low %v1059, %v1074
        %v1240 = vcombine.high %v1059, %v1074
        %v1242 = vunpack.c.l.s4 1983009808
        %v1243 = vunpack.c.0.s8 %v1242
        %v1244 = vlaneseq
        %v1245 = vshrl.u32 %v1244, 7
        %v1246 = vsub.s32 %v1243, %v1245
        %v1247 = vrot.slane %v1239, %v1246
        %v1249 = vunpack.c.l.s4 1983009808
        %v1250 = vunpack.c.0.s8 %v1249
        %v1251 = vlaneseq
        %v1252 = vshrl.u32 %v1251, 7
        %v1253 = vsub.s32 %v1250, %v1252
        %v1254 = vrot.slane %v1240, %v1253
        %v1255 = vcombine.low %v1068, %v1080
        %v1256 = vcombine.high %v1068, %v1080
        %v1258 = vunpack.c.l.s4 1983009808
        %v1259 = vunpack.c.0.s8 %v1258
        %v1260 = vlaneseq
        %v1261 = vshrl.u32 %v1260, 7
        %v1262 = vsub.s32 %v1259, %v1261
        %v1263 = vrot.slane %v1255, %v1262
        %v1265 = vunpack.c.l.s4 1983009808
        %v1266 = vunpack.c.0.s8 %v1265
        %v1267 = vlaneseq
        %v1268 = vshrl.u32 %v1267, 7
        %v1269 = vsub.s32 %v1266, %v1268
        %v1270 = vrot.slane %v1256, %v1269
        %v1271 = vcombine.low %v1061, %v1094
        %v1272 = vcombine.high %v1061, %v1094
        %v1274 = vunpack.c.l.s4 1983009808
        %v1275 = vunpack.c.0.s8 %v1274
        %v1276 = vlaneseq
        %v1277 = vshrl.u32 %v1276, 7
        %v1278 = vsub.s32 %v1275, %v1277
        %v1279 = vrot.slane %v1271, %v1278
        %v1281 = vunpack.c.l.s4 1983009808
        %v1282 = vunpack.c.0.s8 %v1281
        %v1283 = vlaneseq
        %v1284 = vshrl.u32 %v1283, 7
        %v1285 = vsub.s32 %v1282, %v1284
        %v1286 = vrot.slane %v1272, %v1285
        %v1287 = vcombine.low %v1088, %v1100
        %v1288 = vcombine.high %v1088, %v1100
        %v1290 = vunpack.c.l.s4 1983009808
        %v1291 = vunpack.c.0.s8 %v1290
        %v1292 = vlaneseq
        %v1293 = vshrl.u32 %v1292, 7
        %v1294 = vsub.s32 %v1291, %v1293
        %v1295 = vrot.slane %v1287, %v1294
        %v1297 = vunpack.c.l.s4 1983009808
        %v1298 = vunpack.c.0.s8 %v1297
        %v1299 = vlaneseq
        %v1300 = vshrl.u32 %v1299, 7
        %v1301 = vsub.s32 %v1298, %v1300
        %v1302 = vrot.slane %v1288, %v1301
        %v1303 = vcombine.low %v1247, %v1263
        %v1304 = vcombine.high %v1247, %v1263
        %v1306 = vunpack.c.l.s4 1934713408
        %v1307 = vunpack.c.0.s8 %v1306
        %v1308 = vlaneseq
        %v1309 = vshrl.u32 %v1308, 7
        %v1310 = vsub.s32 %v1307, %v1309
        %v1311 = vrot.slane %v1303, %v1310
        %v1313 = vunpack.c.l.s4 1934713408
        %v1314 = vunpack.c.0.s8 %v1313
        %v1315 = vlaneseq
        %v1316 = vshrl.u32 %v1315, 7
        %v1317 = vsub.s32 %v1314, %v1316
        %v1318 = vrot.slane %v1304, %v1317
        %v1319 = vcombine.low %v1254, %v1270
        %v1320 = vcombine.high %v1254, %v1270
        %v1322 = vunpack.c.l.s4 1934713408
        %v1323 = vunpack.c.0.s8 %v1322
        %v1324 = vlaneseq
        %v1325 = vshrl.u32 %v1324, 7
        %v1326 = vsub.s32 %v1323, %v1325
        %v1327 = vrot.slane %v1319, %v1326
        %v1329 = vunpack.c.l.s4 1934713408
        %v1330 = vunpack.c.0.s8 %v1329
        %v1331 = vlaneseq
        %v1332 = vshrl.u32 %v1331, 7
        %v1333 = vsub.s32 %v1330, %v1332
        %v1334 = vrot.slane %v1320, %v1333
        %v1335 = vcombine.low %v1279, %v1295
        %v1336 = vcombine.high %v1279, %v1295
        %v1338 = vunpack.c.l.s4 1934713408
        %v1339 = vunpack.c.0.s8 %v1338
        %v1340 = vlaneseq
        %v1341 = vshrl.u32 %v1340, 7
        %v1342 = vsub.s32 %v1339, %v1341
        %v1343 = vrot.slane %v1335, %v1342
        %v1345 = vunpack.c.l.s4 1934713408
        %v1346 = vunpack.c.0.s8 %v1345
        %v1347 = vlaneseq
        %v1348 = vshrl.u32 %v1347, 7
        %v1349 = vsub.s32 %v1346, %v1348
        %v1350 = vrot.slane %v1336, %v1349
        %v1351 = vcombine.low %v1286, %v1302
        %v1352 = vcombine.high %v1286, %v1302
        %v1354 = vunpack.c.l.s4 1934713408
        %v1355 = vunpack.c.0.s8 %v1354
        %v1356 = vlaneseq
        %v1357 = vshrl.u32 %v1356, 7
        %v1358 = vsub.s32 %v1355, %v1357
        %v1359 = vrot.slane %v1351, %v1358
        %v1361 = vunpack.c.l.s4 1934713408
        %v1362 = vunpack.c.0.s8 %v1361
        %v1363 = vlaneseq
        %v1364 = vshrl.u32 %v1363, 7
        %v1365 = vsub.s32 %v1362, %v1364
        %v1366 = vrot.slane %v1352, %v1365
        %v1367 = vcombine.low %v1311, %v1343
        %v1368 = vcombine.high %v1311, %v1343
        %v1369 = vcombine.low %v1318, %v1350
        %v1370 = vcombine.high %v1318, %v1350
        %v1371 = vcombine.low %v1327, %v1359
        %v1372 = vcombine.high %v1327, %v1359
        %v1373 = vcombine.low %v1334, %v1366
        %v1374 = vcombine.high %v1334, %v1366
        %v1375 = vld [vmem:[%s3] sm:$0xff]
        %v1376 = vld [vmem:[%s3 + $0x8] sm:$0xff]
        %v1378 = vsel %vm979, %v1375, 0
        %v1381 = vsel %vm979, %v1376, 0
        %1383 = vmatprep.subr.mxu0 0.0
        %1384 = vmatpush1.msra.mxu0 0.0
        %1385 = vmatprep.subr.mxu0 0.0
        %1386 = vmatpush1.msra.mxu0 0.0
        %1387 = vmatprep.subr.mxu0 0.0
        %1388 = vmatpush1.msra.mxu0 0.0
        %1389 = vmatprep.subr.mxu0 0.0
        %1390 = vmatpush1.msra.mxu0 0.0
        %1391 = vmatprep.subr.mxu0 0.0
        %1392 = vmatpush1.msra.mxu0 0.0
        %1393 = vmatprep.subr.mxu0 0.0
        %1394 = vmatpush1.msra.mxu0 0.0
        %1395 = vmatprep.subr.mxu0 0.0
        %1396 = vmatpush1.msra.mxu0 0.0
        %1397 = vmatprep.subr.mxu0 0.0
        %1398 = vmatpush1.msra.mxu0 0.0
        %1399 = vmatprep.subr.mxu0 0.0
        %1400 = vmatpush1.msra.mxu0 0.0
        %1401 = vmatprep.subr.mxu0 0.0
        %1402 = vmatpush1.msra.mxu0 0.0
        %1403 = vmatprep.subr.mxu0 0.0
        %1404 = vmatpush1.msra.mxu0 0.0
        %1405 = vmatprep.subr.mxu0 0.0
        %1406 = vmatpush1.msra.mxu0 0.0
        %1407 = vmatprep.subr.mxu0 0.0
        %1408 = vmatpush1.msra.mxu0 0.0
        %1409 = vmatprep.subr.mxu0 0.0
        %1410 = vmatpush1.msra.mxu0 0.0
        %1411 = vmatprep.subr.mxu0 0.0
        %1412 = vmatpush1.msra.mxu0 0.0
        %1413 = vmatprep.subr.mxu0 0.0
        %1414 = vmatpush1.msra.mxu0 %v1231
        %1415 = vmatprep.subr.mxu0 0.0
        %1416 = vmatpush2.msra.mxu0 0.0
        %1417 = vmatprep.subr.mxu0 0.0
        %1418 = vmatpush2.msra.mxu0 0.0
        %1419 = vmatprep.subr.mxu0 0.0
        %1420 = vmatpush2.msra.mxu0 0.0
        %1421 = vmatprep.subr.mxu0 0.0
        %1422 = vmatpush2.msra.mxu0 0.0
        %1423 = vmatprep.subr.mxu0 0.0
        %1424 = vmatpush2.msra.mxu0 0.0
        %1425 = vmatprep.subr.mxu0 0.0
        %1426 = vmatpush2.msra.mxu0 0.0
        %1427 = vmatprep.subr.mxu0 0.0
        %1428 = vmatpush2.msra.mxu0 0.0
        %1429 = vmatprep.subr.mxu0 0.0
        %1430 = vmatpush2.msra.mxu0 0.0
        %1431 = vmatprep.subr.mxu0 0.0
        %1432 = vmatpush2.msra.mxu0 0.0
        %1433 = vmatprep.subr.mxu0 0.0
        %1434 = vmatpush2.msra.mxu0 0.0
        %1435 = vmatprep.subr.mxu0 0.0
        %1436 = vmatpush2.msra.mxu0 0.0
        %1437 = vmatprep.subr.mxu0 0.0
        %1438 = vmatpush2.msra.mxu0 0.0
        %1439 = vmatprep.subr.mxu0 0.0
        %1440 = vmatpush2.msra.mxu0 0.0
        %1441 = vmatprep.subr.mxu0 0.0
        %1442 = vmatpush2.msra.mxu0 0.0
        %1443 = vmatprep.subr.mxu0 0.0
        %1444 = vmatpush2.msra.mxu0 0.0
        %1445 = vmatprep.subr.mxu0 0.0
        %1446 = vmatpush2.msra.mxu0 0.0
        %1447 = vmatprep.mubr.f32.mxu0 0.0
        %1448 = vmatmul.mubr.f32.gmra.mxu0 %v1378
        %v1449 = vpop.f32.mrf.mxu0
        %v1450 = vadd.f32 0.0, %v1449
        %v1451 = vpop.f32.mrf.mxu0
        %1452 = vmatprep.mubr.f32.mxu0 0.0
        %1453 = vmatmul.mubr.f32.gmra.mxu0 %v1381
        %v1454 = vpop.f32.mrf.mxu0
        %v1455 = vadd.f32 0.0, %v1454
        %v1456 = vpop.f32.mrf.mxu0
        %1457 = vdwg.mxu0
        %1458 = vmatprep.subr.mxu0 0.0
        %1459 = vmatpush1.msra.mxu0 0.0
        %1460 = vmatprep.subr.mxu0 0.0
        %1461 = vmatpush1.msra.mxu0 0.0
        %1462 = vmatprep.subr.mxu0 0.0
        %1463 = vmatpush1.msra.mxu0 0.0
        %1464 = vmatprep.subr.mxu0 0.0
        %1465 = vmatpush1.msra.mxu0 0.0
        %1466 = vmatprep.subr.mxu0 0.0
        %1467 = vmatpush1.msra.mxu0 0.0
        %1468 = vmatprep.subr.mxu0 0.0
        %1469 = vmatpush1.msra.mxu0 0.0
        %1470 = vmatprep.subr.mxu0 0.0
        %1471 = vmatpush1.msra.mxu0 0.0
        %1472 = vmatprep.subr.mxu0 0.0
        %1473 = vmatpush1.msra.mxu0 0.0
        %1474 = vmatprep.subr.mxu0 0.0
        %1475 = vmatpush1.msra.mxu0 0.0
        %1476 = vmatprep.subr.mxu0 0.0
        %1477 = vmatpush1.msra.mxu0 0.0
        %1478 = vmatprep.subr.mxu0 0.0
        %1479 = vmatpush1.msra.mxu0 0.0
        %1480 = vmatprep.subr.mxu0 0.0
        %1481 = vmatpush1.msra.mxu0 0.0
        %1482 = vmatprep.subr.mxu0 0.0
        %1483 = vmatpush1.msra.mxu0 0.0
        %1484 = vmatprep.subr.mxu0 0.0
        %1485 = vmatpush1.msra.mxu0 0.0
        %1486 = vmatprep.subr.mxu0 0.0
        %1487 = vmatpush1.msra.mxu0 0.0
        %1488 = vmatprep.subr.mxu0 0.0
        %1489 = vmatpush1.msra.mxu0 %v1232
        %1490 = vmatprep.subr.mxu0 0.0
        %1491 = vmatpush2.msra.mxu0 0.0
        %1492 = vmatprep.subr.mxu0 0.0
        %1493 = vmatpush2.msra.mxu0 0.0
        %1494 = vmatprep.subr.mxu0 0.0
        %1495 = vmatpush2.msra.mxu0 0.0
        %1496 = vmatprep.subr.mxu0 0.0
        %1497 = vmatpush2.msra.mxu0 0.0
        %1498 = vmatprep.subr.mxu0 0.0
        %1499 = vmatpush2.msra.mxu0 0.0
        %1500 = vmatprep.subr.mxu0 0.0
        %1501 = vmatpush2.msra.mxu0 0.0
        %1502 = vmatprep.subr.mxu0 0.0
        %1503 = vmatpush2.msra.mxu0 0.0
        %1504 = vmatprep.subr.mxu0 0.0
        %1505 = vmatpush2.msra.mxu0 0.0
        %1506 = vmatprep.subr.mxu0 0.0
        %1507 = vmatpush2.msra.mxu0 0.0
        %1508 = vmatprep.subr.mxu0 0.0
        %1509 = vmatpush2.msra.mxu0 0.0
        %1510 = vmatprep.subr.mxu0 0.0
        %1511 = vmatpush2.msra.mxu0 0.0
        %1512 = vmatprep.subr.mxu0 0.0
        %1513 = vmatpush2.msra.mxu0 0.0
        %1514 = vmatprep.subr.mxu0 0.0
        %1515 = vmatpush2.msra.mxu0 0.0
        %1516 = vmatprep.subr.mxu0 0.0
        %1517 = vmatpush2.msra.mxu0 0.0
        %1518 = vmatprep.subr.mxu0 0.0
        %1519 = vmatpush2.msra.mxu0 0.0
        %1520 = vmatprep.subr.mxu0 0.0
        %1521 = vmatpush2.msra.mxu0 0.0
        %1522 = vmatprep.mubr.f32.mxu0 0.0
        %1523 = vmatmul.mubr.f32.gmra.mxu0 %v1378
        %v1524 = vpop.f32.mrf.mxu0
        %v1525 = vadd.f32 0.0, %v1524
        %v1526 = vpop.f32.mrf.mxu0
        %1527 = vmatprep.mubr.f32.mxu0 0.0
        %1528 = vmatmul.mubr.f32.gmra.mxu0 %v1381
        %v1529 = vpop.f32.mrf.mxu0
        %v1530 = vadd.f32 0.0, %v1529
        %v1531 = vpop.f32.mrf.mxu0
        %1532 = vdwg.mxu0
        %1533 = vmatprep.subr.mxu0 0.0
        %1534 = vmatpush1.msra.mxu0 0.0
        %1535 = vmatprep.subr.mxu0 0.0
        %1536 = vmatpush1.msra.mxu0 0.0
        %1537 = vmatprep.subr.mxu0 0.0
        %1538 = vmatpush1.msra.mxu0 0.0
        %1539 = vmatprep.subr.mxu0 0.0
        %1540 = vmatpush1.msra.mxu0 0.0
        %1541 = vmatprep.subr.mxu0 0.0
        %1542 = vmatpush1.msra.mxu0 0.0
        %1543 = vmatprep.subr.mxu0 0.0
        %1544 = vmatpush1.msra.mxu0 0.0
        %1545 = vmatprep.subr.mxu0 0.0
        %1546 = vmatpush1.msra.mxu0 0.0
        %1547 = vmatprep.subr.mxu0 0.0
        %1548 = vmatpush1.msra.mxu0 0.0
        %1549 = vmatprep.subr.mxu0 0.0
        %1550 = vmatpush1.msra.mxu0 0.0
        %1551 = vmatprep.subr.mxu0 0.0
        %1552 = vmatpush1.msra.mxu0 0.0
        %1553 = vmatprep.subr.mxu0 0.0
        %1554 = vmatpush1.msra.mxu0 0.0
        %1555 = vmatprep.subr.mxu0 0.0
        %1556 = vmatpush1.msra.mxu0 0.0
        %1557 = vmatprep.subr.mxu0 0.0
        %1558 = vmatpush1.msra.mxu0 0.0
        %1559 = vmatprep.subr.mxu0 0.0
        %1560 = vmatpush1.msra.mxu0 0.0
        %1561 = vmatprep.subr.mxu0 0.0
        %1562 = vmatpush1.msra.mxu0 0.0
        %1563 = vmatprep.subr.mxu0 0.0
        %1564 = vmatpush1.msra.mxu0 %v1233
        %1565 = vmatprep.subr.mxu0 0.0
        %1566 = vmatpush2.msra.mxu0 0.0
        %1567 = vmatprep.subr.mxu0 0.0
        %1568 = vmatpush2.msra.mxu0 0.0
        %1569 = vmatprep.subr.mxu0 0.0
        %1570 = vmatpush2.msra.mxu0 0.0
        %1571 = vmatprep.subr.mxu0 0.0
        %1572 = vmatpush2.msra.mxu0 0.0
        %1573 = vmatprep.subr.mxu0 0.0
        %1574 = vmatpush2.msra.mxu0 0.0
        %1575 = vmatprep.subr.mxu0 0.0
        %1576 = vmatpush2.msra.mxu0 0.0
        %1577 = vmatprep.subr.mxu0 0.0
        %1578 = vmatpush2.msra.mxu0 0.0
        %1579 = vmatprep.subr.mxu0 0.0
        %1580 = vmatpush2.msra.mxu0 0.0
        %1581 = vmatprep.subr.mxu0 0.0
        %1582 = vmatpush2.msra.mxu0 0.0
        %1583 = vmatprep.subr.mxu0 0.0
        %1584 = vmatpush2.msra.mxu0 0.0
        %1585 = vmatprep.subr.mxu0 0.0
        %1586 = vmatpush2.msra.mxu0 0.0
        %1587 = vmatprep.subr.mxu0 0.0
        %1588 = vmatpush2.msra.mxu0 0.0
        %1589 = vmatprep.subr.mxu0 0.0
        %1590 = vmatpush2.msra.mxu0 0.0
        %1591 = vmatprep.subr.mxu0 0.0
        %1592 = vmatpush2.msra.mxu0 0.0
        %1593 = vmatprep.subr.mxu0 0.0
        %1594 = vmatpush2.msra.mxu0 0.0
        %1595 = vmatprep.subr.mxu0 0.0
        %1596 = vmatpush2.msra.mxu0 0.0
        %1597 = vmatprep.mubr.f32.mxu0 0.0
        %1598 = vmatmul.mubr.f32.gmra.mxu0 %v1378
        %v1599 = vpop.f32.mrf.mxu0
        %v1600 = vadd.f32 0.0, %v1599
        %v1601 = vpop.f32.mrf.mxu0
        %1602 = vmatprep.mubr.f32.mxu0 0.0
        %1603 = vmatmul.mubr.f32.gmra.mxu0 %v1381
        %v1604 = vpop.f32.mrf.mxu0
        %v1605 = vadd.f32 0.0, %v1604
        %v1606 = vpop.f32.mrf.mxu0
        %1607 = vdwg.mxu0
        %1608 = vmatprep.subr.mxu0 0.0
        %1609 = vmatpush1.msra.mxu0 0.0
        %1610 = vmatprep.subr.mxu0 0.0
        %1611 = vmatpush1.msra.mxu0 0.0
        %1612 = vmatprep.subr.mxu0 0.0
        %1613 = vmatpush1.msra.mxu0 0.0
        %1614 = vmatprep.subr.mxu0 0.0
        %1615 = vmatpush1.msra.mxu0 0.0
        %1616 = vmatprep.subr.mxu0 0.0
        %1617 = vmatpush1.msra.mxu0 0.0
        %1618 = vmatprep.subr.mxu0 0.0
        %1619 = vmatpush1.msra.mxu0 0.0
        %1620 = vmatprep.subr.mxu0 0.0
        %1621 = vmatpush1.msra.mxu0 0.0
        %1622 = vmatprep.subr.mxu0 0.0
        %1623 = vmatpush1.msra.mxu0 0.0
        %1624 = vmatprep.subr.mxu0 0.0
        %1625 = vmatpush1.msra.mxu0 0.0
        %1626 = vmatprep.subr.mxu0 0.0
        %1627 = vmatpush1.msra.mxu0 0.0
        %1628 = vmatprep.subr.mxu0 0.0
        %1629 = vmatpush1.msra.mxu0 0.0
        %1630 = vmatprep.subr.mxu0 0.0
        %1631 = vmatpush1.msra.mxu0 0.0
        %1632 = vmatprep.subr.mxu0 0.0
        %1633 = vmatpush1.msra.mxu0 0.0
        %1634 = vmatprep.subr.mxu0 0.0
        %1635 = vmatpush1.msra.mxu0 0.0
        %1636 = vmatprep.subr.mxu0 0.0
        %1637 = vmatpush1.msra.mxu0 0.0
        %1638 = vmatprep.subr.mxu0 0.0
        %1639 = vmatpush1.msra.mxu0 %v1234
        %1640 = vmatprep.subr.mxu0 0.0
        %1641 = vmatpush2.msra.mxu0 0.0
        %1642 = vmatprep.subr.mxu0 0.0
        %1643 = vmatpush2.msra.mxu0 0.0
        %1644 = vmatprep.subr.mxu0 0.0
        %1645 = vmatpush2.msra.mxu0 0.0
        %1646 = vmatprep.subr.mxu0 0.0
        %1647 = vmatpush2.msra.mxu0 0.0
        %1648 = vmatprep.subr.mxu0 0.0
        %1649 = vmatpush2.msra.mxu0 0.0
        %1650 = vmatprep.subr.mxu0 0.0
        %1651 = vmatpush2.msra.mxu0 0.0
        %1652 = vmatprep.subr.mxu0 0.0
        %1653 = vmatpush2.msra.mxu0 0.0
        %1654 = vmatprep.subr.mxu0 0.0
        %1655 = vmatpush2.msra.mxu0 0.0
        %1656 = vmatprep.subr.mxu0 0.0
        %1657 = vmatpush2.msra.mxu0 0.0
        %1658 = vmatprep.subr.mxu0 0.0
        %1659 = vmatpush2.msra.mxu0 0.0
        %1660 = vmatprep.subr.mxu0 0.0
        %1661 = vmatpush2.msra.mxu0 0.0
        %1662 = vmatprep.subr.mxu0 0.0
        %1663 = vmatpush2.msra.mxu0 0.0
        %1664 = vmatprep.subr.mxu0 0.0
        %1665 = vmatpush2.msra.mxu0 0.0
        %1666 = vmatprep.subr.mxu0 0.0
        %1667 = vmatpush2.msra.mxu0 0.0
        %1668 = vmatprep.subr.mxu0 0.0
        %1669 = vmatpush2.msra.mxu0 0.0
        %1670 = vmatprep.subr.mxu0 0.0
        %1671 = vmatpush2.msra.mxu0 0.0
        %1672 = vmatprep.mubr.f32.mxu0 0.0
        %1673 = vmatmul.mubr.f32.gmra.mxu0 %v1378
        %v1674 = vpop.f32.mrf.mxu0
        %v1675 = vadd.f32 0.0, %v1674
        %v1676 = vpop.f32.mrf.mxu0
        %1677 = vmatprep.mubr.f32.mxu0 0.0
        %1678 = vmatmul.mubr.f32.gmra.mxu0 %v1381
        %v1679 = vpop.f32.mrf.mxu0
        %v1680 = vadd.f32 0.0, %v1679
        %v1681 = vpop.f32.mrf.mxu0
        %1682 = vdwg.mxu0
        %1683 = vmatprep.subr.mxu0 0.0
        %1684 = vmatpush1.msra.mxu0 0.0
        %1685 = vmatprep.subr.mxu0 0.0
        %1686 = vmatpush1.msra.mxu0 0.0
        %1687 = vmatprep.subr.mxu0 0.0
        %1688 = vmatpush1.msra.mxu0 0.0
        %1689 = vmatprep.subr.mxu0 0.0
        %1690 = vmatpush1.msra.mxu0 0.0
        %1691 = vmatprep.subr.mxu0 0.0
        %1692 = vmatpush1.msra.mxu0 0.0
        %1693 = vmatprep.subr.mxu0 0.0
        %1694 = vmatpush1.msra.mxu0 0.0
        %1695 = vmatprep.subr.mxu0 0.0
        %1696 = vmatpush1.msra.mxu0 0.0
        %1697 = vmatprep.subr.mxu0 0.0
        %1698 = vmatpush1.msra.mxu0 0.0
        %1699 = vmatprep.subr.mxu0 0.0
        %1700 = vmatpush1.msra.mxu0 0.0
        %1701 = vmatprep.subr.mxu0 0.0
        %1702 = vmatpush1.msra.mxu0 0.0
        %1703 = vmatprep.subr.mxu0 0.0
        %1704 = vmatpush1.msra.mxu0 0.0
        %1705 = vmatprep.subr.mxu0 0.0
        %1706 = vmatpush1.msra.mxu0 0.0
        %1707 = vmatprep.subr.mxu0 0.0
        %1708 = vmatpush1.msra.mxu0 0.0
        %1709 = vmatprep.subr.mxu0 0.0
        %1710 = vmatpush1.msra.mxu0 0.0
        %1711 = vmatprep.subr.mxu0 0.0
        %1712 = vmatpush1.msra.mxu0 0.0
        %1713 = vmatprep.subr.mxu0 0.0
        %1714 = vmatpush1.msra.mxu0 %v1235
        %1715 = vmatprep.subr.mxu0 0.0
        %1716 = vmatpush2.msra.mxu0 0.0
        %1717 = vmatprep.subr.mxu0 0.0
        %1718 = vmatpush2.msra.mxu0 0.0
        %1719 = vmatprep.subr.mxu0 0.0
        %1720 = vmatpush2.msra.mxu0 0.0
        %1721 = vmatprep.subr.mxu0 0.0
        %1722 = vmatpush2.msra.mxu0 0.0
        %1723 = vmatprep.subr.mxu0 0.0
        %1724 = vmatpush2.msra.mxu0 0.0
        %1725 = vmatprep.subr.mxu0 0.0
        %1726 = vmatpush2.msra.mxu0 0.0
        %1727 = vmatprep.subr.mxu0 0.0
        %1728 = vmatpush2.msra.mxu0 0.0
        %1729 = vmatprep.subr.mxu0 0.0
        %1730 = vmatpush2.msra.mxu0 0.0
        %1731 = vmatprep.subr.mxu0 0.0
        %1732 = vmatpush2.msra.mxu0 0.0
        %1733 = vmatprep.subr.mxu0 0.0
        %1734 = vmatpush2.msra.mxu0 0.0
        %1735 = vmatprep.subr.mxu0 0.0
        %1736 = vmatpush2.msra.mxu0 0.0
        %1737 = vmatprep.subr.mxu0 0.0
        %1738 = vmatpush2.msra.mxu0 0.0
        %1739 = vmatprep.subr.mxu0 0.0
        %1740 = vmatpush2.msra.mxu0 0.0
        %1741 = vmatprep.subr.mxu0 0.0
        %1742 = vmatpush2.msra.mxu0 0.0
        %1743 = vmatprep.subr.mxu0 0.0
        %1744 = vmatpush2.msra.mxu0 0.0
        %1745 = vmatprep.subr.mxu0 0.0
        %1746 = vmatpush2.msra.mxu0 0.0
        %1747 = vmatprep.mubr.f32.mxu0 0.0
        %1748 = vmatmul.mubr.f32.gmra.mxu0 %v1378
        %v1749 = vpop.f32.mrf.mxu0
        %v1750 = vadd.f32 0.0, %v1749
        %v1751 = vpop.f32.mrf.mxu0
        %1752 = vmatprep.mubr.f32.mxu0 0.0
        %1753 = vmatmul.mubr.f32.gmra.mxu0 %v1381
        %v1754 = vpop.f32.mrf.mxu0
        %v1755 = vadd.f32 0.0, %v1754
        %v1756 = vpop.f32.mrf.mxu0
        %1757 = vdwg.mxu0
        %1758 = vmatprep.subr.mxu0 0.0
        %1759 = vmatpush1.msra.mxu0 0.0
        %1760 = vmatprep.subr.mxu0 0.0
        %1761 = vmatpush1.msra.mxu0 0.0
        %1762 = vmatprep.subr.mxu0 0.0
        %1763 = vmatpush1.msra.mxu0 0.0
        %1764 = vmatprep.subr.mxu0 0.0
        %1765 = vmatpush1.msra.mxu0 0.0
        %1766 = vmatprep.subr.mxu0 0.0
        %1767 = vmatpush1.msra.mxu0 0.0
        %1768 = vmatprep.subr.mxu0 0.0
        %1769 = vmatpush1.msra.mxu0 0.0
        %1770 = vmatprep.subr.mxu0 0.0
        %1771 = vmatpush1.msra.mxu0 0.0
        %1772 = vmatprep.subr.mxu0 0.0
        %1773 = vmatpush1.msra.mxu0 0.0
        %1774 = vmatprep.subr.mxu0 0.0
        %1775 = vmatpush1.msra.mxu0 0.0
        %1776 = vmatprep.subr.mxu0 0.0
        %1777 = vmatpush1.msra.mxu0 0.0
        %1778 = vmatprep.subr.mxu0 0.0
        %1779 = vmatpush1.msra.mxu0 0.0
        %1780 = vmatprep.subr.mxu0 0.0
        %1781 = vmatpush1.msra.mxu0 0.0
        %1782 = vmatprep.subr.mxu0 0.0
        %1783 = vmatpush1.msra.mxu0 0.0
        %1784 = vmatprep.subr.mxu0 0.0
        %1785 = vmatpush1.msra.mxu0 0.0
        %1786 = vmatprep.subr.mxu0 0.0
        %1787 = vmatpush1.msra.mxu0 0.0
        %1788 = vmatprep.subr.mxu0 0.0
        %1789 = vmatpush1.msra.mxu0 %v1236
        %1790 = vmatprep.subr.mxu0 0.0
        %1791 = vmatpush2.msra.mxu0 0.0
        %1792 = vmatprep.subr.mxu0 0.0
        %1793 = vmatpush2.msra.mxu0 0.0
        %1794 = vmatprep.subr.mxu0 0.0
        %1795 = vmatpush2.msra.mxu0 0.0
        %1796 = vmatprep.subr.mxu0 0.0
        %1797 = vmatpush2.msra.mxu0 0.0
        %1798 = vmatprep.subr.mxu0 0.0
        %1799 = vmatpush2.msra.mxu0 0.0
        %1800 = vmatprep.subr.mxu0 0.0
        %1801 = vmatpush2.msra.mxu0 0.0
        %1802 = vmatprep.subr.mxu0 0.0
        %1803 = vmatpush2.msra.mxu0 0.0
        %1804 = vmatprep.subr.mxu0 0.0
        %1805 = vmatpush2.msra.mxu0 0.0
        %1806 = vmatprep.subr.mxu0 0.0
        %1807 = vmatpush2.msra.mxu0 0.0
        %1808 = vmatprep.subr.mxu0 0.0
        %1809 = vmatpush2.msra.mxu0 0.0
        %1810 = vmatprep.subr.mxu0 0.0
        %1811 = vmatpush2.msra.mxu0 0.0
        %1812 = vmatprep.subr.mxu0 0.0
        %1813 = vmatpush2.msra.mxu0 0.0
        %1814 = vmatprep.subr.mxu0 0.0
        %1815 = vmatpush2.msra.mxu0 0.0
        %1816 = vmatprep.subr.mxu0 0.0
        %1817 = vmatpush2.msra.mxu0 0.0
        %1818 = vmatprep.subr.mxu0 0.0
        %1819 = vmatpush2.msra.mxu0 0.0
        %1820 = vmatprep.subr.mxu0 0.0
        %1821 = vmatpush2.msra.mxu0 0.0
        %1822 = vmatprep.mubr.f32.mxu0 0.0
        %1823 = vmatmul.mubr.f32.gmra.mxu0 %v1378
        %v1824 = vpop.f32.mrf.mxu0
        %v1825 = vadd.f32 0.0, %v1824
        %v1826 = vpop.f32.mrf.mxu0
        %1827 = vmatprep.mubr.f32.mxu0 0.0
        %1828 = vmatmul.mubr.f32.gmra.mxu0 %v1381
        %v1829 = vpop.f32.mrf.mxu0
        %v1830 = vadd.f32 0.0, %v1829
        %v1831 = vpop.f32.mrf.mxu0
        %1832 = vdwg.mxu0
        %1833 = vmatprep.subr.mxu0 0.0
        %1834 = vmatpush1.msra.mxu0 0.0
        %1835 = vmatprep.subr.mxu0 0.0
        %1836 = vmatpush1.msra.mxu0 0.0
        %1837 = vmatprep.subr.mxu0 0.0
        %1838 = vmatpush1.msra.mxu0 0.0
        %1839 = vmatprep.subr.mxu0 0.0
        %1840 = vmatpush1.msra.mxu0 0.0
        %1841 = vmatprep.subr.mxu0 0.0
        %1842 = vmatpush1.msra.mxu0 0.0
        %1843 = vmatprep.subr.mxu0 0.0
        %1844 = vmatpush1.msra.mxu0 0.0
        %1845 = vmatprep.subr.mxu0 0.0
        %1846 = vmatpush1.msra.mxu0 0.0
        %1847 = vmatprep.subr.mxu0 0.0
        %1848 = vmatpush1.msra.mxu0 0.0
        %1849 = vmatprep.subr.mxu0 0.0
        %1850 = vmatpush1.msra.mxu0 0.0
        %1851 = vmatprep.subr.mxu0 0.0
        %1852 = vmatpush1.msra.mxu0 0.0
        %1853 = vmatprep.subr.mxu0 0.0
        %1854 = vmatpush1.msra.mxu0 0.0
        %1855 = vmatprep.subr.mxu0 0.0
        %1856 = vmatpush1.msra.mxu0 0.0
        %1857 = vmatprep.subr.mxu0 0.0
        %1858 = vmatpush1.msra.mxu0 0.0
        %1859 = vmatprep.subr.mxu0 0.0
        %1860 = vmatpush1.msra.mxu0 0.0
        %1861 = vmatprep.subr.mxu0 0.0
        %1862 = vmatpush1.msra.mxu0 0.0
        %1863 = vmatprep.subr.mxu0 0.0
        %1864 = vmatpush1.msra.mxu0 %v1237
        %1865 = vmatprep.subr.mxu0 0.0
        %1866 = vmatpush2.msra.mxu0 0.0
        %1867 = vmatprep.subr.mxu0 0.0
        %1868 = vmatpush2.msra.mxu0 0.0
        %1869 = vmatprep.subr.mxu0 0.0
        %1870 = vmatpush2.msra.mxu0 0.0
        %1871 = vmatprep.subr.mxu0 0.0
        %1872 = vmatpush2.msra.mxu0 0.0
        %1873 = vmatprep.subr.mxu0 0.0
        %1874 = vmatpush2.msra.mxu0 0.0
        %1875 = vmatprep.subr.mxu0 0.0
        %1876 = vmatpush2.msra.mxu0 0.0
        %1877 = vmatprep.subr.mxu0 0.0
        %1878 = vmatpush2.msra.mxu0 0.0
        %1879 = vmatprep.subr.mxu0 0.0
        %1880 = vmatpush2.msra.mxu0 0.0
        %1881 = vmatprep.subr.mxu0 0.0
        %1882 = vmatpush2.msra.mxu0 0.0
        %1883 = vmatprep.subr.mxu0 0.0
        %1884 = vmatpush2.msra.mxu0 0.0
        %1885 = vmatprep.subr.mxu0 0.0
        %1886 = vmatpush2.msra.mxu0 0.0
        %1887 = vmatprep.subr.mxu0 0.0
        %1888 = vmatpush2.msra.mxu0 0.0
        %1889 = vmatprep.subr.mxu0 0.0
        %1890 = vmatpush2.msra.mxu0 0.0
        %1891 = vmatprep.subr.mxu0 0.0
        %1892 = vmatpush2.msra.mxu0 0.0
        %1893 = vmatprep.subr.mxu0 0.0
        %1894 = vmatpush2.msra.mxu0 0.0
        %1895 = vmatprep.subr.mxu0 0.0
        %1896 = vmatpush2.msra.mxu0 0.0
        %1897 = vmatprep.mubr.f32.mxu0 0.0
        %1898 = vmatmul.mubr.f32.gmra.mxu0 %v1378
        %v1899 = vpop.f32.mrf.mxu0
        %v1900 = vadd.f32 0.0, %v1899
        %v1901 = vpop.f32.mrf.mxu0
        %1902 = vmatprep.mubr.f32.mxu0 0.0
        %1903 = vmatmul.mubr.f32.gmra.mxu0 %v1381
        %v1904 = vpop.f32.mrf.mxu0
        %v1905 = vadd.f32 0.0, %v1904
        %v1906 = vpop.f32.mrf.mxu0
        %1907 = vdwg.mxu0
        %1908 = vmatprep.subr.mxu0 0.0
        %1909 = vmatpush1.msra.mxu0 0.0
        %1910 = vmatprep.subr.mxu0 0.0
        %1911 = vmatpush1.msra.mxu0 0.0
        %1912 = vmatprep.subr.mxu0 0.0
        %1913 = vmatpush1.msra.mxu0 0.0
        %1914 = vmatprep.subr.mxu0 0.0
        %1915 = vmatpush1.msra.mxu0 0.0
        %1916 = vmatprep.subr.mxu0 0.0
        %1917 = vmatpush1.msra.mxu0 0.0
        %1918 = vmatprep.subr.mxu0 0.0
        %1919 = vmatpush1.msra.mxu0 0.0
        %1920 = vmatprep.subr.mxu0 0.0
        %1921 = vmatpush1.msra.mxu0 0.0
        %1922 = vmatprep.subr.mxu0 0.0
        %1923 = vmatpush1.msra.mxu0 0.0
        %1924 = vmatprep.subr.mxu0 0.0
        %1925 = vmatpush1.msra.mxu0 0.0
        %1926 = vmatprep.subr.mxu0 0.0
        %1927 = vmatpush1.msra.mxu0 0.0
        %1928 = vmatprep.subr.mxu0 0.0
        %1929 = vmatpush1.msra.mxu0 0.0
        %1930 = vmatprep.subr.mxu0 0.0
        %1931 = vmatpush1.msra.mxu0 0.0
        %1932 = vmatprep.subr.mxu0 0.0
        %1933 = vmatpush1.msra.mxu0 0.0
        %1934 = vmatprep.subr.mxu0 0.0
        %1935 = vmatpush1.msra.mxu0 0.0
        %1936 = vmatprep.subr.mxu0 0.0
        %1937 = vmatpush1.msra.mxu0 0.0
        %1938 = vmatprep.subr.mxu0 0.0
        %1939 = vmatpush1.msra.mxu0 %v1238
        %1940 = vmatprep.subr.mxu0 0.0
        %1941 = vmatpush2.msra.mxu0 0.0
        %1942 = vmatprep.subr.mxu0 0.0
        %1943 = vmatpush2.msra.mxu0 0.0
        %1944 = vmatprep.subr.mxu0 0.0
        %1945 = vmatpush2.msra.mxu0 0.0
        %1946 = vmatprep.subr.mxu0 0.0
        %1947 = vmatpush2.msra.mxu0 0.0
        %1948 = vmatprep.subr.mxu0 0.0
        %1949 = vmatpush2.msra.mxu0 0.0
        %1950 = vmatprep.subr.mxu0 0.0
        %1951 = vmatpush2.msra.mxu0 0.0
        %1952 = vmatprep.subr.mxu0 0.0
        %1953 = vmatpush2.msra.mxu0 0.0
        %1954 = vmatprep.subr.mxu0 0.0
        %1955 = vmatpush2.msra.mxu0 0.0
        %1956 = vmatprep.subr.mxu0 0.0
        %1957 = vmatpush2.msra.mxu0 0.0
        %1958 = vmatprep.subr.mxu0 0.0
        %1959 = vmatpush2.msra.mxu0 0.0
        %1960 = vmatprep.subr.mxu0 0.0
        %1961 = vmatpush2.msra.mxu0 0.0
        %1962 = vmatprep.subr.mxu0 0.0
        %1963 = vmatpush2.msra.mxu0 0.0
        %1964 = vmatprep.subr.mxu0 0.0
        %1965 = vmatpush2.msra.mxu0 0.0
        %1966 = vmatprep.subr.mxu0 0.0
        %1967 = vmatpush2.msra.mxu0 0.0
        %1968 = vmatprep.subr.mxu0 0.0
        %1969 = vmatpush2.msra.mxu0 0.0
        %1970 = vmatprep.subr.mxu0 0.0
        %1971 = vmatpush2.msra.mxu0 0.0
        %1972 = vmatprep.mubr.f32.mxu0 0.0
        %1973 = vmatmul.mubr.f32.gmra.mxu0 %v1378
        %v1974 = vpop.f32.mrf.mxu0
        %v1975 = vadd.f32 0.0, %v1974
        %v1976 = vpop.f32.mrf.mxu0
        %1977 = vmatprep.mubr.f32.mxu0 0.0
        %1978 = vmatmul.mubr.f32.gmra.mxu0 %v1381
        %v1979 = vpop.f32.mrf.mxu0
        %v1980 = vadd.f32 0.0, %v1979
        %v1981 = vpop.f32.mrf.mxu0
        %1982 = vdwg.mxu0
        %1983 = vmatprep.subr.mxu0 0.0
        %1984 = vmatpush1.msra.mxu0 0.0
        %1985 = vmatprep.subr.mxu0 0.0
        %1986 = vmatpush1.msra.mxu0 0.0
        %1987 = vmatprep.subr.mxu0 0.0
        %1988 = vmatpush1.msra.mxu0 0.0
        %1989 = vmatprep.subr.mxu0 0.0
        %1990 = vmatpush1.msra.mxu0 0.0
        %1991 = vmatprep.subr.mxu0 0.0
        %1992 = vmatpush1.msra.mxu0 0.0
        %1993 = vmatprep.subr.mxu0 0.0
        %1994 = vmatpush1.msra.mxu0 0.0
        %1995 = vmatprep.subr.mxu0 0.0
        %1996 = vmatpush1.msra.mxu0 0.0
        %1997 = vmatprep.subr.mxu0 0.0
        %1998 = vmatpush1.msra.mxu0 0.0
        %1999 = vmatprep.subr.mxu0 0.0
        %2000 = vmatpush1.msra.mxu0 0.0
        %2001 = vmatprep.subr.mxu0 0.0
        %2002 = vmatpush1.msra.mxu0 0.0
        %2003 = vmatprep.subr.mxu0 0.0
        %2004 = vmatpush1.msra.mxu0 0.0
        %2005 = vmatprep.subr.mxu0 0.0
        %2006 = vmatpush1.msra.mxu0 0.0
        %2007 = vmatprep.subr.mxu0 0.0
        %2008 = vmatpush1.msra.mxu0 0.0
        %2009 = vmatprep.subr.mxu0 0.0
        %2010 = vmatpush1.msra.mxu0 0.0
        %2011 = vmatprep.subr.mxu0 0.0
        %2012 = vmatpush1.msra.mxu0 0.0
        %2013 = vmatprep.subr.mxu0 0.0
        %2014 = vmatpush1.msra.mxu0 %v1367
        %2015 = vmatprep.subr.mxu0 0.0
        %2016 = vmatpush2.msra.mxu0 0.0
        %2017 = vmatprep.subr.mxu0 0.0
        %2018 = vmatpush2.msra.mxu0 0.0
        %2019 = vmatprep.subr.mxu0 0.0
        %2020 = vmatpush2.msra.mxu0 0.0
        %2021 = vmatprep.subr.mxu0 0.0
        %2022 = vmatpush2.msra.mxu0 0.0
        %2023 = vmatprep.subr.mxu0 0.0
        %2024 = vmatpush2.msra.mxu0 0.0
        %2025 = vmatprep.subr.mxu0 0.0
        %2026 = vmatpush2.msra.mxu0 0.0
        %2027 = vmatprep.subr.mxu0 0.0
        %2028 = vmatpush2.msra.mxu0 0.0
        %2029 = vmatprep.subr.mxu0 0.0
        %2030 = vmatpush2.msra.mxu0 0.0
        %2031 = vmatprep.subr.mxu0 0.0
        %2032 = vmatpush2.msra.mxu0 0.0
        %2033 = vmatprep.subr.mxu0 0.0
        %2034 = vmatpush2.msra.mxu0 0.0
        %2035 = vmatprep.subr.mxu0 0.0
        %2036 = vmatpush2.msra.mxu0 0.0
        %2037 = vmatprep.subr.mxu0 0.0
        %2038 = vmatpush2.msra.mxu0 0.0
        %2039 = vmatprep.subr.mxu0 0.0
        %2040 = vmatpush2.msra.mxu0 0.0
        %2041 = vmatprep.subr.mxu0 0.0
        %2042 = vmatpush2.msra.mxu0 0.0
        %2043 = vmatprep.subr.mxu0 0.0
        %2044 = vmatpush2.msra.mxu0 0.0
        %2045 = vmatprep.subr.mxu0 0.0
        %2046 = vmatpush2.msra.mxu0 0.0
        %2047 = vmatprep.mubr.f32.mxu0 0.0
        %2048 = vmatmul.mubr.f32.gmra.mxu0 %v1378
        %v2049 = vpop.f32.mrf.mxu0
        %v2050 = vadd.f32 0.0, %v2049
        %v2051 = vpop.f32.mrf.mxu0
        %2052 = vmatprep.mubr.f32.mxu0 0.0
        %2053 = vmatmul.mubr.f32.gmra.mxu0 %v1381
        %v2054 = vpop.f32.mrf.mxu0
        %v2055 = vadd.f32 0.0, %v2054
        %v2056 = vpop.f32.mrf.mxu0
        %2057 = vdwg.mxu0
        %2058 = vmatprep.subr.mxu0 0.0
        %2059 = vmatpush1.msra.mxu0 0.0
        %2060 = vmatprep.subr.mxu0 0.0
        %2061 = vmatpush1.msra.mxu0 0.0
        %2062 = vmatprep.subr.mxu0 0.0
        %2063 = vmatpush1.msra.mxu0 0.0
        %2064 = vmatprep.subr.mxu0 0.0
        %2065 = vmatpush1.msra.mxu0 0.0
        %2066 = vmatprep.subr.mxu0 0.0
        %2067 = vmatpush1.msra.mxu0 0.0
        %2068 = vmatprep.subr.mxu0 0.0
        %2069 = vmatpush1.msra.mxu0 0.0
        %2070 = vmatprep.subr.mxu0 0.0
        %2071 = vmatpush1.msra.mxu0 0.0
        %2072 = vmatprep.subr.mxu0 0.0
        %2073 = vmatpush1.msra.mxu0 0.0
        %2074 = vmatprep.subr.mxu0 0.0
        %2075 = vmatpush1.msra.mxu0 0.0
        %2076 = vmatprep.subr.mxu0 0.0
        %2077 = vmatpush1.msra.mxu0 0.0
        %2078 = vmatprep.subr.mxu0 0.0
        %2079 = vmatpush1.msra.mxu0 0.0
        %2080 = vmatprep.subr.mxu0 0.0
        %2081 = vmatpush1.msra.mxu0 0.0
        %2082 = vmatprep.subr.mxu0 0.0
        %2083 = vmatpush1.msra.mxu0 0.0
        %2084 = vmatprep.subr.mxu0 0.0
        %2085 = vmatpush1.msra.mxu0 0.0
        %2086 = vmatprep.subr.mxu0 0.0
        %2087 = vmatpush1.msra.mxu0 0.0
        %2088 = vmatprep.subr.mxu0 0.0
        %2089 = vmatpush1.msra.mxu0 %v1368
        %2090 = vmatprep.subr.mxu0 0.0
        %2091 = vmatpush2.msra.mxu0 0.0
        %2092 = vmatprep.subr.mxu0 0.0
        %2093 = vmatpush2.msra.mxu0 0.0
        %2094 = vmatprep.subr.mxu0 0.0
        %2095 = vmatpush2.msra.mxu0 0.0
        %2096 = vmatprep.subr.mxu0 0.0
        %2097 = vmatpush2.msra.mxu0 0.0
        %2098 = vmatprep.subr.mxu0 0.0
        %2099 = vmatpush2.msra.mxu0 0.0
        %2100 = vmatprep.subr.mxu0 0.0
        %2101 = vmatpush2.msra.mxu0 0.0
        %2102 = vmatprep.subr.mxu0 0.0
        %2103 = vmatpush2.msra.mxu0 0.0
        %2104 = vmatprep.subr.mxu0 0.0
        %2105 = vmatpush2.msra.mxu0 0.0
        %2106 = vmatprep.subr.mxu0 0.0
        %2107 = vmatpush2.msra.mxu0 0.0
        %2108 = vmatprep.subr.mxu0 0.0
        %2109 = vmatpush2.msra.mxu0 0.0
        %2110 = vmatprep.subr.mxu0 0.0
        %2111 = vmatpush2.msra.mxu0 0.0
        %2112 = vmatprep.subr.mxu0 0.0
        %2113 = vmatpush2.msra.mxu0 0.0
        %2114 = vmatprep.subr.mxu0 0.0
        %2115 = vmatpush2.msra.mxu0 0.0
        %2116 = vmatprep.subr.mxu0 0.0
        %2117 = vmatpush2.msra.mxu0 0.0
        %2118 = vmatprep.subr.mxu0 0.0
        %2119 = vmatpush2.msra.mxu0 0.0
        %2120 = vmatprep.subr.mxu0 0.0
        %2121 = vmatpush2.msra.mxu0 0.0
        %2122 = vmatprep.mubr.f32.mxu0 0.0
        %2123 = vmatmul.mubr.f32.gmra.mxu0 %v1378
        %v2124 = vpop.f32.mrf.mxu0
        %v2125 = vadd.f32 0.0, %v2124
        %v2126 = vpop.f32.mrf.mxu0
        %2127 = vmatprep.mubr.f32.mxu0 0.0
        %2128 = vmatmul.mubr.f32.gmra.mxu0 %v1381
        %v2129 = vpop.f32.mrf.mxu0
        %v2130 = vadd.f32 0.0, %v2129
        %v2131 = vpop.f32.mrf.mxu0
        %2132 = vdwg.mxu0
        %2133 = vmatprep.subr.mxu0 0.0
        %2134 = vmatpush1.msra.mxu0 0.0
        %2135 = vmatprep.subr.mxu0 0.0
        %2136 = vmatpush1.msra.mxu0 0.0
        %2137 = vmatprep.subr.mxu0 0.0
        %2138 = vmatpush1.msra.mxu0 0.0
        %2139 = vmatprep.subr.mxu0 0.0
        %2140 = vmatpush1.msra.mxu0 0.0
        %2141 = vmatprep.subr.mxu0 0.0
        %2142 = vmatpush1.msra.mxu0 0.0
        %2143 = vmatprep.subr.mxu0 0.0
        %2144 = vmatpush1.msra.mxu0 0.0
        %2145 = vmatprep.subr.mxu0 0.0
        %2146 = vmatpush1.msra.mxu0 0.0
        %2147 = vmatprep.subr.mxu0 0.0
        %2148 = vmatpush1.msra.mxu0 0.0
        %2149 = vmatprep.subr.mxu0 0.0
        %2150 = vmatpush1.msra.mxu0 0.0
        %2151 = vmatprep.subr.mxu0 0.0
        %2152 = vmatpush1.msra.mxu0 0.0
        %2153 = vmatprep.subr.mxu0 0.0
        %2154 = vmatpush1.msra.mxu0 0.0
        %2155 = vmatprep.subr.mxu0 0.0
        %2156 = vmatpush1.msra.mxu0 0.0
        %2157 = vmatprep.subr.mxu0 0.0
        %2158 = vmatpush1.msra.mxu0 0.0
        %2159 = vmatprep.subr.mxu0 0.0
        %2160 = vmatpush1.msra.mxu0 0.0
        %2161 = vmatprep.subr.mxu0 0.0
        %2162 = vmatpush1.msra.mxu0 0.0
        %2163 = vmatprep.subr.mxu0 0.0
        %2164 = vmatpush1.msra.mxu0 %v1369
        %2165 = vmatprep.subr.mxu0 0.0
        %2166 = vmatpush2.msra.mxu0 0.0
        %2167 = vmatprep.subr.mxu0 0.0
        %2168 = vmatpush2.msra.mxu0 0.0
        %2169 = vmatprep.subr.mxu0 0.0
        %2170 = vmatpush2.msra.mxu0 0.0
        %2171 = vmatprep.subr.mxu0 0.0
        %2172 = vmatpush2.msra.mxu0 0.0
        %2173 = vmatprep.subr.mxu0 0.0
        %2174 = vmatpush2.msra.mxu0 0.0
        %2175 = vmatprep.subr.mxu0 0.0
        %2176 = vmatpush2.msra.mxu0 0.0
        %2177 = vmatprep.subr.mxu0 0.0
        %2178 = vmatpush2.msra.mxu0 0.0
        %2179 = vmatprep.subr.mxu0 0.0
        %2180 = vmatpush2.msra.mxu0 0.0
        %2181 = vmatprep.subr.mxu0 0.0
        %2182 = vmatpush2.msra.mxu0 0.0
        %2183 = vmatprep.subr.mxu0 0.0
        %2184 = vmatpush2.msra.mxu0 0.0
        %2185 = vmatprep.subr.mxu0 0.0
        %2186 = vmatpush2.msra.mxu0 0.0
        %2187 = vmatprep.subr.mxu0 0.0
        %2188 = vmatpush2.msra.mxu0 0.0
        %2189 = vmatprep.subr.mxu0 0.0
        %2190 = vmatpush2.msra.mxu0 0.0
        %2191 = vmatprep.subr.mxu0 0.0
        %2192 = vmatpush2.msra.mxu0 0.0
        %2193 = vmatprep.subr.mxu0 0.0
        %2194 = vmatpush2.msra.mxu0 0.0
        %2195 = vmatprep.subr.mxu0 0.0
        %2196 = vmatpush2.msra.mxu0 0.0
        %2197 = vmatprep.mubr.f32.mxu0 0.0
        %2198 = vmatmul.mubr.f32.gmra.mxu0 %v1378
        %v2199 = vpop.f32.mrf.mxu0
        %v2200 = vadd.f32 0.0, %v2199
        %v2201 = vpop.f32.mrf.mxu0
        %2202 = vmatprep.mubr.f32.mxu0 0.0
        %2203 = vmatmul.mubr.f32.gmra.mxu0 %v1381
        %v2204 = vpop.f32.mrf.mxu0
        %v2205 = vadd.f32 0.0, %v2204
        %v2206 = vpop.f32.mrf.mxu0
        %2207 = vdwg.mxu0
        %2208 = vmatprep.subr.mxu0 0.0
        %2209 = vmatpush1.msra.mxu0 0.0
        %2210 = vmatprep.subr.mxu0 0.0
        %2211 = vmatpush1.msra.mxu0 0.0
        %2212 = vmatprep.subr.mxu0 0.0
        %2213 = vmatpush1.msra.mxu0 0.0
        %2214 = vmatprep.subr.mxu0 0.0
        %2215 = vmatpush1.msra.mxu0 0.0
        %2216 = vmatprep.subr.mxu0 0.0
        %2217 = vmatpush1.msra.mxu0 0.0
        %2218 = vmatprep.subr.mxu0 0.0
        %2219 = vmatpush1.msra.mxu0 0.0
        %2220 = vmatprep.subr.mxu0 0.0
        %2221 = vmatpush1.msra.mxu0 0.0
        %2222 = vmatprep.subr.mxu0 0.0
        %2223 = vmatpush1.msra.mxu0 0.0
        %2224 = vmatprep.subr.mxu0 0.0
        %2225 = vmatpush1.msra.mxu0 0.0
        %2226 = vmatprep.subr.mxu0 0.0
        %2227 = vmatpush1.msra.mxu0 0.0
        %2228 = vmatprep.subr.mxu0 0.0
        %2229 = vmatpush1.msra.mxu0 0.0
        %2230 = vmatprep.subr.mxu0 0.0
        %2231 = vmatpush1.msra.mxu0 0.0
        %2232 = vmatprep.subr.mxu0 0.0
        %2233 = vmatpush1.msra.mxu0 0.0
        %2234 = vmatprep.subr.mxu0 0.0
        %2235 = vmatpush1.msra.mxu0 0.0
        %2236 = vmatprep.subr.mxu0 0.0
        %2237 = vmatpush1.msra.mxu0 0.0
        %2238 = vmatprep.subr.mxu0 0.0
        %2239 = vmatpush1.msra.mxu0 %v1370
        %2240 = vmatprep.subr.mxu0 0.0
        %2241 = vmatpush2.msra.mxu0 0.0
        %2242 = vmatprep.subr.mxu0 0.0
        %2243 = vmatpush2.msra.mxu0 0.0
        %2244 = vmatprep.subr.mxu0 0.0
        %2245 = vmatpush2.msra.mxu0 0.0
        %2246 = vmatprep.subr.mxu0 0.0
        %2247 = vmatpush2.msra.mxu0 0.0
        %2248 = vmatprep.subr.mxu0 0.0
        %2249 = vmatpush2.msra.mxu0 0.0
        %2250 = vmatprep.subr.mxu0 0.0
        %2251 = vmatpush2.msra.mxu0 0.0
        %2252 = vmatprep.subr.mxu0 0.0
        %2253 = vmatpush2.msra.mxu0 0.0
        %2254 = vmatprep.subr.mxu0 0.0
        %2255 = vmatpush2.msra.mxu0 0.0
        %2256 = vmatprep.subr.mxu0 0.0
        %2257 = vmatpush2.msra.mxu0 0.0
        %2258 = vmatprep.subr.mxu0 0.0
        %2259 = vmatpush2.msra.mxu0 0.0
        %2260 = vmatprep.subr.mxu0 0.0
        %2261 = vmatpush2.msra.mxu0 0.0
        %2262 = vmatprep.subr.mxu0 0.0
        %2263 = vmatpush2.msra.mxu0 0.0
        %2264 = vmatprep.subr.mxu0 0.0
        %2265 = vmatpush2.msra.mxu0 0.0
        %2266 = vmatprep.subr.mxu0 0.0
        %2267 = vmatpush2.msra.mxu0 0.0
        %2268 = vmatprep.subr.mxu0 0.0
        %2269 = vmatpush2.msra.mxu0 0.0
        %2270 = vmatprep.subr.mxu0 0.0
        %2271 = vmatpush2.msra.mxu0 0.0
        %2272 = vmatprep.mubr.f32.mxu0 0.0
        %2273 = vmatmul.mubr.f32.gmra.mxu0 %v1378
        %v2274 = vpop.f32.mrf.mxu0
        %v2275 = vadd.f32 0.0, %v2274
        %v2276 = vpop.f32.mrf.mxu0
        %2277 = vmatprep.mubr.f32.mxu0 0.0
        %2278 = vmatmul.mubr.f32.gmra.mxu0 %v1381
        %v2279 = vpop.f32.mrf.mxu0
        %v2280 = vadd.f32 0.0, %v2279
        %v2281 = vpop.f32.mrf.mxu0
        %2282 = vdwg.mxu0
        %2283 = vmatprep.subr.mxu0 0.0
        %2284 = vmatpush1.msra.mxu0 0.0
        %2285 = vmatprep.subr.mxu0 0.0
        %2286 = vmatpush1.msra.mxu0 0.0
        %2287 = vmatprep.subr.mxu0 0.0
        %2288 = vmatpush1.msra.mxu0 0.0
        %2289 = vmatprep.subr.mxu0 0.0
        %2290 = vmatpush1.msra.mxu0 0.0
        %2291 = vmatprep.subr.mxu0 0.0
        %2292 = vmatpush1.msra.mxu0 0.0
        %2293 = vmatprep.subr.mxu0 0.0
        %2294 = vmatpush1.msra.mxu0 0.0
        %2295 = vmatprep.subr.mxu0 0.0
        %2296 = vmatpush1.msra.mxu0 0.0
        %2297 = vmatprep.subr.mxu0 0.0
        %2298 = vmatpush1.msra.mxu0 0.0
        %2299 = vmatprep.subr.mxu0 0.0
        %2300 = vmatpush1.msra.mxu0 0.0
        %2301 = vmatprep.subr.mxu0 0.0
        %2302 = vmatpush1.msra.mxu0 0.0
        %2303 = vmatprep.subr.mxu0 0.0
        %2304 = vmatpush1.msra.mxu0 0.0
        %2305 = vmatprep.subr.mxu0 0.0
        %2306 = vmatpush1.msra.mxu0 0.0
        %2307 = vmatprep.subr.mxu0 0.0
        %2308 = vmatpush1.msra.mxu0 0.0
        %2309 = vmatprep.subr.mxu0 0.0
        %2310 = vmatpush1.msra.mxu0 0.0
        %2311 = vmatprep.subr.mxu0 0.0
        %2312 = vmatpush1.msra.mxu0 0.0
        %2313 = vmatprep.subr.mxu0 0.0
        %2314 = vmatpush1.msra.mxu0 %v1371
        %2315 = vmatprep.subr.mxu0 0.0
        %2316 = vmatpush2.msra.mxu0 0.0
        %2317 = vmatprep.subr.mxu0 0.0
        %2318 = vmatpush2.msra.mxu0 0.0
        %2319 = vmatprep.subr.mxu0 0.0
        %2320 = vmatpush2.msra.mxu0 0.0
        %2321 = vmatprep.subr.mxu0 0.0
        %2322 = vmatpush2.msra.mxu0 0.0
        %2323 = vmatprep.subr.mxu0 0.0
        %2324 = vmatpush2.msra.mxu0 0.0
        %2325 = vmatprep.subr.mxu0 0.0
        %2326 = vmatpush2.msra.mxu0 0.0
        %2327 = vmatprep.subr.mxu0 0.0
        %2328 = vmatpush2.msra.mxu0 0.0
        %2329 = vmatprep.subr.mxu0 0.0
        %2330 = vmatpush2.msra.mxu0 0.0
        %2331 = vmatprep.subr.mxu0 0.0
        %2332 = vmatpush2.msra.mxu0 0.0
        %2333 = vmatprep.subr.mxu0 0.0
        %2334 = vmatpush2.msra.mxu0 0.0
        %2335 = vmatprep.subr.mxu0 0.0
        %2336 = vmatpush2.msra.mxu0 0.0
        %2337 = vmatprep.subr.mxu0 0.0
        %2338 = vmatpush2.msra.mxu0 0.0
        %2339 = vmatprep.subr.mxu0 0.0
        %2340 = vmatpush2.msra.mxu0 0.0
        %2341 = vmatprep.subr.mxu0 0.0
        %2342 = vmatpush2.msra.mxu0 0.0
        %2343 = vmatprep.subr.mxu0 0.0
        %2344 = vmatpush2.msra.mxu0 0.0
        %2345 = vmatprep.subr.mxu0 0.0
        %2346 = vmatpush2.msra.mxu0 0.0
        %2347 = vmatprep.mubr.f32.mxu0 0.0
        %2348 = vmatmul.mubr.f32.gmra.mxu0 %v1378
        %v2349 = vpop.f32.mrf.mxu0
        %v2350 = vadd.f32 0.0, %v2349
        %v2351 = vpop.f32.mrf.mxu0
        %2352 = vmatprep.mubr.f32.mxu0 0.0
        %2353 = vmatmul.mubr.f32.gmra.mxu0 %v1381
        %v2354 = vpop.f32.mrf.mxu0
        %v2355 = vadd.f32 0.0, %v2354
        %v2356 = vpop.f32.mrf.mxu0
        %2357 = vdwg.mxu0
        %2358 = vmatprep.subr.mxu0 0.0
        %2359 = vmatpush1.msra.mxu0 0.0
        %2360 = vmatprep.subr.mxu0 0.0
        %2361 = vmatpush1.msra.mxu0 0.0
        %2362 = vmatprep.subr.mxu0 0.0
        %2363 = vmatpush1.msra.mxu0 0.0
        %2364 = vmatprep.subr.mxu0 0.0
        %2365 = vmatpush1.msra.mxu0 0.0
        %2366 = vmatprep.subr.mxu0 0.0
        %2367 = vmatpush1.msra.mxu0 0.0
        %2368 = vmatprep.subr.mxu0 0.0
        %2369 = vmatpush1.msra.mxu0 0.0
        %2370 = vmatprep.subr.mxu0 0.0
        %2371 = vmatpush1.msra.mxu0 0.0
        %2372 = vmatprep.subr.mxu0 0.0
        %2373 = vmatpush1.msra.mxu0 0.0
        %2374 = vmatprep.subr.mxu0 0.0
        %2375 = vmatpush1.msra.mxu0 0.0
        %2376 = vmatprep.subr.mxu0 0.0
        %2377 = vmatpush1.msra.mxu0 0.0
        %2378 = vmatprep.subr.mxu0 0.0
        %2379 = vmatpush1.msra.mxu0 0.0
        %2380 = vmatprep.subr.mxu0 0.0
        %2381 = vmatpush1.msra.mxu0 0.0
        %2382 = vmatprep.subr.mxu0 0.0
        %2383 = vmatpush1.msra.mxu0 0.0
        %2384 = vmatprep.subr.mxu0 0.0
        %2385 = vmatpush1.msra.mxu0 0.0
        %2386 = vmatprep.subr.mxu0 0.0
        %2387 = vmatpush1.msra.mxu0 0.0
        %2388 = vmatprep.subr.mxu0 0.0
        %2389 = vmatpush1.msra.mxu0 %v1372
        %2390 = vmatprep.subr.mxu0 0.0
        %2391 = vmatpush2.msra.mxu0 0.0
        %2392 = vmatprep.subr.mxu0 0.0
        %2393 = vmatpush2.msra.mxu0 0.0
        %2394 = vmatprep.subr.mxu0 0.0
        %2395 = vmatpush2.msra.mxu0 0.0
        %2396 = vmatprep.subr.mxu0 0.0
        %2397 = vmatpush2.msra.mxu0 0.0
        %2398 = vmatprep.subr.mxu0 0.0
        %2399 = vmatpush2.msra.mxu0 0.0
        %2400 = vmatprep.subr.mxu0 0.0
        %2401 = vmatpush2.msra.mxu0 0.0
        %2402 = vmatprep.subr.mxu0 0.0
        %2403 = vmatpush2.msra.mxu0 0.0
        %2404 = vmatprep.subr.mxu0 0.0
        %2405 = vmatpush2.msra.mxu0 0.0
        %2406 = vmatprep.subr.mxu0 0.0
        %2407 = vmatpush2.msra.mxu0 0.0
        %2408 = vmatprep.subr.mxu0 0.0
        %2409 = vmatpush2.msra.mxu0 0.0
        %2410 = vmatprep.subr.mxu0 0.0
        %2411 = vmatpush2.msra.mxu0 0.0
        %2412 = vmatprep.subr.mxu0 0.0
        %2413 = vmatpush2.msra.mxu0 0.0
        %2414 = vmatprep.subr.mxu0 0.0
        %2415 = vmatpush2.msra.mxu0 0.0
        %2416 = vmatprep.subr.mxu0 0.0
        %2417 = vmatpush2.msra.mxu0 0.0
        %2418 = vmatprep.subr.mxu0 0.0
        %2419 = vmatpush2.msra.mxu0 0.0
        %2420 = vmatprep.subr.mxu0 0.0
        %2421 = vmatpush2.msra.mxu0 0.0
        %2422 = vmatprep.mubr.f32.mxu0 0.0
        %2423 = vmatmul.mubr.f32.gmra.mxu0 %v1378
        %v2424 = vpop.f32.mrf.mxu0
        %v2425 = vadd.f32 0.0, %v2424
        %v2426 = vpop.f32.mrf.mxu0
        %2427 = vmatprep.mubr.f32.mxu0 0.0
        %2428 = vmatmul.mubr.f32.gmra.mxu0 %v1381
        %v2429 = vpop.f32.mrf.mxu0
        %v2430 = vadd.f32 0.0, %v2429
        %v2431 = vpop.f32.mrf.mxu0
        %2432 = vdwg.mxu0
        %2433 = vmatprep.subr.mxu0 0.0
        %2434 = vmatpush1.msra.mxu0 0.0
        %2435 = vmatprep.subr.mxu0 0.0
        %2436 = vmatpush1.msra.mxu0 0.0
        %2437 = vmatprep.subr.mxu0 0.0
        %2438 = vmatpush1.msra.mxu0 0.0
        %2439 = vmatprep.subr.mxu0 0.0
        %2440 = vmatpush1.msra.mxu0 0.0
        %2441 = vmatprep.subr.mxu0 0.0
        %2442 = vmatpush1.msra.mxu0 0.0
        %2443 = vmatprep.subr.mxu0 0.0
        %2444 = vmatpush1.msra.mxu0 0.0
        %2445 = vmatprep.subr.mxu0 0.0
        %2446 = vmatpush1.msra.mxu0 0.0
        %2447 = vmatprep.subr.mxu0 0.0
        %2448 = vmatpush1.msra.mxu0 0.0
        %2449 = vmatprep.subr.mxu0 0.0
        %2450 = vmatpush1.msra.mxu0 0.0
        %2451 = vmatprep.subr.mxu0 0.0
        %2452 = vmatpush1.msra.mxu0 0.0
        %2453 = vmatprep.subr.mxu0 0.0
        %2454 = vmatpush1.msra.mxu0 0.0
        %2455 = vmatprep.subr.mxu0 0.0
        %2456 = vmatpush1.msra.mxu0 0.0
        %2457 = vmatprep.subr.mxu0 0.0
        %2458 = vmatpush1.msra.mxu0 0.0
        %2459 = vmatprep.subr.mxu0 0.0
        %2460 = vmatpush1.msra.mxu0 0.0
        %2461 = vmatprep.subr.mxu0 0.0
        %2462 = vmatpush1.msra.mxu0 0.0
        %2463 = vmatprep.subr.mxu0 0.0
        %2464 = vmatpush1.msra.mxu0 %v1373
        %2465 = vmatprep.subr.mxu0 0.0
        %2466 = vmatpush2.msra.mxu0 0.0
        %2467 = vmatprep.subr.mxu0 0.0
        %2468 = vmatpush2.msra.mxu0 0.0
        %2469 = vmatprep.subr.mxu0 0.0
        %2470 = vmatpush2.msra.mxu0 0.0
        %2471 = vmatprep.subr.mxu0 0.0
        %2472 = vmatpush2.msra.mxu0 0.0
        %2473 = vmatprep.subr.mxu0 0.0
        %2474 = vmatpush2.msra.mxu0 0.0
        %2475 = vmatprep.subr.mxu0 0.0
        %2476 = vmatpush2.msra.mxu0 0.0
        %2477 = vmatprep.subr.mxu0 0.0
        %2478 = vmatpush2.msra.mxu0 0.0
        %2479 = vmatprep.subr.mxu0 0.0
        %2480 = vmatpush2.msra.mxu0 0.0
        %2481 = vmatprep.subr.mxu0 0.0
        %2482 = vmatpush2.msra.mxu0 0.0
        %2483 = vmatprep.subr.mxu0 0.0
        %2484 = vmatpush2.msra.mxu0 0.0
        %2485 = vmatprep.subr.mxu0 0.0
        %2486 = vmatpush2.msra.mxu0 0.0
        %2487 = vmatprep.subr.mxu0 0.0
        %2488 = vmatpush2.msra.mxu0 0.0
        %2489 = vmatprep.subr.mxu0 0.0
        %2490 = vmatpush2.msra.mxu0 0.0
        %2491 = vmatprep.subr.mxu0 0.0
        %2492 = vmatpush2.msra.mxu0 0.0
        %2493 = vmatprep.subr.mxu0 0.0
        %2494 = vmatpush2.msra.mxu0 0.0
        %2495 = vmatprep.subr.mxu0 0.0
        %2496 = vmatpush2.msra.mxu0 0.0
        %2497 = vmatprep.mubr.f32.mxu0 0.0
        %2498 = vmatmul.mubr.f32.gmra.mxu0 %v1378
        %v2499 = vpop.f32.mrf.mxu0
        %v2500 = vadd.f32 0.0, %v2499
        %v2501 = vpop.f32.mrf.mxu0
        %2502 = vmatprep.mubr.f32.mxu0 0.0
        %2503 = vmatmul.mubr.f32.gmra.mxu0 %v1381
        %v2504 = vpop.f32.mrf.mxu0
        %v2505 = vadd.f32 0.0, %v2504
        %v2506 = vpop.f32.mrf.mxu0
        %2507 = vdwg.mxu0
        %2508 = vmatprep.subr.mxu0 0.0
        %2509 = vmatpush1.msra.mxu0 0.0
        %2510 = vmatprep.subr.mxu0 0.0
        %2511 = vmatpush1.msra.mxu0 0.0
        %2512 = vmatprep.subr.mxu0 0.0
        %2513 = vmatpush1.msra.mxu0 0.0
        %2514 = vmatprep.subr.mxu0 0.0
        %2515 = vmatpush1.msra.mxu0 0.0
        %2516 = vmatprep.subr.mxu0 0.0
        %2517 = vmatpush1.msra.mxu0 0.0
        %2518 = vmatprep.subr.mxu0 0.0
        %2519 = vmatpush1.msra.mxu0 0.0
        %2520 = vmatprep.subr.mxu0 0.0
        %2521 = vmatpush1.msra.mxu0 0.0
        %2522 = vmatprep.subr.mxu0 0.0
        %2523 = vmatpush1.msra.mxu0 0.0
        %2524 = vmatprep.subr.mxu0 0.0
        %2525 = vmatpush1.msra.mxu0 0.0
        %2526 = vmatprep.subr.mxu0 0.0
        %2527 = vmatpush1.msra.mxu0 0.0
        %2528 = vmatprep.subr.mxu0 0.0
        %2529 = vmatpush1.msra.mxu0 0.0
        %2530 = vmatprep.subr.mxu0 0.0
        %2531 = vmatpush1.msra.mxu0 0.0
        %2532 = vmatprep.subr.mxu0 0.0
        %2533 = vmatpush1.msra.mxu0 0.0
        %2534 = vmatprep.subr.mxu0 0.0
        %2535 = vmatpush1.msra.mxu0 0.0
        %2536 = vmatprep.subr.mxu0 0.0
        %2537 = vmatpush1.msra.mxu0 0.0
        %2538 = vmatprep.subr.mxu0 0.0
        %2539 = vmatpush1.msra.mxu0 %v1374
        %2540 = vmatprep.subr.mxu0 0.0
        %2541 = vmatpush2.msra.mxu0 0.0
        %2542 = vmatprep.subr.mxu0 0.0
        %2543 = vmatpush2.msra.mxu0 0.0
        %2544 = vmatprep.subr.mxu0 0.0
        %2545 = vmatpush2.msra.mxu0 0.0
        %2546 = vmatprep.subr.mxu0 0.0
        %2547 = vmatpush2.msra.mxu0 0.0
        %2548 = vmatprep.subr.mxu0 0.0
        %2549 = vmatpush2.msra.mxu0 0.0
        %2550 = vmatprep.subr.mxu0 0.0
        %2551 = vmatpush2.msra.mxu0 0.0
        %2552 = vmatprep.subr.mxu0 0.0
        %2553 = vmatpush2.msra.mxu0 0.0
        %2554 = vmatprep.subr.mxu0 0.0
        %2555 = vmatpush2.msra.mxu0 0.0
        %2556 = vmatprep.subr.mxu0 0.0
        %2557 = vmatpush2.msra.mxu0 0.0
        %2558 = vmatprep.subr.mxu0 0.0
        %2559 = vmatpush2.msra.mxu0 0.0
        %2560 = vmatprep.subr.mxu0 0.0
        %2561 = vmatpush2.msra.mxu0 0.0
        %2562 = vmatprep.subr.mxu0 0.0
        %2563 = vmatpush2.msra.mxu0 0.0
        %2564 = vmatprep.subr.mxu0 0.0
        %2565 = vmatpush2.msra.mxu0 0.0
        %2566 = vmatprep.subr.mxu0 0.0
        %2567 = vmatpush2.msra.mxu0 0.0
        %2568 = vmatprep.subr.mxu0 0.0
        %2569 = vmatpush2.msra.mxu0 0.0
        %2570 = vmatprep.subr.mxu0 0.0
        %2571 = vmatpush2.msra.mxu0 0.0
        %2572 = vmatprep.mubr.f32.mxu0 0.0
        %2573 = vmatmul.mubr.f32.gmra.mxu0 %v1378
        %v2574 = vpop.f32.mrf.mxu0
        %v2575 = vadd.f32 0.0, %v2574
        %v2576 = vpop.f32.mrf.mxu0
        %2577 = vmatprep.mubr.f32.mxu0 0.0
        %2578 = vmatmul.mubr.f32.gmra.mxu0 %v1381
        %v2579 = vpop.f32.mrf.mxu0
        %v2580 = vadd.f32 0.0, %v2579
        %v2581 = vpop.f32.mrf.mxu0
        %2582 = vdwg.mxu0
        %2583 = vst [vmem:[#allocation2] sm:$0xff] 0.0
        %2584 = vst [vmem:[#allocation2 + $0x8] sm:$0xff] 0.0
        %2585 = vst [vmem:[#allocation2 + $0x10] sm:$0x3] 0.0
        %s2586 = scalar_lea.vmem [#allocation2], 408
        %2587 = vst [vmem:[%s2586] sm:$0xff] 0.0
        %2588 = vst [vmem:[%s2586 + $0x8] sm:$0xff] 0.0
        %2589 = vst [vmem:[%s2586 + $0x10] sm:$0x3] 0.0
        %2590 = vst [vmem:[#allocation2] sm:$0x1] 0.0
        %2591 = vst [vmem:[#allocation2 + $0x18] sm:$0x1] 0.0
        %2592 = vst [vmem:[#allocation2 + $0x30] sm:$0x1] 0.0
        %2593 = vst [vmem:[#allocation2 + $0x48] sm:$0x1] 0.0
        %2594 = vst [vmem:[#allocation2 + $0x60] sm:$0x1] 0.0
        %2595 = vst [vmem:[#allocation2 + $0x78] sm:$0x1] 0.0
        %2596 = vst [vmem:[#allocation2 + $0x90] sm:$0x1] 0.0
        %2597 = vst [vmem:[#allocation2 + $0xa8] sm:$0x1] 0.0
        %2598 = vst [vmem:[#allocation2 + $0xc0] sm:$0x1] 0.0
        %2599 = vst [vmem:[#allocation2 + $0xd8] sm:$0x1] 0.0
        %2600 = vst [vmem:[#allocation2 + $0xf0] sm:$0x1] 0.0
        %2601 = vst [vmem:[#allocation2 + $0x108] sm:$0x1] 0.0
        %2602 = vst [vmem:[#allocation2 + $0x120] sm:$0x1] 0.0
        %2603 = vst [vmem:[#allocation2 + $0x138] sm:$0x1] 0.0
        %2604 = vst [vmem:[#allocation2 + $0x150] sm:$0x1] 0.0
        %2605 = vst [vmem:[#allocation2 + $0x168] sm:$0x1] 0.0
        %2606 = vst [vmem:[#allocation2 + $0x180] sm:$0x1] 0.0
        %2607 = vst [vmem:[#allocation2 + $0x198] sm:$0x1] 0.0
        %2608 = vst [vmem:[#allocation2 + $0x11] sm:$0x1] 0.0
        %2609 = vst [vmem:[#allocation2 + $0x29] sm:$0x1] 0.0
        %2610 = vst [vmem:[#allocation2 + $0x41] sm:$0x1] 0.0
        %2611 = vst [vmem:[#allocation2 + $0x59] sm:$0x1] 0.0
        %2612 = vst [vmem:[#allocation2 + $0x71] sm:$0x1] 0.0
        %2613 = vst [vmem:[#allocation2 + $0x89] sm:$0x1] 0.0
        %2614 = vst [vmem:[#allocation2 + $0xa1] sm:$0x1] 0.0
        %2615 = vst [vmem:[#allocation2 + $0xb9] sm:$0x1] 0.0
        %2616 = vst [vmem:[#allocation2 + $0xd1] sm:$0x1] 0.0
        %2617 = vst [vmem:[#allocation2 + $0xe9] sm:$0x1] 0.0
        %2618 = vst [vmem:[#allocation2 + $0x101] sm:$0x1] 0.0
        %2619 = vst [vmem:[#allocation2 + $0x119] sm:$0x1] 0.0
        %2620 = vst [vmem:[#allocation2 + $0x131] sm:$0x1] 0.0
        %2621 = vst [vmem:[#allocation2 + $0x149] sm:$0x1] 0.0
        %2622 = vst [vmem:[#allocation2 + $0x161] sm:$0x1] 0.0
        %2623 = vst [vmem:[#allocation2 + $0x179] sm:$0x1] 0.0
        %2624 = vst [vmem:[#allocation2 + $0x191] sm:$0x1] 0.0
        %2625 = vst [vmem:[#allocation2 + $0x1a9] sm:$0x1] 0.0
        %s2626 = scalar_lea.vmem [#allocation2], 24
        %2627 = vst.msk [vmem:[%s2626 + $0x1] sm:$0xff] %vm621, %v1450
        %2628 = vst.msk [vmem:[%s2626 + $0x9] sm:$0xff] %vm621, %v1455
        %2629 = vst.msk [vmem:[%s2626 + $0x19] sm:$0xff] %vm621, %v1525
        %2630 = vst.msk [vmem:[%s2626 + $0x21] sm:$0xff] %vm621, %v1530
        %2631 = vst.msk [vmem:[%s2626 + $0x31] sm:$0xff] %vm621, %v1600
        %2632 = vst.msk [vmem:[%s2626 + $0x39] sm:$0xff] %vm621, %v1605
        %2633 = vst.msk [vmem:[%s2626 + $0x49] sm:$0xff] %vm621, %v1675
        %2634 = vst.msk [vmem:[%s2626 + $0x51] sm:$0xff] %vm621, %v1680
        %2635 = vst.msk [vmem:[%s2626 + $0x61] sm:$0xff] %vm621, %v1750
        %2636 = vst.msk [vmem:[%s2626 + $0x69] sm:$0xff] %vm621, %v1755
        %2637 = vst.msk [vmem:[%s2626 + $0x79] sm:$0xff] %vm621, %v1825
        %2638 = vst.msk [vmem:[%s2626 + $0x81] sm:$0xff] %vm621, %v1830
        %2639 = vst.msk [vmem:[%s2626 + $0x91] sm:$0xff] %vm621, %v1900
        %2640 = vst.msk [vmem:[%s2626 + $0x99] sm:$0xff] %vm621, %v1905
        %2641 = vst.msk [vmem:[%s2626 + $0xa9] sm:$0xff] %vm621, %v1975
        %2642 = vst.msk [vmem:[%s2626 + $0xb1] sm:$0xff] %vm621, %v1980
        %2643 = vst.msk [vmem:[%s2626 + $0xc1] sm:$0xff] %vm621, %v2050
        %2644 = vst.msk [vmem:[%s2626 + $0xc9] sm:$0xff] %vm621, %v2055
        %2645 = vst.msk [vmem:[%s2626 + $0xd9] sm:$0xff] %vm621, %v2125
        %2646 = vst.msk [vmem:[%s2626 + $0xe1] sm:$0xff] %vm621, %v2130
        %2647 = vst.msk [vmem:[%s2626 + $0xf1] sm:$0xff] %vm621, %v2200
        %2648 = vst.msk [vmem:[%s2626 + $0xf9] sm:$0xff] %vm621, %v2205
        %2649 = vst.msk [vmem:[%s2626 + $0x109] sm:$0xff] %vm621, %v2275
        %2650 = vst.msk [vmem:[%s2626 + $0x111] sm:$0xff] %vm621, %v2280
        %2651 = vst.msk [vmem:[%s2626 + $0x121] sm:$0xff] %vm621, %v2350
        %2652 = vst.msk [vmem:[%s2626 + $0x129] sm:$0xff] %vm621, %v2355
        %2653 = vst.msk [vmem:[%s2626 + $0x139] sm:$0xff] %vm621, %v2425
        %2654 = vst.msk [vmem:[%s2626 + $0x141] sm:$0xff] %vm621, %v2430
        %2655 = vst.msk [vmem:[%s2626 + $0x151] sm:$0xff] %vm621, %v2500
        %2656 = vst.msk [vmem:[%s2626 + $0x159] sm:$0xff] %vm621, %v2505
        %2657 = vst.msk [vmem:[%s2626 + $0x169] sm:$0xff] %vm621, %v2575
        %2658 = vst.msk [vmem:[%s2626 + $0x171] sm:$0xff] %vm621, %v2580
        %2691 = vrot.lane.b32.xlu0 %v943, 32
        %v2692 = vpop.permute.xlu0 %2691
        %2693 = vrot.lane.b32.xlu0 %v944, 32
        %v2694 = vpop.permute.xlu0 %2693
        %2695 = vrot.lane.b32.xlu0 %v945, 32
        %v2696 = vpop.permute.xlu0 %2695
        %2697 = vrot.lane.b32.xlu0 %v946, 32
        %v2698 = vpop.permute.xlu0 %2697
        %2699 = vrot.lane.b32.xlu0 %v947, 32
        %v2700 = vpop.permute.xlu0 %2699
        %2701 = vrot.lane.b32.xlu0 %v948, 32
        %v2702 = vpop.permute.xlu0 %2701
        %2703 = vrot.lane.b32.xlu0 %v949, 32
        %v2704 = vpop.permute.xlu0 %2703
        %2705 = vrot.lane.b32.xlu0 %v950, 32
        %v2706 = vpop.permute.xlu0 %2705
        %2707 = vrot.lane.b32.xlu0 %v951, 32
        %v2708 = vpop.permute.xlu0 %2707
        %2709 = vrot.lane.b32.xlu0 %v952, 32
        %v2710 = vpop.permute.xlu0 %2709
        %2711 = vrot.lane.b32.xlu0 %v953, 32
        %v2712 = vpop.permute.xlu0 %2711
        %2713 = vrot.lane.b32.xlu0 %v954, 32
        %v2714 = vpop.permute.xlu0 %2713
        %2715 = vrot.lane.b32.xlu0 %v955, 32
        %v2716 = vpop.permute.xlu0 %2715
        %2717 = vrot.lane.b32.xlu0 %v956, 32
        %v2718 = vpop.permute.xlu0 %2717
        %2719 = vrot.lane.b32.xlu0 %v957, 32
        %v2720 = vpop.permute.xlu0 %2719
        %2721 = vrot.lane.b32.xlu0 %v958, 32
        %v2722 = vpop.permute.xlu0 %2721
        %2723 = vrot.lane.b32.xlu0 %v959, 32
        %v2724 = vpop.permute.xlu0 %2723
        %2725 = vrot.lane.b32.xlu0 %v960, 32
        %v2726 = vpop.permute.xlu0 %2725
        %2727 = vrot.lane.b32.xlu0 %v961, 32
        %v2728 = vpop.permute.xlu0 %2727
        %2729 = vrot.lane.b32.xlu0 %v962, 32
        %v2730 = vpop.permute.xlu0 %2729
        %2731 = vrot.lane.b32.xlu0 %v963, 32
        %v2732 = vpop.permute.xlu0 %2731
        %2733 = vrot.lane.b32.xlu0 %v964, 32
        %v2734 = vpop.permute.xlu0 %2733
        %2735 = vrot.lane.b32.xlu0 %v965, 32
        %v2736 = vpop.permute.xlu0 %2735
        %2737 = vrot.lane.b32.xlu0 %v966, 32
        %v2738 = vpop.permute.xlu0 %2737
        %2739 = vrot.lane.b32.xlu0 %v967, 32
        %v2740 = vpop.permute.xlu0 %2739
        %2741 = vrot.lane.b32.xlu0 %v968, 32
        %v2742 = vpop.permute.xlu0 %2741
        %2743 = vrot.lane.b32.xlu0 %v969, 32
        %v2744 = vpop.permute.xlu0 %2743
        %2745 = vrot.lane.b32.xlu0 %v970, 32
        %v2746 = vpop.permute.xlu0 %2745
        %2747 = vrot.lane.b32.xlu0 %v971, 32
        %v2748 = vpop.permute.xlu0 %2747
        %2749 = vrot.lane.b32.xlu0 %v972, 32
        %v2750 = vpop.permute.xlu0 %2749
        %2751 = vrot.lane.b32.xlu0 %v973, 32
        %v2752 = vpop.permute.xlu0 %2751
        %2753 = vrot.lane.b32.xlu0 %v974, 32
        %v2754 = vpop.permute.xlu0 %2753
        %vm2787 = vcmask 654592
        %2788 = vst.msk [vmem:[%s2626 + $0x1] sm:$0xff] %vm2787, %v2692
        %2789 = vst.msk [vmem:[%s2626 + $0x9] sm:$0xff] %vm2787, %v2694
        %2790 = vst.msk [vmem:[%s2626 + $0x19] sm:$0xff] %vm2787, %v2696
        %2791 = vst.msk [vmem:[%s2626 + $0x21] sm:$0xff] %vm2787, %v2698
        %2792 = vst.msk [vmem:[%s2626 + $0x31] sm:$0xff] %vm2787, %v2700
        %2793 = vst.msk [vmem:[%s2626 + $0x39] sm:$0xff] %vm2787, %v2702
        %2794 = vst.msk [vmem:[%s2626 + $0x49] sm:$0xff] %vm2787, %v2704
        %2795 = vst.msk [vmem:[%s2626 + $0x51] sm:$0xff] %vm2787, %v2706
        %2796 = vst.msk [vmem:[%s2626 + $0x61] sm:$0xff] %vm2787, %v2708
        %2797 = vst.msk [vmem:[%s2626 + $0x69] sm:$0xff] %vm2787, %v2710
        %2798 = vst.msk [vmem:[%s2626 + $0x79] sm:$0xff] %vm2787, %v2712
        %2799 = vst.msk [vmem:[%s2626 + $0x81] sm:$0xff] %vm2787, %v2714
        %2800 = vst.msk [vmem:[%s2626 + $0x91] sm:$0xff] %vm2787, %v2716
        %2801 = vst.msk [vmem:[%s2626 + $0x99] sm:$0xff] %vm2787, %v2718
        %2802 = vst.msk [vmem:[%s2626 + $0xa9] sm:$0xff] %vm2787, %v2720
        %2803 = vst.msk [vmem:[%s2626 + $0xb1] sm:$0xff] %vm2787, %v2722
        %2804 = vst.msk [vmem:[%s2626 + $0xc1] sm:$0xff] %vm2787, %v2724
        %2805 = vst.msk [vmem:[%s2626 + $0xc9] sm:$0xff] %vm2787, %v2726
        %2806 = vst.msk [vmem:[%s2626 + $0xd9] sm:$0xff] %vm2787, %v2728
        %2807 = vst.msk [vmem:[%s2626 + $0xe1] sm:$0xff] %vm2787, %v2730
        %2808 = vst.msk [vmem:[%s2626 + $0xf1] sm:$0xff] %vm2787, %v2732
        %2809 = vst.msk [vmem:[%s2626 + $0xf9] sm:$0xff] %vm2787, %v2734
        %2810 = vst.msk [vmem:[%s2626 + $0x109] sm:$0xff] %vm2787, %v2736
        %2811 = vst.msk [vmem:[%s2626 + $0x111] sm:$0xff] %vm2787, %v2738
        %2812 = vst.msk [vmem:[%s2626 + $0x121] sm:$0xff] %vm2787, %v2740
        %2813 = vst.msk [vmem:[%s2626 + $0x129] sm:$0xff] %vm2787, %v2742
        %2814 = vst.msk [vmem:[%s2626 + $0x139] sm:$0xff] %vm2787, %v2744
        %2815 = vst.msk [vmem:[%s2626 + $0x141] sm:$0xff] %vm2787, %v2746
        %2816 = vst.msk [vmem:[%s2626 + $0x151] sm:$0xff] %vm2787, %v2748
        %2817 = vst.msk [vmem:[%s2626 + $0x159] sm:$0xff] %vm2787, %v2750
        %2818 = vst.msk [vmem:[%s2626 + $0x169] sm:$0xff] %vm2787, %v2752
        %2819 = vst.msk [vmem:[%s2626 + $0x171] sm:$0xff] %vm2787, %v2754
        %vm2820 = vcmask 1048192
        %2821 = vst.msk [vmem:[%s2626 + $0x1] sm:$0xff] %vm2820, 0.0
        %2822 = vst.msk [vmem:[%s2626 + $0x9] sm:$0xff] %vm2820, 0.0
        %2823 = vst.msk [vmem:[%s2626 + $0x19] sm:$0xff] %vm2820, 0.0
        %2824 = vst.msk [vmem:[%s2626 + $0x21] sm:$0xff] %vm2820, 0.0
        %2825 = vst.msk [vmem:[%s2626 + $0x31] sm:$0xff] %vm2820, 0.0
        %2826 = vst.msk [vmem:[%s2626 + $0x39] sm:$0xff] %vm2820, 0.0
        %2827 = vst.msk [vmem:[%s2626 + $0x49] sm:$0xff] %vm2820, 0.0
        %2828 = vst.msk [vmem:[%s2626 + $0x51] sm:$0xff] %vm2820, 0.0
        %2829 = vst.msk [vmem:[%s2626 + $0x61] sm:$0xff] %vm2820, 0.0
        %2830 = vst.msk [vmem:[%s2626 + $0x69] sm:$0xff] %vm2820, 0.0
        %2831 = vst.msk [vmem:[%s2626 + $0x79] sm:$0xff] %vm2820, 0.0
        %2832 = vst.msk [vmem:[%s2626 + $0x81] sm:$0xff] %vm2820, 0.0
        %2833 = vst.msk [vmem:[%s2626 + $0x91] sm:$0xff] %vm2820, 0.0
        %2834 = vst.msk [vmem:[%s2626 + $0x99] sm:$0xff] %vm2820, 0.0
        %2835 = vst.msk [vmem:[%s2626 + $0xa9] sm:$0xff] %vm2820, 0.0
        %2836 = vst.msk [vmem:[%s2626 + $0xb1] sm:$0xff] %vm2820, 0.0
        %2837 = vst.msk [vmem:[%s2626 + $0xc1] sm:$0xff] %vm2820, 0.0
        %2838 = vst.msk [vmem:[%s2626 + $0xc9] sm:$0xff] %vm2820, 0.0
        %2839 = vst.msk [vmem:[%s2626 + $0xd9] sm:$0xff] %vm2820, 0.0
        %2840 = vst.msk [vmem:[%s2626 + $0xe1] sm:$0xff] %vm2820, 0.0
        %2841 = vst.msk [vmem:[%s2626 + $0xf1] sm:$0xff] %vm2820, 0.0
        %2842 = vst.msk [vmem:[%s2626 + $0xf9] sm:$0xff] %vm2820, 0.0
        %2843 = vst.msk [vmem:[%s2626 + $0x109] sm:$0xff] %vm2820, 0.0
        %2844 = vst.msk [vmem:[%s2626 + $0x111] sm:$0xff] %vm2820, 0.0
        %2845 = vst.msk [vmem:[%s2626 + $0x121] sm:$0xff] %vm2820, 0.0
        %2846 = vst.msk [vmem:[%s2626 + $0x129] sm:$0xff] %vm2820, 0.0
        %2847 = vst.msk [vmem:[%s2626 + $0x139] sm:$0xff] %vm2820, 0.0
        %2848 = vst.msk [vmem:[%s2626 + $0x141] sm:$0xff] %vm2820, 0.0
        %2849 = vst.msk [vmem:[%s2626 + $0x151] sm:$0xff] %vm2820, 0.0
        %2850 = vst.msk [vmem:[%s2626 + $0x159] sm:$0xff] %vm2820, 0.0
        %2851 = vst.msk [vmem:[%s2626 + $0x169] sm:$0xff] %vm2820, 0.0
        %2852 = vst.msk [vmem:[%s2626 + $0x171] sm:$0xff] %vm2820, 0.0
        %v2853 = vld [vmem:[#allocation2] sm:$0xff]
        %v2854 = vld [vmem:[#allocation2 + $0x8] sm:$0xff]
        %v2855 = vld [vmem:[#allocation2 + $0x18] sm:$0xff]
        %v2856 = vld [vmem:[#allocation2 + $0x20] sm:$0xff]
        %v2857 = vld [vmem:[#allocation2 + $0x30] sm:$0xff]
        %v2858 = vld [vmem:[#allocation2 + $0x38] sm:$0xff]
        %v2859 = vld [vmem:[#allocation2 + $0x48] sm:$0xff]
        %v2860 = vld [vmem:[#allocation2 + $0x50] sm:$0xff]
        %v2861 = vld [vmem:[#allocation2 + $0x60] sm:$0xff]
        %v2862 = vld [vmem:[#allocation2 + $0x68] sm:$0xff]
        %v2863 = vld [vmem:[#allocation2 + $0x78] sm:$0xff]
        %v2864 = vld [vmem:[#allocation2 + $0x80] sm:$0xff]
        %v2865 = vld [vmem:[#allocation2 + $0x90] sm:$0xff]
        %v2866 = vld [vmem:[#allocation2 + $0x98] sm:$0xff]
        %v2867 = vld [vmem:[#allocation2 + $0xa8] sm:$0xff]
        %v2868 = vld [vmem:[#allocation2 + $0xb0] sm:$0xff]
        %v2869 = vld [vmem:[#allocation2 + $0xc0] sm:$0xff]
        %v2870 = vld [vmem:[#allocation2 + $0xc8] sm:$0xff]
        %v2871 = vld [vmem:[#allocation2 + $0xd8] sm:$0xff]
        %v2872 = vld [vmem:[#allocation2 + $0xe0] sm:$0xff]
        %v2873 = vld [vmem:[#allocation2 + $0xf0] sm:$0xff]
        %v2874 = vld [vmem:[#allocation2 + $0xf8] sm:$0xff]
        %v2875 = vld [vmem:[#allocation2 + $0x108] sm:$0xff]
        %v2876 = vld [vmem:[#allocation2 + $0x110] sm:$0xff]
        %v2877 = vld [vmem:[#allocation2 + $0x120] sm:$0xff]
        %v2878 = vld [vmem:[#allocation2 + $0x128] sm:$0xff]
        %v2879 = vld [vmem:[#allocation2 + $0x138] sm:$0xff]
        %v2880 = vld [vmem:[#allocation2 + $0x140] sm:$0xff]
        %v2881 = vld [vmem:[#allocation2 + $0x150] sm:$0xff]
        %v2882 = vld [vmem:[#allocation2 + $0x158] sm:$0xff]
        %v2883 = vld [vmem:[#allocation2 + $0x168] sm:$0xff]
        %v2884 = vld [vmem:[#allocation2 + $0x170] sm:$0xff]
        %v2885 = vld [vmem:[#allocation2 + $0x180] sm:$0xff]
        %v2886 = vld [vmem:[#allocation2 + $0x188] sm:$0xff]
        %v2887 = vld [vmem:[#allocation2 + $0x198] sm:$0xff]
        %v2888 = vld [vmem:[#allocation2 + $0x1a0] sm:$0xff]
        %v2889 = vld [vmem:[#allocation2 + $0x1] sm:$0xff]
        %v2890 = vld [vmem:[#allocation2 + $0x9] sm:$0xff]
        %v2891 = vld [vmem:[#allocation2 + $0x19] sm:$0xff]
        %v2892 = vld [vmem:[#allocation2 + $0x21] sm:$0xff]
        %v2893 = vld [vmem:[#allocation2 + $0x31] sm:$0xff]
        %v2894 = vld [vmem:[#allocation2 + $0x39] sm:$0xff]
        %v2895 = vld [vmem:[#allocation2 + $0x49] sm:$0xff]
        %v2896 = vld [vmem:[#allocation2 + $0x51] sm:$0xff]
        %v2897 = vld [vmem:[#allocation2 + $0x61] sm:$0xff]
        %v2898 = vld [vmem:[#allocation2 + $0x69] sm:$0xff]
        %v2899 = vld [vmem:[#allocation2 + $0x79] sm:$0xff]
        %v2900 = vld [vmem:[#allocation2 + $0x81] sm:$0xff]
        %v2901 = vld [vmem:[#allocation2 + $0x91] sm:$0xff]
        %v2902 = vld [vmem:[#allocation2 + $0x99] sm:$0xff]
        %v2903 = vld [vmem:[#allocation2 + $0xa9] sm:$0xff]
        %v2904 = vld [vmem:[#allocation2 + $0xb1] sm:$0xff]
        %v2905 = vld [vmem:[#allocation2 + $0xc1] sm:$0xff]
        %v2906 = vld [vmem:[#allocation2 + $0xc9] sm:$0xff]
        %v2907 = vld [vmem:[#allocation2 + $0xd9] sm:$0xff]
        %v2908 = vld [vmem:[#allocation2 + $0xe1] sm:$0xff]
        %v2909 = vld [vmem:[#allocation2 + $0xf1] sm:$0xff]
        %v2910 = vld [vmem:[#allocation2 + $0xf9] sm:$0xff]
        %v2911 = vld [vmem:[#allocation2 + $0x109] sm:$0xff]
        %v2912 = vld [vmem:[#allocation2 + $0x111] sm:$0xff]
        %v2913 = vld [vmem:[#allocation2 + $0x121] sm:$0xff]
        %v2914 = vld [vmem:[#allocation2 + $0x129] sm:$0xff]
        %v2915 = vld [vmem:[#allocation2 + $0x139] sm:$0xff]
        %v2916 = vld [vmem:[#allocation2 + $0x141] sm:$0xff]
        %v2917 = vld [vmem:[#allocation2 + $0x151] sm:$0xff]
        %v2918 = vld [vmem:[#allocation2 + $0x159] sm:$0xff]
        %v2919 = vld [vmem:[#allocation2 + $0x169] sm:$0xff]
        %v2920 = vld [vmem:[#allocation2 + $0x171] sm:$0xff]
        %v2921 = vld [vmem:[#allocation2 + $0x181] sm:$0xff]
        %v2922 = vld [vmem:[#allocation2 + $0x189] sm:$0xff]
        %v2923 = vld [vmem:[#allocation2 + $0x199] sm:$0xff]
        %v2924 = vld [vmem:[#allocation2 + $0x1a1] sm:$0xff]
        %v2925 = vld [vmem:[#allocation2 + $0x2] sm:$0xff]
        %v2926 = vld [vmem:[#allocation2 + $0xa] sm:$0xff]
        %v2927 = vld [vmem:[#allocation2 + $0x1a] sm:$0xff]
        %v2928 = vld [vmem:[#allocation2 + $0x22] sm:$0xff]
        %v2929 = vld [vmem:[#allocation2 + $0x32] sm:$0xff]
        %v2930 = vld [vmem:[#allocation2 + $0x3a] sm:$0xff]
        %v2931 = vld [vmem:[#allocation2 + $0x4a] sm:$0xff]
        %v2932 = vld [vmem:[#allocation2 + $0x52] sm:$0xff]
        %v2933 = vld [vmem:[#allocation2 + $0x62] sm:$0xff]
        %v2934 = vld [vmem:[#allocation2 + $0x6a] sm:$0xff]
        %v2935 = vld [vmem:[#allocation2 + $0x7a] sm:$0xff]
        %v2936 = vld [vmem:[#allocation2 + $0x82] sm:$0xff]
        %v2937 = vld [vmem:[#allocation2 + $0x92] sm:$0xff]
        %v2938 = vld [vmem:[#allocation2 + $0x9a] sm:$0xff]
        %v2939 = vld [vmem:[#allocation2 + $0xaa] sm:$0xff]
        %v2940 = vld [vmem:[#allocation2 + $0xb2] sm:$0xff]
        %v2941 = vld [vmem:[#allocation2 + $0xc2] sm:$0xff]
        %v2942 = vld [vmem:[#allocation2 + $0xca] sm:$0xff]
        %v2943 = vld [vmem:[#allocation2 + $0xda] sm:$0xff]
        %v2944 = vld [vmem:[#allocation2 + $0xe2] sm:$0xff]
        %v2945 = vld [vmem:[#allocation2 + $0xf2] sm:$0xff]
        %v2946 = vld [vmem:[#allocation2 + $0xfa] sm:$0xff]
        %v2947 = vld [vmem:[#allocation2 + $0x10a] sm:$0xff]
        %v2948 = vld [vmem:[#allocation2 + $0x112] sm:$0xff]
        %v2949 = vld [vmem:[#allocation2 + $0x122] sm:$0xff]
        %v2950 = vld [vmem:[#allocation2 + $0x12a] sm:$0xff]
        %v2951 = vld [vmem:[#allocation2 + $0x13a] sm:$0xff]
        %v2952 = vld [vmem:[#allocation2 + $0x142] sm:$0xff]
        %v2953 = vld [vmem:[#allocation2 + $0x152] sm:$0xff]
        %v2954 = vld [vmem:[#allocation2 + $0x15a] sm:$0xff]
        %v2955 = vld [vmem:[#allocation2 + $0x16a] sm:$0xff]
        %v2956 = vld [vmem:[#allocation2 + $0x172] sm:$0xff]
        %v2957 = vld [vmem:[#allocation2 + $0x182] sm:$0xff]
        %v2958 = vld [vmem:[#allocation2 + $0x18a] sm:$0xff]
        %v2959 = vld [vmem:[#allocation2 + $0x19a] sm:$0xff]
        %v2960 = vld [vmem:[#allocation2 + $0x1a2] sm:$0xff]
        %v2961 = vld [vmem:[#allocation12] sm:$0xff]
        %v2962 = vld [vmem:[#allocation12 + $0x8] sm:$0xff]
        %v2963 = vld [vmem:[#allocation12 + $0x10] sm:$0xff]
        %v2964 = vld [vmem:[#allocation12 + $0x18] sm:$0xff]
        %v2965 = vld [vmem:[#allocation12 + $0x20] sm:$0xff]
        %v2966 = vld [vmem:[#allocation12 + $0x28] sm:$0xff]
        %v2967 = vld [vmem:[#allocation12 + $0x30] sm:$0xff]
        %v2968 = vld [vmem:[#allocation12 + $0x38] sm:$0xff]
        %v2969 = vld [vmem:[#allocation12 + $0x40] sm:$0xff]
        %v2970 = vld [vmem:[#allocation12 + $0x48] sm:$0xff]
        %v2971 = vld [vmem:[#allocation12 + $0x50] sm:$0xff]
        %v2972 = vld [vmem:[#allocation12 + $0x58] sm:$0xff]
        %v2973 = vld [vmem:[#allocation12 + $0x60] sm:$0xff]
        %v2974 = vld [vmem:[#allocation12 + $0x68] sm:$0xff]
        %v2975 = vld [vmem:[#allocation12 + $0x70] sm:$0xff]
        %v2976 = vld [vmem:[#allocation12 + $0x78] sm:$0xff]
        %v2977 = vld [vmem:[#allocation12 + $0x80] sm:$0xff]
        %v2978 = vld [vmem:[#allocation12 + $0x88] sm:$0xff]
        %v2979 = vld [vmem:[#allocation12 + $0x90] sm:$0xff]
        %v2980 = vld [vmem:[#allocation12 + $0x98] sm:$0xff]
        %v2981 = vld [vmem:[#allocation12 + $0xa0] sm:$0xff]
        %v2982 = vld [vmem:[#allocation12 + $0xa8] sm:$0xff]
        %v2983 = vld [vmem:[#allocation12 + $0xb0] sm:$0xff]
        %v2984 = vld [vmem:[#allocation12 + $0xb8] sm:$0xff]
        %v2985 = vld [vmem:[#allocation12 + $0xc0] sm:$0xff]
        %v2986 = vld [vmem:[#allocation12 + $0xc8] sm:$0xff]
        %v2987 = vld [vmem:[#allocation12 + $0xd0] sm:$0xff]
        %v2988 = vld [vmem:[#allocation12 + $0xd8] sm:$0xff]
        %v2989 = vld [vmem:[#allocation12 + $0xe0] sm:$0xff]
        %v2990 = vld [vmem:[#allocation12 + $0xe8] sm:$0xff]
        %v2991 = vld [vmem:[#allocation12 + $0xf0] sm:$0xff]
        %v2992 = vld [vmem:[#allocation12 + $0xf8] sm:$0xff]
        %v2993 = vld [vmem:[#allocation12 + $0x100] sm:$0xff]
        %v2994 = vld [vmem:[#allocation12 + $0x108] sm:$0xff]
        %v2995 = vld [vmem:[#allocation12 + $0x110] sm:$0xff]
        %v2996 = vld [vmem:[#allocation12 + $0x118] sm:$0xff]
        %v2997 = vld [vmem:[#allocation12 + $0x120] sm:$0xff]
        %v2998 = vld [vmem:[#allocation12 + $0x128] sm:$0xff]
        %v2999 = vld [vmem:[#allocation12 + $0x130] sm:$0xff]
        %v3000 = vld [vmem:[#allocation12 + $0x138] sm:$0xff]
        %v3001 = vld [vmem:[#allocation12 + $0x140] sm:$0xff]
        %v3002 = vld [vmem:[#allocation12 + $0x148] sm:$0xff]
        %v3003 = vld [vmem:[#allocation12 + $0x150] sm:$0xff]
        %v3004 = vld [vmem:[#allocation12 + $0x158] sm:$0xff]
        %v3005 = vld [vmem:[#allocation12 + $0x160] sm:$0xff]
        %v3006 = vld [vmem:[#allocation12 + $0x168] sm:$0xff]
        %v3007 = vld [vmem:[#allocation12 + $0x170] sm:$0xff]
        %v3008 = vld [vmem:[#allocation12 + $0x178] sm:$0xff]
        %v3009 = vld [vmem:[#allocation12 + $0x180] sm:$0xff]
        %v3010 = vld [vmem:[#allocation12 + $0x188] sm:$0xff]
        %v3011 = vld [vmem:[#allocation12 + $0x190] sm:$0xff]
        %v3012 = vld [vmem:[#allocation12 + $0x198] sm:$0xff]
        %v3013 = vld [vmem:[#allocation12 + $0x1a0] sm:$0xff]
        %v3014 = vld [vmem:[#allocation12 + $0x1a8] sm:$0xff]
        %v3015 = vld [vmem:[#allocation12 + $0x1b0] sm:$0xff]
        %v3016 = vld [vmem:[#allocation12 + $0x1b8] sm:$0xff]
        %v3017 = vld [vmem:[#allocation12 + $0x1c0] sm:$0xff]
        %v3018 = vld [vmem:[#allocation12 + $0x1c8] sm:$0xff]
        %v3019 = vld [vmem:[#allocation12 + $0x1d0] sm:$0xff]
        %v3020 = vld [vmem:[#allocation12 + $0x1d8] sm:$0xff]
        %v3021 = vld [vmem:[#allocation12 + $0x1e0] sm:$0xff]
        %v3022 = vld [vmem:[#allocation12 + $0x1e8] sm:$0xff]
        %v3023 = vld [vmem:[#allocation12 + $0x1f0] sm:$0xff]
        %v3024 = vld [vmem:[#allocation12 + $0x1f8] sm:$0xff]
        %v3025 = vld [vmem:[#allocation12 + $0x200] sm:$0xff]
        %v3026 = vld [vmem:[#allocation12 + $0x208] sm:$0xff]
        %v3027 = vld [vmem:[#allocation12 + $0x210] sm:$0xff]
        %v3028 = vld [vmem:[#allocation12 + $0x218] sm:$0xff]
        %v3029 = vld [vmem:[#allocation12 + $0x220] sm:$0xff]
        %v3030 = vld [vmem:[#allocation12 + $0x228] sm:$0xff]
        %v3031 = vld [vmem:[#allocation12 + $0x230] sm:$0xff]
        %v3032 = vld [vmem:[#allocation12 + $0x238] sm:$0xff]
        %v3033 = vld [vmem:[#allocation12 + $0x240] sm:$0xff]
        %v3034 = vld [vmem:[#allocation12 + $0x248] sm:$0xff]
        %v3035 = vld [vmem:[#allocation12 + $0x250] sm:$0xff]
        %v3036 = vld [vmem:[#allocation12 + $0x258] sm:$0xff]
        %v3037 = vld [vmem:[#allocation12 + $0x260] sm:$0xff]
        %v3038 = vld [vmem:[#allocation12 + $0x268] sm:$0xff]
        %v3039 = vld [vmem:[#allocation12 + $0x270] sm:$0xff]
        %v3040 = vld [vmem:[#allocation12 + $0x278] sm:$0xff]
        %v3041 = vld [vmem:[#allocation12 + $0x280] sm:$0xff]
        %v3042 = vld [vmem:[#allocation12 + $0x288] sm:$0xff]
        %v3043 = vld [vmem:[#allocation12 + $0x290] sm:$0xff]
        %v3044 = vld [vmem:[#allocation12 + $0x298] sm:$0xff]
        %v3045 = vld [vmem:[#allocation12 + $0x2a0] sm:$0xff]
        %v3046 = vld [vmem:[#allocation12 + $0x2a8] sm:$0xff]
        %v3047 = vld [vmem:[#allocation12 + $0x2b0] sm:$0xff]
        %v3048 = vld [vmem:[#allocation12 + $0x2b8] sm:$0xff]
        %v3049 = vld [vmem:[#allocation12 + $0x2c0] sm:$0xff]
        %v3050 = vld [vmem:[#allocation12 + $0x2c8] sm:$0xff]
        %v3051 = vld [vmem:[#allocation12 + $0x2d0] sm:$0xff]
        %v3052 = vld [vmem:[#allocation12 + $0x2d8] sm:$0xff]
        %v3053 = vld [vmem:[#allocation12 + $0x2e0] sm:$0xff]
        %v3054 = vld [vmem:[#allocation12 + $0x2e8] sm:$0xff]
        %v3055 = vld [vmem:[#allocation12 + $0x2f0] sm:$0xff]
        %v3056 = vld [vmem:[#allocation12 + $0x2f8] sm:$0xff]
        %s3057 = scalar_lea.vmem [#allocation12], 768
        %v3058 = vld [vmem:[%s3057] sm:$0xff]
        %v3059 = vld [vmem:[%s3057 + $0x8] sm:$0xff]
        %v3060 = vld [vmem:[%s3057 + $0x10] sm:$0xff]
        %v3061 = vld [vmem:[%s3057 + $0x18] sm:$0xff]
        %v3062 = vld [vmem:[%s3057 + $0x20] sm:$0xff]
        %v3063 = vld [vmem:[%s3057 + $0x28] sm:$0xff]
        %v3064 = vld [vmem:[%s3057 + $0x30] sm:$0xff]
        %v3065 = vld [vmem:[%s3057 + $0x38] sm:$0xff]
        %v3066 = vld [vmem:[%s3057 + $0x40] sm:$0xff]
        %v3067 = vld [vmem:[%s3057 + $0x48] sm:$0xff]
        %v3068 = vld [vmem:[%s3057 + $0x50] sm:$0xff]
        %v3069 = vld [vmem:[%s3057 + $0x58] sm:$0xff]
        %v3070 = vld [vmem:[%s3057 + $0x60] sm:$0xff]
        %v3071 = vld [vmem:[%s3057 + $0x68] sm:$0xff]
        %v3072 = vld [vmem:[%s3057 + $0x70] sm:$0xff]
        %v3073 = vld [vmem:[%s3057 + $0x78] sm:$0xff]
        %v3074 = vld [vmem:[%s3057 + $0x80] sm:$0xff]
        %v3075 = vld [vmem:[%s3057 + $0x88] sm:$0xff]
        %v3076 = vld [vmem:[%s3057 + $0x90] sm:$0xff]
        %v3077 = vld [vmem:[%s3057 + $0x98] sm:$0xff]
        %v3078 = vld [vmem:[%s3057 + $0xa0] sm:$0xff]
        %v3079 = vld [vmem:[%s3057 + $0xa8] sm:$0xff]
        %v3080 = vld [vmem:[%s3057 + $0xb0] sm:$0xff]
        %v3081 = vld [vmem:[%s3057 + $0xb8] sm:$0xff]
        %v3082 = vld [vmem:[%s3057 + $0xc0] sm:$0xff]
        %v3083 = vld [vmem:[%s3057 + $0xc8] sm:$0xff]
        %v3084 = vld [vmem:[%s3057 + $0xd0] sm:$0xff]
        %v3085 = vld [vmem:[%s3057 + $0xd8] sm:$0xff]
        %v3086 = vld [vmem:[%s3057 + $0xe0] sm:$0xff]
        %v3087 = vld [vmem:[%s3057 + $0xe8] sm:$0xff]
        %v3088 = vld [vmem:[%s3057 + $0xf0] sm:$0xff]
        %v3089 = vld [vmem:[%s3057 + $0xf8] sm:$0xff]
        %v3090 = vld [vmem:[%s3057 + $0x100] sm:$0xff]
        %v3091 = vld [vmem:[%s3057 + $0x108] sm:$0xff]
        %v3092 = vld [vmem:[%s3057 + $0x110] sm:$0xff]
        %v3093 = vld [vmem:[%s3057 + $0x118] sm:$0xff]
        %v3094 = vld [vmem:[%s3057 + $0x120] sm:$0xff]
        %v3095 = vld [vmem:[%s3057 + $0x128] sm:$0xff]
        %v3096 = vld [vmem:[%s3057 + $0x130] sm:$0xff]
        %v3097 = vld [vmem:[%s3057 + $0x138] sm:$0xff]
        %v3098 = vld [vmem:[%s3057 + $0x140] sm:$0xff]
        %v3099 = vld [vmem:[%s3057 + $0x148] sm:$0xff]
        %v3100 = vld [vmem:[%s3057 + $0x150] sm:$0xff]
        %v3101 = vld [vmem:[%s3057 + $0x158] sm:$0xff]
        %v3102 = vld [vmem:[%s3057 + $0x160] sm:$0xff]
        %v3103 = vld [vmem:[%s3057 + $0x168] sm:$0xff]
        %v3104 = vld [vmem:[%s3057 + $0x170] sm:$0xff]
        %v3105 = vld [vmem:[%s3057 + $0x178] sm:$0xff]
        %v3106 = vld [vmem:[%s3057 + $0x180] sm:$0xff]
        %v3107 = vld [vmem:[%s3057 + $0x188] sm:$0xff]
        %v3108 = vld [vmem:[%s3057 + $0x190] sm:$0xff]
        %v3109 = vld [vmem:[%s3057 + $0x198] sm:$0xff]
        %v3110 = vld [vmem:[%s3057 + $0x1a0] sm:$0xff]
        %v3111 = vld [vmem:[%s3057 + $0x1a8] sm:$0xff]
        %v3112 = vld [vmem:[%s3057 + $0x1b0] sm:$0xff]
        %v3113 = vld [vmem:[%s3057 + $0x1b8] sm:$0xff]
        %v3114 = vld [vmem:[%s3057 + $0x1c0] sm:$0xff]
        %v3115 = vld [vmem:[%s3057 + $0x1c8] sm:$0xff]
        %v3116 = vld [vmem:[%s3057 + $0x1d0] sm:$0xff]
        %v3117 = vld [vmem:[%s3057 + $0x1d8] sm:$0xff]
        %v3118 = vld [vmem:[%s3057 + $0x1e0] sm:$0xff]
        %v3119 = vld [vmem:[%s3057 + $0x1e8] sm:$0xff]
        %v3120 = vld [vmem:[%s3057 + $0x1f0] sm:$0xff]
        %v3121 = vld [vmem:[%s3057 + $0x1f8] sm:$0xff]
        %v3122 = vld [vmem:[%s3057 + $0x200] sm:$0xff]
        %v3123 = vld [vmem:[%s3057 + $0x208] sm:$0xff]
        %v3124 = vld [vmem:[%s3057 + $0x210] sm:$0xff]
        %v3125 = vld [vmem:[%s3057 + $0x218] sm:$0xff]
        %v3126 = vld [vmem:[%s3057 + $0x220] sm:$0xff]
        %v3127 = vld [vmem:[%s3057 + $0x228] sm:$0xff]
        %v3128 = vld [vmem:[%s3057 + $0x230] sm:$0xff]
        %v3129 = vld [vmem:[%s3057 + $0x238] sm:$0xff]
        %v3130 = vld [vmem:[%s3057 + $0x240] sm:$0xff]
        %v3131 = vld [vmem:[%s3057 + $0x248] sm:$0xff]
        %v3132 = vld [vmem:[%s3057 + $0x250] sm:$0xff]
        %v3133 = vld [vmem:[%s3057 + $0x258] sm:$0xff]
        %v3134 = vld [vmem:[%s3057 + $0x260] sm:$0xff]
        %v3135 = vld [vmem:[%s3057 + $0x268] sm:$0xff]
        %v3136 = vld [vmem:[%s3057 + $0x270] sm:$0xff]
        %v3137 = vld [vmem:[%s3057 + $0x278] sm:$0xff]
        %v3138 = vld [vmem:[%s3057 + $0x280] sm:$0xff]
        %v3139 = vld [vmem:[%s3057 + $0x288] sm:$0xff]
        %v3140 = vld [vmem:[%s3057 + $0x290] sm:$0xff]
        %v3141 = vld [vmem:[%s3057 + $0x298] sm:$0xff]
        %v3142 = vld [vmem:[%s3057 + $0x2a0] sm:$0xff]
        %v3143 = vld [vmem:[%s3057 + $0x2a8] sm:$0xff]
        %v3144 = vld [vmem:[%s3057 + $0x2b0] sm:$0xff]
        %v3145 = vld [vmem:[%s3057 + $0x2b8] sm:$0xff]
        %v3146 = vld [vmem:[%s3057 + $0x2c0] sm:$0xff]
        %v3147 = vld [vmem:[%s3057 + $0x2c8] sm:$0xff]
        %v3148 = vld [vmem:[%s3057 + $0x2d0] sm:$0xff]
        %v3149 = vld [vmem:[%s3057 + $0x2d8] sm:$0xff]
        %v3150 = vld [vmem:[%s3057 + $0x2e0] sm:$0xff]
        %v3151 = vld [vmem:[%s3057 + $0x2e8] sm:$0xff]
        %v3152 = vld [vmem:[%s3057 + $0x2f0] sm:$0xff]
        %v3153 = vld [vmem:[%s3057 + $0x2f8] sm:$0xff]
        %3154 = vmatprep.subr.mxu0 %v3089
        %3155 = vmatpush1.msra.mxu0 %v3088
        %3156 = vmatprep.subr.mxu0 %v3087
        %3157 = vmatpush1.msra.mxu0 %v3086
        %3158 = vmatprep.subr.mxu0 %v3085
        %3159 = vmatpush1.msra.mxu0 %v3084
        %3160 = vmatprep.subr.mxu0 %v3083
        %3161 = vmatpush1.msra.mxu0 %v3082
        %3162 = vmatprep.subr.mxu0 %v3081
        %3163 = vmatpush1.msra.mxu0 %v3080
        %3164 = vmatprep.subr.mxu0 %v3079
        %3165 = vmatpush1.msra.mxu0 %v3078
        %3166 = vmatprep.subr.mxu0 %v3077
        %3167 = vmatpush1.msra.mxu0 %v3076
        %3168 = vmatprep.subr.mxu0 %v3075
        %3169 = vmatpush1.msra.mxu0 %v3074
        %3170 = vmatprep.subr.mxu0 %v3073
        %3171 = vmatpush1.msra.mxu0 %v3072
        %3172 = vmatprep.subr.mxu0 %v3071
        %3173 = vmatpush1.msra.mxu0 %v3070
        %3174 = vmatprep.subr.mxu0 %v3069
        %3175 = vmatpush1.msra.mxu0 %v3068
        %3176 = vmatprep.subr.mxu0 %v3067
        %3177 = vmatpush1.msra.mxu0 %v3066
        %3178 = vmatprep.subr.mxu0 %v3065
        %3179 = vmatpush1.msra.mxu0 %v3064
        %3180 = vmatprep.subr.mxu0 %v3063
        %3181 = vmatpush1.msra.mxu0 %v3062
        %3182 = vmatprep.subr.mxu0 %v3061
        %3183 = vmatpush1.msra.mxu0 %v3060
        %3184 = vmatprep.subr.mxu0 %v3059
        %3185 = vmatpush1.msra.mxu0 %v3058
        %3186 = vmatprep.subr.mxu0 %v3121
        %3187 = vmatpush2.msra.mxu0 %v3120
        %3188 = vmatprep.subr.mxu0 %v3119
        %3189 = vmatpush2.msra.mxu0 %v3118
        %3190 = vmatprep.subr.mxu0 %v3117
        %3191 = vmatpush2.msra.mxu0 %v3116
        %3192 = vmatprep.subr.mxu0 %v3115
        %3193 = vmatpush2.msra.mxu0 %v3114
        %3194 = vmatprep.subr.mxu0 %v3113
        %3195 = vmatpush2.msra.mxu0 %v3112
        %3196 = vmatprep.subr.mxu0 %v3111
        %3197 = vmatpush2.msra.mxu0 %v3110
        %3198 = vmatprep.subr.mxu0 %v3109
        %3199 = vmatpush2.msra.mxu0 %v3108
        %3200 = vmatprep.subr.mxu0 %v3107
        %3201 = vmatpush2.msra.mxu0 %v3106
        %3202 = vmatprep.subr.mxu0 %v3105
        %3203 = vmatpush2.msra.mxu0 %v3104
        %3204 = vmatprep.subr.mxu0 %v3103
        %3205 = vmatpush2.msra.mxu0 %v3102
        %3206 = vmatprep.subr.mxu0 %v3101
        %3207 = vmatpush2.msra.mxu0 %v3100
        %3208 = vmatprep.subr.mxu0 %v3099
        %3209 = vmatpush2.msra.mxu0 %v3098
        %3210 = vmatprep.subr.mxu0 %v3097
        %3211 = vmatpush2.msra.mxu0 %v3096
        %3212 = vmatprep.subr.mxu0 %v3095
        %3213 = vmatpush2.msra.mxu0 %v3094
        %3214 = vmatprep.subr.mxu0 %v3093
        %3215 = vmatpush2.msra.mxu0 %v3092
        %3216 = vmatprep.subr.mxu0 %v3091
        %3217 = vmatpush2.msra.mxu0 %v3090
        %3218 = vmatprep.mubr.f32.mxu0 %v2891
        %3219 = vmatmul.mubr.f32.gmra.mxu0 %v2855
        %v3220 = vpop.f32.mrf.mxu0
        %v3221 = vadd.f32 0.0, %v3220
        %v3222 = vpop.f32.mrf.mxu0
        %v3223 = vadd.f32 0.0, %v3222
        %3224 = vmatprep.mubr.f32.mxu0 %v2892
        %3225 = vmatmul.mubr.f32.gmra.mxu0 %v2856
        %v3226 = vpop.f32.mrf.mxu0
        %v3227 = vadd.f32 0.0, %v3226
        %v3228 = vpop.f32.mrf.mxu0
        %v3229 = vadd.f32 0.0, %v3228
        %3230 = vmatprep.mubr.f32.mxu0 %v2893
        %3231 = vmatmul.mubr.f32.gmra.mxu0 %v2857
        %v3232 = vpop.f32.mrf.mxu0
        %v3233 = vadd.f32 0.0, %v3232
        %v3234 = vpop.f32.mrf.mxu0
        %v3235 = vadd.f32 0.0, %v3234
        %3236 = vmatprep.mubr.f32.mxu0 %v2894
        %3237 = vmatmul.mubr.f32.gmra.mxu0 %v2858
        %v3238 = vpop.f32.mrf.mxu0
        %v3239 = vadd.f32 0.0, %v3238
        %v3240 = vpop.f32.mrf.mxu0
        %v3241 = vadd.f32 0.0, %v3240
        %3242 = vmatprep.mubr.f32.mxu0 %v2895
        %3243 = vmatmul.mubr.f32.gmra.mxu0 %v2859
        %v3244 = vpop.f32.mrf.mxu0
        %v3245 = vadd.f32 0.0, %v3244
        %v3246 = vpop.f32.mrf.mxu0
        %v3247 = vadd.f32 0.0, %v3246
        %3248 = vmatprep.mubr.f32.mxu0 %v2896
        %3249 = vmatmul.mubr.f32.gmra.mxu0 %v2860
        %v3250 = vpop.f32.mrf.mxu0
        %v3251 = vadd.f32 0.0, %v3250
        %v3252 = vpop.f32.mrf.mxu0
        %v3253 = vadd.f32 0.0, %v3252
        %3254 = vmatprep.mubr.f32.mxu0 %v2897
        %3255 = vmatmul.mubr.f32.gmra.mxu0 %v2861
        %v3256 = vpop.f32.mrf.mxu0
        %v3257 = vadd.f32 0.0, %v3256
        %v3258 = vpop.f32.mrf.mxu0
        %v3259 = vadd.f32 0.0, %v3258
        %3260 = vmatprep.mubr.f32.mxu0 %v2898
        %3261 = vmatmul.mubr.f32.gmra.mxu0 %v2862
        %v3262 = vpop.f32.mrf.mxu0
        %v3263 = vadd.f32 0.0, %v3262
        %v3264 = vpop.f32.mrf.mxu0
        %v3265 = vadd.f32 0.0, %v3264
        %3266 = vmatprep.mubr.f32.mxu0 %v2899
        %3267 = vmatmul.mubr.f32.gmra.mxu0 %v2863
        %v3268 = vpop.f32.mrf.mxu0
        %v3269 = vadd.f32 0.0, %v3268
        %v3270 = vpop.f32.mrf.mxu0
        %v3271 = vadd.f32 0.0, %v3270
        %3272 = vmatprep.mubr.f32.mxu0 %v2900
        %3273 = vmatmul.mubr.f32.gmra.mxu0 %v2864
        %v3274 = vpop.f32.mrf.mxu0
        %v3275 = vadd.f32 0.0, %v3274
        %v3276 = vpop.f32.mrf.mxu0
        %v3277 = vadd.f32 0.0, %v3276
        %3278 = vmatprep.mubr.f32.mxu0 %v2901
        %3279 = vmatmul.mubr.f32.gmra.mxu0 %v2865
        %v3280 = vpop.f32.mrf.mxu0
        %v3281 = vadd.f32 0.0, %v3280
        %v3282 = vpop.f32.mrf.mxu0
        %v3283 = vadd.f32 0.0, %v3282
        %3284 = vmatprep.mubr.f32.mxu0 %v2902
        %3285 = vmatmul.mubr.f32.gmra.mxu0 %v2866
        %v3286 = vpop.f32.mrf.mxu0
        %v3287 = vadd.f32 0.0, %v3286
        %v3288 = vpop.f32.mrf.mxu0
        %v3289 = vadd.f32 0.0, %v3288
        %3290 = vmatprep.mubr.f32.mxu0 %v2903
        %3291 = vmatmul.mubr.f32.gmra.mxu0 %v2867
        %v3292 = vpop.f32.mrf.mxu0
        %v3293 = vadd.f32 0.0, %v3292
        %v3294 = vpop.f32.mrf.mxu0
        %v3295 = vadd.f32 0.0, %v3294
        %3296 = vmatprep.mubr.f32.mxu0 %v2904
        %3297 = vmatmul.mubr.f32.gmra.mxu0 %v2868
        %v3298 = vpop.f32.mrf.mxu0
        %v3299 = vadd.f32 0.0, %v3298
        %v3300 = vpop.f32.mrf.mxu0
        %v3301 = vadd.f32 0.0, %v3300
        %3302 = vmatprep.mubr.f32.mxu0 %v2905
        %3303 = vmatmul.mubr.f32.gmra.mxu0 %v2869
        %v3304 = vpop.f32.mrf.mxu0
        %v3305 = vadd.f32 0.0, %v3304
        %v3306 = vpop.f32.mrf.mxu0
        %v3307 = vadd.f32 0.0, %v3306
        %3308 = vmatprep.mubr.f32.mxu0 %v2906
        %3309 = vmatmul.mubr.f32.gmra.mxu0 %v2870
        %v3310 = vpop.f32.mrf.mxu0
        %v3311 = vadd.f32 0.0, %v3310
        %v3312 = vpop.f32.mrf.mxu0
        %v3313 = vadd.f32 0.0, %v3312
        %3314 = vmatprep.mubr.f32.mxu0 %v2907
        %3315 = vmatmul.mubr.f32.gmra.mxu0 %v2871
        %v3316 = vpop.f32.mrf.mxu0
        %v3317 = vadd.f32 0.0, %v3316
        %v3318 = vpop.f32.mrf.mxu0
        %v3319 = vadd.f32 0.0, %v3318
        %3320 = vmatprep.mubr.f32.mxu0 %v2908
        %3321 = vmatmul.mubr.f32.gmra.mxu0 %v2872
        %v3322 = vpop.f32.mrf.mxu0
        %v3323 = vadd.f32 0.0, %v3322
        %v3324 = vpop.f32.mrf.mxu0
        %v3325 = vadd.f32 0.0, %v3324
        %3326 = vmatprep.mubr.f32.mxu0 %v2909
        %3327 = vmatmul.mubr.f32.gmra.mxu0 %v2873
        %v3328 = vpop.f32.mrf.mxu0
        %v3329 = vadd.f32 0.0, %v3328
        %v3330 = vpop.f32.mrf.mxu0
        %v3331 = vadd.f32 0.0, %v3330
        %3332 = vmatprep.mubr.f32.mxu0 %v2910
        %3333 = vmatmul.mubr.f32.gmra.mxu0 %v2874
        %v3334 = vpop.f32.mrf.mxu0
        %v3335 = vadd.f32 0.0, %v3334
        %v3336 = vpop.f32.mrf.mxu0
        %v3337 = vadd.f32 0.0, %v3336
        %3338 = vmatprep.mubr.f32.mxu0 %v2911
        %3339 = vmatmul.mubr.f32.gmra.mxu0 %v2875
        %v3340 = vpop.f32.mrf.mxu0
        %v3341 = vadd.f32 0.0, %v3340
        %v3342 = vpop.f32.mrf.mxu0
        %v3343 = vadd.f32 0.0, %v3342
        %3344 = vmatprep.mubr.f32.mxu0 %v2912
        %3345 = vmatmul.mubr.f32.gmra.mxu0 %v2876
        %v3346 = vpop.f32.mrf.mxu0
        %v3347 = vadd.f32 0.0, %v3346
        %v3348 = vpop.f32.mrf.mxu0
        %v3349 = vadd.f32 0.0, %v3348
        %3350 = vmatprep.mubr.f32.mxu0 %v2913
        %3351 = vmatmul.mubr.f32.gmra.mxu0 %v2877
        %v3352 = vpop.f32.mrf.mxu0
        %v3353 = vadd.f32 0.0, %v3352
        %v3354 = vpop.f32.mrf.mxu0
        %v3355 = vadd.f32 0.0, %v3354
        %3356 = vmatprep.mubr.f32.mxu0 %v2914
        %3357 = vmatmul.mubr.f32.gmra.mxu0 %v2878
        %v3358 = vpop.f32.mrf.mxu0
        %v3359 = vadd.f32 0.0, %v3358
        %v3360 = vpop.f32.mrf.mxu0
        %v3361 = vadd.f32 0.0, %v3360
        %3362 = vmatprep.mubr.f32.mxu0 %v2915
        %3363 = vmatmul.mubr.f32.gmra.mxu0 %v2879
        %v3364 = vpop.f32.mrf.mxu0
        %v3365 = vadd.f32 0.0, %v3364
        %v3366 = vpop.f32.mrf.mxu0
        %v3367 = vadd.f32 0.0, %v3366
        %3368 = vmatprep.mubr.f32.mxu0 %v2916
        %3369 = vmatmul.mubr.f32.gmra.mxu0 %v2880
        %v3370 = vpop.f32.mrf.mxu0
        %v3371 = vadd.f32 0.0, %v3370
        %v3372 = vpop.f32.mrf.mxu0
        %v3373 = vadd.f32 0.0, %v3372
        %3374 = vmatprep.mubr.f32.mxu0 %v2917
        %3375 = vmatmul.mubr.f32.gmra.mxu0 %v2881
        %v3376 = vpop.f32.mrf.mxu0
        %v3377 = vadd.f32 0.0, %v3376
        %v3378 = vpop.f32.mrf.mxu0
        %v3379 = vadd.f32 0.0, %v3378
        %3380 = vmatprep.mubr.f32.mxu0 %v2918
        %3381 = vmatmul.mubr.f32.gmra.mxu0 %v2882
        %v3382 = vpop.f32.mrf.mxu0
        %v3383 = vadd.f32 0.0, %v3382
        %v3384 = vpop.f32.mrf.mxu0
        %v3385 = vadd.f32 0.0, %v3384
        %3386 = vmatprep.mubr.f32.mxu0 %v2919
        %3387 = vmatmul.mubr.f32.gmra.mxu0 %v2883
        %v3388 = vpop.f32.mrf.mxu0
        %v3389 = vadd.f32 0.0, %v3388
        %v3390 = vpop.f32.mrf.mxu0
        %v3391 = vadd.f32 0.0, %v3390
        %3392 = vmatprep.mubr.f32.mxu0 %v2920
        %3393 = vmatmul.mubr.f32.gmra.mxu0 %v2884
        %v3394 = vpop.f32.mrf.mxu0
        %v3395 = vadd.f32 0.0, %v3394
        %v3396 = vpop.f32.mrf.mxu0
        %v3397 = vadd.f32 0.0, %v3396
        %3398 = vmatprep.mubr.f32.mxu0 %v2921
        %3399 = vmatmul.mubr.f32.gmra.mxu0 %v2885
        %v3400 = vpop.f32.mrf.mxu0
        %v3401 = vadd.f32 0.0, %v3400
        %v3402 = vpop.f32.mrf.mxu0
        %v3403 = vadd.f32 0.0, %v3402
        %3404 = vmatprep.mubr.f32.mxu0 %v2922
        %3405 = vmatmul.mubr.f32.gmra.mxu0 %v2886
        %v3406 = vpop.f32.mrf.mxu0
        %v3407 = vadd.f32 0.0, %v3406
        %v3408 = vpop.f32.mrf.mxu0
        %v3409 = vadd.f32 0.0, %v3408
        %3410 = vdwg.mxu0
        %3411 = vmatprep.subr.mxu0 %v3153
        %3412 = vmatpush1.msra.mxu0 %v3152
        %3413 = vmatprep.subr.mxu0 %v3151
        %3414 = vmatpush1.msra.mxu0 %v3150
        %3415 = vmatprep.subr.mxu0 %v3149
        %3416 = vmatpush1.msra.mxu0 %v3148
        %3417 = vmatprep.subr.mxu0 %v3147
        %3418 = vmatpush1.msra.mxu0 %v3146
        %3419 = vmatprep.subr.mxu0 %v3145
        %3420 = vmatpush1.msra.mxu0 %v3144
        %3421 = vmatprep.subr.mxu0 %v3143
        %3422 = vmatpush1.msra.mxu0 %v3142
        %3423 = vmatprep.subr.mxu0 %v3141
        %3424 = vmatpush1.msra.mxu0 %v3140
        %3425 = vmatprep.subr.mxu0 %v3139
        %3426 = vmatpush1.msra.mxu0 %v3138
        %3427 = vmatprep.subr.mxu0 %v3137
        %3428 = vmatpush1.msra.mxu0 %v3136
        %3429 = vmatprep.subr.mxu0 %v3135
        %3430 = vmatpush1.msra.mxu0 %v3134
        %3431 = vmatprep.subr.mxu0 %v3133
        %3432 = vmatpush1.msra.mxu0 %v3132
        %3433 = vmatprep.subr.mxu0 %v3131
        %3434 = vmatpush1.msra.mxu0 %v3130
        %3435 = vmatprep.subr.mxu0 %v3129
        %3436 = vmatpush1.msra.mxu0 %v3128
        %3437 = vmatprep.subr.mxu0 %v3127
        %3438 = vmatpush1.msra.mxu0 %v3126
        %3439 = vmatprep.subr.mxu0 %v3125
        %3440 = vmatpush1.msra.mxu0 %v3124
        %3441 = vmatprep.subr.mxu0 %v3123
        %3442 = vmatpush1.msra.mxu0 %v3122
        %3443 = vmatprep.subr.mxu0 0.0
        %3444 = vmatpush2.msra.mxu0 0.0
        %3445 = vmatprep.subr.mxu0 0.0
        %3446 = vmatpush2.msra.mxu0 0.0
        %3447 = vmatprep.subr.mxu0 0.0
        %3448 = vmatpush2.msra.mxu0 0.0
        %3449 = vmatprep.subr.mxu0 0.0
        %3450 = vmatpush2.msra.mxu0 0.0
        %3451 = vmatprep.subr.mxu0 0.0
        %3452 = vmatpush2.msra.mxu0 0.0
        %3453 = vmatprep.subr.mxu0 0.0
        %3454 = vmatpush2.msra.mxu0 0.0
        %3455 = vmatprep.subr.mxu0 0.0
        %3456 = vmatpush2.msra.mxu0 0.0
        %3457 = vmatprep.subr.mxu0 0.0
        %3458 = vmatpush2.msra.mxu0 0.0
        %3459 = vmatprep.subr.mxu0 0.0
        %3460 = vmatpush2.msra.mxu0 0.0
        %3461 = vmatprep.subr.mxu0 0.0
        %3462 = vmatpush2.msra.mxu0 0.0
        %3463 = vmatprep.subr.mxu0 0.0
        %3464 = vmatpush2.msra.mxu0 0.0
        %3465 = vmatprep.subr.mxu0 0.0
        %3466 = vmatpush2.msra.mxu0 0.0
        %3467 = vmatprep.subr.mxu0 0.0
        %3468 = vmatpush2.msra.mxu0 0.0
        %3469 = vmatprep.subr.mxu0 0.0
        %3470 = vmatpush2.msra.mxu0 0.0
        %3471 = vmatprep.subr.mxu0 0.0
        %3472 = vmatpush2.msra.mxu0 0.0
        %3473 = vmatprep.subr.mxu0 0.0
        %3474 = vmatpush2.msra.mxu0 0.0
        %3475 = vmatprep.mubr.f32.mxu0 0.0
        %3476 = vmatmul.mubr.f32.gmra.mxu0 %v2927
        %v3477 = vpop.f32.mrf.mxu0
        %v3478 = vadd.f32 %v3221, %v3477
        %v3479 = vpop.f32.mrf.mxu0
        %v3480 = vadd.f32 %v3223, %v3479
        %3481 = vmatprep.mubr.f32.mxu0 0.0
        %3482 = vmatmul.mubr.f32.gmra.mxu0 %v2928
        %v3483 = vpop.f32.mrf.mxu0
        %v3484 = vadd.f32 %v3227, %v3483
        %v3485 = vpop.f32.mrf.mxu0
        %v3486 = vadd.f32 %v3229, %v3485
        %3487 = vmatprep.mubr.f32.mxu0 0.0
        %3488 = vmatmul.mubr.f32.gmra.mxu0 %v2929
        %v3489 = vpop.f32.mrf.mxu0
        %v3490 = vadd.f32 %v3233, %v3489
        %v3491 = vpop.f32.mrf.mxu0
        %v3492 = vadd.f32 %v3235, %v3491
        %3493 = vmatprep.mubr.f32.mxu0 0.0
        %3494 = vmatmul.mubr.f32.gmra.mxu0 %v2930
        %v3495 = vpop.f32.mrf.mxu0
        %v3496 = vadd.f32 %v3239, %v3495
        %v3497 = vpop.f32.mrf.mxu0
        %v3498 = vadd.f32 %v3241, %v3497
        %3499 = vmatprep.mubr.f32.mxu0 0.0
        %3500 = vmatmul.mubr.f32.gmra.mxu0 %v2931
        %v3501 = vpop.f32.mrf.mxu0
        %v3502 = vadd.f32 %v3245, %v3501
        %v3503 = vpop.f32.mrf.mxu0
        %v3504 = vadd.f32 %v3247, %v3503
        %3505 = vmatprep.mubr.f32.mxu0 0.0
        %3506 = vmatmul.mubr.f32.gmra.mxu0 %v2932
        %v3507 = vpop.f32.mrf.mxu0
        %v3508 = vadd.f32 %v3251, %v3507
        %v3509 = vpop.f32.mrf.mxu0
        %v3510 = vadd.f32 %v3253, %v3509
        %3511 = vmatprep.mubr.f32.mxu0 0.0
        %3512 = vmatmul.mubr.f32.gmra.mxu0 %v2933
        %v3513 = vpop.f32.mrf.mxu0
        %v3514 = vadd.f32 %v3257, %v3513
        %v3515 = vpop.f32.mrf.mxu0
        %v3516 = vadd.f32 %v3259, %v3515
        %3517 = vmatprep.mubr.f32.mxu0 0.0
        %3518 = vmatmul.mubr.f32.gmra.mxu0 %v2934
        %v3519 = vpop.f32.mrf.mxu0
        %v3520 = vadd.f32 %v3263, %v3519
        %v3521 = vpop.f32.mrf.mxu0
        %v3522 = vadd.f32 %v3265, %v3521
        %3523 = vmatprep.mubr.f32.mxu0 0.0
        %3524 = vmatmul.mubr.f32.gmra.mxu0 %v2935
        %v3525 = vpop.f32.mrf.mxu0
        %v3526 = vadd.f32 %v3269, %v3525
        %v3527 = vpop.f32.mrf.mxu0
        %v3528 = vadd.f32 %v3271, %v3527
        %3529 = vmatprep.mubr.f32.mxu0 0.0
        %3530 = vmatmul.mubr.f32.gmra.mxu0 %v2936
        %v3531 = vpop.f32.mrf.mxu0
        %v3532 = vadd.f32 %v3275, %v3531
        %v3533 = vpop.f32.mrf.mxu0
        %v3534 = vadd.f32 %v3277, %v3533
        %3535 = vmatprep.mubr.f32.mxu0 0.0
        %3536 = vmatmul.mubr.f32.gmra.mxu0 %v2937
        %v3537 = vpop.f32.mrf.mxu0
        %v3538 = vadd.f32 %v3281, %v3537
        %v3539 = vpop.f32.mrf.mxu0
        %v3540 = vadd.f32 %v3283, %v3539
        %3541 = vmatprep.mubr.f32.mxu0 0.0
        %3542 = vmatmul.mubr.f32.gmra.mxu0 %v2938
        %v3543 = vpop.f32.mrf.mxu0
        %v3544 = vadd.f32 %v3287, %v3543
        %v3545 = vpop.f32.mrf.mxu0
        %v3546 = vadd.f32 %v3289, %v3545
        %3547 = vmatprep.mubr.f32.mxu0 0.0
        %3548 = vmatmul.mubr.f32.gmra.mxu0 %v2939
        %v3549 = vpop.f32.mrf.mxu0
        %v3550 = vadd.f32 %v3293, %v3549
        %v3551 = vpop.f32.mrf.mxu0
        %v3552 = vadd.f32 %v3295, %v3551
        %3553 = vmatprep.mubr.f32.mxu0 0.0
        %3554 = vmatmul.mubr.f32.gmra.mxu0 %v2940
        %v3555 = vpop.f32.mrf.mxu0
        %v3556 = vadd.f32 %v3299, %v3555
        %v3557 = vpop.f32.mrf.mxu0
        %v3558 = vadd.f32 %v3301, %v3557
        %3559 = vmatprep.mubr.f32.mxu0 0.0
        %3560 = vmatmul.mubr.f32.gmra.mxu0 %v2941
        %v3561 = vpop.f32.mrf.mxu0
        %v3562 = vadd.f32 %v3305, %v3561
        %v3563 = vpop.f32.mrf.mxu0
        %v3564 = vadd.f32 %v3307, %v3563
        %3565 = vmatprep.mubr.f32.mxu0 0.0
        %3566 = vmatmul.mubr.f32.gmra.mxu0 %v2942
        %v3567 = vpop.f32.mrf.mxu0
        %v3568 = vadd.f32 %v3311, %v3567
        %v3569 = vpop.f32.mrf.mxu0
        %v3570 = vadd.f32 %v3313, %v3569
        %3571 = vmatprep.mubr.f32.mxu0 0.0
        %3572 = vmatmul.mubr.f32.gmra.mxu0 %v2943
        %v3573 = vpop.f32.mrf.mxu0
        %v3574 = vadd.f32 %v3317, %v3573
        %v3575 = vpop.f32.mrf.mxu0
        %v3576 = vadd.f32 %v3319, %v3575
        %3577 = vmatprep.mubr.f32.mxu0 0.0
        %3578 = vmatmul.mubr.f32.gmra.mxu0 %v2944
        %v3579 = vpop.f32.mrf.mxu0
        %v3580 = vadd.f32 %v3323, %v3579
        %v3581 = vpop.f32.mrf.mxu0
        %v3582 = vadd.f32 %v3325, %v3581
        %3583 = vmatprep.mubr.f32.mxu0 0.0
        %3584 = vmatmul.mubr.f32.gmra.mxu0 %v2945
        %v3585 = vpop.f32.mrf.mxu0
        %v3586 = vadd.f32 %v3329, %v3585
        %v3587 = vpop.f32.mrf.mxu0
        %v3588 = vadd.f32 %v3331, %v3587
        %3589 = vmatprep.mubr.f32.mxu0 0.0
        %3590 = vmatmul.mubr.f32.gmra.mxu0 %v2946
        %v3591 = vpop.f32.mrf.mxu0
        %v3592 = vadd.f32 %v3335, %v3591
        %v3593 = vpop.f32.mrf.mxu0
        %v3594 = vadd.f32 %v3337, %v3593
        %3595 = vmatprep.mubr.f32.mxu0 0.0
        %3596 = vmatmul.mubr.f32.gmra.mxu0 %v2947
        %v3597 = vpop.f32.mrf.mxu0
        %v3598 = vadd.f32 %v3341, %v3597
        %v3599 = vpop.f32.mrf.mxu0
        %v3600 = vadd.f32 %v3343, %v3599
        %3601 = vmatprep.mubr.f32.mxu0 0.0
        %3602 = vmatmul.mubr.f32.gmra.mxu0 %v2948
        %v3603 = vpop.f32.mrf.mxu0
        %v3604 = vadd.f32 %v3347, %v3603
        %v3605 = vpop.f32.mrf.mxu0
        %v3606 = vadd.f32 %v3349, %v3605
        %3607 = vmatprep.mubr.f32.mxu0 0.0
        %3608 = vmatmul.mubr.f32.gmra.mxu0 %v2949
        %v3609 = vpop.f32.mrf.mxu0
        %v3610 = vadd.f32 %v3353, %v3609
        %v3611 = vpop.f32.mrf.mxu0
        %v3612 = vadd.f32 %v3355, %v3611
        %3613 = vmatprep.mubr.f32.mxu0 0.0
        %3614 = vmatmul.mubr.f32.gmra.mxu0 %v2950
        %v3615 = vpop.f32.mrf.mxu0
        %v3616 = vadd.f32 %v3359, %v3615
        %v3617 = vpop.f32.mrf.mxu0
        %v3618 = vadd.f32 %v3361, %v3617
        %3619 = vmatprep.mubr.f32.mxu0 0.0
        %3620 = vmatmul.mubr.f32.gmra.mxu0 %v2951
        %v3621 = vpop.f32.mrf.mxu0
        %v3622 = vadd.f32 %v3365, %v3621
        %v3623 = vpop.f32.mrf.mxu0
        %v3624 = vadd.f32 %v3367, %v3623
        %3625 = vmatprep.mubr.f32.mxu0 0.0
        %3626 = vmatmul.mubr.f32.gmra.mxu0 %v2952
        %v3627 = vpop.f32.mrf.mxu0
        %v3628 = vadd.f32 %v3371, %v3627
        %v3629 = vpop.f32.mrf.mxu0
        %v3630 = vadd.f32 %v3373, %v3629
        %3631 = vmatprep.mubr.f32.mxu0 0.0
        %3632 = vmatmul.mubr.f32.gmra.mxu0 %v2953
        %v3633 = vpop.f32.mrf.mxu0
        %v3634 = vadd.f32 %v3377, %v3633
        %v3635 = vpop.f32.mrf.mxu0
        %v3636 = vadd.f32 %v3379, %v3635
        %3637 = vmatprep.mubr.f32.mxu0 0.0
        %3638 = vmatmul.mubr.f32.gmra.mxu0 %v2954
        %v3639 = vpop.f32.mrf.mxu0
        %v3640 = vadd.f32 %v3383, %v3639
        %v3641 = vpop.f32.mrf.mxu0
        %v3642 = vadd.f32 %v3385, %v3641
        %3643 = vmatprep.mubr.f32.mxu0 0.0
        %3644 = vmatmul.mubr.f32.gmra.mxu0 %v2955
        %v3645 = vpop.f32.mrf.mxu0
        %v3646 = vadd.f32 %v3389, %v3645
        %v3647 = vpop.f32.mrf.mxu0
        %v3648 = vadd.f32 %v3391, %v3647
        %3649 = vmatprep.mubr.f32.mxu0 0.0
        %3650 = vmatmul.mubr.f32.gmra.mxu0 %v2956
        %v3651 = vpop.f32.mrf.mxu0
        %v3652 = vadd.f32 %v3395, %v3651
        %v3653 = vpop.f32.mrf.mxu0
        %v3654 = vadd.f32 %v3397, %v3653
        %3655 = vmatprep.mubr.f32.mxu0 0.0
        %3656 = vmatmul.mubr.f32.gmra.mxu0 %v2957
        %v3657 = vpop.f32.mrf.mxu0
        %v3658 = vadd.f32 %v3401, %v3657
        %v3659 = vpop.f32.mrf.mxu0
        %v3660 = vadd.f32 %v3403, %v3659
        %3661 = vmatprep.mubr.f32.mxu0 0.0
        %3662 = vmatmul.mubr.f32.gmra.mxu0 %v2958
        %v3663 = vpop.f32.mrf.mxu0
        %v3664 = vadd.f32 %v3407, %v3663
        %v3665 = vpop.f32.mrf.mxu0
        %v3666 = vadd.f32 %v3409, %v3665
        %3667 = vdwg.mxu0
        %3668 = vmatprep.subr.mxu0 %v2992
        %3669 = vmatpush1.msra.mxu0 %v2991
        %3670 = vmatprep.subr.mxu0 %v2990
        %3671 = vmatpush1.msra.mxu0 %v2989
        %3672 = vmatprep.subr.mxu0 %v2988
        %3673 = vmatpush1.msra.mxu0 %v2987
        %3674 = vmatprep.subr.mxu0 %v2986
        %3675 = vmatpush1.msra.mxu0 %v2985
        %3676 = vmatprep.subr.mxu0 %v2984
        %3677 = vmatpush1.msra.mxu0 %v2983
        %3678 = vmatprep.subr.mxu0 %v2982
        %3679 = vmatpush1.msra.mxu0 %v2981
        %3680 = vmatprep.subr.mxu0 %v2980
        %3681 = vmatpush1.msra.mxu0 %v2979
        %3682 = vmatprep.subr.mxu0 %v2978
        %3683 = vmatpush1.msra.mxu0 %v2977
        %3684 = vmatprep.subr.mxu0 %v2976
        %3685 = vmatpush1.msra.mxu0 %v2975
        %3686 = vmatprep.subr.mxu0 %v2974
        %3687 = vmatpush1.msra.mxu0 %v2973
        %3688 = vmatprep.subr.mxu0 %v2972
        %3689 = vmatpush1.msra.mxu0 %v2971
        %3690 = vmatprep.subr.mxu0 %v2970
        %3691 = vmatpush1.msra.mxu0 %v2969
        %3692 = vmatprep.subr.mxu0 %v2968
        %3693 = vmatpush1.msra.mxu0 %v2967
        %3694 = vmatprep.subr.mxu0 %v2966
        %3695 = vmatpush1.msra.mxu0 %v2965
        %3696 = vmatprep.subr.mxu0 %v2964
        %3697 = vmatpush1.msra.mxu0 %v2963
        %3698 = vmatprep.subr.mxu0 %v2962
        %3699 = vmatpush1.msra.mxu0 %v2961
        %3700 = vmatprep.subr.mxu0 %v3024
        %3701 = vmatpush2.msra.mxu0 %v3023
        %3702 = vmatprep.subr.mxu0 %v3022
        %3703 = vmatpush2.msra.mxu0 %v3021
        %3704 = vmatprep.subr.mxu0 %v3020
        %3705 = vmatpush2.msra.mxu0 %v3019
        %3706 = vmatprep.subr.mxu0 %v3018
        %3707 = vmatpush2.msra.mxu0 %v3017
        %3708 = vmatprep.subr.mxu0 %v3016
        %3709 = vmatpush2.msra.mxu0 %v3015
        %3710 = vmatprep.subr.mxu0 %v3014
        %3711 = vmatpush2.msra.mxu0 %v3013
        %3712 = vmatprep.subr.mxu0 %v3012
        %3713 = vmatpush2.msra.mxu0 %v3011
        %3714 = vmatprep.subr.mxu0 %v3010
        %3715 = vmatpush2.msra.mxu0 %v3009
        %3716 = vmatprep.subr.mxu0 %v3008
        %3717 = vmatpush2.msra.mxu0 %v3007
        %3718 = vmatprep.subr.mxu0 %v3006
        %3719 = vmatpush2.msra.mxu0 %v3005
        %3720 = vmatprep.subr.mxu0 %v3004
        %3721 = vmatpush2.msra.mxu0 %v3003
        %3722 = vmatprep.subr.mxu0 %v3002
        %3723 = vmatpush2.msra.mxu0 %v3001
        %3724 = vmatprep.subr.mxu0 %v3000
        %3725 = vmatpush2.msra.mxu0 %v2999
        %3726 = vmatprep.subr.mxu0 %v2998
        %3727 = vmatpush2.msra.mxu0 %v2997
        %3728 = vmatprep.subr.mxu0 %v2996
        %3729 = vmatpush2.msra.mxu0 %v2995
        %3730 = vmatprep.subr.mxu0 %v2994
        %3731 = vmatpush2.msra.mxu0 %v2993
        %3732 = vmatprep.mubr.f32.mxu0 %v2889
        %3733 = vmatmul.mubr.f32.gmra.mxu0 %v2853
        %v3734 = vpop.f32.mrf.mxu0
        %v3735 = vadd.f32 %v3478, %v3734
        %v3736 = vpop.f32.mrf.mxu0
        %v3737 = vadd.f32 %v3480, %v3736
        %3738 = vmatprep.mubr.f32.mxu0 %v2890
        %3739 = vmatmul.mubr.f32.gmra.mxu0 %v2854
        %v3740 = vpop.f32.mrf.mxu0
        %v3741 = vadd.f32 %v3484, %v3740
        %v3742 = vpop.f32.mrf.mxu0
        %v3743 = vadd.f32 %v3486, %v3742
        %3744 = vmatprep.mubr.f32.mxu0 %v2891
        %3745 = vmatmul.mubr.f32.gmra.mxu0 %v2855
        %v3746 = vpop.f32.mrf.mxu0
        %v3747 = vadd.f32 %v3490, %v3746
        %v3748 = vpop.f32.mrf.mxu0
        %v3749 = vadd.f32 %v3492, %v3748
        %3750 = vmatprep.mubr.f32.mxu0 %v2892
        %3751 = vmatmul.mubr.f32.gmra.mxu0 %v2856
        %v3752 = vpop.f32.mrf.mxu0
        %v3753 = vadd.f32 %v3496, %v3752
        %v3754 = vpop.f32.mrf.mxu0
        %v3755 = vadd.f32 %v3498, %v3754
        %3756 = vmatprep.mubr.f32.mxu0 %v2893
        %3757 = vmatmul.mubr.f32.gmra.mxu0 %v2857
        %v3758 = vpop.f32.mrf.mxu0
        %v3759 = vadd.f32 %v3502, %v3758
        %v3760 = vpop.f32.mrf.mxu0
        %v3761 = vadd.f32 %v3504, %v3760
        %3762 = vmatprep.mubr.f32.mxu0 %v2894
        %3763 = vmatmul.mubr.f32.gmra.mxu0 %v2858
        %v3764 = vpop.f32.mrf.mxu0
        %v3765 = vadd.f32 %v3508, %v3764
        %v3766 = vpop.f32.mrf.mxu0
        %v3767 = vadd.f32 %v3510, %v3766
        %3768 = vmatprep.mubr.f32.mxu0 %v2895
        %3769 = vmatmul.mubr.f32.gmra.mxu0 %v2859
        %v3770 = vpop.f32.mrf.mxu0
        %v3771 = vadd.f32 %v3514, %v3770
        %v3772 = vpop.f32.mrf.mxu0
        %v3773 = vadd.f32 %v3516, %v3772
        %3774 = vmatprep.mubr.f32.mxu0 %v2896
        %3775 = vmatmul.mubr.f32.gmra.mxu0 %v2860
        %v3776 = vpop.f32.mrf.mxu0
        %v3777 = vadd.f32 %v3520, %v3776
        %v3778 = vpop.f32.mrf.mxu0
        %v3779 = vadd.f32 %v3522, %v3778
        %3780 = vmatprep.mubr.f32.mxu0 %v2897
        %3781 = vmatmul.mubr.f32.gmra.mxu0 %v2861
        %v3782 = vpop.f32.mrf.mxu0
        %v3783 = vadd.f32 %v3526, %v3782
        %v3784 = vpop.f32.mrf.mxu0
        %v3785 = vadd.f32 %v3528, %v3784
        %3786 = vmatprep.mubr.f32.mxu0 %v2898
        %3787 = vmatmul.mubr.f32.gmra.mxu0 %v2862
        %v3788 = vpop.f32.mrf.mxu0
        %v3789 = vadd.f32 %v3532, %v3788
        %v3790 = vpop.f32.mrf.mxu0
        %v3791 = vadd.f32 %v3534, %v3790
        %3792 = vmatprep.mubr.f32.mxu0 %v2899
        %3793 = vmatmul.mubr.f32.gmra.mxu0 %v2863
        %v3794 = vpop.f32.mrf.mxu0
        %v3795 = vadd.f32 %v3538, %v3794
        %v3796 = vpop.f32.mrf.mxu0
        %v3797 = vadd.f32 %v3540, %v3796
        %3798 = vmatprep.mubr.f32.mxu0 %v2900
        %3799 = vmatmul.mubr.f32.gmra.mxu0 %v2864
        %v3800 = vpop.f32.mrf.mxu0
        %v3801 = vadd.f32 %v3544, %v3800
        %v3802 = vpop.f32.mrf.mxu0
        %v3803 = vadd.f32 %v3546, %v3802
        %3804 = vmatprep.mubr.f32.mxu0 %v2901
        %3805 = vmatmul.mubr.f32.gmra.mxu0 %v2865
        %v3806 = vpop.f32.mrf.mxu0
        %v3807 = vadd.f32 %v3550, %v3806
        %v3808 = vpop.f32.mrf.mxu0
        %v3809 = vadd.f32 %v3552, %v3808
        %3810 = vmatprep.mubr.f32.mxu0 %v2902
        %3811 = vmatmul.mubr.f32.gmra.mxu0 %v2866
        %v3812 = vpop.f32.mrf.mxu0
        %v3813 = vadd.f32 %v3556, %v3812
        %v3814 = vpop.f32.mrf.mxu0
        %v3815 = vadd.f32 %v3558, %v3814
        %3816 = vmatprep.mubr.f32.mxu0 %v2903
        %3817 = vmatmul.mubr.f32.gmra.mxu0 %v2867
        %v3818 = vpop.f32.mrf.mxu0
        %v3819 = vadd.f32 %v3562, %v3818
        %v3820 = vpop.f32.mrf.mxu0
        %v3821 = vadd.f32 %v3564, %v3820
        %3822 = vmatprep.mubr.f32.mxu0 %v2904
        %3823 = vmatmul.mubr.f32.gmra.mxu0 %v2868
        %v3824 = vpop.f32.mrf.mxu0
        %v3825 = vadd.f32 %v3568, %v3824
        %v3826 = vpop.f32.mrf.mxu0
        %v3827 = vadd.f32 %v3570, %v3826
        %3828 = vmatprep.mubr.f32.mxu0 %v2905
        %3829 = vmatmul.mubr.f32.gmra.mxu0 %v2869
        %v3830 = vpop.f32.mrf.mxu0
        %v3831 = vadd.f32 %v3574, %v3830
        %v3832 = vpop.f32.mrf.mxu0
        %v3833 = vadd.f32 %v3576, %v3832
        %3834 = vmatprep.mubr.f32.mxu0 %v2906
        %3835 = vmatmul.mubr.f32.gmra.mxu0 %v2870
        %v3836 = vpop.f32.mrf.mxu0
        %v3837 = vadd.f32 %v3580, %v3836
        %v3838 = vpop.f32.mrf.mxu0
        %v3839 = vadd.f32 %v3582, %v3838
        %3840 = vmatprep.mubr.f32.mxu0 %v2907
        %3841 = vmatmul.mubr.f32.gmra.mxu0 %v2871
        %v3842 = vpop.f32.mrf.mxu0
        %v3843 = vadd.f32 %v3586, %v3842
        %v3844 = vpop.f32.mrf.mxu0
        %v3845 = vadd.f32 %v3588, %v3844
        %3846 = vmatprep.mubr.f32.mxu0 %v2908
        %3847 = vmatmul.mubr.f32.gmra.mxu0 %v2872
        %v3848 = vpop.f32.mrf.mxu0
        %v3849 = vadd.f32 %v3592, %v3848
        %v3850 = vpop.f32.mrf.mxu0
        %v3851 = vadd.f32 %v3594, %v3850
        %3852 = vmatprep.mubr.f32.mxu0 %v2909
        %3853 = vmatmul.mubr.f32.gmra.mxu0 %v2873
        %v3854 = vpop.f32.mrf.mxu0
        %v3855 = vadd.f32 %v3598, %v3854
        %v3856 = vpop.f32.mrf.mxu0
        %v3857 = vadd.f32 %v3600, %v3856
        %3858 = vmatprep.mubr.f32.mxu0 %v2910
        %3859 = vmatmul.mubr.f32.gmra.mxu0 %v2874
        %v3860 = vpop.f32.mrf.mxu0
        %v3861 = vadd.f32 %v3604, %v3860
        %v3862 = vpop.f32.mrf.mxu0
        %v3863 = vadd.f32 %v3606, %v3862
        %3864 = vmatprep.mubr.f32.mxu0 %v2911
        %3865 = vmatmul.mubr.f32.gmra.mxu0 %v2875
        %v3866 = vpop.f32.mrf.mxu0
        %v3867 = vadd.f32 %v3610, %v3866
        %v3868 = vpop.f32.mrf.mxu0
        %v3869 = vadd.f32 %v3612, %v3868
        %3870 = vmatprep.mubr.f32.mxu0 %v2912
        %3871 = vmatmul.mubr.f32.gmra.mxu0 %v2876
        %v3872 = vpop.f32.mrf.mxu0
        %v3873 = vadd.f32 %v3616, %v3872
        %v3874 = vpop.f32.mrf.mxu0
        %v3875 = vadd.f32 %v3618, %v3874
        %3876 = vmatprep.mubr.f32.mxu0 %v2913
        %3877 = vmatmul.mubr.f32.gmra.mxu0 %v2877
        %v3878 = vpop.f32.mrf.mxu0
        %v3879 = vadd.f32 %v3622, %v3878
        %v3880 = vpop.f32.mrf.mxu0
        %v3881 = vadd.f32 %v3624, %v3880
        %3882 = vmatprep.mubr.f32.mxu0 %v2914
        %3883 = vmatmul.mubr.f32.gmra.mxu0 %v2878
        %v3884 = vpop.f32.mrf.mxu0
        %v3885 = vadd.f32 %v3628, %v3884
        %v3886 = vpop.f32.mrf.mxu0
        %v3887 = vadd.f32 %v3630, %v3886
        %3888 = vmatprep.mubr.f32.mxu0 %v2915
        %3889 = vmatmul.mubr.f32.gmra.mxu0 %v2879
        %v3890 = vpop.f32.mrf.mxu0
        %v3891 = vadd.f32 %v3634, %v3890
        %v3892 = vpop.f32.mrf.mxu0
        %v3893 = vadd.f32 %v3636, %v3892
        %3894 = vmatprep.mubr.f32.mxu0 %v2916
        %3895 = vmatmul.mubr.f32.gmra.mxu0 %v2880
        %v3896 = vpop.f32.mrf.mxu0
        %v3897 = vadd.f32 %v3640, %v3896
        %v3898 = vpop.f32.mrf.mxu0
        %v3899 = vadd.f32 %v3642, %v3898
        %3900 = vmatprep.mubr.f32.mxu0 %v2917
        %3901 = vmatmul.mubr.f32.gmra.mxu0 %v2881
        %v3902 = vpop.f32.mrf.mxu0
        %v3903 = vadd.f32 %v3646, %v3902
        %v3904 = vpop.f32.mrf.mxu0
        %v3905 = vadd.f32 %v3648, %v3904
        %3906 = vmatprep.mubr.f32.mxu0 %v2918
        %3907 = vmatmul.mubr.f32.gmra.mxu0 %v2882
        %v3908 = vpop.f32.mrf.mxu0
        %v3909 = vadd.f32 %v3652, %v3908
        %v3910 = vpop.f32.mrf.mxu0
        %v3911 = vadd.f32 %v3654, %v3910
        %3912 = vmatprep.mubr.f32.mxu0 %v2919
        %3913 = vmatmul.mubr.f32.gmra.mxu0 %v2883
        %v3914 = vpop.f32.mrf.mxu0
        %v3915 = vadd.f32 %v3658, %v3914
        %v3916 = vpop.f32.mrf.mxu0
        %v3917 = vadd.f32 %v3660, %v3916
        %3918 = vmatprep.mubr.f32.mxu0 %v2920
        %3919 = vmatmul.mubr.f32.gmra.mxu0 %v2884
        %v3920 = vpop.f32.mrf.mxu0
        %v3921 = vadd.f32 %v3664, %v3920
        %v3922 = vpop.f32.mrf.mxu0
        %v3923 = vadd.f32 %v3666, %v3922
        %3924 = vdwg.mxu0
        %3925 = vmatprep.subr.mxu0 %v3056
        %3926 = vmatpush1.msra.mxu0 %v3055
        %3927 = vmatprep.subr.mxu0 %v3054
        %3928 = vmatpush1.msra.mxu0 %v3053
        %3929 = vmatprep.subr.mxu0 %v3052
        %3930 = vmatpush1.msra.mxu0 %v3051
        %3931 = vmatprep.subr.mxu0 %v3050
        %3932 = vmatpush1.msra.mxu0 %v3049
        %3933 = vmatprep.subr.mxu0 %v3048
        %3934 = vmatpush1.msra.mxu0 %v3047
        %3935 = vmatprep.subr.mxu0 %v3046
        %3936 = vmatpush1.msra.mxu0 %v3045
        %3937 = vmatprep.subr.mxu0 %v3044
        %3938 = vmatpush1.msra.mxu0 %v3043
        %3939 = vmatprep.subr.mxu0 %v3042
        %3940 = vmatpush1.msra.mxu0 %v3041
        %3941 = vmatprep.subr.mxu0 %v3040
        %3942 = vmatpush1.msra.mxu0 %v3039
        %3943 = vmatprep.subr.mxu0 %v3038
        %3944 = vmatpush1.msra.mxu0 %v3037
        %3945 = vmatprep.subr.mxu0 %v3036
        %3946 = vmatpush1.msra.mxu0 %v3035
        %3947 = vmatprep.subr.mxu0 %v3034
        %3948 = vmatpush1.msra.mxu0 %v3033
        %3949 = vmatprep.subr.mxu0 %v3032
        %3950 = vmatpush1.msra.mxu0 %v3031
        %3951 = vmatprep.subr.mxu0 %v3030
        %3952 = vmatpush1.msra.mxu0 %v3029
        %3953 = vmatprep.subr.mxu0 %v3028
        %3954 = vmatpush1.msra.mxu0 %v3027
        %3955 = vmatprep.subr.mxu0 %v3026
        %3956 = vmatpush1.msra.mxu0 %v3025
        %3957 = vmatprep.subr.mxu0 0.0
        %3958 = vmatpush2.msra.mxu0 0.0
        %3959 = vmatprep.subr.mxu0 0.0
        %3960 = vmatpush2.msra.mxu0 0.0
        %3961 = vmatprep.subr.mxu0 0.0
        %3962 = vmatpush2.msra.mxu0 0.0
        %3963 = vmatprep.subr.mxu0 0.0
        %3964 = vmatpush2.msra.mxu0 0.0
        %3965 = vmatprep.subr.mxu0 0.0
        %3966 = vmatpush2.msra.mxu0 0.0
        %3967 = vmatprep.subr.mxu0 0.0
        %3968 = vmatpush2.msra.mxu0 0.0
        %3969 = vmatprep.subr.mxu0 0.0
        %3970 = vmatpush2.msra.mxu0 0.0
        %3971 = vmatprep.subr.mxu0 0.0
        %3972 = vmatpush2.msra.mxu0 0.0
        %3973 = vmatprep.subr.mxu0 0.0
        %3974 = vmatpush2.msra.mxu0 0.0
        %3975 = vmatprep.subr.mxu0 0.0
        %3976 = vmatpush2.msra.mxu0 0.0
        %3977 = vmatprep.subr.mxu0 0.0
        %3978 = vmatpush2.msra.mxu0 0.0
        %3979 = vmatprep.subr.mxu0 0.0
        %3980 = vmatpush2.msra.mxu0 0.0
        %3981 = vmatprep.subr.mxu0 0.0
        %3982 = vmatpush2.msra.mxu0 0.0
        %3983 = vmatprep.subr.mxu0 0.0
        %3984 = vmatpush2.msra.mxu0 0.0
        %3985 = vmatprep.subr.mxu0 0.0
        %3986 = vmatpush2.msra.mxu0 0.0
        %3987 = vmatprep.subr.mxu0 0.0
        %3988 = vmatpush2.msra.mxu0 0.0
        %3989 = vmatprep.mubr.f32.mxu0 0.0
        %3990 = vmatmul.mubr.f32.gmra.mxu0 %v2925
        %v3991 = vpop.f32.mrf.mxu0
        %v3992 = vadd.f32 %v3735, %v3991
        %v3993 = vpop.f32.mrf.mxu0
        %v3994 = vadd.f32 %v3737, %v3993
        %3995 = vmatprep.mubr.f32.mxu0 0.0
        %3996 = vmatmul.mubr.f32.gmra.mxu0 %v2926
        %v3997 = vpop.f32.mrf.mxu0
        %v3998 = vadd.f32 %v3741, %v3997
        %v3999 = vpop.f32.mrf.mxu0
        %v4000 = vadd.f32 %v3743, %v3999
        %4001 = vmatprep.mubr.f32.mxu0 0.0
        %4002 = vmatmul.mubr.f32.gmra.mxu0 %v2927
        %v4003 = vpop.f32.mrf.mxu0
        %v4004 = vadd.f32 %v3747, %v4003
        %v4005 = vpop.f32.mrf.mxu0
        %v4006 = vadd.f32 %v3749, %v4005
        %4007 = vmatprep.mubr.f32.mxu0 0.0
        %4008 = vmatmul.mubr.f32.gmra.mxu0 %v2928
        %v4009 = vpop.f32.mrf.mxu0
        %v4010 = vadd.f32 %v3753, %v4009
        %v4011 = vpop.f32.mrf.mxu0
        %v4012 = vadd.f32 %v3755, %v4011
        %4013 = vmatprep.mubr.f32.mxu0 0.0
        %4014 = vmatmul.mubr.f32.gmra.mxu0 %v2929
        %v4015 = vpop.f32.mrf.mxu0
        %v4016 = vadd.f32 %v3759, %v4015
        %v4017 = vpop.f32.mrf.mxu0
        %v4018 = vadd.f32 %v3761, %v4017
        %4019 = vmatprep.mubr.f32.mxu0 0.0
        %4020 = vmatmul.mubr.f32.gmra.mxu0 %v2930
        %v4021 = vpop.f32.mrf.mxu0
        %v4022 = vadd.f32 %v3765, %v4021
        %v4023 = vpop.f32.mrf.mxu0
        %v4024 = vadd.f32 %v3767, %v4023
        %4025 = vmatprep.mubr.f32.mxu0 0.0
        %4026 = vmatmul.mubr.f32.gmra.mxu0 %v2931
        %v4027 = vpop.f32.mrf.mxu0
        %v4028 = vadd.f32 %v3771, %v4027
        %v4029 = vpop.f32.mrf.mxu0
        %v4030 = vadd.f32 %v3773, %v4029
        %4031 = vmatprep.mubr.f32.mxu0 0.0
        %4032 = vmatmul.mubr.f32.gmra.mxu0 %v2932
        %v4033 = vpop.f32.mrf.mxu0
        %v4034 = vadd.f32 %v3777, %v4033
        %v4035 = vpop.f32.mrf.mxu0
        %v4036 = vadd.f32 %v3779, %v4035
        %4037 = vmatprep.mubr.f32.mxu0 0.0
        %4038 = vmatmul.mubr.f32.gmra.mxu0 %v2933
        %v4039 = vpop.f32.mrf.mxu0
        %v4040 = vadd.f32 %v3783, %v4039
        %v4041 = vpop.f32.mrf.mxu0
        %v4042 = vadd.f32 %v3785, %v4041
        %4043 = vmatprep.mubr.f32.mxu0 0.0
        %4044 = vmatmul.mubr.f32.gmra.mxu0 %v2934
        %v4045 = vpop.f32.mrf.mxu0
        %v4046 = vadd.f32 %v3789, %v4045
        %v4047 = vpop.f32.mrf.mxu0
        %v4048 = vadd.f32 %v3791, %v4047
        %4049 = vmatprep.mubr.f32.mxu0 0.0
        %4050 = vmatmul.mubr.f32.gmra.mxu0 %v2935
        %v4051 = vpop.f32.mrf.mxu0
        %v4052 = vadd.f32 %v3795, %v4051
        %v4053 = vpop.f32.mrf.mxu0
        %v4054 = vadd.f32 %v3797, %v4053
        %4055 = vmatprep.mubr.f32.mxu0 0.0
        %4056 = vmatmul.mubr.f32.gmra.mxu0 %v2936
        %v4057 = vpop.f32.mrf.mxu0
        %v4058 = vadd.f32 %v3801, %v4057
        %v4059 = vpop.f32.mrf.mxu0
        %v4060 = vadd.f32 %v3803, %v4059
        %4061 = vmatprep.mubr.f32.mxu0 0.0
        %4062 = vmatmul.mubr.f32.gmra.mxu0 %v2937
        %v4063 = vpop.f32.mrf.mxu0
        %v4064 = vadd.f32 %v3807, %v4063
        %v4065 = vpop.f32.mrf.mxu0
        %v4066 = vadd.f32 %v3809, %v4065
        %4067 = vmatprep.mubr.f32.mxu0 0.0
        %4068 = vmatmul.mubr.f32.gmra.mxu0 %v2938
        %v4069 = vpop.f32.mrf.mxu0
        %v4070 = vadd.f32 %v3813, %v4069
        %v4071 = vpop.f32.mrf.mxu0
        %v4072 = vadd.f32 %v3815, %v4071
        %4073 = vmatprep.mubr.f32.mxu0 0.0
        %4074 = vmatmul.mubr.f32.gmra.mxu0 %v2939
        %v4075 = vpop.f32.mrf.mxu0
        %v4076 = vadd.f32 %v3819, %v4075
        %v4077 = vpop.f32.mrf.mxu0
        %v4078 = vadd.f32 %v3821, %v4077
        %4079 = vmatprep.mubr.f32.mxu0 0.0
        %4080 = vmatmul.mubr.f32.gmra.mxu0 %v2940
        %v4081 = vpop.f32.mrf.mxu0
        %v4082 = vadd.f32 %v3825, %v4081
        %v4083 = vpop.f32.mrf.mxu0
        %v4084 = vadd.f32 %v3827, %v4083
        %4085 = vmatprep.mubr.f32.mxu0 0.0
        %4086 = vmatmul.mubr.f32.gmra.mxu0 %v2941
        %v4087 = vpop.f32.mrf.mxu0
        %v4088 = vadd.f32 %v3831, %v4087
        %v4089 = vpop.f32.mrf.mxu0
        %v4090 = vadd.f32 %v3833, %v4089
        %4091 = vmatprep.mubr.f32.mxu0 0.0
        %4092 = vmatmul.mubr.f32.gmra.mxu0 %v2942
        %v4093 = vpop.f32.mrf.mxu0
        %v4094 = vadd.f32 %v3837, %v4093
        %v4095 = vpop.f32.mrf.mxu0
        %v4096 = vadd.f32 %v3839, %v4095
        %4097 = vmatprep.mubr.f32.mxu0 0.0
        %4098 = vmatmul.mubr.f32.gmra.mxu0 %v2943
        %v4099 = vpop.f32.mrf.mxu0
        %v4100 = vadd.f32 %v3843, %v4099
        %v4101 = vpop.f32.mrf.mxu0
        %v4102 = vadd.f32 %v3845, %v4101
        %4103 = vmatprep.mubr.f32.mxu0 0.0
        %4104 = vmatmul.mubr.f32.gmra.mxu0 %v2944
        %v4105 = vpop.f32.mrf.mxu0
        %v4106 = vadd.f32 %v3849, %v4105
        %v4107 = vpop.f32.mrf.mxu0
        %v4108 = vadd.f32 %v3851, %v4107
        %4109 = vmatprep.mubr.f32.mxu0 0.0
        %4110 = vmatmul.mubr.f32.gmra.mxu0 %v2945
        %v4111 = vpop.f32.mrf.mxu0
        %v4112 = vadd.f32 %v3855, %v4111
        %v4113 = vpop.f32.mrf.mxu0
        %v4114 = vadd.f32 %v3857, %v4113
        %4115 = vmatprep.mubr.f32.mxu0 0.0
        %4116 = vmatmul.mubr.f32.gmra.mxu0 %v2946
        %v4117 = vpop.f32.mrf.mxu0
        %v4118 = vadd.f32 %v3861, %v4117
        %v4119 = vpop.f32.mrf.mxu0
        %v4120 = vadd.f32 %v3863, %v4119
        %4121 = vmatprep.mubr.f32.mxu0 0.0
        %4122 = vmatmul.mubr.f32.gmra.mxu0 %v2947
        %v4123 = vpop.f32.mrf.mxu0
        %v4124 = vadd.f32 %v3867, %v4123
        %v4125 = vpop.f32.mrf.mxu0
        %v4126 = vadd.f32 %v3869, %v4125
        %4127 = vmatprep.mubr.f32.mxu0 0.0
        %4128 = vmatmul.mubr.f32.gmra.mxu0 %v2948
        %v4129 = vpop.f32.mrf.mxu0
        %v4130 = vadd.f32 %v3873, %v4129
        %v4131 = vpop.f32.mrf.mxu0
        %v4132 = vadd.f32 %v3875, %v4131
        %4133 = vmatprep.mubr.f32.mxu0 0.0
        %4134 = vmatmul.mubr.f32.gmra.mxu0 %v2949
        %v4135 = vpop.f32.mrf.mxu0
        %v4136 = vadd.f32 %v3879, %v4135
        %v4137 = vpop.f32.mrf.mxu0
        %v4138 = vadd.f32 %v3881, %v4137
        %4139 = vmatprep.mubr.f32.mxu0 0.0
        %4140 = vmatmul.mubr.f32.gmra.mxu0 %v2950
        %v4141 = vpop.f32.mrf.mxu0
        %v4142 = vadd.f32 %v3885, %v4141
        %v4143 = vpop.f32.mrf.mxu0
        %v4144 = vadd.f32 %v3887, %v4143
        %4145 = vmatprep.mubr.f32.mxu0 0.0
        %4146 = vmatmul.mubr.f32.gmra.mxu0 %v2951
        %v4147 = vpop.f32.mrf.mxu0
        %v4148 = vadd.f32 %v3891, %v4147
        %v4149 = vpop.f32.mrf.mxu0
        %v4150 = vadd.f32 %v3893, %v4149
        %4151 = vmatprep.mubr.f32.mxu0 0.0
        %4152 = vmatmul.mubr.f32.gmra.mxu0 %v2952
        %v4153 = vpop.f32.mrf.mxu0
        %v4154 = vadd.f32 %v3897, %v4153
        %v4155 = vpop.f32.mrf.mxu0
        %v4156 = vadd.f32 %v3899, %v4155
        %4157 = vmatprep.mubr.f32.mxu0 0.0
        %4158 = vmatmul.mubr.f32.gmra.mxu0 %v2953
        %v4159 = vpop.f32.mrf.mxu0
        %v4160 = vadd.f32 %v3903, %v4159
        %v4161 = vpop.f32.mrf.mxu0
        %v4162 = vadd.f32 %v3905, %v4161
        %4163 = vmatprep.mubr.f32.mxu0 0.0
        %4164 = vmatmul.mubr.f32.gmra.mxu0 %v2954
        %v4165 = vpop.f32.mrf.mxu0
        %v4166 = vadd.f32 %v3909, %v4165
        %v4167 = vpop.f32.mrf.mxu0
        %v4168 = vadd.f32 %v3911, %v4167
        %4169 = vmatprep.mubr.f32.mxu0 0.0
        %4170 = vmatmul.mubr.f32.gmra.mxu0 %v2955
        %v4171 = vpop.f32.mrf.mxu0
        %v4172 = vadd.f32 %v3915, %v4171
        %v4173 = vpop.f32.mrf.mxu0
        %v4174 = vadd.f32 %v3917, %v4173
        %4175 = vmatprep.mubr.f32.mxu0 0.0
        %4176 = vmatmul.mubr.f32.gmra.mxu0 %v2956
        %v4177 = vpop.f32.mrf.mxu0
        %v4178 = vadd.f32 %v3921, %v4177
        %v4179 = vpop.f32.mrf.mxu0
        %v4180 = vadd.f32 %v3923, %v4179
        %4181 = vdwg.mxu0
        %s4182 = scalar_lea.vmem [#allocation12], 1536
        %v4183 = vld [vmem:[%s4182] sm:$0xff]
        %v4184 = vld [vmem:[%s4182 + $0x8] sm:$0xff]
        %v4185 = vld [vmem:[%s4182 + $0x10] sm:$0xff]
        %v4186 = vld [vmem:[%s4182 + $0x18] sm:$0xff]
        %v4187 = vld [vmem:[%s4182 + $0x20] sm:$0xff]
        %v4188 = vld [vmem:[%s4182 + $0x28] sm:$0xff]
        %v4189 = vld [vmem:[%s4182 + $0x30] sm:$0xff]
        %v4190 = vld [vmem:[%s4182 + $0x38] sm:$0xff]
        %v4191 = vld [vmem:[%s4182 + $0x40] sm:$0xff]
        %v4192 = vld [vmem:[%s4182 + $0x48] sm:$0xff]
        %v4193 = vld [vmem:[%s4182 + $0x50] sm:$0xff]
        %v4194 = vld [vmem:[%s4182 + $0x58] sm:$0xff]
        %v4195 = vld [vmem:[%s4182 + $0x60] sm:$0xff]
        %v4196 = vld [vmem:[%s4182 + $0x68] sm:$0xff]
        %v4197 = vld [vmem:[%s4182 + $0x70] sm:$0xff]
        %v4198 = vld [vmem:[%s4182 + $0x78] sm:$0xff]
        %v4199 = vld [vmem:[%s4182 + $0x80] sm:$0xff]
        %v4200 = vld [vmem:[%s4182 + $0x88] sm:$0xff]
        %v4201 = vld [vmem:[%s4182 + $0x90] sm:$0xff]
        %v4202 = vld [vmem:[%s4182 + $0x98] sm:$0xff]
        %v4203 = vld [vmem:[%s4182 + $0xa0] sm:$0xff]
        %v4204 = vld [vmem:[%s4182 + $0xa8] sm:$0xff]
        %v4205 = vld [vmem:[%s4182 + $0xb0] sm:$0xff]
        %v4206 = vld [vmem:[%s4182 + $0xb8] sm:$0xff]
        %v4207 = vld [vmem:[%s4182 + $0xc0] sm:$0xff]
        %v4208 = vld [vmem:[%s4182 + $0xc8] sm:$0xff]
        %v4209 = vld [vmem:[%s4182 + $0xd0] sm:$0xff]
        %v4210 = vld [vmem:[%s4182 + $0xd8] sm:$0xff]
        %v4211 = vld [vmem:[%s4182 + $0xe0] sm:$0xff]
        %v4212 = vld [vmem:[%s4182 + $0xe8] sm:$0xff]
        %v4213 = vld [vmem:[%s4182 + $0xf0] sm:$0xff]
        %v4214 = vld [vmem:[%s4182 + $0xf8] sm:$0xff]
        %v4215 = vld [vmem:[%s4182 + $0x100] sm:$0xff]
        %v4216 = vld [vmem:[%s4182 + $0x108] sm:$0xff]
        %v4217 = vld [vmem:[%s4182 + $0x110] sm:$0xff]
        %v4218 = vld [vmem:[%s4182 + $0x118] sm:$0xff]
        %v4219 = vld [vmem:[%s4182 + $0x120] sm:$0xff]
        %v4220 = vld [vmem:[%s4182 + $0x128] sm:$0xff]
        %v4221 = vld [vmem:[%s4182 + $0x130] sm:$0xff]
        %v4222 = vld [vmem:[%s4182 + $0x138] sm:$0xff]
        %v4223 = vld [vmem:[%s4182 + $0x140] sm:$0xff]
        %v4224 = vld [vmem:[%s4182 + $0x148] sm:$0xff]
        %v4225 = vld [vmem:[%s4182 + $0x150] sm:$0xff]
        %v4226 = vld [vmem:[%s4182 + $0x158] sm:$0xff]
        %v4227 = vld [vmem:[%s4182 + $0x160] sm:$0xff]
        %v4228 = vld [vmem:[%s4182 + $0x168] sm:$0xff]
        %v4229 = vld [vmem:[%s4182 + $0x170] sm:$0xff]
        %v4230 = vld [vmem:[%s4182 + $0x178] sm:$0xff]
        %v4231 = vld [vmem:[%s4182 + $0x180] sm:$0xff]
        %v4232 = vld [vmem:[%s4182 + $0x188] sm:$0xff]
        %v4233 = vld [vmem:[%s4182 + $0x190] sm:$0xff]
        %v4234 = vld [vmem:[%s4182 + $0x198] sm:$0xff]
        %v4235 = vld [vmem:[%s4182 + $0x1a0] sm:$0xff]
        %v4236 = vld [vmem:[%s4182 + $0x1a8] sm:$0xff]
        %v4237 = vld [vmem:[%s4182 + $0x1b0] sm:$0xff]
        %v4238 = vld [vmem:[%s4182 + $0x1b8] sm:$0xff]
        %v4239 = vld [vmem:[%s4182 + $0x1c0] sm:$0xff]
        %v4240 = vld [vmem:[%s4182 + $0x1c8] sm:$0xff]
        %v4241 = vld [vmem:[%s4182 + $0x1d0] sm:$0xff]
        %v4242 = vld [vmem:[%s4182 + $0x1d8] sm:$0xff]
        %v4243 = vld [vmem:[%s4182 + $0x1e0] sm:$0xff]
        %v4244 = vld [vmem:[%s4182 + $0x1e8] sm:$0xff]
        %v4245 = vld [vmem:[%s4182 + $0x1f0] sm:$0xff]
        %v4246 = vld [vmem:[%s4182 + $0x1f8] sm:$0xff]
        %v4247 = vld [vmem:[%s4182 + $0x200] sm:$0xff]
        %v4248 = vld [vmem:[%s4182 + $0x208] sm:$0xff]
        %v4249 = vld [vmem:[%s4182 + $0x210] sm:$0xff]
        %v4250 = vld [vmem:[%s4182 + $0x218] sm:$0xff]
        %v4251 = vld [vmem:[%s4182 + $0x220] sm:$0xff]
        %v4252 = vld [vmem:[%s4182 + $0x228] sm:$0xff]
        %v4253 = vld [vmem:[%s4182 + $0x230] sm:$0xff]
        %v4254 = vld [vmem:[%s4182 + $0x238] sm:$0xff]
        %v4255 = vld [vmem:[%s4182 + $0x240] sm:$0xff]
        %v4256 = vld [vmem:[%s4182 + $0x248] sm:$0xff]
        %v4257 = vld [vmem:[%s4182 + $0x250] sm:$0xff]
        %v4258 = vld [vmem:[%s4182 + $0x258] sm:$0xff]
        %v4259 = vld [vmem:[%s4182 + $0x260] sm:$0xff]
        %v4260 = vld [vmem:[%s4182 + $0x268] sm:$0xff]
        %v4261 = vld [vmem:[%s4182 + $0x270] sm:$0xff]
        %v4262 = vld [vmem:[%s4182 + $0x278] sm:$0xff]
        %v4263 = vld [vmem:[%s4182 + $0x280] sm:$0xff]
        %v4264 = vld [vmem:[%s4182 + $0x288] sm:$0xff]
        %v4265 = vld [vmem:[%s4182 + $0x290] sm:$0xff]
        %v4266 = vld [vmem:[%s4182 + $0x298] sm:$0xff]
        %v4267 = vld [vmem:[%s4182 + $0x2a0] sm:$0xff]
        %v4268 = vld [vmem:[%s4182 + $0x2a8] sm:$0xff]
        %v4269 = vld [vmem:[%s4182 + $0x2b0] sm:$0xff]
        %v4270 = vld [vmem:[%s4182 + $0x2b8] sm:$0xff]
        %v4271 = vld [vmem:[%s4182 + $0x2c0] sm:$0xff]
        %v4272 = vld [vmem:[%s4182 + $0x2c8] sm:$0xff]
        %v4273 = vld [vmem:[%s4182 + $0x2d0] sm:$0xff]
        %v4274 = vld [vmem:[%s4182 + $0x2d8] sm:$0xff]
        %v4275 = vld [vmem:[%s4182 + $0x2e0] sm:$0xff]
        %v4276 = vld [vmem:[%s4182 + $0x2e8] sm:$0xff]
        %v4277 = vld [vmem:[%s4182 + $0x2f0] sm:$0xff]
        %v4278 = vld [vmem:[%s4182 + $0x2f8] sm:$0xff]
        %4279 = vmatprep.subr.mxu0 %v4214
        %4280 = vmatpush1.msra.mxu0 %v4213
        %4281 = vmatprep.subr.mxu0 %v4212
        %4282 = vmatpush1.msra.mxu0 %v4211
        %4283 = vmatprep.subr.mxu0 %v4210
        %4284 = vmatpush1.msra.mxu0 %v4209
        %4285 = vmatprep.subr.mxu0 %v4208
        %4286 = vmatpush1.msra.mxu0 %v4207
        %4287 = vmatprep.subr.mxu0 %v4206
        %4288 = vmatpush1.msra.mxu0 %v4205
        %4289 = vmatprep.subr.mxu0 %v4204
        %4290 = vmatpush1.msra.mxu0 %v4203
        %4291 = vmatprep.subr.mxu0 %v4202
        %4292 = vmatpush1.msra.mxu0 %v4201
        %4293 = vmatprep.subr.mxu0 %v4200
        %4294 = vmatpush1.msra.mxu0 %v4199
        %4295 = vmatprep.subr.mxu0 %v4198
        %4296 = vmatpush1.msra.mxu0 %v4197
        %4297 = vmatprep.subr.mxu0 %v4196
        %4298 = vmatpush1.msra.mxu0 %v4195
        %4299 = vmatprep.subr.mxu0 %v4194
        %4300 = vmatpush1.msra.mxu0 %v4193
        %4301 = vmatprep.subr.mxu0 %v4192
        %4302 = vmatpush1.msra.mxu0 %v4191
        %4303 = vmatprep.subr.mxu0 %v4190
        %4304 = vmatpush1.msra.mxu0 %v4189
        %4305 = vmatprep.subr.mxu0 %v4188
        %4306 = vmatpush1.msra.mxu0 %v4187
        %4307 = vmatprep.subr.mxu0 %v4186
        %4308 = vmatpush1.msra.mxu0 %v4185
        %4309 = vmatprep.subr.mxu0 %v4184
        %4310 = vmatpush1.msra.mxu0 %v4183
        %4311 = vmatprep.subr.mxu0 %v4246
        %4312 = vmatpush2.msra.mxu0 %v4245
        %4313 = vmatprep.subr.mxu0 %v4244
        %4314 = vmatpush2.msra.mxu0 %v4243
        %4315 = vmatprep.subr.mxu0 %v4242
        %4316 = vmatpush2.msra.mxu0 %v4241
        %4317 = vmatprep.subr.mxu0 %v4240
        %4318 = vmatpush2.msra.mxu0 %v4239
        %4319 = vmatprep.subr.mxu0 %v4238
        %4320 = vmatpush2.msra.mxu0 %v4237
        %4321 = vmatprep.subr.mxu0 %v4236
        %4322 = vmatpush2.msra.mxu0 %v4235
        %4323 = vmatprep.subr.mxu0 %v4234
        %4324 = vmatpush2.msra.mxu0 %v4233
        %4325 = vmatprep.subr.mxu0 %v4232
        %4326 = vmatpush2.msra.mxu0 %v4231
        %4327 = vmatprep.subr.mxu0 %v4230
        %4328 = vmatpush2.msra.mxu0 %v4229
        %4329 = vmatprep.subr.mxu0 %v4228
        %4330 = vmatpush2.msra.mxu0 %v4227
        %4331 = vmatprep.subr.mxu0 %v4226
        %4332 = vmatpush2.msra.mxu0 %v4225
        %4333 = vmatprep.subr.mxu0 %v4224
        %4334 = vmatpush2.msra.mxu0 %v4223
        %4335 = vmatprep.subr.mxu0 %v4222
        %4336 = vmatpush2.msra.mxu0 %v4221
        %4337 = vmatprep.subr.mxu0 %v4220
        %4338 = vmatpush2.msra.mxu0 %v4219
        %4339 = vmatprep.subr.mxu0 %v4218
        %4340 = vmatpush2.msra.mxu0 %v4217
        %4341 = vmatprep.subr.mxu0 %v4216
        %4342 = vmatpush2.msra.mxu0 %v4215
        %4343 = vmatprep.mubr.f32.mxu0 %v2893
        %4344 = vmatmul.mubr.f32.gmra.mxu0 %v2857
        %v4345 = vpop.f32.mrf.mxu0
        %v4346 = vadd.f32 0.0, %v4345
        %v4347 = vpop.f32.mrf.mxu0
        %v4348 = vadd.f32 0.0, %v4347
        %4349 = vmatprep.mubr.f32.mxu0 %v2894
        %4350 = vmatmul.mubr.f32.gmra.mxu0 %v2858
        %v4351 = vpop.f32.mrf.mxu0
        %v4352 = vadd.f32 0.0, %v4351
        %v4353 = vpop.f32.mrf.mxu0
        %v4354 = vadd.f32 0.0, %v4353
        %4355 = vmatprep.mubr.f32.mxu0 %v2895
        %4356 = vmatmul.mubr.f32.gmra.mxu0 %v2859
        %v4357 = vpop.f32.mrf.mxu0
        %v4358 = vadd.f32 0.0, %v4357
        %v4359 = vpop.f32.mrf.mxu0
        %v4360 = vadd.f32 0.0, %v4359
        %4361 = vmatprep.mubr.f32.mxu0 %v2896
        %4362 = vmatmul.mubr.f32.gmra.mxu0 %v2860
        %v4363 = vpop.f32.mrf.mxu0
        %v4364 = vadd.f32 0.0, %v4363
        %v4365 = vpop.f32.mrf.mxu0
        %v4366 = vadd.f32 0.0, %v4365
        %4367 = vmatprep.mubr.f32.mxu0 %v2897
        %4368 = vmatmul.mubr.f32.gmra.mxu0 %v2861
        %v4369 = vpop.f32.mrf.mxu0
        %v4370 = vadd.f32 0.0, %v4369
        %v4371 = vpop.f32.mrf.mxu0
        %v4372 = vadd.f32 0.0, %v4371
        %4373 = vmatprep.mubr.f32.mxu0 %v2898
        %4374 = vmatmul.mubr.f32.gmra.mxu0 %v2862
        %v4375 = vpop.f32.mrf.mxu0
        %v4376 = vadd.f32 0.0, %v4375
        %v4377 = vpop.f32.mrf.mxu0
        %v4378 = vadd.f32 0.0, %v4377
        %4379 = vmatprep.mubr.f32.mxu0 %v2899
        %4380 = vmatmul.mubr.f32.gmra.mxu0 %v2863
        %v4381 = vpop.f32.mrf.mxu0
        %v4382 = vadd.f32 0.0, %v4381
        %v4383 = vpop.f32.mrf.mxu0
        %v4384 = vadd.f32 0.0, %v4383
        %4385 = vmatprep.mubr.f32.mxu0 %v2900
        %4386 = vmatmul.mubr.f32.gmra.mxu0 %v2864
        %v4387 = vpop.f32.mrf.mxu0
        %v4388 = vadd.f32 0.0, %v4387
        %v4389 = vpop.f32.mrf.mxu0
        %v4390 = vadd.f32 0.0, %v4389
        %4391 = vmatprep.mubr.f32.mxu0 %v2901
        %4392 = vmatmul.mubr.f32.gmra.mxu0 %v2865
        %v4393 = vpop.f32.mrf.mxu0
        %v4394 = vadd.f32 0.0, %v4393
        %v4395 = vpop.f32.mrf.mxu0
        %v4396 = vadd.f32 0.0, %v4395
        %4397 = vmatprep.mubr.f32.mxu0 %v2902
        %4398 = vmatmul.mubr.f32.gmra.mxu0 %v2866
        %v4399 = vpop.f32.mrf.mxu0
        %v4400 = vadd.f32 0.0, %v4399
        %v4401 = vpop.f32.mrf.mxu0
        %v4402 = vadd.f32 0.0, %v4401
        %4403 = vmatprep.mubr.f32.mxu0 %v2903
        %4404 = vmatmul.mubr.f32.gmra.mxu0 %v2867
        %v4405 = vpop.f32.mrf.mxu0
        %v4406 = vadd.f32 0.0, %v4405
        %v4407 = vpop.f32.mrf.mxu0
        %v4408 = vadd.f32 0.0, %v4407
        %4409 = vmatprep.mubr.f32.mxu0 %v2904
        %4410 = vmatmul.mubr.f32.gmra.mxu0 %v2868
        %v4411 = vpop.f32.mrf.mxu0
        %v4412 = vadd.f32 0.0, %v4411
        %v4413 = vpop.f32.mrf.mxu0
        %v4414 = vadd.f32 0.0, %v4413
        %4415 = vmatprep.mubr.f32.mxu0 %v2905
        %4416 = vmatmul.mubr.f32.gmra.mxu0 %v2869
        %v4417 = vpop.f32.mrf.mxu0
        %v4418 = vadd.f32 0.0, %v4417
        %v4419 = vpop.f32.mrf.mxu0
        %v4420 = vadd.f32 0.0, %v4419
        %4421 = vmatprep.mubr.f32.mxu0 %v2906
        %4422 = vmatmul.mubr.f32.gmra.mxu0 %v2870
        %v4423 = vpop.f32.mrf.mxu0
        %v4424 = vadd.f32 0.0, %v4423
        %v4425 = vpop.f32.mrf.mxu0
        %v4426 = vadd.f32 0.0, %v4425
        %4427 = vmatprep.mubr.f32.mxu0 %v2907
        %4428 = vmatmul.mubr.f32.gmra.mxu0 %v2871
        %v4429 = vpop.f32.mrf.mxu0
        %v4430 = vadd.f32 0.0, %v4429
        %v4431 = vpop.f32.mrf.mxu0
        %v4432 = vadd.f32 0.0, %v4431
        %4433 = vmatprep.mubr.f32.mxu0 %v2908
        %4434 = vmatmul.mubr.f32.gmra.mxu0 %v2872
        %v4435 = vpop.f32.mrf.mxu0
        %v4436 = vadd.f32 0.0, %v4435
        %v4437 = vpop.f32.mrf.mxu0
        %v4438 = vadd.f32 0.0, %v4437
        %4439 = vmatprep.mubr.f32.mxu0 %v2909
        %4440 = vmatmul.mubr.f32.gmra.mxu0 %v2873
        %v4441 = vpop.f32.mrf.mxu0
        %v4442 = vadd.f32 0.0, %v4441
        %v4443 = vpop.f32.mrf.mxu0
        %v4444 = vadd.f32 0.0, %v4443
        %4445 = vmatprep.mubr.f32.mxu0 %v2910
        %4446 = vmatmul.mubr.f32.gmra.mxu0 %v2874
        %v4447 = vpop.f32.mrf.mxu0
        %v4448 = vadd.f32 0.0, %v4447
        %v4449 = vpop.f32.mrf.mxu0
        %v4450 = vadd.f32 0.0, %v4449
        %4451 = vmatprep.mubr.f32.mxu0 %v2911
        %4452 = vmatmul.mubr.f32.gmra.mxu0 %v2875
        %v4453 = vpop.f32.mrf.mxu0
        %v4454 = vadd.f32 0.0, %v4453
        %v4455 = vpop.f32.mrf.mxu0
        %v4456 = vadd.f32 0.0, %v4455
        %4457 = vmatprep.mubr.f32.mxu0 %v2912
        %4458 = vmatmul.mubr.f32.gmra.mxu0 %v2876
        %v4459 = vpop.f32.mrf.mxu0
        %v4460 = vadd.f32 0.0, %v4459
        %v4461 = vpop.f32.mrf.mxu0
        %v4462 = vadd.f32 0.0, %v4461
        %4463 = vmatprep.mubr.f32.mxu0 %v2913
        %4464 = vmatmul.mubr.f32.gmra.mxu0 %v2877
        %v4465 = vpop.f32.mrf.mxu0
        %v4466 = vadd.f32 0.0, %v4465
        %v4467 = vpop.f32.mrf.mxu0
        %v4468 = vadd.f32 0.0, %v4467
        %4469 = vmatprep.mubr.f32.mxu0 %v2914
        %4470 = vmatmul.mubr.f32.gmra.mxu0 %v2878
        %v4471 = vpop.f32.mrf.mxu0
        %v4472 = vadd.f32 0.0, %v4471
        %v4473 = vpop.f32.mrf.mxu0
        %v4474 = vadd.f32 0.0, %v4473
        %4475 = vmatprep.mubr.f32.mxu0 %v2915
        %4476 = vmatmul.mubr.f32.gmra.mxu0 %v2879
        %v4477 = vpop.f32.mrf.mxu0
        %v4478 = vadd.f32 0.0, %v4477
        %v4479 = vpop.f32.mrf.mxu0
        %v4480 = vadd.f32 0.0, %v4479
        %4481 = vmatprep.mubr.f32.mxu0 %v2916
        %4482 = vmatmul.mubr.f32.gmra.mxu0 %v2880
        %v4483 = vpop.f32.mrf.mxu0
        %v4484 = vadd.f32 0.0, %v4483
        %v4485 = vpop.f32.mrf.mxu0
        %v4486 = vadd.f32 0.0, %v4485
        %4487 = vmatprep.mubr.f32.mxu0 %v2917
        %4488 = vmatmul.mubr.f32.gmra.mxu0 %v2881
        %v4489 = vpop.f32.mrf.mxu0
        %v4490 = vadd.f32 0.0, %v4489
        %v4491 = vpop.f32.mrf.mxu0
        %v4492 = vadd.f32 0.0, %v4491
        %4493 = vmatprep.mubr.f32.mxu0 %v2918
        %4494 = vmatmul.mubr.f32.gmra.mxu0 %v2882
        %v4495 = vpop.f32.mrf.mxu0
        %v4496 = vadd.f32 0.0, %v4495
        %v4497 = vpop.f32.mrf.mxu0
        %v4498 = vadd.f32 0.0, %v4497
        %4499 = vmatprep.mubr.f32.mxu0 %v2919
        %4500 = vmatmul.mubr.f32.gmra.mxu0 %v2883
        %v4501 = vpop.f32.mrf.mxu0
        %v4502 = vadd.f32 0.0, %v4501
        %v4503 = vpop.f32.mrf.mxu0
        %v4504 = vadd.f32 0.0, %v4503
        %4505 = vmatprep.mubr.f32.mxu0 %v2920
        %4506 = vmatmul.mubr.f32.gmra.mxu0 %v2884
        %v4507 = vpop.f32.mrf.mxu0
        %v4508 = vadd.f32 0.0, %v4507
        %v4509 = vpop.f32.mrf.mxu0
        %v4510 = vadd.f32 0.0, %v4509
        %4511 = vmatprep.mubr.f32.mxu0 %v2921
        %4512 = vmatmul.mubr.f32.gmra.mxu0 %v2885
        %v4513 = vpop.f32.mrf.mxu0
        %v4514 = vadd.f32 0.0, %v4513
        %v4515 = vpop.f32.mrf.mxu0
        %v4516 = vadd.f32 0.0, %v4515
        %4517 = vmatprep.mubr.f32.mxu0 %v2922
        %4518 = vmatmul.mubr.f32.gmra.mxu0 %v2886
        %v4519 = vpop.f32.mrf.mxu0
        %v4520 = vadd.f32 0.0, %v4519
        %v4521 = vpop.f32.mrf.mxu0
        %v4522 = vadd.f32 0.0, %v4521
        %4523 = vmatprep.mubr.f32.mxu0 %v2923
        %4524 = vmatmul.mubr.f32.gmra.mxu0 %v2887
        %v4525 = vpop.f32.mrf.mxu0
        %v4526 = vadd.f32 0.0, %v4525
        %v4527 = vpop.f32.mrf.mxu0
        %v4528 = vadd.f32 0.0, %v4527
        %4529 = vmatprep.mubr.f32.mxu0 %v2924
        %4530 = vmatmul.mubr.f32.gmra.mxu0 %v2888
        %v4531 = vpop.f32.mrf.mxu0
        %v4532 = vadd.f32 0.0, %v4531
        %v4533 = vpop.f32.mrf.mxu0
        %v4534 = vadd.f32 0.0, %v4533
        %4535 = vdwg.mxu0
        %4536 = vmatprep.subr.mxu0 %v4278
        %4537 = vmatpush1.msra.mxu0 %v4277
        %4538 = vmatprep.subr.mxu0 %v4276
        %4539 = vmatpush1.msra.mxu0 %v4275
        %4540 = vmatprep.subr.mxu0 %v4274
        %4541 = vmatpush1.msra.mxu0 %v4273
        %4542 = vmatprep.subr.mxu0 %v4272
        %4543 = vmatpush1.msra.mxu0 %v4271
        %4544 = vmatprep.subr.mxu0 %v4270
        %4545 = vmatpush1.msra.mxu0 %v4269
        %4546 = vmatprep.subr.mxu0 %v4268
        %4547 = vmatpush1.msra.mxu0 %v4267
        %4548 = vmatprep.subr.mxu0 %v4266
        %4549 = vmatpush1.msra.mxu0 %v4265
        %4550 = vmatprep.subr.mxu0 %v4264
        %4551 = vmatpush1.msra.mxu0 %v4263
        %4552 = vmatprep.subr.mxu0 %v4262
        %4553 = vmatpush1.msra.mxu0 %v4261
        %4554 = vmatprep.subr.mxu0 %v4260
        %4555 = vmatpush1.msra.mxu0 %v4259
        %4556 = vmatprep.subr.mxu0 %v4258
        %4557 = vmatpush1.msra.mxu0 %v4257
        %4558 = vmatprep.subr.mxu0 %v4256
        %4559 = vmatpush1.msra.mxu0 %v4255
        %4560 = vmatprep.subr.mxu0 %v4254
        %4561 = vmatpush1.msra.mxu0 %v4253
        %4562 = vmatprep.subr.mxu0 %v4252
        %4563 = vmatpush1.msra.mxu0 %v4251
        %4564 = vmatprep.subr.mxu0 %v4250
        %4565 = vmatpush1.msra.mxu0 %v4249
        %4566 = vmatprep.subr.mxu0 %v4248
        %4567 = vmatpush1.msra.mxu0 %v4247
        %4568 = vmatprep.subr.mxu0 0.0
        %4569 = vmatpush2.msra.mxu0 0.0
        %4570 = vmatprep.subr.mxu0 0.0
        %4571 = vmatpush2.msra.mxu0 0.0
        %4572 = vmatprep.subr.mxu0 0.0
        %4573 = vmatpush2.msra.mxu0 0.0
        %4574 = vmatprep.subr.mxu0 0.0
        %4575 = vmatpush2.msra.mxu0 0.0
        %4576 = vmatprep.subr.mxu0 0.0
        %4577 = vmatpush2.msra.mxu0 0.0
        %4578 = vmatprep.subr.mxu0 0.0
        %4579 = vmatpush2.msra.mxu0 0.0
        %4580 = vmatprep.subr.mxu0 0.0
        %4581 = vmatpush2.msra.mxu0 0.0
        %4582 = vmatprep.subr.mxu0 0.0
        %4583 = vmatpush2.msra.mxu0 0.0
        %4584 = vmatprep.subr.mxu0 0.0
        %4585 = vmatpush2.msra.mxu0 0.0
        %4586 = vmatprep.subr.mxu0 0.0
        %4587 = vmatpush2.msra.mxu0 0.0
        %4588 = vmatprep.subr.mxu0 0.0
        %4589 = vmatpush2.msra.mxu0 0.0
        %4590 = vmatprep.subr.mxu0 0.0
        %4591 = vmatpush2.msra.mxu0 0.0
        %4592 = vmatprep.subr.mxu0 0.0
        %4593 = vmatpush2.msra.mxu0 0.0
        %4594 = vmatprep.subr.mxu0 0.0
        %4595 = vmatpush2.msra.mxu0 0.0
        %4596 = vmatprep.subr.mxu0 0.0
        %4597 = vmatpush2.msra.mxu0 0.0
        %4598 = vmatprep.subr.mxu0 0.0
        %4599 = vmatpush2.msra.mxu0 0.0
        %4600 = vmatprep.mubr.f32.mxu0 0.0
        %4601 = vmatmul.mubr.f32.gmra.mxu0 %v2929
        %v4602 = vpop.f32.mrf.mxu0
        %v4603 = vadd.f32 %v4346, %v4602
        %v4604 = vpop.f32.mrf.mxu0
        %v4605 = vadd.f32 %v4348, %v4604
        %4606 = vmatprep.mubr.f32.mxu0 0.0
        %4607 = vmatmul.mubr.f32.gmra.mxu0 %v2930
        %v4608 = vpop.f32.mrf.mxu0
        %v4609 = vadd.f32 %v4352, %v4608
        %v4610 = vpop.f32.mrf.mxu0
        %v4611 = vadd.f32 %v4354, %v4610
        %4612 = vmatprep.mubr.f32.mxu0 0.0
        %4613 = vmatmul.mubr.f32.gmra.mxu0 %v2931
        %v4614 = vpop.f32.mrf.mxu0
        %v4615 = vadd.f32 %v4358, %v4614
        %v4616 = vpop.f32.mrf.mxu0
        %v4617 = vadd.f32 %v4360, %v4616
        %4618 = vmatprep.mubr.f32.mxu0 0.0
        %4619 = vmatmul.mubr.f32.gmra.mxu0 %v2932
        %v4620 = vpop.f32.mrf.mxu0
        %v4621 = vadd.f32 %v4364, %v4620
        %v4622 = vpop.f32.mrf.mxu0
        %v4623 = vadd.f32 %v4366, %v4622
        %4624 = vmatprep.mubr.f32.mxu0 0.0
        %4625 = vmatmul.mubr.f32.gmra.mxu0 %v2933
        %v4626 = vpop.f32.mrf.mxu0
        %v4627 = vadd.f32 %v4370, %v4626
        %v4628 = vpop.f32.mrf.mxu0
        %v4629 = vadd.f32 %v4372, %v4628
        %4630 = vmatprep.mubr.f32.mxu0 0.0
        %4631 = vmatmul.mubr.f32.gmra.mxu0 %v2934
        %v4632 = vpop.f32.mrf.mxu0
        %v4633 = vadd.f32 %v4376, %v4632
        %v4634 = vpop.f32.mrf.mxu0
        %v4635 = vadd.f32 %v4378, %v4634
        %4636 = vmatprep.mubr.f32.mxu0 0.0
        %4637 = vmatmul.mubr.f32.gmra.mxu0 %v2935
        %v4638 = vpop.f32.mrf.mxu0
        %v4639 = vadd.f32 %v4382, %v4638
        %v4640 = vpop.f32.mrf.mxu0
        %v4641 = vadd.f32 %v4384, %v4640
        %4642 = vmatprep.mubr.f32.mxu0 0.0
        %4643 = vmatmul.mubr.f32.gmra.mxu0 %v2936
        %v4644 = vpop.f32.mrf.mxu0
        %v4645 = vadd.f32 %v4388, %v4644
        %v4646 = vpop.f32.mrf.mxu0
        %v4647 = vadd.f32 %v4390, %v4646
        %4648 = vmatprep.mubr.f32.mxu0 0.0
        %4649 = vmatmul.mubr.f32.gmra.mxu0 %v2937
        %v4650 = vpop.f32.mrf.mxu0
        %v4651 = vadd.f32 %v4394, %v4650
        %v4652 = vpop.f32.mrf.mxu0
        %v4653 = vadd.f32 %v4396, %v4652
        %4654 = vmatprep.mubr.f32.mxu0 0.0
        %4655 = vmatmul.mubr.f32.gmra.mxu0 %v2938
        %v4656 = vpop.f32.mrf.mxu0
        %v4657 = vadd.f32 %v4400, %v4656
        %v4658 = vpop.f32.mrf.mxu0
        %v4659 = vadd.f32 %v4402, %v4658
        %4660 = vmatprep.mubr.f32.mxu0 0.0
        %4661 = vmatmul.mubr.f32.gmra.mxu0 %v2939
        %v4662 = vpop.f32.mrf.mxu0
        %v4663 = vadd.f32 %v4406, %v4662
        %v4664 = vpop.f32.mrf.mxu0
        %v4665 = vadd.f32 %v4408, %v4664
        %4666 = vmatprep.mubr.f32.mxu0 0.0
        %4667 = vmatmul.mubr.f32.gmra.mxu0 %v2940
        %v4668 = vpop.f32.mrf.mxu0
        %v4669 = vadd.f32 %v4412, %v4668
        %v4670 = vpop.f32.mrf.mxu0
        %v4671 = vadd.f32 %v4414, %v4670
        %4672 = vmatprep.mubr.f32.mxu0 0.0
        %4673 = vmatmul.mubr.f32.gmra.mxu0 %v2941
        %v4674 = vpop.f32.mrf.mxu0
        %v4675 = vadd.f32 %v4418, %v4674
        %v4676 = vpop.f32.mrf.mxu0
        %v4677 = vadd.f32 %v4420, %v4676
        %4678 = vmatprep.mubr.f32.mxu0 0.0
        %4679 = vmatmul.mubr.f32.gmra.mxu0 %v2942
        %v4680 = vpop.f32.mrf.mxu0
        %v4681 = vadd.f32 %v4424, %v4680
        %v4682 = vpop.f32.mrf.mxu0
        %v4683 = vadd.f32 %v4426, %v4682
        %4684 = vmatprep.mubr.f32.mxu0 0.0
        %4685 = vmatmul.mubr.f32.gmra.mxu0 %v2943
        %v4686 = vpop.f32.mrf.mxu0
        %v4687 = vadd.f32 %v4430, %v4686
        %v4688 = vpop.f32.mrf.mxu0
        %v4689 = vadd.f32 %v4432, %v4688
        %4690 = vmatprep.mubr.f32.mxu0 0.0
        %4691 = vmatmul.mubr.f32.gmra.mxu0 %v2944
        %v4692 = vpop.f32.mrf.mxu0
        %v4693 = vadd.f32 %v4436, %v4692
        %v4694 = vpop.f32.mrf.mxu0
        %v4695 = vadd.f32 %v4438, %v4694
        %4696 = vmatprep.mubr.f32.mxu0 0.0
        %4697 = vmatmul.mubr.f32.gmra.mxu0 %v2945
        %v4698 = vpop.f32.mrf.mxu0
        %v4699 = vadd.f32 %v4442, %v4698
        %v4700 = vpop.f32.mrf.mxu0
        %v4701 = vadd.f32 %v4444, %v4700
        %4702 = vmatprep.mubr.f32.mxu0 0.0
        %4703 = vmatmul.mubr.f32.gmra.mxu0 %v2946
        %v4704 = vpop.f32.mrf.mxu0
        %v4705 = vadd.f32 %v4448, %v4704
        %v4706 = vpop.f32.mrf.mxu0
        %v4707 = vadd.f32 %v4450, %v4706
        %4708 = vmatprep.mubr.f32.mxu0 0.0
        %4709 = vmatmul.mubr.f32.gmra.mxu0 %v2947
        %v4710 = vpop.f32.mrf.mxu0
        %v4711 = vadd.f32 %v4454, %v4710
        %v4712 = vpop.f32.mrf.mxu0
        %v4713 = vadd.f32 %v4456, %v4712
        %4714 = vmatprep.mubr.f32.mxu0 0.0
        %4715 = vmatmul.mubr.f32.gmra.mxu0 %v2948
        %v4716 = vpop.f32.mrf.mxu0
        %v4717 = vadd.f32 %v4460, %v4716
        %v4718 = vpop.f32.mrf.mxu0
        %v4719 = vadd.f32 %v4462, %v4718
        %4720 = vmatprep.mubr.f32.mxu0 0.0
        %4721 = vmatmul.mubr.f32.gmra.mxu0 %v2949
        %v4722 = vpop.f32.mrf.mxu0
        %v4723 = vadd.f32 %v4466, %v4722
        %v4724 = vpop.f32.mrf.mxu0
        %v4725 = vadd.f32 %v4468, %v4724
        %4726 = vmatprep.mubr.f32.mxu0 0.0
        %4727 = vmatmul.mubr.f32.gmra.mxu0 %v2950
        %v4728 = vpop.f32.mrf.mxu0
        %v4729 = vadd.f32 %v4472, %v4728
        %v4730 = vpop.f32.mrf.mxu0
        %v4731 = vadd.f32 %v4474, %v4730
        %4732 = vmatprep.mubr.f32.mxu0 0.0
        %4733 = vmatmul.mubr.f32.gmra.mxu0 %v2951
        %v4734 = vpop.f32.mrf.mxu0
        %v4735 = vadd.f32 %v4478, %v4734
        %v4736 = vpop.f32.mrf.mxu0
        %v4737 = vadd.f32 %v4480, %v4736
        %4738 = vmatprep.mubr.f32.mxu0 0.0
        %4739 = vmatmul.mubr.f32.gmra.mxu0 %v2952
        %v4740 = vpop.f32.mrf.mxu0
        %v4741 = vadd.f32 %v4484, %v4740
        %v4742 = vpop.f32.mrf.mxu0
        %v4743 = vadd.f32 %v4486, %v4742
        %4744 = vmatprep.mubr.f32.mxu0 0.0
        %4745 = vmatmul.mubr.f32.gmra.mxu0 %v2953
        %v4746 = vpop.f32.mrf.mxu0
        %v4747 = vadd.f32 %v4490, %v4746
        %v4748 = vpop.f32.mrf.mxu0
        %v4749 = vadd.f32 %v4492, %v4748
        %4750 = vmatprep.mubr.f32.mxu0 0.0
        %4751 = vmatmul.mubr.f32.gmra.mxu0 %v2954
        %v4752 = vpop.f32.mrf.mxu0
        %v4753 = vadd.f32 %v4496, %v4752
        %v4754 = vpop.f32.mrf.mxu0
        %v4755 = vadd.f32 %v4498, %v4754
        %4756 = vmatprep.mubr.f32.mxu0 0.0
        %4757 = vmatmul.mubr.f32.gmra.mxu0 %v2955
        %v4758 = vpop.f32.mrf.mxu0
        %v4759 = vadd.f32 %v4502, %v4758
        %v4760 = vpop.f32.mrf.mxu0
        %v4761 = vadd.f32 %v4504, %v4760
        %4762 = vmatprep.mubr.f32.mxu0 0.0
        %4763 = vmatmul.mubr.f32.gmra.mxu0 %v2956
        %v4764 = vpop.f32.mrf.mxu0
        %v4765 = vadd.f32 %v4508, %v4764
        %v4766 = vpop.f32.mrf.mxu0
        %v4767 = vadd.f32 %v4510, %v4766
        %4768 = vmatprep.mubr.f32.mxu0 0.0
        %4769 = vmatmul.mubr.f32.gmra.mxu0 %v2957
        %v4770 = vpop.f32.mrf.mxu0
        %v4771 = vadd.f32 %v4514, %v4770
        %v4772 = vpop.f32.mrf.mxu0
        %v4773 = vadd.f32 %v4516, %v4772
        %4774 = vmatprep.mubr.f32.mxu0 0.0
        %4775 = vmatmul.mubr.f32.gmra.mxu0 %v2958
        %v4776 = vpop.f32.mrf.mxu0
        %v4777 = vadd.f32 %v4520, %v4776
        %v4778 = vpop.f32.mrf.mxu0
        %v4779 = vadd.f32 %v4522, %v4778
        %4780 = vmatprep.mubr.f32.mxu0 0.0
        %4781 = vmatmul.mubr.f32.gmra.mxu0 %v2959
        %v4782 = vpop.f32.mrf.mxu0
        %v4783 = vadd.f32 %v4526, %v4782
        %v4784 = vpop.f32.mrf.mxu0
        %v4785 = vadd.f32 %v4528, %v4784
        %4786 = vmatprep.mubr.f32.mxu0 0.0
        %4787 = vmatmul.mubr.f32.gmra.mxu0 %v2960
        %v4788 = vpop.f32.mrf.mxu0
        %v4789 = vadd.f32 %v4532, %v4788
        %v4790 = vpop.f32.mrf.mxu0
        %v4791 = vadd.f32 %v4534, %v4790
        %4792 = vdwg.mxu0
        %v4793 = vadd.f32 %v3992, %v4603
        %v4794 = vadd.f32 %v3994, %v4605
        %v4795 = vadd.f32 %v3998, %v4609
        %v4796 = vadd.f32 %v4000, %v4611
        %v4797 = vadd.f32 %v4004, %v4615
        %v4798 = vadd.f32 %v4006, %v4617
        %v4799 = vadd.f32 %v4010, %v4621
        %v4800 = vadd.f32 %v4012, %v4623
        %v4801 = vadd.f32 %v4016, %v4627
        %v4802 = vadd.f32 %v4018, %v4629
        %v4803 = vadd.f32 %v4022, %v4633
        %v4804 = vadd.f32 %v4024, %v4635
        %v4805 = vadd.f32 %v4028, %v4639
        %v4806 = vadd.f32 %v4030, %v4641
        %v4807 = vadd.f32 %v4034, %v4645
        %v4808 = vadd.f32 %v4036, %v4647
        %v4809 = vadd.f32 %v4040, %v4651
        %v4810 = vadd.f32 %v4042, %v4653
        %v4811 = vadd.f32 %v4046, %v4657
        %v4812 = vadd.f32 %v4048, %v4659
        %v4813 = vadd.f32 %v4052, %v4663
        %v4814 = vadd.f32 %v4054, %v4665
        %v4815 = vadd.f32 %v4058, %v4669
        %v4816 = vadd.f32 %v4060, %v4671
        %v4817 = vadd.f32 %v4064, %v4675
        %v4818 = vadd.f32 %v4066, %v4677
        %v4819 = vadd.f32 %v4070, %v4681
        %v4820 = vadd.f32 %v4072, %v4683
        %v4821 = vadd.f32 %v4076, %v4687
        %v4822 = vadd.f32 %v4078, %v4689
        %v4823 = vadd.f32 %v4082, %v4693
        %v4824 = vadd.f32 %v4084, %v4695
        %v4825 = vadd.f32 %v4088, %v4699
        %v4826 = vadd.f32 %v4090, %v4701
        %v4827 = vadd.f32 %v4094, %v4705
        %v4828 = vadd.f32 %v4096, %v4707
        %v4829 = vadd.f32 %v4100, %v4711
        %v4830 = vadd.f32 %v4102, %v4713
        %v4831 = vadd.f32 %v4106, %v4717
        %v4832 = vadd.f32 %v4108, %v4719
        %v4833 = vadd.f32 %v4112, %v4723
        %v4834 = vadd.f32 %v4114, %v4725
        %v4835 = vadd.f32 %v4118, %v4729
        %v4836 = vadd.f32 %v4120, %v4731
        %v4837 = vadd.f32 %v4124, %v4735
        %v4838 = vadd.f32 %v4126, %v4737
        %v4839 = vadd.f32 %v4130, %v4741
        %v4840 = vadd.f32 %v4132, %v4743
        %v4841 = vadd.f32 %v4136, %v4747
        %v4842 = vadd.f32 %v4138, %v4749
        %v4843 = vadd.f32 %v4142, %v4753
        %v4844 = vadd.f32 %v4144, %v4755
        %v4845 = vadd.f32 %v4148, %v4759
        %v4846 = vadd.f32 %v4150, %v4761
        %v4847 = vadd.f32 %v4154, %v4765
        %v4848 = vadd.f32 %v4156, %v4767
        %v4849 = vadd.f32 %v4160, %v4771
        %v4850 = vadd.f32 %v4162, %v4773
        %v4851 = vadd.f32 %v4166, %v4777
        %v4852 = vadd.f32 %v4168, %v4779
        %v4853 = vadd.f32 %v4172, %v4783
        %v4854 = vadd.f32 %v4174, %v4785
        %v4855 = vadd.f32 %v4178, %v4789
        %v4856 = vadd.f32 %v4180, %v4791
        %v4857 = vld [vmem:[#allocation13] sm:$0x3]
        %v4859 = vlaneseq
        %v4860 = vshrl.u32 %v4859, 7
        %v4861 = vsub.s32 0, %v4860
        %v4862 = vrot.slane %v4857, %v4861
        %v4863 = vlaneseq
        %v4864 = vshrl.u32 %v4863, 7
        %v4865 = vsub.s32 1, %v4864
        %v4866 = vrot.slane %v4857, %v4865
        %v4869 = vadd.f32 %v4793, %v4862
        %v4870 = vadd.f32 %v4794, %v4866
        %v4871 = vadd.f32 %v4795, %v4862
        %v4872 = vadd.f32 %v4796, %v4866
        %v4873 = vadd.f32 %v4797, %v4862
        %v4874 = vadd.f32 %v4798, %v4866
        %v4875 = vadd.f32 %v4799, %v4862
        %v4876 = vadd.f32 %v4800, %v4866
        %v4877 = vadd.f32 %v4801, %v4862
        %v4878 = vadd.f32 %v4802, %v4866
        %v4879 = vadd.f32 %v4803, %v4862
        %v4880 = vadd.f32 %v4804, %v4866
        %v4881 = vadd.f32 %v4805, %v4862
        %v4882 = vadd.f32 %v4806, %v4866
        %v4883 = vadd.f32 %v4807, %v4862
        %v4884 = vadd.f32 %v4808, %v4866
        %v4885 = vadd.f32 %v4809, %v4862
        %v4886 = vadd.f32 %v4810, %v4866
        %v4887 = vadd.f32 %v4811, %v4862
        %v4888 = vadd.f32 %v4812, %v4866
        %v4889 = vadd.f32 %v4813, %v4862
        %v4890 = vadd.f32 %v4814, %v4866
        %v4891 = vadd.f32 %v4815, %v4862
        %v4892 = vadd.f32 %v4816, %v4866
        %v4893 = vadd.f32 %v4817, %v4862
        %v4894 = vadd.f32 %v4818, %v4866
        %v4895 = vadd.f32 %v4819, %v4862
        %v4896 = vadd.f32 %v4820, %v4866
        %v4897 = vadd.f32 %v4821, %v4862
        %v4898 = vadd.f32 %v4822, %v4866
        %v4899 = vadd.f32 %v4823, %v4862
        %v4900 = vadd.f32 %v4824, %v4866
        %v4901 = vadd.f32 %v4825, %v4862
        %v4902 = vadd.f32 %v4826, %v4866
        %v4903 = vadd.f32 %v4827, %v4862
        %v4904 = vadd.f32 %v4828, %v4866
        %v4905 = vadd.f32 %v4829, %v4862
        %v4906 = vadd.f32 %v4830, %v4866
        %v4907 = vadd.f32 %v4831, %v4862
        %v4908 = vadd.f32 %v4832, %v4866
        %v4909 = vadd.f32 %v4833, %v4862
        %v4910 = vadd.f32 %v4834, %v4866
        %v4911 = vadd.f32 %v4835, %v4862
        %v4912 = vadd.f32 %v4836, %v4866
        %v4913 = vadd.f32 %v4837, %v4862
        %v4914 = vadd.f32 %v4838, %v4866
        %v4915 = vadd.f32 %v4839, %v4862
        %v4916 = vadd.f32 %v4840, %v4866
        %v4917 = vadd.f32 %v4841, %v4862
        %v4918 = vadd.f32 %v4842, %v4866
        %v4919 = vadd.f32 %v4843, %v4862
        %v4920 = vadd.f32 %v4844, %v4866
        %v4921 = vadd.f32 %v4845, %v4862
        %v4922 = vadd.f32 %v4846, %v4866
        %v4923 = vadd.f32 %v4847, %v4862
        %v4924 = vadd.f32 %v4848, %v4866
        %v4925 = vadd.f32 %v4849, %v4862
        %v4926 = vadd.f32 %v4850, %v4866
        %v4927 = vadd.f32 %v4851, %v4862
        %v4928 = vadd.f32 %v4852, %v4866
        %v4929 = vadd.f32 %v4853, %v4862
        %v4930 = vadd.f32 %v4854, %v4866
        %v4931 = vadd.f32 %v4855, %v4862
        %v4932 = vadd.f32 %v4856, %v4866
        %v4933 = vmax.f32 %v4869, 0.0
        %v4934 = vmax.f32 %v4870, 0.0
        %v4935 = vmax.f32 %v4871, 0.0
        %v4936 = vmax.f32 %v4872, 0.0
        %v4937 = vmax.f32 %v4873, 0.0
        %v4938 = vmax.f32 %v4874, 0.0
        %v4939 = vmax.f32 %v4875, 0.0
        %v4940 = vmax.f32 %v4876, 0.0
        %v4941 = vmax.f32 %v4877, 0.0
        %v4942 = vmax.f32 %v4878, 0.0
        %v4943 = vmax.f32 %v4879, 0.0
        %v4944 = vmax.f32 %v4880, 0.0
        %v4945 = vmax.f32 %v4881, 0.0
        %v4946 = vmax.f32 %v4882, 0.0
        %v4947 = vmax.f32 %v4883, 0.0
        %v4948 = vmax.f32 %v4884, 0.0
        %v4949 = vmax.f32 %v4885, 0.0
        %v4950 = vmax.f32 %v4886, 0.0
        %v4951 = vmax.f32 %v4887, 0.0
        %v4952 = vmax.f32 %v4888, 0.0
        %v4953 = vmax.f32 %v4889, 0.0
        %v4954 = vmax.f32 %v4890, 0.0
        %v4955 = vmax.f32 %v4891, 0.0
        %v4956 = vmax.f32 %v4892, 0.0
        %v4957 = vmax.f32 %v4893, 0.0
        %v4958 = vmax.f32 %v4894, 0.0
        %v4959 = vmax.f32 %v4895, 0.0
        %v4960 = vmax.f32 %v4896, 0.0
        %v4961 = vmax.f32 %v4897, 0.0
        %v4962 = vmax.f32 %v4898, 0.0
        %v4963 = vmax.f32 %v4899, 0.0
        %v4964 = vmax.f32 %v4900, 0.0
        %v4965 = vmax.f32 %v4901, 0.0
        %v4966 = vmax.f32 %v4902, 0.0
        %v4967 = vmax.f32 %v4903, 0.0
        %v4968 = vmax.f32 %v4904, 0.0
        %v4969 = vmax.f32 %v4905, 0.0
        %v4970 = vmax.f32 %v4906, 0.0
        %v4971 = vmax.f32 %v4907, 0.0
        %v4972 = vmax.f32 %v4908, 0.0
        %v4973 = vmax.f32 %v4909, 0.0
        %v4974 = vmax.f32 %v4910, 0.0
        %v4975 = vmax.f32 %v4911, 0.0
        %v4976 = vmax.f32 %v4912, 0.0
        %v4977 = vmax.f32 %v4913, 0.0
        %v4978 = vmax.f32 %v4914, 0.0
        %v4979 = vmax.f32 %v4915, 0.0
        %v4980 = vmax.f32 %v4916, 0.0
        %v4981 = vmax.f32 %v4917, 0.0
        %v4982 = vmax.f32 %v4918, 0.0
        %v4983 = vmax.f32 %v4919, 0.0
        %v4984 = vmax.f32 %v4920, 0.0
        %v4985 = vmax.f32 %v4921, 0.0
        %v4986 = vmax.f32 %v4922, 0.0
        %v4987 = vmax.f32 %v4923, 0.0
        %v4988 = vmax.f32 %v4924, 0.0
        %v4989 = vmax.f32 %v4925, 0.0
        %v4990 = vmax.f32 %v4926, 0.0
        %v4991 = vmax.f32 %v4927, 0.0
        %v4992 = vmax.f32 %v4928, 0.0
        %v4993 = vmax.f32 %v4929, 0.0
        %v4994 = vmax.f32 %v4930, 0.0
        %v4995 = vmax.f32 %v4931, 0.0
        %v4996 = vmax.f32 %v4932, 0.0
        %4997 = vst [vmem:[#allocation3] sm:$0xff] 0.0
        %4998 = vst [vmem:[#allocation3 + $0x8] sm:$0xff] 0.0
        %4999 = vst [vmem:[#allocation3 + $0x10] sm:$0xff] 0.0
        %5000 = vst [vmem:[#allocation3 + $0x18] sm:$0xff] 0.0
        %5001 = vst [vmem:[#allocation3 + $0x20] sm:$0x3] 0.0
        %5002 = vst [vmem:[#allocation3 + $0x28] sm:$0x3] 0.0
        %s5003 = scalar_lea.vmem [#allocation3], 816
        %5004 = vst [vmem:[%s5003] sm:$0xff] 0.0
        %5005 = vst [vmem:[%s5003 + $0x8] sm:$0xff] 0.0
        %5006 = vst [vmem:[%s5003 + $0x10] sm:$0xff] 0.0
        %5007 = vst [vmem:[%s5003 + $0x18] sm:$0xff] 0.0
        %5008 = vst [vmem:[%s5003 + $0x20] sm:$0x3] 0.0
        %5009 = vst [vmem:[%s5003 + $0x28] sm:$0x3] 0.0
        %v5010 = vlaneseq
        %vm5011 = vcmp.ge.s32.totalorder %v5010, 0
        %vm5012 = vcmp.lt.s32.totalorder %v5010, 256
        %vm5013 = vmand %vm5011, %vm5012
        %5014 = vst.msk [vmem:[#allocation3] ss:$8 sm:$0x3] %vm5013, 0.0
        %5015 = vst.msk [vmem:[#allocation3] ss:$8 sm:$0x0] %vm5013, 0.0
        %s5016 = scalar_lea.vmem [#allocation3], 48
        %5017 = vst.msk [vmem:[%s5016] ss:$8 sm:$0x3] %vm5013, 0.0
        %5018 = vst.msk [vmem:[%s5016] ss:$8 sm:$0x0] %vm5013, 0.0
        %s5019 = scalar_lea.vmem [#allocation3], 96
        %5020 = vst.msk [vmem:[%s5019] ss:$8 sm:$0x3] %vm5013, 0.0
        %5021 = vst.msk [vmem:[%s5019] ss:$8 sm:$0x0] %vm5013, 0.0
        %s5022 = scalar_lea.vmem [#allocation3], 144
        %5023 = vst.msk [vmem:[%s5022] ss:$8 sm:$0x3] %vm5013, 0.0
        %5024 = vst.msk [vmem:[%s5022] ss:$8 sm:$0x0] %vm5013, 0.0
        %s5025 = scalar_lea.vmem [#allocation3], 192
        %5026 = vst.msk [vmem:[%s5025] ss:$8 sm:$0x3] %vm5013, 0.0
        %5027 = vst.msk [vmem:[%s5025] ss:$8 sm:$0x0] %vm5013, 0.0
        %s5028 = scalar_lea.vmem [#allocation3], 240
        %5029 = vst.msk [vmem:[%s5028] ss:$8 sm:$0x3] %vm5013, 0.0
        %5030 = vst.msk [vmem:[%s5028] ss:$8 sm:$0x0] %vm5013, 0.0
        %s5031 = scalar_lea.vmem [#allocation3], 288
        %5032 = vst.msk [vmem:[%s5031] ss:$8 sm:$0x3] %vm5013, 0.0
        %5033 = vst.msk [vmem:[%s5031] ss:$8 sm:$0x0] %vm5013, 0.0
        %s5034 = scalar_lea.vmem [#allocation3], 336
        %5035 = vst.msk [vmem:[%s5034] ss:$8 sm:$0x3] %vm5013, 0.0
        %5036 = vst.msk [vmem:[%s5034] ss:$8 sm:$0x0] %vm5013, 0.0
        %s5037 = scalar_lea.vmem [#allocation3], 384
        %5038 = vst.msk [vmem:[%s5037] ss:$8 sm:$0x3] %vm5013, 0.0
        %5039 = vst.msk [vmem:[%s5037] ss:$8 sm:$0x0] %vm5013, 0.0
        %s5040 = scalar_lea.vmem [#allocation3], 432
        %5041 = vst.msk [vmem:[%s5040] ss:$8 sm:$0x3] %vm5013, 0.0
        %5042 = vst.msk [vmem:[%s5040] ss:$8 sm:$0x0] %vm5013, 0.0
        %s5043 = scalar_lea.vmem [#allocation3], 480
        %5044 = vst.msk [vmem:[%s5043] ss:$8 sm:$0x3] %vm5013, 0.0
        %5045 = vst.msk [vmem:[%s5043] ss:$8 sm:$0x0] %vm5013, 0.0
        %s5046 = scalar_lea.vmem [#allocation3], 528
        %5047 = vst.msk [vmem:[%s5046] ss:$8 sm:$0x3] %vm5013, 0.0
        %5048 = vst.msk [vmem:[%s5046] ss:$8 sm:$0x0] %vm5013, 0.0
        %s5049 = scalar_lea.vmem [#allocation3], 576
        %5050 = vst.msk [vmem:[%s5049] ss:$8 sm:$0x3] %vm5013, 0.0
        %5051 = vst.msk [vmem:[%s5049] ss:$8 sm:$0x0] %vm5013, 0.0
        %s5052 = scalar_lea.vmem [#allocation3], 624
        %5053 = vst.msk [vmem:[%s5052] ss:$8 sm:$0x3] %vm5013, 0.0
        %5054 = vst.msk [vmem:[%s5052] ss:$8 sm:$0x0] %vm5013, 0.0
        %s5055 = scalar_lea.vmem [#allocation3], 672
        %5056 = vst.msk [vmem:[%s5055] ss:$8 sm:$0x3] %vm5013, 0.0
        %5057 = vst.msk [vmem:[%s5055] ss:$8 sm:$0x0] %vm5013, 0.0
        %s5058 = scalar_lea.vmem [#allocation3], 720
        %5059 = vst.msk [vmem:[%s5058] ss:$8 sm:$0x3] %vm5013, 0.0
        %5060 = vst.msk [vmem:[%s5058] ss:$8 sm:$0x0] %vm5013, 0.0
        %s5061 = scalar_lea.vmem [#allocation3], 768
        %5062 = vst.msk [vmem:[%s5061] ss:$8 sm:$0x3] %vm5013, 0.0
        %5063 = vst.msk [vmem:[%s5061] ss:$8 sm:$0x0] %vm5013, 0.0
        %s5064 = scalar_lea.vmem [#allocation3], 816
        %5065 = vst.msk [vmem:[%s5064] ss:$8 sm:$0x3] %vm5013, 0.0
        %5066 = vst.msk [vmem:[%s5064] ss:$8 sm:$0x0] %vm5013, 0.0
        %s5067 = scalar_lea.vmem [#allocation3], 33
        %5068 = vst.msk [vmem:[%s5067] ss:$8 sm:$0x3] %vm5013, 0.0
        %5069 = vst.msk [vmem:[%s5067] ss:$8 sm:$0x0] %vm5013, 0.0
        %s5070 = scalar_lea.vmem [#allocation3], 81
        %5071 = vst.msk [vmem:[%s5070] ss:$8 sm:$0x3] %vm5013, 0.0
        %5072 = vst.msk [vmem:[%s5070] ss:$8 sm:$0x0] %vm5013, 0.0
        %s5073 = scalar_lea.vmem [#allocation3], 129
        %5074 = vst.msk [vmem:[%s5073] ss:$8 sm:$0x3] %vm5013, 0.0
        %5075 = vst.msk [vmem:[%s5073] ss:$8 sm:$0x0] %vm5013, 0.0
        %s5076 = scalar_lea.vmem [#allocation3], 177
        %5077 = vst.msk [vmem:[%s5076] ss:$8 sm:$0x3] %vm5013, 0.0
        %5078 = vst.msk [vmem:[%s5076] ss:$8 sm:$0x0] %vm5013, 0.0
        %s5079 = scalar_lea.vmem [#allocation3], 225
        %5080 = vst.msk [vmem:[%s5079] ss:$8 sm:$0x3] %vm5013, 0.0
        %5081 = vst.msk [vmem:[%s5079] ss:$8 sm:$0x0] %vm5013, 0.0
        %s5082 = scalar_lea.vmem [#allocation3], 273
        %5083 = vst.msk [vmem:[%s5082] ss:$8 sm:$0x3] %vm5013, 0.0
        %5084 = vst.msk [vmem:[%s5082] ss:$8 sm:$0x0] %vm5013, 0.0
        %s5085 = scalar_lea.vmem [#allocation3], 321
        %5086 = vst.msk [vmem:[%s5085] ss:$8 sm:$0x3] %vm5013, 0.0
        %5087 = vst.msk [vmem:[%s5085] ss:$8 sm:$0x0] %vm5013, 0.0
        %s5088 = scalar_lea.vmem [#allocation3], 369
        %5089 = vst.msk [vmem:[%s5088] ss:$8 sm:$0x3] %vm5013, 0.0
        %5090 = vst.msk [vmem:[%s5088] ss:$8 sm:$0x0] %vm5013, 0.0
        %s5091 = scalar_lea.vmem [#allocation3], 417
        %5092 = vst.msk [vmem:[%s5091] ss:$8 sm:$0x3] %vm5013, 0.0
        %5093 = vst.msk [vmem:[%s5091] ss:$8 sm:$0x0] %vm5013, 0.0
        %s5094 = scalar_lea.vmem [#allocation3], 465
        %5095 = vst.msk [vmem:[%s5094] ss:$8 sm:$0x3] %vm5013, 0.0
        %5096 = vst.msk [vmem:[%s5094] ss:$8 sm:$0x0] %vm5013, 0.0
        %s5097 = scalar_lea.vmem [#allocation3], 513
        %5098 = vst.msk [vmem:[%s5097] ss:$8 sm:$0x3] %vm5013, 0.0
        %5099 = vst.msk [vmem:[%s5097] ss:$8 sm:$0x0] %vm5013, 0.0
        %s5100 = scalar_lea.vmem [#allocation3], 561
        %5101 = vst.msk [vmem:[%s5100] ss:$8 sm:$0x3] %vm5013, 0.0
        %5102 = vst.msk [vmem:[%s5100] ss:$8 sm:$0x0] %vm5013, 0.0
        %s5103 = scalar_lea.vmem [#allocation3], 609
        %5104 = vst.msk [vmem:[%s5103] ss:$8 sm:$0x3] %vm5013, 0.0
        %5105 = vst.msk [vmem:[%s5103] ss:$8 sm:$0x0] %vm5013, 0.0
        %s5106 = scalar_lea.vmem [#allocation3], 657
        %5107 = vst.msk [vmem:[%s5106] ss:$8 sm:$0x3] %vm5013, 0.0
        %5108 = vst.msk [vmem:[%s5106] ss:$8 sm:$0x0] %vm5013, 0.0
        %s5109 = scalar_lea.vmem [#allocation3], 705
        %5110 = vst.msk [vmem:[%s5109] ss:$8 sm:$0x3] %vm5013, 0.0
        %5111 = vst.msk [vmem:[%s5109] ss:$8 sm:$0x0] %vm5013, 0.0
        %s5112 = scalar_lea.vmem [#allocation3], 753
        %5113 = vst.msk [vmem:[%s5112] ss:$8 sm:$0x3] %vm5013, 0.0
        %5114 = vst.msk [vmem:[%s5112] ss:$8 sm:$0x0] %vm5013, 0.0
        %s5115 = scalar_lea.vmem [#allocation3], 801
        %5116 = vst.msk [vmem:[%s5115] ss:$8 sm:$0x3] %vm5013, 0.0
        %5117 = vst.msk [vmem:[%s5115] ss:$8 sm:$0x0] %vm5013, 0.0
        %s5118 = scalar_lea.vmem [#allocation3], 849
        %5119 = vst.msk [vmem:[%s5118] ss:$8 sm:$0x3] %vm5013, 0.0
        %5120 = vst.msk [vmem:[%s5118] ss:$8 sm:$0x0] %vm5013, 0.0
        %vm5185 = vcmask 1040384
        %v5186 = vrot.slane %v4933, 7
        %v5187 = vrot.slane %v4934, 7
        %v5188 = vrot.slane %v4935, 7
        %v5189 = vsel %vm5185, %v5186, %v5188
        %v5190 = vrot.slane %v4936, 7
        %v5191 = vsel %vm5185, %v5187, %v5190
        %v5192 = vrot.slane %v4937, 7
        %v5193 = vrot.slane %v4938, 7
        %v5194 = vrot.slane %v4939, 7
        %v5195 = vsel %vm5185, %v5192, %v5194
        %v5196 = vrot.slane %v4940, 7
        %v5197 = vsel %vm5185, %v5193, %v5196
        %v5198 = vrot.slane %v4941, 7
        %v5199 = vrot.slane %v4942, 7
        %v5200 = vrot.slane %v4943, 7
        %v5201 = vsel %vm5185, %v5198, %v5200
        %v5202 = vrot.slane %v4944, 7
        %v5203 = vsel %vm5185, %v5199, %v5202
        %v5204 = vrot.slane %v4945, 7
        %v5205 = vrot.slane %v4946, 7
        %v5206 = vrot.slane %v4947, 7
        %v5207 = vsel %vm5185, %v5204, %v5206
        %v5208 = vrot.slane %v4948, 7
        %v5209 = vsel %vm5185, %v5205, %v5208
        %v5210 = vrot.slane %v4949, 7
        %v5211 = vrot.slane %v4950, 7
        %v5212 = vrot.slane %v4951, 7
        %v5213 = vsel %vm5185, %v5210, %v5212
        %v5214 = vrot.slane %v4952, 7
        %v5215 = vsel %vm5185, %v5211, %v5214
        %v5216 = vrot.slane %v4953, 7
        %v5217 = vrot.slane %v4954, 7
        %v5218 = vrot.slane %v4955, 7
        %v5219 = vsel %vm5185, %v5216, %v5218
        %v5220 = vrot.slane %v4956, 7
        %v5221 = vsel %vm5185, %v5217, %v5220
        %v5222 = vrot.slane %v4957, 7
        %v5223 = vrot.slane %v4958, 7
        %v5224 = vrot.slane %v4959, 7
        %v5225 = vsel %vm5185, %v5222, %v5224
        %v5226 = vrot.slane %v4960, 7
        %v5227 = vsel %vm5185, %v5223, %v5226
        %v5228 = vrot.slane %v4961, 7
        %v5229 = vrot.slane %v4962, 7
        %v5230 = vrot.slane %v4963, 7
        %v5231 = vsel %vm5185, %v5228, %v5230
        %v5232 = vrot.slane %v4964, 7
        %v5233 = vsel %vm5185, %v5229, %v5232
        %v5234 = vrot.slane %v4965, 7
        %v5235 = vrot.slane %v4966, 7
        %v5236 = vrot.slane %v4967, 7
        %v5237 = vsel %vm5185, %v5234, %v5236
        %v5238 = vrot.slane %v4968, 7
        %v5239 = vsel %vm5185, %v5235, %v5238
        %v5240 = vrot.slane %v4969, 7
        %v5241 = vrot.slane %v4970, 7
        %v5242 = vrot.slane %v4971, 7
        %v5243 = vsel %vm5185, %v5240, %v5242
        %v5244 = vrot.slane %v4972, 7
        %v5245 = vsel %vm5185, %v5241, %v5244
        %v5246 = vrot.slane %v4973, 7
        %v5247 = vrot.slane %v4974, 7
        %v5248 = vrot.slane %v4975, 7
        %v5249 = vsel %vm5185, %v5246, %v5248
        %v5250 = vrot.slane %v4976, 7
        %v5251 = vsel %vm5185, %v5247, %v5250
        %v5252 = vrot.slane %v4977, 7
        %v5253 = vrot.slane %v4978, 7
        %v5254 = vrot.slane %v4979, 7
        %v5255 = vsel %vm5185, %v5252, %v5254
        %v5256 = vrot.slane %v4980, 7
        %v5257 = vsel %vm5185, %v5253, %v5256
        %v5258 = vrot.slane %v4981, 7
        %v5259 = vrot.slane %v4982, 7
        %v5260 = vrot.slane %v4983, 7
        %v5261 = vsel %vm5185, %v5258, %v5260
        %v5262 = vrot.slane %v4984, 7
        %v5263 = vsel %vm5185, %v5259, %v5262
        %v5264 = vrot.slane %v4985, 7
        %v5265 = vrot.slane %v4986, 7
        %v5266 = vrot.slane %v4987, 7
        %v5267 = vsel %vm5185, %v5264, %v5266
        %v5268 = vrot.slane %v4988, 7
        %v5269 = vsel %vm5185, %v5265, %v5268
        %v5270 = vrot.slane %v4989, 7
        %v5271 = vrot.slane %v4990, 7
        %v5272 = vrot.slane %v4991, 7
        %v5273 = vsel %vm5185, %v5270, %v5272
        %v5274 = vrot.slane %v4992, 7
        %v5275 = vsel %vm5185, %v5271, %v5274
        %v5276 = vrot.slane %v4993, 7
        %v5277 = vrot.slane %v4994, 7
        %v5278 = vrot.slane %v4995, 7
        %v5279 = vsel %vm5185, %v5276, %v5278
        %v5280 = vrot.slane %v4996, 7
        %v5281 = vsel %vm5185, %v5277, %v5280
        %s5378 = scalar_lea.vmem [#allocation3], 48
        %5379 = vst [vmem:[%s5378] sm:$0xfe] %v5186
        %5380 = vst [vmem:[%s5378 + $0x8] sm:$0xfe] %v5187
        %5381 = vst [vmem:[%s5378 + $0x10] sm:$0xff] %v5189
        %5382 = vst [vmem:[%s5378 + $0x18] sm:$0xff] %v5191
        %5383 = vst [vmem:[%s5378 + $0x20] sm:$0x1] %v5188
        %5384 = vst [vmem:[%s5378 + $0x28] sm:$0x1] %v5190
        %5385 = vst [vmem:[%s5378 + $0x30] sm:$0xfe] %v5192
        %5386 = vst [vmem:[%s5378 + $0x38] sm:$0xfe] %v5193
        %5387 = vst [vmem:[%s5378 + $0x40] sm:$0xff] %v5195
        %5388 = vst [vmem:[%s5378 + $0x48] sm:$0xff] %v5197
        %5389 = vst [vmem:[%s5378 + $0x50] sm:$0x1] %v5194
        %5390 = vst [vmem:[%s5378 + $0x58] sm:$0x1] %v5196
        %5391 = vst [vmem:[%s5378 + $0x60] sm:$0xfe] %v5198
        %5392 = vst [vmem:[%s5378 + $0x68] sm:$0xfe] %v5199
        %5393 = vst [vmem:[%s5378 + $0x70] sm:$0xff] %v5201
        %5394 = vst [vmem:[%s5378 + $0x78] sm:$0xff] %v5203
        %5395 = vst [vmem:[%s5378 + $0x80] sm:$0x1] %v5200
        %5396 = vst [vmem:[%s5378 + $0x88] sm:$0x1] %v5202
        %5397 = vst [vmem:[%s5378 + $0x90] sm:$0xfe] %v5204
        %5398 = vst [vmem:[%s5378 + $0x98] sm:$0xfe] %v5205
        %5399 = vst [vmem:[%s5378 + $0xa0] sm:$0xff] %v5207
        %5400 = vst [vmem:[%s5378 + $0xa8] sm:$0xff] %v5209
        %5401 = vst [vmem:[%s5378 + $0xb0] sm:$0x1] %v5206
        %5402 = vst [vmem:[%s5378 + $0xb8] sm:$0x1] %v5208
        %5403 = vst [vmem:[%s5378 + $0xc0] sm:$0xfe] %v5210
        %5404 = vst [vmem:[%s5378 + $0xc8] sm:$0xfe] %v5211
        %5405 = vst [vmem:[%s5378 + $0xd0] sm:$0xff] %v5213
        %5406 = vst [vmem:[%s5378 + $0xd8] sm:$0xff] %v5215
        %5407 = vst [vmem:[%s5378 + $0xe0] sm:$0x1] %v5212
        %5408 = vst [vmem:[%s5378 + $0xe8] sm:$0x1] %v5214
        %5409 = vst [vmem:[%s5378 + $0xf0] sm:$0xfe] %v5216
        %5410 = vst [vmem:[%s5378 + $0xf8] sm:$0xfe] %v5217
        %5411 = vst [vmem:[%s5378 + $0x100] sm:$0xff] %v5219
        %5412 = vst [vmem:[%s5378 + $0x108] sm:$0xff] %v5221
        %5413 = vst [vmem:[%s5378 + $0x110] sm:$0x1] %v5218
        %5414 = vst [vmem:[%s5378 + $0x118] sm:$0x1] %v5220
        %5415 = vst [vmem:[%s5378 + $0x120] sm:$0xfe] %v5222
        %5416 = vst [vmem:[%s5378 + $0x128] sm:$0xfe] %v5223
        %5417 = vst [vmem:[%s5378 + $0x130] sm:$0xff] %v5225
        %5418 = vst [vmem:[%s5378 + $0x138] sm:$0xff] %v5227
        %5419 = vst [vmem:[%s5378 + $0x140] sm:$0x1] %v5224
        %5420 = vst [vmem:[%s5378 + $0x148] sm:$0x1] %v5226
        %5421 = vst [vmem:[%s5378 + $0x150] sm:$0xfe] %v5228
        %5422 = vst [vmem:[%s5378 + $0x158] sm:$0xfe] %v5229
        %5423 = vst [vmem:[%s5378 + $0x160] sm:$0xff] %v5231
        %5424 = vst [vmem:[%s5378 + $0x168] sm:$0xff] %v5233
        %5425 = vst [vmem:[%s5378 + $0x170] sm:$0x1] %v5230
        %5426 = vst [vmem:[%s5378 + $0x178] sm:$0x1] %v5232
        %5427 = vst [vmem:[%s5378 + $0x180] sm:$0xfe] %v5234
        %5428 = vst [vmem:[%s5378 + $0x188] sm:$0xfe] %v5235
        %5429 = vst [vmem:[%s5378 + $0x190] sm:$0xff] %v5237
        %5430 = vst [vmem:[%s5378 + $0x198] sm:$0xff] %v5239
        %5431 = vst [vmem:[%s5378 + $0x1a0] sm:$0x1] %v5236
        %5432 = vst [vmem:[%s5378 + $0x1a8] sm:$0x1] %v5238
        %5433 = vst [vmem:[%s5378 + $0x1b0] sm:$0xfe] %v5240
        %5434 = vst [vmem:[%s5378 + $0x1b8] sm:$0xfe] %v5241
        %5435 = vst [vmem:[%s5378 + $0x1c0] sm:$0xff] %v5243
        %5436 = vst [vmem:[%s5378 + $0x1c8] sm:$0xff] %v5245
        %5437 = vst [vmem:[%s5378 + $0x1d0] sm:$0x1] %v5242
        %5438 = vst [vmem:[%s5378 + $0x1d8] sm:$0x1] %v5244
        %5439 = vst [vmem:[%s5378 + $0x1e0] sm:$0xfe] %v5246
        %5440 = vst [vmem:[%s5378 + $0x1e8] sm:$0xfe] %v5247
        %5441 = vst [vmem:[%s5378 + $0x1f0] sm:$0xff] %v5249
        %5442 = vst [vmem:[%s5378 + $0x1f8] sm:$0xff] %v5251
        %5443 = vst [vmem:[%s5378 + $0x200] sm:$0x1] %v5248
        %5444 = vst [vmem:[%s5378 + $0x208] sm:$0x1] %v5250
        %5445 = vst [vmem:[%s5378 + $0x210] sm:$0xfe] %v5252
        %5446 = vst [vmem:[%s5378 + $0x218] sm:$0xfe] %v5253
        %5447 = vst [vmem:[%s5378 + $0x220] sm:$0xff] %v5255
        %5448 = vst [vmem:[%s5378 + $0x228] sm:$0xff] %v5257
        %5449 = vst [vmem:[%s5378 + $0x230] sm:$0x1] %v5254
        %5450 = vst [vmem:[%s5378 + $0x238] sm:$0x1] %v5256
        %5451 = vst [vmem:[%s5378 + $0x240] sm:$0xfe] %v5258
        %5452 = vst [vmem:[%s5378 + $0x248] sm:$0xfe] %v5259
        %5453 = vst [vmem:[%s5378 + $0x250] sm:$0xff] %v5261
        %5454 = vst [vmem:[%s5378 + $0x258] sm:$0xff] %v5263
        %5455 = vst [vmem:[%s5378 + $0x260] sm:$0x1] %v5260
        %5456 = vst [vmem:[%s5378 + $0x268] sm:$0x1] %v5262
        %5457 = vst [vmem:[%s5378 + $0x270] sm:$0xfe] %v5264
        %5458 = vst [vmem:[%s5378 + $0x278] sm:$0xfe] %v5265
        %5459 = vst [vmem:[%s5378 + $0x280] sm:$0xff] %v5267
        %5460 = vst [vmem:[%s5378 + $0x288] sm:$0xff] %v5269
        %5461 = vst [vmem:[%s5378 + $0x290] sm:$0x1] %v5266
        %5462 = vst [vmem:[%s5378 + $0x298] sm:$0x1] %v5268
        %5463 = vst [vmem:[%s5378 + $0x2a0] sm:$0xfe] %v5270
        %5464 = vst [vmem:[%s5378 + $0x2a8] sm:$0xfe] %v5271
        %5465 = vst [vmem:[%s5378 + $0x2b0] sm:$0xff] %v5273
        %5466 = vst [vmem:[%s5378 + $0x2b8] sm:$0xff] %v5275
        %5467 = vst [vmem:[%s5378 + $0x2c0] sm:$0x1] %v5272
        %5468 = vst [vmem:[%s5378 + $0x2c8] sm:$0x1] %v5274
        %5469 = vst [vmem:[%s5378 + $0x2d0] sm:$0xfe] %v5276
        %5470 = vst [vmem:[%s5378 + $0x2d8] sm:$0xfe] %v5277
        %5471 = vst [vmem:[%s5378 + $0x2e0] sm:$0xff] %v5279
        %5472 = vst [vmem:[%s5378 + $0x2e8] sm:$0xff] %v5281
        %5473 = vst [vmem:[%s5378 + $0x2f0] sm:$0x1] %v5278
        %5474 = vst [vmem:[%s5378 + $0x2f8] sm:$0x1] %v5280
        %v5475 = vld [vmem:[#allocation3] sm:$0xff]
        %v5476 = vld [vmem:[#allocation3 + $0x8] sm:$0xff]
        %v5477 = vld [vmem:[#allocation3 + $0x10] sm:$0xff]
        %v5478 = vld [vmem:[#allocation3 + $0x18] sm:$0xff]
        %v5479 = vld [vmem:[#allocation3 + $0x30] sm:$0xff]
        %v5480 = vld [vmem:[#allocation3 + $0x38] sm:$0xff]
        %v5481 = vld [vmem:[#allocation3 + $0x40] sm:$0xff]
        %v5482 = vld [vmem:[#allocation3 + $0x48] sm:$0xff]
        %v5483 = vld [vmem:[#allocation3 + $0x60] sm:$0xff]
        %v5484 = vld [vmem:[#allocation3 + $0x68] sm:$0xff]
        %v5485 = vld [vmem:[#allocation3 + $0x70] sm:$0xff]
        %v5486 = vld [vmem:[#allocation3 + $0x78] sm:$0xff]
        %v5487 = vld [vmem:[#allocation3 + $0x90] sm:$0xff]
        %v5488 = vld [vmem:[#allocation3 + $0x98] sm:$0xff]
        %v5489 = vld [vmem:[#allocation3 + $0xa0] sm:$0xff]
        %v5490 = vld [vmem:[#allocation3 + $0xa8] sm:$0xff]
        %v5491 = vld [vmem:[#allocation3 + $0xc0] sm:$0xff]
        %v5492 = vld [vmem:[#allocation3 + $0xc8] sm:$0xff]
        %v5493 = vld [vmem:[#allocation3 + $0xd0] sm:$0xff]
        %v5494 = vld [vmem:[#allocation3 + $0xd8] sm:$0xff]
        %v5495 = vld [vmem:[#allocation3 + $0xf0] sm:$0xff]
        %v5496 = vld [vmem:[#allocation3 + $0xf8] sm:$0xff]
        %v5497 = vld [vmem:[#allocation3 + $0x100] sm:$0xff]
        %v5498 = vld [vmem:[#allocation3 + $0x108] sm:$0xff]
        %v5499 = vld [vmem:[#allocation3 + $0x120] sm:$0xff]
        %v5500 = vld [vmem:[#allocation3 + $0x128] sm:$0xff]
        %v5501 = vld [vmem:[#allocation3 + $0x130] sm:$0xff]
        %v5502 = vld [vmem:[#allocation3 + $0x138] sm:$0xff]
        %v5503 = vld [vmem:[#allocation3 + $0x150] sm:$0xff]
        %v5504 = vld [vmem:[#allocation3 + $0x158] sm:$0xff]
        %v5505 = vld [vmem:[#allocation3 + $0x160] sm:$0xff]
        %v5506 = vld [vmem:[#allocation3 + $0x168] sm:$0xff]
        %v5507 = vld [vmem:[#allocation3 + $0x180] sm:$0xff]
        %v5508 = vld [vmem:[#allocation3 + $0x188] sm:$0xff]
        %v5509 = vld [vmem:[#allocation3 + $0x190] sm:$0xff]
        %v5510 = vld [vmem:[#allocation3 + $0x198] sm:$0xff]
        %v5511 = vld [vmem:[#allocation3 + $0x1b0] sm:$0xff]
        %v5512 = vld [vmem:[#allocation3 + $0x1b8] sm:$0xff]
        %v5513 = vld [vmem:[#allocation3 + $0x1c0] sm:$0xff]
        %v5514 = vld [vmem:[#allocation3 + $0x1c8] sm:$0xff]
        %v5515 = vld [vmem:[#allocation3 + $0x1e0] sm:$0xff]
        %v5516 = vld [vmem:[#allocation3 + $0x1e8] sm:$0xff]
        %v5517 = vld [vmem:[#allocation3 + $0x1f0] sm:$0xff]
        %v5518 = vld [vmem:[#allocation3 + $0x1f8] sm:$0xff]
        %v5519 = vld [vmem:[#allocation3 + $0x210] sm:$0xff]
        %v5520 = vld [vmem:[#allocation3 + $0x218] sm:$0xff]
        %v5521 = vld [vmem:[#allocation3 + $0x220] sm:$0xff]
        %v5522 = vld [vmem:[#allocation3 + $0x228] sm:$0xff]
        %v5523 = vld [vmem:[#allocation3 + $0x240] sm:$0xff]
        %v5524 = vld [vmem:[#allocation3 + $0x248] sm:$0xff]
        %v5525 = vld [vmem:[#allocation3 + $0x250] sm:$0xff]
        %v5526 = vld [vmem:[#allocation3 + $0x258] sm:$0xff]
        %v5527 = vld [vmem:[#allocation3 + $0x270] sm:$0xff]
        %v5528 = vld [vmem:[#allocation3 + $0x278] sm:$0xff]
        %v5529 = vld [vmem:[#allocation3 + $0x280] sm:$0xff]
        %v5530 = vld [vmem:[#allocation3 + $0x288] sm:$0xff]
        %v5531 = vld [vmem:[#allocation3 + $0x2a0] sm:$0xff]
        %v5532 = vld [vmem:[#allocation3 + $0x2a8] sm:$0xff]
        %v5533 = vld [vmem:[#allocation3 + $0x2b0] sm:$0xff]
        %v5534 = vld [vmem:[#allocation3 + $0x2b8] sm:$0xff]
        %v5535 = vld [vmem:[#allocation3 + $0x2d0] sm:$0xff]
        %v5536 = vld [vmem:[#allocation3 + $0x2d8] sm:$0xff]
        %v5537 = vld [vmem:[#allocation3 + $0x2e0] sm:$0xff]
        %v5538 = vld [vmem:[#allocation3 + $0x2e8] sm:$0xff]
        %v5539 = vld [vmem:[#allocation3 + $0x300] sm:$0xff]
        %v5540 = vld [vmem:[#allocation3 + $0x308] sm:$0xff]
        %v5541 = vld [vmem:[#allocation3 + $0x310] sm:$0xff]
        %v5542 = vld [vmem:[#allocation3 + $0x318] sm:$0xff]
        %v5543 = vld [vmem:[#allocation3 + $0x330] sm:$0xff]
        %v5544 = vld [vmem:[#allocation3 + $0x338] sm:$0xff]
        %v5545 = vld [vmem:[#allocation3 + $0x340] sm:$0xff]
        %v5546 = vld [vmem:[#allocation3 + $0x348] sm:$0xff]
        %v5547 = vld [vmem:[#allocation3] sm:$0xfe]
        %v5548 = vld [vmem:[#allocation3 + $0x8] sm:$0xfe]
        %v5549 = vld [vmem:[#allocation3 + $0x20] sm:$0x1]
        %v5550 = vld [vmem:[#allocation3 + $0x28] sm:$0x1]
        %v5551 = vld [vmem:[#allocation3 + $0x30] sm:$0xfe]
        %v5552 = vld [vmem:[#allocation3 + $0x38] sm:$0xfe]
        %v5553 = vld [vmem:[#allocation3 + $0x50] sm:$0x1]
        %v5554 = vld [vmem:[#allocation3 + $0x58] sm:$0x1]
        %v5555 = vld [vmem:[#allocation3 + $0x60] sm:$0xfe]
        %v5556 = vld [vmem:[#allocation3 + $0x68] sm:$0xfe]
        %v5557 = vld [vmem:[#allocation3 + $0x80] sm:$0x1]
        %v5558 = vld [vmem:[#allocation3 + $0x88] sm:$0x1]
        %v5559 = vld [vmem:[#allocation3 + $0x90] sm:$0xfe]
        %v5560 = vld [vmem:[#allocation3 + $0x98] sm:$0xfe]
        %v5561 = vld [vmem:[#allocation3 + $0xb0] sm:$0x1]
        %v5562 = vld [vmem:[#allocation3 + $0xb8] sm:$0x1]
        %v5563 = vld [vmem:[#allocation3 + $0xc0] sm:$0xfe]
        %v5564 = vld [vmem:[#allocation3 + $0xc8] sm:$0xfe]
        %v5565 = vld [vmem:[#allocation3 + $0xe0] sm:$0x1]
        %v5566 = vld [vmem:[#allocation3 + $0xe8] sm:$0x1]
        %v5567 = vld [vmem:[#allocation3 + $0xf0] sm:$0xfe]
        %v5568 = vld [vmem:[#allocation3 + $0xf8] sm:$0xfe]
        %v5569 = vld [vmem:[#allocation3 + $0x110] sm:$0x1]
        %v5570 = vld [vmem:[#allocation3 + $0x118] sm:$0x1]
        %v5571 = vld [vmem:[#allocation3 + $0x120] sm:$0xfe]
        %v5572 = vld [vmem:[#allocation3 + $0x128] sm:$0xfe]
        %v5573 = vld [vmem:[#allocation3 + $0x140] sm:$0x1]
        %v5574 = vld [vmem:[#allocation3 + $0x148] sm:$0x1]
        %v5575 = vld [vmem:[#allocation3 + $0x150] sm:$0xfe]
        %v5576 = vld [vmem:[#allocation3 + $0x158] sm:$0xfe]
        %v5577 = vld [vmem:[#allocation3 + $0x170] sm:$0x1]
        %v5578 = vld [vmem:[#allocation3 + $0x178] sm:$0x1]
        %v5579 = vld [vmem:[#allocation3 + $0x180] sm:$0xfe]
        %v5580 = vld [vmem:[#allocation3 + $0x188] sm:$0xfe]
        %v5581 = vld [vmem:[#allocation3 + $0x1a0] sm:$0x1]
        %v5582 = vld [vmem:[#allocation3 + $0x1a8] sm:$0x1]
        %v5583 = vld [vmem:[#allocation3 + $0x1b0] sm:$0xfe]
        %v5584 = vld [vmem:[#allocation3 + $0x1b8] sm:$0xfe]
        %v5585 = vld [vmem:[#allocation3 + $0x1d0] sm:$0x1]
        %v5586 = vld [vmem:[#allocation3 + $0x1d8] sm:$0x1]
        %v5587 = vld [vmem:[#allocation3 + $0x1e0] sm:$0xfe]
        %v5588 = vld [vmem:[#allocation3 + $0x1e8] sm:$0xfe]
        %v5589 = vld [vmem:[#allocation3 + $0x200] sm:$0x1]
        %v5590 = vld [vmem:[#allocation3 + $0x208] sm:$0x1]
        %v5591 = vld [vmem:[#allocation3 + $0x210] sm:$0xfe]
        %v5592 = vld [vmem:[#allocation3 + $0x218] sm:$0xfe]
        %v5593 = vld [vmem:[#allocation3 + $0x230] sm:$0x1]
        %v5594 = vld [vmem:[#allocation3 + $0x238] sm:$0x1]
        %v5595 = vld [vmem:[#allocation3 + $0x240] sm:$0xfe]
        %v5596 = vld [vmem:[#allocation3 + $0x248] sm:$0xfe]
        %v5597 = vld [vmem:[#allocation3 + $0x260] sm:$0x1]
        %v5598 = vld [vmem:[#allocation3 + $0x268] sm:$0x1]
        %v5599 = vld [vmem:[#allocation3 + $0x270] sm:$0xfe]
        %v5600 = vld [vmem:[#allocation3 + $0x278] sm:$0xfe]
        %v5601 = vld [vmem:[#allocation3 + $0x290] sm:$0x1]
        %v5602 = vld [vmem:[#allocation3 + $0x298] sm:$0x1]
        %v5603 = vld [vmem:[#allocation3 + $0x2a0] sm:$0xfe]
        %v5604 = vld [vmem:[#allocation3 + $0x2a8] sm:$0xfe]
        %v5605 = vld [vmem:[#allocation3 + $0x2c0] sm:$0x1]
        %v5606 = vld [vmem:[#allocation3 + $0x2c8] sm:$0x1]
        %v5607 = vld [vmem:[#allocation3 + $0x2d0] sm:$0xfe]
        %v5608 = vld [vmem:[#allocation3 + $0x2d8] sm:$0xfe]
        %v5609 = vld [vmem:[#allocation3 + $0x2f0] sm:$0x1]
        %v5610 = vld [vmem:[#allocation3 + $0x2f8] sm:$0x1]
        %v5611 = vld [vmem:[#allocation3 + $0x300] sm:$0xfe]
        %v5612 = vld [vmem:[#allocation3 + $0x308] sm:$0xfe]
        %v5613 = vld [vmem:[#allocation3 + $0x320] sm:$0x1]
        %v5614 = vld [vmem:[#allocation3 + $0x328] sm:$0x1]
        %v5615 = vld [vmem:[#allocation3 + $0x330] sm:$0xfe]
        %v5616 = vld [vmem:[#allocation3 + $0x338] sm:$0xfe]
        %v5617 = vld [vmem:[#allocation3 + $0x350] sm:$0x1]
        %v5618 = vld [vmem:[#allocation3 + $0x358] sm:$0x1]
        %v5619 = vld [vmem:[#allocation3] sm:$0xfc]
        %v5620 = vld [vmem:[#allocation3 + $0x8] sm:$0xfc]
        %v5621 = vld [vmem:[#allocation3 + $0x20] sm:$0x3]
        %v5622 = vld [vmem:[#allocation3 + $0x28] sm:$0x3]
        %v5623 = vld [vmem:[#allocation3 + $0x30] sm:$0xfc]
        %v5624 = vld [vmem:[#allocation3 + $0x38] sm:$0xfc]
        %v5625 = vld [vmem:[#allocation3 + $0x50] sm:$0x3]
        %v5626 = vld [vmem:[#allocation3 + $0x58] sm:$0x3]
        %v5627 = vld [vmem:[#allocation3 + $0x60] sm:$0xfc]
        %v5628 = vld [vmem:[#allocation3 + $0x68] sm:$0xfc]
        %v5629 = vld [vmem:[#allocation3 + $0x80] sm:$0x3]
        %v5630 = vld [vmem:[#allocation3 + $0x88] sm:$0x3]
        %v5631 = vld [vmem:[#allocation3 + $0x90] sm:$0xfc]
        %v5632 = vld [vmem:[#allocation3 + $0x98] sm:$0xfc]
        %v5633 = vld [vmem:[#allocation3 + $0xb0] sm:$0x3]
        %v5634 = vld [vmem:[#allocation3 + $0xb8] sm:$0x3]
        %v5635 = vld [vmem:[#allocation3 + $0xc0] sm:$0xfc]
        %v5636 = vld [vmem:[#allocation3 + $0xc8] sm:$0xfc]
        %v5637 = vld [vmem:[#allocation3 + $0xe0] sm:$0x3]
        %v5638 = vld [vmem:[#allocation3 + $0xe8] sm:$0x3]
        %v5639 = vld [vmem:[#allocation3 + $0xf0] sm:$0xfc]
        %v5640 = vld [vmem:[#allocation3 + $0xf8] sm:$0xfc]
        %v5641 = vld [vmem:[#allocation3 + $0x110] sm:$0x3]
        %v5642 = vld [vmem:[#allocation3 + $0x118] sm:$0x3]
        %v5643 = vld [vmem:[#allocation3 + $0x120] sm:$0xfc]
        %v5644 = vld [vmem:[#allocation3 + $0x128] sm:$0xfc]
        %v5645 = vld [vmem:[#allocation3 + $0x140] sm:$0x3]
        %v5646 = vld [vmem:[#allocation3 + $0x148] sm:$0x3]
        %v5647 = vld [vmem:[#allocation3 + $0x150] sm:$0xfc]
        %v5648 = vld [vmem:[#allocation3 + $0x158] sm:$0xfc]
        %v5649 = vld [vmem:[#allocation3 + $0x170] sm:$0x3]
        %v5650 = vld [vmem:[#allocation3 + $0x178] sm:$0x3]
        %v5651 = vld [vmem:[#allocation3 + $0x180] sm:$0xfc]
        %v5652 = vld [vmem:[#allocation3 + $0x188] sm:$0xfc]
        %v5653 = vld [vmem:[#allocation3 + $0x1a0] sm:$0x3]
        %v5654 = vld [vmem:[#allocation3 + $0x1a8] sm:$0x3]
        %v5655 = vld [vmem:[#allocation3 + $0x1b0] sm:$0xfc]
        %v5656 = vld [vmem:[#allocation3 + $0x1b8] sm:$0xfc]
        %v5657 = vld [vmem:[#allocation3 + $0x1d0] sm:$0x3]
        %v5658 = vld [vmem:[#allocation3 + $0x1d8] sm:$0x3]
        %v5659 = vld [vmem:[#allocation3 + $0x1e0] sm:$0xfc]
        %v5660 = vld [vmem:[#allocation3 + $0x1e8] sm:$0xfc]
        %v5661 = vld [vmem:[#allocation3 + $0x200] sm:$0x3]
        %v5662 = vld [vmem:[#allocation3 + $0x208] sm:$0x3]
        %v5663 = vld [vmem:[#allocation3 + $0x210] sm:$0xfc]
        %v5664 = vld [vmem:[#allocation3 + $0x218] sm:$0xfc]
        %v5665 = vld [vmem:[#allocation3 + $0x230] sm:$0x3]
        %v5666 = vld [vmem:[#allocation3 + $0x238] sm:$0x3]
        %v5667 = vld [vmem:[#allocation3 + $0x240] sm:$0xfc]
        %v5668 = vld [vmem:[#allocation3 + $0x248] sm:$0xfc]
        %v5669 = vld [vmem:[#allocation3 + $0x260] sm:$0x3]
        %v5670 = vld [vmem:[#allocation3 + $0x268] sm:$0x3]
        %v5671 = vld [vmem:[#allocation3 + $0x270] sm:$0xfc]
        %v5672 = vld [vmem:[#allocation3 + $0x278] sm:$0xfc]
        %v5673 = vld [vmem:[#allocation3 + $0x290] sm:$0x3]
        %v5674 = vld [vmem:[#allocation3 + $0x298] sm:$0x3]
        %v5675 = vld [vmem:[#allocation3 + $0x2a0] sm:$0xfc]
        %v5676 = vld [vmem:[#allocation3 + $0x2a8] sm:$0xfc]
        %v5677 = vld [vmem:[#allocation3 + $0x2c0] sm:$0x3]
        %v5678 = vld [vmem:[#allocation3 + $0x2c8] sm:$0x3]
        %v5679 = vld [vmem:[#allocation3 + $0x2d0] sm:$0xfc]
        %v5680 = vld [vmem:[#allocation3 + $0x2d8] sm:$0xfc]
        %v5681 = vld [vmem:[#allocation3 + $0x2f0] sm:$0x3]
        %v5682 = vld [vmem:[#allocation3 + $0x2f8] sm:$0x3]
        %v5683 = vld [vmem:[#allocation3 + $0x300] sm:$0xfc]
        %v5684 = vld [vmem:[#allocation3 + $0x308] sm:$0xfc]
        %v5685 = vld [vmem:[#allocation3 + $0x320] sm:$0x3]
        %v5686 = vld [vmem:[#allocation3 + $0x328] sm:$0x3]
        %v5687 = vld [vmem:[#allocation3 + $0x330] sm:$0xfc]
        %v5688 = vld [vmem:[#allocation3 + $0x338] sm:$0xfc]
        %v5689 = vld [vmem:[#allocation3 + $0x350] sm:$0x3]
        %v5690 = vld [vmem:[#allocation3 + $0x358] sm:$0x3]
        %vm5799 = vcmask 1046528
        %v5800 = vrot.slane %v5547, 1
        %v5801 = vrot.slane %v5477, 1
        %v5802 = vsel %vm5799, %v5800, %v5801
        %v5803 = vrot.slane %v5548, 1
        %v5804 = vrot.slane %v5478, 1
        %v5805 = vsel %vm5799, %v5803, %v5804
        %v5806 = vrot.slane %v5549, 1
        %v5807 = vsel %vm5799, %v5801, %v5806
        %v5808 = vrot.slane %v5550, 1
        %v5809 = vsel %vm5799, %v5804, %v5808
        %v5810 = vrot.slane %v5551, 1
        %v5811 = vrot.slane %v5481, 1
        %v5812 = vsel %vm5799, %v5810, %v5811
        %v5813 = vrot.slane %v5552, 1
        %v5814 = vrot.slane %v5482, 1
        %v5815 = vsel %vm5799, %v5813, %v5814
        %v5816 = vrot.slane %v5553, 1
        %v5817 = vsel %vm5799, %v5811, %v5816
        %v5818 = vrot.slane %v5554, 1
        %v5819 = vsel %vm5799, %v5814, %v5818
        %v5820 = vrot.slane %v5555, 1
        %v5821 = vrot.slane %v5485, 1
        %v5822 = vsel %vm5799, %v5820, %v5821
        %v5823 = vrot.slane %v5556, 1
        %v5824 = vrot.slane %v5486, 1
        %v5825 = vsel %vm5799, %v5823, %v5824
        %v5826 = vrot.slane %v5557, 1
        %v5827 = vsel %vm5799, %v5821, %v5826
        %v5828 = vrot.slane %v5558, 1
        %v5829 = vsel %vm5799, %v5824, %v5828
        %v5830 = vrot.slane %v5559, 1
        %v5831 = vrot.slane %v5489, 1
        %v5832 = vsel %vm5799, %v5830, %v5831
        %v5833 = vrot.slane %v5560, 1
        %v5834 = vrot.slane %v5490, 1
        %v5835 = vsel %vm5799, %v5833, %v5834
        %v5836 = vrot.slane %v5561, 1
        %v5837 = vsel %vm5799, %v5831, %v5836
        %v5838 = vrot.slane %v5562, 1
        %v5839 = vsel %vm5799, %v5834, %v5838
        %v5840 = vrot.slane %v5563, 1
        %v5841 = vrot.slane %v5493, 1
        %v5842 = vsel %vm5799, %v5840, %v5841
        %v5843 = vrot.slane %v5564, 1
        %v5844 = vrot.slane %v5494, 1
        %v5845 = vsel %vm5799, %v5843, %v5844
        %v5846 = vrot.slane %v5565, 1
        %v5847 = vsel %vm5799, %v5841, %v5846
        %v5848 = vrot.slane %v5566, 1
        %v5849 = vsel %vm5799, %v5844, %v5848
        %v5850 = vrot.slane %v5567, 1
        %v5851 = vrot.slane %v5497, 1
        %v5852 = vsel %vm5799, %v5850, %v5851
        %v5853 = vrot.slane %v5568, 1
        %v5854 = vrot.slane %v5498, 1
        %v5855 = vsel %vm5799, %v5853, %v5854
        %v5856 = vrot.slane %v5569, 1
        %v5857 = vsel %vm5799, %v5851, %v5856
        %v5858 = vrot.slane %v5570, 1
        %v5859 = vsel %vm5799, %v5854, %v5858
        %v5860 = vrot.slane %v5571, 1
        %v5861 = vrot.slane %v5501, 1
        %v5862 = vsel %vm5799, %v5860, %v5861
        %v5863 = vrot.slane %v5572, 1
        %v5864 = vrot.slane %v5502, 1
        %v5865 = vsel %vm5799, %v5863, %v5864
        %v5866 = vrot.slane %v5573, 1
        %v5867 = vsel %vm5799, %v5861, %v5866
        %v5868 = vrot.slane %v5574, 1
        %v5869 = vsel %vm5799, %v5864, %v5868
        %v5870 = vrot.slane %v5575, 1
        %v5871 = vrot.slane %v5505, 1
        %v5872 = vsel %vm5799, %v5870, %v5871
        %v5873 = vrot.slane %v5576, 1
        %v5874 = vrot.slane %v5506, 1
        %v5875 = vsel %vm5799, %v5873, %v5874
        %v5876 = vrot.slane %v5577, 1
        %v5877 = vsel %vm5799, %v5871, %v5876
        %v5878 = vrot.slane %v5578, 1
        %v5879 = vsel %vm5799, %v5874, %v5878
        %v5880 = vrot.slane %v5579, 1
        %v5881 = vrot.slane %v5509, 1
        %v5882 = vsel %vm5799, %v5880, %v5881
        %v5883 = vrot.slane %v5580, 1
        %v5884 = vrot.slane %v5510, 1
        %v5885 = vsel %vm5799, %v5883, %v5884
        %v5886 = vrot.slane %v5581, 1
        %v5887 = vsel %vm5799, %v5881, %v5886
        %v5888 = vrot.slane %v5582, 1
        %v5889 = vsel %vm5799, %v5884, %v5888
        %v5890 = vrot.slane %v5583, 1
        %v5891 = vrot.slane %v5513, 1
        %v5892 = vsel %vm5799, %v5890, %v5891
        %v5893 = vrot.slane %v5584, 1
        %v5894 = vrot.slane %v5514, 1
        %v5895 = vsel %vm5799, %v5893, %v5894
        %v5896 = vrot.slane %v5585, 1
        %v5897 = vsel %vm5799, %v5891, %v5896
        %v5898 = vrot.slane %v5586, 1
        %v5899 = vsel %vm5799, %v5894, %v5898
        %v5900 = vrot.slane %v5587, 1
        %v5901 = vrot.slane %v5517, 1
        %v5902 = vsel %vm5799, %v5900, %v5901
        %v5903 = vrot.slane %v5588, 1
        %v5904 = vrot.slane %v5518, 1
        %v5905 = vsel %vm5799, %v5903, %v5904
        %v5906 = vrot.slane %v5589, 1
        %v5907 = vsel %vm5799, %v5901, %v5906
        %v5908 = vrot.slane %v5590, 1
        %v5909 = vsel %vm5799, %v5904, %v5908
        %v5910 = vrot.slane %v5591, 1
        %v5911 = vrot.slane %v5521, 1
        %v5912 = vsel %vm5799, %v5910, %v5911
        %v5913 = vrot.slane %v5592, 1
        %v5914 = vrot.slane %v5522, 1
        %v5915 = vsel %vm5799, %v5913, %v5914
        %v5916 = vrot.slane %v5593, 1
        %v5917 = vsel %vm5799, %v5911, %v5916
        %v5918 = vrot.slane %v5594, 1
        %v5919 = vsel %vm5799, %v5914, %v5918
        %v5920 = vrot.slane %v5595, 1
        %v5921 = vrot.slane %v5525, 1
        %v5922 = vsel %vm5799, %v5920, %v5921
        %v5923 = vrot.slane %v5596, 1
        %v5924 = vrot.slane %v5526, 1
        %v5925 = vsel %vm5799, %v5923, %v5924
        %v5926 = vrot.slane %v5597, 1
        %v5927 = vsel %vm5799, %v5921, %v5926
        %v5928 = vrot.slane %v5598, 1
        %v5929 = vsel %vm5799, %v5924, %v5928
        %v5930 = vrot.slane %v5599, 1
        %v5931 = vrot.slane %v5529, 1
        %v5932 = vsel %vm5799, %v5930, %v5931
        %v5933 = vrot.slane %v5600, 1
        %v5934 = vrot.slane %v5530, 1
        %v5935 = vsel %vm5799, %v5933, %v5934
        %v5936 = vrot.slane %v5601, 1
        %v5937 = vsel %vm5799, %v5931, %v5936
        %v5938 = vrot.slane %v5602, 1
        %v5939 = vsel %vm5799, %v5934, %v5938
        %v5940 = vrot.slane %v5603, 1
        %v5941 = vrot.slane %v5533, 1
        %v5942 = vsel %vm5799, %v5940, %v5941
        %v5943 = vrot.slane %v5604, 1
        %v5944 = vrot.slane %v5534, 1
        %v5945 = vsel %vm5799, %v5943, %v5944
        %v5946 = vrot.slane %v5605, 1
        %v5947 = vsel %vm5799, %v5941, %v5946
        %v5948 = vrot.slane %v5606, 1
        %v5949 = vsel %vm5799, %v5944, %v5948
        %v5950 = vrot.slane %v5607, 1
        %v5951 = vrot.slane %v5537, 1
        %v5952 = vsel %vm5799, %v5950, %v5951
        %v5953 = vrot.slane %v5608, 1
        %v5954 = vrot.slane %v5538, 1
        %v5955 = vsel %vm5799, %v5953, %v5954
        %v5956 = vrot.slane %v5609, 1
        %v5957 = vsel %vm5799, %v5951, %v5956
        %v5958 = vrot.slane %v5610, 1
        %v5959 = vsel %vm5799, %v5954, %v5958
        %v5960 = vrot.slane %v5611, 1
        %v5961 = vrot.slane %v5541, 1
        %v5962 = vsel %vm5799, %v5960, %v5961
        %v5963 = vrot.slane %v5612, 1
        %v5964 = vrot.slane %v5542, 1
        %v5965 = vsel %vm5799, %v5963, %v5964
        %v5966 = vrot.slane %v5613, 1
        %v5967 = vsel %vm5799, %v5961, %v5966
        %v5968 = vrot.slane %v5614, 1
        %v5969 = vsel %vm5799, %v5964, %v5968
        %v5970 = vrot.slane %v5615, 1
        %v5971 = vrot.slane %v5545, 1
        %v5972 = vsel %vm5799, %v5970, %v5971
        %v5973 = vrot.slane %v5616, 1
        %v5974 = vrot.slane %v5546, 1
        %v5975 = vsel %vm5799, %v5973, %v5974
        %v5976 = vrot.slane %v5617, 1
        %v5977 = vsel %vm5799, %v5971, %v5976
        %v5978 = vrot.slane %v5618, 1
        %v5979 = vsel %vm5799, %v5974, %v5978
        %vm6124 = vcmask 1045504
        %v6125 = vrot.slane %v5619, 2
        %v6126 = vrot.slane %v5477, 2
        %v6127 = vsel %vm6124, %v6125, %v6126
        %v6128 = vrot.slane %v5620, 2
        %v6129 = vrot.slane %v5478, 2
        %v6130 = vsel %vm6124, %v6128, %v6129
        %v6131 = vrot.slane %v5621, 2
        %v6132 = vsel %vm6124, %v6126, %v6131
        %v6133 = vrot.slane %v5622, 2
        %v6134 = vsel %vm6124, %v6129, %v6133
        %v6135 = vrot.slane %v5623, 2
        %v6136 = vrot.slane %v5481, 2
        %v6137 = vsel %vm6124, %v6135, %v6136
        %v6138 = vrot.slane %v5624, 2
        %v6139 = vrot.slane %v5482, 2
        %v6140 = vsel %vm6124, %v6138, %v6139
        %v6141 = vrot.slane %v5625, 2
        %v6142 = vsel %vm6124, %v6136, %v6141
        %v6143 = vrot.slane %v5626, 2
        %v6144 = vsel %vm6124, %v6139, %v6143
        %v6145 = vrot.slane %v5627, 2
        %v6146 = vrot.slane %v5485, 2
        %v6147 = vsel %vm6124, %v6145, %v6146
        %v6148 = vrot.slane %v5628, 2
        %v6149 = vrot.slane %v5486, 2
        %v6150 = vsel %vm6124, %v6148, %v6149
        %v6151 = vrot.slane %v5629, 2
        %v6152 = vsel %vm6124, %v6146, %v6151
        %v6153 = vrot.slane %v5630, 2
        %v6154 = vsel %vm6124, %v6149, %v6153
        %v6155 = vrot.slane %v5631, 2
        %v6156 = vrot.slane %v5489, 2
        %v6157 = vsel %vm6124, %v6155, %v6156
        %v6158 = vrot.slane %v5632, 2
        %v6159 = vrot.slane %v5490, 2
        %v6160 = vsel %vm6124, %v6158, %v6159
        %v6161 = vrot.slane %v5633, 2
        %v6162 = vsel %vm6124, %v6156, %v6161
        %v6163 = vrot.slane %v5634, 2
        %v6164 = vsel %vm6124, %v6159, %v6163
        %v6165 = vrot.slane %v5635, 2
        %v6166 = vrot.slane %v5493, 2
        %v6167 = vsel %vm6124, %v6165, %v6166
        %v6168 = vrot.slane %v5636, 2
        %v6169 = vrot.slane %v5494, 2
        %v6170 = vsel %vm6124, %v6168, %v6169
        %v6171 = vrot.slane %v5637, 2
        %v6172 = vsel %vm6124, %v6166, %v6171
        %v6173 = vrot.slane %v5638, 2
        %v6174 = vsel %vm6124, %v6169, %v6173
        %v6175 = vrot.slane %v5639, 2
        %v6176 = vrot.slane %v5497, 2
        %v6177 = vsel %vm6124, %v6175, %v6176
        %v6178 = vrot.slane %v5640, 2
        %v6179 = vrot.slane %v5498, 2
        %v6180 = vsel %vm6124, %v6178, %v6179
        %v6181 = vrot.slane %v5641, 2
        %v6182 = vsel %vm6124, %v6176, %v6181
        %v6183 = vrot.slane %v5642, 2
        %v6184 = vsel %vm6124, %v6179, %v6183
        %v6185 = vrot.slane %v5643, 2
        %v6186 = vrot.slane %v5501, 2
        %v6187 = vsel %vm6124, %v6185, %v6186
        %v6188 = vrot.slane %v5644, 2
        %v6189 = vrot.slane %v5502, 2
        %v6190 = vsel %vm6124, %v6188, %v6189
        %v6191 = vrot.slane %v5645, 2
        %v6192 = vsel %vm6124, %v6186, %v6191
        %v6193 = vrot.slane %v5646, 2
        %v6194 = vsel %vm6124, %v6189, %v6193
        %v6195 = vrot.slane %v5647, 2
        %v6196 = vrot.slane %v5505, 2
        %v6197 = vsel %vm6124, %v6195, %v6196
        %v6198 = vrot.slane %v5648, 2
        %v6199 = vrot.slane %v5506, 2
        %v6200 = vsel %vm6124, %v6198, %v6199
        %v6201 = vrot.slane %v5649, 2
        %v6202 = vsel %vm6124, %v6196, %v6201
        %v6203 = vrot.slane %v5650, 2
        %v6204 = vsel %vm6124, %v6199, %v6203
        %v6205 = vrot.slane %v5651, 2
        %v6206 = vrot.slane %v5509, 2
        %v6207 = vsel %vm6124, %v6205, %v6206
        %v6208 = vrot.slane %v5652, 2
        %v6209 = vrot.slane %v5510, 2
        %v6210 = vsel %vm6124, %v6208, %v6209
        %v6211 = vrot.slane %v5653, 2
        %v6212 = vsel %vm6124, %v6206, %v6211
        %v6213 = vrot.slane %v5654, 2
        %v6214 = vsel %vm6124, %v6209, %v6213
        %v6215 = vrot.slane %v5655, 2
        %v6216 = vrot.slane %v5513, 2
        %v6217 = vsel %vm6124, %v6215, %v6216
        %v6218 = vrot.slane %v5656, 2
        %v6219 = vrot.slane %v5514, 2
        %v6220 = vsel %vm6124, %v6218, %v6219
        %v6221 = vrot.slane %v5657, 2
        %v6222 = vsel %vm6124, %v6216, %v6221
        %v6223 = vrot.slane %v5658, 2
        %v6224 = vsel %vm6124, %v6219, %v6223
        %v6225 = vrot.slane %v5659, 2
        %v6226 = vrot.slane %v5517, 2
        %v6227 = vsel %vm6124, %v6225, %v6226
        %v6228 = vrot.slane %v5660, 2
        %v6229 = vrot.slane %v5518, 2
        %v6230 = vsel %vm6124, %v6228, %v6229
        %v6231 = vrot.slane %v5661, 2
        %v6232 = vsel %vm6124, %v6226, %v6231
        %v6233 = vrot.slane %v5662, 2
        %v6234 = vsel %vm6124, %v6229, %v6233
        %v6235 = vrot.slane %v5663, 2
        %v6236 = vrot.slane %v5521, 2
        %v6237 = vsel %vm6124, %v6235, %v6236
        %v6238 = vrot.slane %v5664, 2
        %v6239 = vrot.slane %v5522, 2
        %v6240 = vsel %vm6124, %v6238, %v6239
        %v6241 = vrot.slane %v5665, 2
        %v6242 = vsel %vm6124, %v6236, %v6241
        %v6243 = vrot.slane %v5666, 2
        %v6244 = vsel %vm6124, %v6239, %v6243
        %v6245 = vrot.slane %v5667, 2
        %v6246 = vrot.slane %v5525, 2
        %v6247 = vsel %vm6124, %v6245, %v6246
        %v6248 = vrot.slane %v5668, 2
        %v6249 = vrot.slane %v5526, 2
        %v6250 = vsel %vm6124, %v6248, %v6249
        %v6251 = vrot.slane %v5669, 2
        %v6252 = vsel %vm6124, %v6246, %v6251
        %v6253 = vrot.slane %v5670, 2
        %v6254 = vsel %vm6124, %v6249, %v6253
        %v6255 = vrot.slane %v5671, 2
        %v6256 = vrot.slane %v5529, 2
        %v6257 = vsel %vm6124, %v6255, %v6256
        %v6258 = vrot.slane %v5672, 2
        %v6259 = vrot.slane %v5530, 2
        %v6260 = vsel %vm6124, %v6258, %v6259
        %v6261 = vrot.slane %v5673, 2
        %v6262 = vsel %vm6124, %v6256, %v6261
        %v6263 = vrot.slane %v5674, 2
        %v6264 = vsel %vm6124, %v6259, %v6263
        %v6265 = vrot.slane %v5675, 2
        %v6266 = vrot.slane %v5533, 2
        %v6267 = vsel %vm6124, %v6265, %v6266
        %v6268 = vrot.slane %v5676, 2
        %v6269 = vrot.slane %v5534, 2
        %v6270 = vsel %vm6124, %v6268, %v6269
        %v6271 = vrot.slane %v5677, 2
        %v6272 = vsel %vm6124, %v6266, %v6271
        %v6273 = vrot.slane %v5678, 2
        %v6274 = vsel %vm6124, %v6269, %v6273
        %v6275 = vrot.slane %v5679, 2
        %v6276 = vrot.slane %v5537, 2
        %v6277 = vsel %vm6124, %v6275, %v6276
        %v6278 = vrot.slane %v5680, 2
        %v6279 = vrot.slane %v5538, 2
        %v6280 = vsel %vm6124, %v6278, %v6279
        %v6281 = vrot.slane %v5681, 2
        %v6282 = vsel %vm6124, %v6276, %v6281
        %v6283 = vrot.slane %v5682, 2
        %v6284 = vsel %vm6124, %v6279, %v6283
        %v6285 = vrot.slane %v5683, 2
        %v6286 = vrot.slane %v5541, 2
        %v6287 = vsel %vm6124, %v6285, %v6286
        %v6288 = vrot.slane %v5684, 2
        %v6289 = vrot.slane %v5542, 2
        %v6290 = vsel %vm6124, %v6288, %v6289
        %v6291 = vrot.slane %v5685, 2
        %v6292 = vsel %vm6124, %v6286, %v6291
        %v6293 = vrot.slane %v5686, 2
        %v6294 = vsel %vm6124, %v6289, %v6293
        %v6295 = vrot.slane %v5687, 2
        %v6296 = vrot.slane %v5545, 2
        %v6297 = vsel %vm6124, %v6295, %v6296
        %v6298 = vrot.slane %v5688, 2
        %v6299 = vrot.slane %v5546, 2
        %v6300 = vsel %vm6124, %v6298, %v6299
        %v6301 = vrot.slane %v5689, 2
        %v6302 = vsel %vm6124, %v6296, %v6301
        %v6303 = vrot.slane %v5690, 2
        %v6304 = vsel %vm6124, %v6299, %v6303
        %v6377 = vld [vmem:[#allocation15] sm:$0xff]
        %v6378 = vld [vmem:[#allocation15 + $0x8] sm:$0xff]
        %v6379 = vld [vmem:[#allocation15 + $0x10] sm:$0xff]
        %v6380 = vld [vmem:[#allocation15 + $0x18] sm:$0xff]
        %v6381 = vld [vmem:[#allocation15 + $0x20] sm:$0xff]
        %v6382 = vld [vmem:[#allocation15 + $0x28] sm:$0xff]
        %v6383 = vld [vmem:[#allocation15 + $0x30] sm:$0xff]
        %v6384 = vld [vmem:[#allocation15 + $0x38] sm:$0xff]
        %v6385 = vld [vmem:[#allocation15 + $0x40] sm:$0xff]
        %v6386 = vld [vmem:[#allocation15 + $0x48] sm:$0xff]
        %v6387 = vld [vmem:[#allocation15 + $0x50] sm:$0xff]
        %v6388 = vld [vmem:[#allocation15 + $0x58] sm:$0xff]
        %v6389 = vld [vmem:[#allocation15 + $0x60] sm:$0xff]
        %v6390 = vld [vmem:[#allocation15 + $0x68] sm:$0xff]
        %v6391 = vld [vmem:[#allocation15 + $0x70] sm:$0xff]
        %v6392 = vld [vmem:[#allocation15 + $0x78] sm:$0xff]
        %v6393 = vld [vmem:[#allocation15 + $0x80] sm:$0xff]
        %v6394 = vld [vmem:[#allocation15 + $0x88] sm:$0xff]
        %v6395 = vld [vmem:[#allocation15 + $0x90] sm:$0xff]
        %v6396 = vld [vmem:[#allocation15 + $0x98] sm:$0xff]
        %v6397 = vld [vmem:[#allocation15 + $0xa0] sm:$0xff]
        %v6398 = vld [vmem:[#allocation15 + $0xa8] sm:$0xff]
        %v6399 = vld [vmem:[#allocation15 + $0xb0] sm:$0xff]
        %v6400 = vld [vmem:[#allocation15 + $0xb8] sm:$0xff]
        %v6401 = vld [vmem:[#allocation15 + $0xc0] sm:$0xff]
        %v6402 = vld [vmem:[#allocation15 + $0xc8] sm:$0xff]
        %v6403 = vld [vmem:[#allocation15 + $0xd0] sm:$0xff]
        %v6404 = vld [vmem:[#allocation15 + $0xd8] sm:$0xff]
        %v6405 = vld [vmem:[#allocation15 + $0xe0] sm:$0xff]
        %v6406 = vld [vmem:[#allocation15 + $0xe8] sm:$0xff]
        %v6407 = vld [vmem:[#allocation15 + $0xf0] sm:$0xff]
        %v6408 = vld [vmem:[#allocation15 + $0xf8] sm:$0xff]
        %v6409 = vld [vmem:[#allocation15 + $0x100] sm:$0xff]
        %v6410 = vld [vmem:[#allocation15 + $0x108] sm:$0xff]
        %v6411 = vld [vmem:[#allocation15 + $0x110] sm:$0xff]
        %v6412 = vld [vmem:[#allocation15 + $0x118] sm:$0xff]
        %v6413 = vld [vmem:[#allocation15 + $0x120] sm:$0xff]
        %v6414 = vld [vmem:[#allocation15 + $0x128] sm:$0xff]
        %v6415 = vld [vmem:[#allocation15 + $0x130] sm:$0xff]
        %v6416 = vld [vmem:[#allocation15 + $0x138] sm:$0xff]
        %v6417 = vld [vmem:[#allocation15 + $0x140] sm:$0xff]
        %v6418 = vld [vmem:[#allocation15 + $0x148] sm:$0xff]
        %v6419 = vld [vmem:[#allocation15 + $0x150] sm:$0xff]
        %v6420 = vld [vmem:[#allocation15 + $0x158] sm:$0xff]
        %v6421 = vld [vmem:[#allocation15 + $0x160] sm:$0xff]
        %v6422 = vld [vmem:[#allocation15 + $0x168] sm:$0xff]
        %v6423 = vld [vmem:[#allocation15 + $0x170] sm:$0xff]
        %v6424 = vld [vmem:[#allocation15 + $0x178] sm:$0xff]
        %v6425 = vld [vmem:[#allocation15 + $0x180] sm:$0xff]
        %v6426 = vld [vmem:[#allocation15 + $0x188] sm:$0xff]
        %v6427 = vld [vmem:[#allocation15 + $0x190] sm:$0xff]
        %v6428 = vld [vmem:[#allocation15 + $0x198] sm:$0xff]
        %v6429 = vld [vmem:[#allocation15 + $0x1a0] sm:$0xff]
        %v6430 = vld [vmem:[#allocation15 + $0x1a8] sm:$0xff]
        %v6431 = vld [vmem:[#allocation15 + $0x1b0] sm:$0xff]
        %v6432 = vld [vmem:[#allocation15 + $0x1b8] sm:$0xff]
        %v6433 = vld [vmem:[#allocation15 + $0x1c0] sm:$0xff]
        %v6434 = vld [vmem:[#allocation15 + $0x1c8] sm:$0xff]
        %v6435 = vld [vmem:[#allocation15 + $0x1d0] sm:$0xff]
        %v6436 = vld [vmem:[#allocation15 + $0x1d8] sm:$0xff]
        %v6437 = vld [vmem:[#allocation15 + $0x1e0] sm:$0xff]
        %v6438 = vld [vmem:[#allocation15 + $0x1e8] sm:$0xff]
        %v6439 = vld [vmem:[#allocation15 + $0x1f0] sm:$0xff]
        %v6440 = vld [vmem:[#allocation15 + $0x1f8] sm:$0xff]
        %v6441 = vld [vmem:[#allocation15 + $0x200] sm:$0xff]
        %v6442 = vld [vmem:[#allocation15 + $0x208] sm:$0xff]
        %v6443 = vld [vmem:[#allocation15 + $0x210] sm:$0xff]
        %v6444 = vld [vmem:[#allocation15 + $0x218] sm:$0xff]
        %v6445 = vld [vmem:[#allocation15 + $0x220] sm:$0xff]
        %v6446 = vld [vmem:[#allocation15 + $0x228] sm:$0xff]
        %v6447 = vld [vmem:[#allocation15 + $0x230] sm:$0xff]
        %v6448 = vld [vmem:[#allocation15 + $0x238] sm:$0xff]
        %v6449 = vld [vmem:[#allocation15 + $0x240] sm:$0xff]
        %v6450 = vld [vmem:[#allocation15 + $0x248] sm:$0xff]
        %v6451 = vld [vmem:[#allocation15 + $0x250] sm:$0xff]
        %v6452 = vld [vmem:[#allocation15 + $0x258] sm:$0xff]
        %v6453 = vld [vmem:[#allocation15 + $0x260] sm:$0xff]
        %v6454 = vld [vmem:[#allocation15 + $0x268] sm:$0xff]
        %v6455 = vld [vmem:[#allocation15 + $0x270] sm:$0xff]
        %v6456 = vld [vmem:[#allocation15 + $0x278] sm:$0xff]
        %v6457 = vld [vmem:[#allocation15 + $0x280] sm:$0xff]
        %v6458 = vld [vmem:[#allocation15 + $0x288] sm:$0xff]
        %v6459 = vld [vmem:[#allocation15 + $0x290] sm:$0xff]
        %v6460 = vld [vmem:[#allocation15 + $0x298] sm:$0xff]
        %v6461 = vld [vmem:[#allocation15 + $0x2a0] sm:$0xff]
        %v6462 = vld [vmem:[#allocation15 + $0x2a8] sm:$0xff]
        %v6463 = vld [vmem:[#allocation15 + $0x2b0] sm:$0xff]
        %v6464 = vld [vmem:[#allocation15 + $0x2b8] sm:$0xff]
        %v6465 = vld [vmem:[#allocation15 + $0x2c0] sm:$0xff]
        %v6466 = vld [vmem:[#allocation15 + $0x2c8] sm:$0xff]
        %v6467 = vld [vmem:[#allocation15 + $0x2d0] sm:$0xff]
        %v6468 = vld [vmem:[#allocation15 + $0x2d8] sm:$0xff]
        %v6469 = vld [vmem:[#allocation15 + $0x2e0] sm:$0xff]
        %v6470 = vld [vmem:[#allocation15 + $0x2e8] sm:$0xff]
        %v6471 = vld [vmem:[#allocation15 + $0x2f0] sm:$0xff]
        %v6472 = vld [vmem:[#allocation15 + $0x2f8] sm:$0xff]
        %v6473 = vld [vmem:[#allocation15 + $0x300] sm:$0xff]
        %v6474 = vld [vmem:[#allocation15 + $0x308] sm:$0xff]
        %v6475 = vld [vmem:[#allocation15 + $0x310] sm:$0xff]
        %v6476 = vld [vmem:[#allocation15 + $0x318] sm:$0xff]
        %v6477 = vld [vmem:[#allocation15 + $0x320] sm:$0xff]
        %v6478 = vld [vmem:[#allocation15 + $0x328] sm:$0xff]
        %v6479 = vld [vmem:[#allocation15 + $0x330] sm:$0xff]
        %v6480 = vld [vmem:[#allocation15 + $0x338] sm:$0xff]
        %v6481 = vld [vmem:[#allocation15 + $0x340] sm:$0xff]
        %v6482 = vld [vmem:[#allocation15 + $0x348] sm:$0xff]
        %v6483 = vld [vmem:[#allocation15 + $0x350] sm:$0xff]
        %v6484 = vld [vmem:[#allocation15 + $0x358] sm:$0xff]
        %v6485 = vld [vmem:[#allocation15 + $0x360] sm:$0xff]
        %v6486 = vld [vmem:[#allocation15 + $0x368] sm:$0xff]
        %v6487 = vld [vmem:[#allocation15 + $0x370] sm:$0xff]
        %v6488 = vld [vmem:[#allocation15 + $0x378] sm:$0xff]
        %v6489 = vld [vmem:[#allocation15 + $0x380] sm:$0xff]
        %v6490 = vld [vmem:[#allocation15 + $0x388] sm:$0xff]
        %v6491 = vld [vmem:[#allocation15 + $0x390] sm:$0xff]
        %v6492 = vld [vmem:[#allocation15 + $0x398] sm:$0xff]
        %v6493 = vld [vmem:[#allocation15 + $0x3a0] sm:$0xff]
        %v6494 = vld [vmem:[#allocation15 + $0x3a8] sm:$0xff]
        %v6495 = vld [vmem:[#allocation15 + $0x3b0] sm:$0xff]
        %v6496 = vld [vmem:[#allocation15 + $0x3b8] sm:$0xff]
        %v6497 = vld [vmem:[#allocation15 + $0x3c0] sm:$0xff]
        %v6498 = vld [vmem:[#allocation15 + $0x3c8] sm:$0xff]
        %v6499 = vld [vmem:[#allocation15 + $0x3d0] sm:$0xff]
        %v6500 = vld [vmem:[#allocation15 + $0x3d8] sm:$0xff]
        %v6501 = vld [vmem:[#allocation15 + $0x3e0] sm:$0xff]
        %v6502 = vld [vmem:[#allocation15 + $0x3e8] sm:$0xff]
        %v6503 = vld [vmem:[#allocation15 + $0x3f0] sm:$0xff]
        %v6504 = vld [vmem:[#allocation15 + $0x3f8] sm:$0xff]
        %v6505 = vld [vmem:[#allocation15 + $0x400] sm:$0xff]
        %v6506 = vld [vmem:[#allocation15 + $0x408] sm:$0xff]
        %v6507 = vld [vmem:[#allocation15 + $0x410] sm:$0xff]
        %v6508 = vld [vmem:[#allocation15 + $0x418] sm:$0xff]
        %v6509 = vld [vmem:[#allocation15 + $0x420] sm:$0xff]
        %v6510 = vld [vmem:[#allocation15 + $0x428] sm:$0xff]
        %v6511 = vld [vmem:[#allocation15 + $0x430] sm:$0xff]
        %v6512 = vld [vmem:[#allocation15 + $0x438] sm:$0xff]
        %v6513 = vld [vmem:[#allocation15 + $0x440] sm:$0xff]
        %v6514 = vld [vmem:[#allocation15 + $0x448] sm:$0xff]
        %v6515 = vld [vmem:[#allocation15 + $0x450] sm:$0xff]
        %v6516 = vld [vmem:[#allocation15 + $0x458] sm:$0xff]
        %v6517 = vld [vmem:[#allocation15 + $0x460] sm:$0xff]
        %v6518 = vld [vmem:[#allocation15 + $0x468] sm:$0xff]
        %v6519 = vld [vmem:[#allocation15 + $0x470] sm:$0xff]
        %v6520 = vld [vmem:[#allocation15 + $0x478] sm:$0xff]
        %v6521 = vld [vmem:[#allocation15 + $0x480] sm:$0xff]
        %v6522 = vld [vmem:[#allocation15 + $0x488] sm:$0xff]
        %v6523 = vld [vmem:[#allocation15 + $0x490] sm:$0xff]
        %v6524 = vld [vmem:[#allocation15 + $0x498] sm:$0xff]
        %v6525 = vld [vmem:[#allocation15 + $0x4a0] sm:$0xff]
        %v6526 = vld [vmem:[#allocation15 + $0x4a8] sm:$0xff]
        %v6527 = vld [vmem:[#allocation15 + $0x4b0] sm:$0xff]
        %v6528 = vld [vmem:[#allocation15 + $0x4b8] sm:$0xff]
        %v6529 = vld [vmem:[#allocation15 + $0x4c0] sm:$0xff]
        %v6530 = vld [vmem:[#allocation15 + $0x4c8] sm:$0xff]
        %v6531 = vld [vmem:[#allocation15 + $0x4d0] sm:$0xff]
        %v6532 = vld [vmem:[#allocation15 + $0x4d8] sm:$0xff]
        %v6533 = vld [vmem:[#allocation15 + $0x4e0] sm:$0xff]
        %v6534 = vld [vmem:[#allocation15 + $0x4e8] sm:$0xff]
        %v6535 = vld [vmem:[#allocation15 + $0x4f0] sm:$0xff]
        %v6536 = vld [vmem:[#allocation15 + $0x4f8] sm:$0xff]
        %v6537 = vld [vmem:[#allocation15 + $0x500] sm:$0xff]
        %v6538 = vld [vmem:[#allocation15 + $0x508] sm:$0xff]
        %v6539 = vld [vmem:[#allocation15 + $0x510] sm:$0xff]
        %v6540 = vld [vmem:[#allocation15 + $0x518] sm:$0xff]
        %v6541 = vld [vmem:[#allocation15 + $0x520] sm:$0xff]
        %v6542 = vld [vmem:[#allocation15 + $0x528] sm:$0xff]
        %v6543 = vld [vmem:[#allocation15 + $0x530] sm:$0xff]
        %v6544 = vld [vmem:[#allocation15 + $0x538] sm:$0xff]
        %v6545 = vld [vmem:[#allocation15 + $0x540] sm:$0xff]
        %v6546 = vld [vmem:[#allocation15 + $0x548] sm:$0xff]
        %v6547 = vld [vmem:[#allocation15 + $0x550] sm:$0xff]
        %v6548 = vld [vmem:[#allocation15 + $0x558] sm:$0xff]
        %v6549 = vld [vmem:[#allocation15 + $0x560] sm:$0xff]
        %v6550 = vld [vmem:[#allocation15 + $0x568] sm:$0xff]
        %v6551 = vld [vmem:[#allocation15 + $0x570] sm:$0xff]
        %v6552 = vld [vmem:[#allocation15 + $0x578] sm:$0xff]
        %v6553 = vld [vmem:[#allocation15 + $0x580] sm:$0xff]
        %v6554 = vld [vmem:[#allocation15 + $0x588] sm:$0xff]
        %v6555 = vld [vmem:[#allocation15 + $0x590] sm:$0xff]
        %v6556 = vld [vmem:[#allocation15 + $0x598] sm:$0xff]
        %v6557 = vld [vmem:[#allocation15 + $0x5a0] sm:$0xff]
        %v6558 = vld [vmem:[#allocation15 + $0x5a8] sm:$0xff]
        %v6559 = vld [vmem:[#allocation15 + $0x5b0] sm:$0xff]
        %v6560 = vld [vmem:[#allocation15 + $0x5b8] sm:$0xff]
        %v6561 = vld [vmem:[#allocation15 + $0x5c0] sm:$0xff]
        %v6562 = vld [vmem:[#allocation15 + $0x5c8] sm:$0xff]
        %v6563 = vld [vmem:[#allocation15 + $0x5d0] sm:$0xff]
        %v6564 = vld [vmem:[#allocation15 + $0x5d8] sm:$0xff]
        %v6565 = vld [vmem:[#allocation15 + $0x5e0] sm:$0xff]
        %v6566 = vld [vmem:[#allocation15 + $0x5e8] sm:$0xff]
        %v6567 = vld [vmem:[#allocation15 + $0x5f0] sm:$0xff]
        %v6568 = vld [vmem:[#allocation15 + $0x5f8] sm:$0xff]
        %s6569 = scalar_lea.vmem [#allocation15], 1536
        %v6570 = vld [vmem:[%s6569] sm:$0xff]
        %v6571 = vld [vmem:[%s6569 + $0x8] sm:$0xff]
        %v6572 = vld [vmem:[%s6569 + $0x10] sm:$0xff]
        %v6573 = vld [vmem:[%s6569 + $0x18] sm:$0xff]
        %v6574 = vld [vmem:[%s6569 + $0x20] sm:$0xff]
        %v6575 = vld [vmem:[%s6569 + $0x28] sm:$0xff]
        %v6576 = vld [vmem:[%s6569 + $0x30] sm:$0xff]
        %v6577 = vld [vmem:[%s6569 + $0x38] sm:$0xff]
        %v6578 = vld [vmem:[%s6569 + $0x40] sm:$0xff]
        %v6579 = vld [vmem:[%s6569 + $0x48] sm:$0xff]
        %v6580 = vld [vmem:[%s6569 + $0x50] sm:$0xff]
        %v6581 = vld [vmem:[%s6569 + $0x58] sm:$0xff]
        %v6582 = vld [vmem:[%s6569 + $0x60] sm:$0xff]
        %v6583 = vld [vmem:[%s6569 + $0x68] sm:$0xff]
        %v6584 = vld [vmem:[%s6569 + $0x70] sm:$0xff]
        %v6585 = vld [vmem:[%s6569 + $0x78] sm:$0xff]
        %v6586 = vld [vmem:[%s6569 + $0x80] sm:$0xff]
        %v6587 = vld [vmem:[%s6569 + $0x88] sm:$0xff]
        %v6588 = vld [vmem:[%s6569 + $0x90] sm:$0xff]
        %v6589 = vld [vmem:[%s6569 + $0x98] sm:$0xff]
        %v6590 = vld [vmem:[%s6569 + $0xa0] sm:$0xff]
        %v6591 = vld [vmem:[%s6569 + $0xa8] sm:$0xff]
        %v6592 = vld [vmem:[%s6569 + $0xb0] sm:$0xff]
        %v6593 = vld [vmem:[%s6569 + $0xb8] sm:$0xff]
        %v6594 = vld [vmem:[%s6569 + $0xc0] sm:$0xff]
        %v6595 = vld [vmem:[%s6569 + $0xc8] sm:$0xff]
        %v6596 = vld [vmem:[%s6569 + $0xd0] sm:$0xff]
        %v6597 = vld [vmem:[%s6569 + $0xd8] sm:$0xff]
        %v6598 = vld [vmem:[%s6569 + $0xe0] sm:$0xff]
        %v6599 = vld [vmem:[%s6569 + $0xe8] sm:$0xff]
        %v6600 = vld [vmem:[%s6569 + $0xf0] sm:$0xff]
        %v6601 = vld [vmem:[%s6569 + $0xf8] sm:$0xff]
        %v6602 = vld [vmem:[%s6569 + $0x100] sm:$0xff]
        %v6603 = vld [vmem:[%s6569 + $0x108] sm:$0xff]
        %v6604 = vld [vmem:[%s6569 + $0x110] sm:$0xff]
        %v6605 = vld [vmem:[%s6569 + $0x118] sm:$0xff]
        %v6606 = vld [vmem:[%s6569 + $0x120] sm:$0xff]
        %v6607 = vld [vmem:[%s6569 + $0x128] sm:$0xff]
        %v6608 = vld [vmem:[%s6569 + $0x130] sm:$0xff]
        %v6609 = vld [vmem:[%s6569 + $0x138] sm:$0xff]
        %v6610 = vld [vmem:[%s6569 + $0x140] sm:$0xff]
        %v6611 = vld [vmem:[%s6569 + $0x148] sm:$0xff]
        %v6612 = vld [vmem:[%s6569 + $0x150] sm:$0xff]
        %v6613 = vld [vmem:[%s6569 + $0x158] sm:$0xff]
        %v6614 = vld [vmem:[%s6569 + $0x160] sm:$0xff]
        %v6615 = vld [vmem:[%s6569 + $0x168] sm:$0xff]
        %v6616 = vld [vmem:[%s6569 + $0x170] sm:$0xff]
        %v6617 = vld [vmem:[%s6569 + $0x178] sm:$0xff]
        %v6618 = vld [vmem:[%s6569 + $0x180] sm:$0xff]
        %v6619 = vld [vmem:[%s6569 + $0x188] sm:$0xff]
        %v6620 = vld [vmem:[%s6569 + $0x190] sm:$0xff]
        %v6621 = vld [vmem:[%s6569 + $0x198] sm:$0xff]
        %v6622 = vld [vmem:[%s6569 + $0x1a0] sm:$0xff]
        %v6623 = vld [vmem:[%s6569 + $0x1a8] sm:$0xff]
        %v6624 = vld [vmem:[%s6569 + $0x1b0] sm:$0xff]
        %v6625 = vld [vmem:[%s6569 + $0x1b8] sm:$0xff]
        %v6626 = vld [vmem:[%s6569 + $0x1c0] sm:$0xff]
        %v6627 = vld [vmem:[%s6569 + $0x1c8] sm:$0xff]
        %v6628 = vld [vmem:[%s6569 + $0x1d0] sm:$0xff]
        %v6629 = vld [vmem:[%s6569 + $0x1d8] sm:$0xff]
        %v6630 = vld [vmem:[%s6569 + $0x1e0] sm:$0xff]
        %v6631 = vld [vmem:[%s6569 + $0x1e8] sm:$0xff]
        %v6632 = vld [vmem:[%s6569 + $0x1f0] sm:$0xff]
        %v6633 = vld [vmem:[%s6569 + $0x1f8] sm:$0xff]
        %v6634 = vld [vmem:[%s6569 + $0x200] sm:$0xff]
        %v6635 = vld [vmem:[%s6569 + $0x208] sm:$0xff]
        %v6636 = vld [vmem:[%s6569 + $0x210] sm:$0xff]
        %v6637 = vld [vmem:[%s6569 + $0x218] sm:$0xff]
        %v6638 = vld [vmem:[%s6569 + $0x220] sm:$0xff]
        %v6639 = vld [vmem:[%s6569 + $0x228] sm:$0xff]
        %v6640 = vld [vmem:[%s6569 + $0x230] sm:$0xff]
        %v6641 = vld [vmem:[%s6569 + $0x238] sm:$0xff]
        %v6642 = vld [vmem:[%s6569 + $0x240] sm:$0xff]
        %v6643 = vld [vmem:[%s6569 + $0x248] sm:$0xff]
        %v6644 = vld [vmem:[%s6569 + $0x250] sm:$0xff]
        %v6645 = vld [vmem:[%s6569 + $0x258] sm:$0xff]
        %v6646 = vld [vmem:[%s6569 + $0x260] sm:$0xff]
        %v6647 = vld [vmem:[%s6569 + $0x268] sm:$0xff]
        %v6648 = vld [vmem:[%s6569 + $0x270] sm:$0xff]
        %v6649 = vld [vmem:[%s6569 + $0x278] sm:$0xff]
        %v6650 = vld [vmem:[%s6569 + $0x280] sm:$0xff]
        %v6651 = vld [vmem:[%s6569 + $0x288] sm:$0xff]
        %v6652 = vld [vmem:[%s6569 + $0x290] sm:$0xff]
        %v6653 = vld [vmem:[%s6569 + $0x298] sm:$0xff]
        %v6654 = vld [vmem:[%s6569 + $0x2a0] sm:$0xff]
        %v6655 = vld [vmem:[%s6569 + $0x2a8] sm:$0xff]
        %v6656 = vld [vmem:[%s6569 + $0x2b0] sm:$0xff]
        %v6657 = vld [vmem:[%s6569 + $0x2b8] sm:$0xff]
        %v6658 = vld [vmem:[%s6569 + $0x2c0] sm:$0xff]
        %v6659 = vld [vmem:[%s6569 + $0x2c8] sm:$0xff]
        %v6660 = vld [vmem:[%s6569 + $0x2d0] sm:$0xff]
        %v6661 = vld [vmem:[%s6569 + $0x2d8] sm:$0xff]
        %v6662 = vld [vmem:[%s6569 + $0x2e0] sm:$0xff]
        %v6663 = vld [vmem:[%s6569 + $0x2e8] sm:$0xff]
        %v6664 = vld [vmem:[%s6569 + $0x2f0] sm:$0xff]
        %v6665 = vld [vmem:[%s6569 + $0x2f8] sm:$0xff]
        %v6666 = vld [vmem:[%s6569 + $0x300] sm:$0xff]
        %v6667 = vld [vmem:[%s6569 + $0x308] sm:$0xff]
        %v6668 = vld [vmem:[%s6569 + $0x310] sm:$0xff]
        %v6669 = vld [vmem:[%s6569 + $0x318] sm:$0xff]
        %v6670 = vld [vmem:[%s6569 + $0x320] sm:$0xff]
        %v6671 = vld [vmem:[%s6569 + $0x328] sm:$0xff]
        %v6672 = vld [vmem:[%s6569 + $0x330] sm:$0xff]
        %v6673 = vld [vmem:[%s6569 + $0x338] sm:$0xff]
        %v6674 = vld [vmem:[%s6569 + $0x340] sm:$0xff]
        %v6675 = vld [vmem:[%s6569 + $0x348] sm:$0xff]
        %v6676 = vld [vmem:[%s6569 + $0x350] sm:$0xff]
        %v6677 = vld [vmem:[%s6569 + $0x358] sm:$0xff]
        %v6678 = vld [vmem:[%s6569 + $0x360] sm:$0xff]
        %v6679 = vld [vmem:[%s6569 + $0x368] sm:$0xff]
        %v6680 = vld [vmem:[%s6569 + $0x370] sm:$0xff]
        %v6681 = vld [vmem:[%s6569 + $0x378] sm:$0xff]
        %v6682 = vld [vmem:[%s6569 + $0x380] sm:$0xff]
        %v6683 = vld [vmem:[%s6569 + $0x388] sm:$0xff]
        %v6684 = vld [vmem:[%s6569 + $0x390] sm:$0xff]
        %v6685 = vld [vmem:[%s6569 + $0x398] sm:$0xff]
        %v6686 = vld [vmem:[%s6569 + $0x3a0] sm:$0xff]
        %v6687 = vld [vmem:[%s6569 + $0x3a8] sm:$0xff]
        %v6688 = vld [vmem:[%s6569 + $0x3b0] sm:$0xff]
        %v6689 = vld [vmem:[%s6569 + $0x3b8] sm:$0xff]
        %v6690 = vld [vmem:[%s6569 + $0x3c0] sm:$0xff]
        %v6691 = vld [vmem:[%s6569 + $0x3c8] sm:$0xff]
        %v6692 = vld [vmem:[%s6569 + $0x3d0] sm:$0xff]
        %v6693 = vld [vmem:[%s6569 + $0x3d8] sm:$0xff]
        %v6694 = vld [vmem:[%s6569 + $0x3e0] sm:$0xff]
        %v6695 = vld [vmem:[%s6569 + $0x3e8] sm:$0xff]
        %v6696 = vld [vmem:[%s6569 + $0x3f0] sm:$0xff]
        %v6697 = vld [vmem:[%s6569 + $0x3f8] sm:$0xff]
        %v6698 = vld [vmem:[%s6569 + $0x400] sm:$0xff]
        %v6699 = vld [vmem:[%s6569 + $0x408] sm:$0xff]
        %v6700 = vld [vmem:[%s6569 + $0x410] sm:$0xff]
        %v6701 = vld [vmem:[%s6569 + $0x418] sm:$0xff]
        %v6702 = vld [vmem:[%s6569 + $0x420] sm:$0xff]
        %v6703 = vld [vmem:[%s6569 + $0x428] sm:$0xff]
        %v6704 = vld [vmem:[%s6569 + $0x430] sm:$0xff]
        %v6705 = vld [vmem:[%s6569 + $0x438] sm:$0xff]
        %v6706 = vld [vmem:[%s6569 + $0x440] sm:$0xff]
        %v6707 = vld [vmem:[%s6569 + $0x448] sm:$0xff]
        %v6708 = vld [vmem:[%s6569 + $0x450] sm:$0xff]
        %v6709 = vld [vmem:[%s6569 + $0x458] sm:$0xff]
        %v6710 = vld [vmem:[%s6569 + $0x460] sm:$0xff]
        %v6711 = vld [vmem:[%s6569 + $0x468] sm:$0xff]
        %v6712 = vld [vmem:[%s6569 + $0x470] sm:$0xff]
        %v6713 = vld [vmem:[%s6569 + $0x478] sm:$0xff]
        %v6714 = vld [vmem:[%s6569 + $0x480] sm:$0xff]
        %v6715 = vld [vmem:[%s6569 + $0x488] sm:$0xff]
        %v6716 = vld [vmem:[%s6569 + $0x490] sm:$0xff]
        %v6717 = vld [vmem:[%s6569 + $0x498] sm:$0xff]
        %v6718 = vld [vmem:[%s6569 + $0x4a0] sm:$0xff]
        %v6719 = vld [vmem:[%s6569 + $0x4a8] sm:$0xff]
        %v6720 = vld [vmem:[%s6569 + $0x4b0] sm:$0xff]
        %v6721 = vld [vmem:[%s6569 + $0x4b8] sm:$0xff]
        %v6722 = vld [vmem:[%s6569 + $0x4c0] sm:$0xff]
        %v6723 = vld [vmem:[%s6569 + $0x4c8] sm:$0xff]
        %v6724 = vld [vmem:[%s6569 + $0x4d0] sm:$0xff]
        %v6725 = vld [vmem:[%s6569 + $0x4d8] sm:$0xff]
        %v6726 = vld [vmem:[%s6569 + $0x4e0] sm:$0xff]
        %v6727 = vld [vmem:[%s6569 + $0x4e8] sm:$0xff]
        %v6728 = vld [vmem:[%s6569 + $0x4f0] sm:$0xff]
        %v6729 = vld [vmem:[%s6569 + $0x4f8] sm:$0xff]
        %v6730 = vld [vmem:[%s6569 + $0x500] sm:$0xff]
        %v6731 = vld [vmem:[%s6569 + $0x508] sm:$0xff]
        %v6732 = vld [vmem:[%s6569 + $0x510] sm:$0xff]
        %v6733 = vld [vmem:[%s6569 + $0x518] sm:$0xff]
        %v6734 = vld [vmem:[%s6569 + $0x520] sm:$0xff]
        %v6735 = vld [vmem:[%s6569 + $0x528] sm:$0xff]
        %v6736 = vld [vmem:[%s6569 + $0x530] sm:$0xff]
        %v6737 = vld [vmem:[%s6569 + $0x538] sm:$0xff]
        %v6738 = vld [vmem:[%s6569 + $0x540] sm:$0xff]
        %v6739 = vld [vmem:[%s6569 + $0x548] sm:$0xff]
        %v6740 = vld [vmem:[%s6569 + $0x550] sm:$0xff]
        %v6741 = vld [vmem:[%s6569 + $0x558] sm:$0xff]
        %v6742 = vld [vmem:[%s6569 + $0x560] sm:$0xff]
        %v6743 = vld [vmem:[%s6569 + $0x568] sm:$0xff]
        %v6744 = vld [vmem:[%s6569 + $0x570] sm:$0xff]
        %v6745 = vld [vmem:[%s6569 + $0x578] sm:$0xff]
        %v6746 = vld [vmem:[%s6569 + $0x580] sm:$0xff]
        %v6747 = vld [vmem:[%s6569 + $0x588] sm:$0xff]
        %v6748 = vld [vmem:[%s6569 + $0x590] sm:$0xff]
        %v6749 = vld [vmem:[%s6569 + $0x598] sm:$0xff]
        %v6750 = vld [vmem:[%s6569 + $0x5a0] sm:$0xff]
        %v6751 = vld [vmem:[%s6569 + $0x5a8] sm:$0xff]
        %v6752 = vld [vmem:[%s6569 + $0x5b0] sm:$0xff]
        %v6753 = vld [vmem:[%s6569 + $0x5b8] sm:$0xff]
        %v6754 = vld [vmem:[%s6569 + $0x5c0] sm:$0xff]
        %v6755 = vld [vmem:[%s6569 + $0x5c8] sm:$0xff]
        %v6756 = vld [vmem:[%s6569 + $0x5d0] sm:$0xff]
        %v6757 = vld [vmem:[%s6569 + $0x5d8] sm:$0xff]
        %v6758 = vld [vmem:[%s6569 + $0x5e0] sm:$0xff]
        %v6759 = vld [vmem:[%s6569 + $0x5e8] sm:$0xff]
        %v6760 = vld [vmem:[%s6569 + $0x5f0] sm:$0xff]
        %v6761 = vld [vmem:[%s6569 + $0x5f8] sm:$0xff]
        %6762 = vmatprep.subr.mxu0 %v6601
        %6763 = vmatpush1.msra.mxu0 %v6600
        %6764 = vmatprep.subr.mxu0 %v6599
        %6765 = vmatpush1.msra.mxu0 %v6598
        %6766 = vmatprep.subr.mxu0 %v6597
        %6767 = vmatpush1.msra.mxu0 %v6596
        %6768 = vmatprep.subr.mxu0 %v6595
        %6769 = vmatpush1.msra.mxu0 %v6594
        %6770 = vmatprep.subr.mxu0 %v6593
        %6771 = vmatpush1.msra.mxu0 %v6592
        %6772 = vmatprep.subr.mxu0 %v6591
        %6773 = vmatpush1.msra.mxu0 %v6590
        %6774 = vmatprep.subr.mxu0 %v6589
        %6775 = vmatpush1.msra.mxu0 %v6588
        %6776 = vmatprep.subr.mxu0 %v6587
        %6777 = vmatpush1.msra.mxu0 %v6586
        %6778 = vmatprep.subr.mxu0 %v6585
        %6779 = vmatpush1.msra.mxu0 %v6584
        %6780 = vmatprep.subr.mxu0 %v6583
        %6781 = vmatpush1.msra.mxu0 %v6582
        %6782 = vmatprep.subr.mxu0 %v6581
        %6783 = vmatpush1.msra.mxu0 %v6580
        %6784 = vmatprep.subr.mxu0 %v6579
        %6785 = vmatpush1.msra.mxu0 %v6578
        %6786 = vmatprep.subr.mxu0 %v6577
        %6787 = vmatpush1.msra.mxu0 %v6576
        %6788 = vmatprep.subr.mxu0 %v6575
        %6789 = vmatpush1.msra.mxu0 %v6574
        %6790 = vmatprep.subr.mxu0 %v6573
        %6791 = vmatpush1.msra.mxu0 %v6572
        %6792 = vmatprep.subr.mxu0 %v6571
        %6793 = vmatpush1.msra.mxu0 %v6570
        %6794 = vmatprep.subr.mxu0 %v6633
        %6795 = vmatpush2.msra.mxu0 %v6632
        %6796 = vmatprep.subr.mxu0 %v6631
        %6797 = vmatpush2.msra.mxu0 %v6630
        %6798 = vmatprep.subr.mxu0 %v6629
        %6799 = vmatpush2.msra.mxu0 %v6628
        %6800 = vmatprep.subr.mxu0 %v6627
        %6801 = vmatpush2.msra.mxu0 %v6626
        %6802 = vmatprep.subr.mxu0 %v6625
        %6803 = vmatpush2.msra.mxu0 %v6624
        %6804 = vmatprep.subr.mxu0 %v6623
        %6805 = vmatpush2.msra.mxu0 %v6622
        %6806 = vmatprep.subr.mxu0 %v6621
        %6807 = vmatpush2.msra.mxu0 %v6620
        %6808 = vmatprep.subr.mxu0 %v6619
        %6809 = vmatpush2.msra.mxu0 %v6618
        %6810 = vmatprep.subr.mxu0 %v6617
        %6811 = vmatpush2.msra.mxu0 %v6616
        %6812 = vmatprep.subr.mxu0 %v6615
        %6813 = vmatpush2.msra.mxu0 %v6614
        %6814 = vmatprep.subr.mxu0 %v6613
        %6815 = vmatpush2.msra.mxu0 %v6612
        %6816 = vmatprep.subr.mxu0 %v6611
        %6817 = vmatpush2.msra.mxu0 %v6610
        %6818 = vmatprep.subr.mxu0 %v6609
        %6819 = vmatpush2.msra.mxu0 %v6608
        %6820 = vmatprep.subr.mxu0 %v6607
        %6821 = vmatpush2.msra.mxu0 %v6606
        %6822 = vmatprep.subr.mxu0 %v6605
        %6823 = vmatpush2.msra.mxu0 %v6604
        %6824 = vmatprep.subr.mxu0 %v6603
        %6825 = vmatpush2.msra.mxu0 %v6602
        %6826 = vmatprep.mubr.f32.mxu0 %v5480
        %6827 = vmatmul.mubr.f32.gmra.mxu0 %v5479
        %v6828 = vpop.f32.mrf.mxu0
        %v6829 = vadd.f32 0.0, %v6828
        %v6830 = vpop.f32.mrf.mxu0
        %v6831 = vadd.f32 0.0, %v6830
        %6832 = vmatprep.mubr.f32.mxu0 %v5482
        %6833 = vmatmul.mubr.f32.gmra.mxu0 %v5481
        %v6834 = vpop.f32.mrf.mxu0
        %v6835 = vadd.f32 0.0, %v6834
        %v6836 = vpop.f32.mrf.mxu0
        %v6837 = vadd.f32 0.0, %v6836
        %6838 = vmatprep.mubr.f32.mxu0 %v5484
        %6839 = vmatmul.mubr.f32.gmra.mxu0 %v5483
        %v6840 = vpop.f32.mrf.mxu0
        %v6841 = vadd.f32 0.0, %v6840
        %v6842 = vpop.f32.mrf.mxu0
        %v6843 = vadd.f32 0.0, %v6842
        %6844 = vmatprep.mubr.f32.mxu0 %v5486
        %6845 = vmatmul.mubr.f32.gmra.mxu0 %v5485
        %v6846 = vpop.f32.mrf.mxu0
        %v6847 = vadd.f32 0.0, %v6846
        %v6848 = vpop.f32.mrf.mxu0
        %v6849 = vadd.f32 0.0, %v6848
        %6850 = vmatprep.mubr.f32.mxu0 %v5488
        %6851 = vmatmul.mubr.f32.gmra.mxu0 %v5487
        %v6852 = vpop.f32.mrf.mxu0
        %v6853 = vadd.f32 0.0, %v6852
        %v6854 = vpop.f32.mrf.mxu0
        %v6855 = vadd.f32 0.0, %v6854
        %6856 = vmatprep.mubr.f32.mxu0 %v5490
        %6857 = vmatmul.mubr.f32.gmra.mxu0 %v5489
        %v6858 = vpop.f32.mrf.mxu0
        %v6859 = vadd.f32 0.0, %v6858
        %v6860 = vpop.f32.mrf.mxu0
        %v6861 = vadd.f32 0.0, %v6860
        %6862 = vmatprep.mubr.f32.mxu0 %v5492
        %6863 = vmatmul.mubr.f32.gmra.mxu0 %v5491
        %v6864 = vpop.f32.mrf.mxu0
        %v6865 = vadd.f32 0.0, %v6864
        %v6866 = vpop.f32.mrf.mxu0
        %v6867 = vadd.f32 0.0, %v6866
        %6868 = vmatprep.mubr.f32.mxu0 %v5494
        %6869 = vmatmul.mubr.f32.gmra.mxu0 %v5493
        %v6870 = vpop.f32.mrf.mxu0
        %v6871 = vadd.f32 0.0, %v6870
        %v6872 = vpop.f32.mrf.mxu0
        %v6873 = vadd.f32 0.0, %v6872
        %6874 = vmatprep.mubr.f32.mxu0 %v5496
        %6875 = vmatmul.mubr.f32.gmra.mxu0 %v5495
        %v6876 = vpop.f32.mrf.mxu0
        %v6877 = vadd.f32 0.0, %v6876
        %v6878 = vpop.f32.mrf.mxu0
        %v6879 = vadd.f32 0.0, %v6878
        %6880 = vmatprep.mubr.f32.mxu0 %v5498
        %6881 = vmatmul.mubr.f32.gmra.mxu0 %v5497
        %v6882 = vpop.f32.mrf.mxu0
        %v6883 = vadd.f32 0.0, %v6882
        %v6884 = vpop.f32.mrf.mxu0
        %v6885 = vadd.f32 0.0, %v6884
        %6886 = vmatprep.mubr.f32.mxu0 %v5500
        %6887 = vmatmul.mubr.f32.gmra.mxu0 %v5499
        %v6888 = vpop.f32.mrf.mxu0
        %v6889 = vadd.f32 0.0, %v6888
        %v6890 = vpop.f32.mrf.mxu0
        %v6891 = vadd.f32 0.0, %v6890
        %6892 = vmatprep.mubr.f32.mxu0 %v5502
        %6893 = vmatmul.mubr.f32.gmra.mxu0 %v5501
        %v6894 = vpop.f32.mrf.mxu0
        %v6895 = vadd.f32 0.0, %v6894
        %v6896 = vpop.f32.mrf.mxu0
        %v6897 = vadd.f32 0.0, %v6896
        %6898 = vmatprep.mubr.f32.mxu0 %v5504
        %6899 = vmatmul.mubr.f32.gmra.mxu0 %v5503
        %v6900 = vpop.f32.mrf.mxu0
        %v6901 = vadd.f32 0.0, %v6900
        %v6902 = vpop.f32.mrf.mxu0
        %v6903 = vadd.f32 0.0, %v6902
        %6904 = vmatprep.mubr.f32.mxu0 %v5506
        %6905 = vmatmul.mubr.f32.gmra.mxu0 %v5505
        %v6906 = vpop.f32.mrf.mxu0
        %v6907 = vadd.f32 0.0, %v6906
        %v6908 = vpop.f32.mrf.mxu0
        %v6909 = vadd.f32 0.0, %v6908
        %6910 = vmatprep.mubr.f32.mxu0 %v5508
        %6911 = vmatmul.mubr.f32.gmra.mxu0 %v5507
        %v6912 = vpop.f32.mrf.mxu0
        %v6913 = vadd.f32 0.0, %v6912
        %v6914 = vpop.f32.mrf.mxu0
        %v6915 = vadd.f32 0.0, %v6914
        %6916 = vmatprep.mubr.f32.mxu0 %v5510
        %6917 = vmatmul.mubr.f32.gmra.mxu0 %v5509
        %v6918 = vpop.f32.mrf.mxu0
        %v6919 = vadd.f32 0.0, %v6918
        %v6920 = vpop.f32.mrf.mxu0
        %v6921 = vadd.f32 0.0, %v6920
        %6922 = vmatprep.mubr.f32.mxu0 %v5512
        %6923 = vmatmul.mubr.f32.gmra.mxu0 %v5511
        %v6924 = vpop.f32.mrf.mxu0
        %v6925 = vadd.f32 0.0, %v6924
        %v6926 = vpop.f32.mrf.mxu0
        %v6927 = vadd.f32 0.0, %v6926
        %6928 = vmatprep.mubr.f32.mxu0 %v5514
        %6929 = vmatmul.mubr.f32.gmra.mxu0 %v5513
        %v6930 = vpop.f32.mrf.mxu0
        %v6931 = vadd.f32 0.0, %v6930
        %v6932 = vpop.f32.mrf.mxu0
        %v6933 = vadd.f32 0.0, %v6932
        %6934 = vmatprep.mubr.f32.mxu0 %v5516
        %6935 = vmatmul.mubr.f32.gmra.mxu0 %v5515
        %v6936 = vpop.f32.mrf.mxu0
        %v6937 = vadd.f32 0.0, %v6936
        %v6938 = vpop.f32.mrf.mxu0
        %v6939 = vadd.f32 0.0, %v6938
        %6940 = vmatprep.mubr.f32.mxu0 %v5518
        %6941 = vmatmul.mubr.f32.gmra.mxu0 %v5517
        %v6942 = vpop.f32.mrf.mxu0
        %v6943 = vadd.f32 0.0, %v6942
        %v6944 = vpop.f32.mrf.mxu0
        %v6945 = vadd.f32 0.0, %v6944
        %6946 = vmatprep.mubr.f32.mxu0 %v5520
        %6947 = vmatmul.mubr.f32.gmra.mxu0 %v5519
        %v6948 = vpop.f32.mrf.mxu0
        %v6949 = vadd.f32 0.0, %v6948
        %v6950 = vpop.f32.mrf.mxu0
        %v6951 = vadd.f32 0.0, %v6950
        %6952 = vmatprep.mubr.f32.mxu0 %v5522
        %6953 = vmatmul.mubr.f32.gmra.mxu0 %v5521
        %v6954 = vpop.f32.mrf.mxu0
        %v6955 = vadd.f32 0.0, %v6954
        %v6956 = vpop.f32.mrf.mxu0
        %v6957 = vadd.f32 0.0, %v6956
        %6958 = vmatprep.mubr.f32.mxu0 %v5524
        %6959 = vmatmul.mubr.f32.gmra.mxu0 %v5523
        %v6960 = vpop.f32.mrf.mxu0
        %v6961 = vadd.f32 0.0, %v6960
        %v6962 = vpop.f32.mrf.mxu0
        %v6963 = vadd.f32 0.0, %v6962
        %6964 = vmatprep.mubr.f32.mxu0 %v5526
        %6965 = vmatmul.mubr.f32.gmra.mxu0 %v5525
        %v6966 = vpop.f32.mrf.mxu0
        %v6967 = vadd.f32 0.0, %v6966
        %v6968 = vpop.f32.mrf.mxu0
        %v6969 = vadd.f32 0.0, %v6968
        %6970 = vmatprep.mubr.f32.mxu0 %v5528
        %6971 = vmatmul.mubr.f32.gmra.mxu0 %v5527
        %v6972 = vpop.f32.mrf.mxu0
        %v6973 = vadd.f32 0.0, %v6972
        %v6974 = vpop.f32.mrf.mxu0
        %v6975 = vadd.f32 0.0, %v6974
        %6976 = vmatprep.mubr.f32.mxu0 %v5530
        %6977 = vmatmul.mubr.f32.gmra.mxu0 %v5529
        %v6978 = vpop.f32.mrf.mxu0
        %v6979 = vadd.f32 0.0, %v6978
        %v6980 = vpop.f32.mrf.mxu0
        %v6981 = vadd.f32 0.0, %v6980
        %6982 = vmatprep.mubr.f32.mxu0 %v5532
        %6983 = vmatmul.mubr.f32.gmra.mxu0 %v5531
        %v6984 = vpop.f32.mrf.mxu0
        %v6985 = vadd.f32 0.0, %v6984
        %v6986 = vpop.f32.mrf.mxu0
        %v6987 = vadd.f32 0.0, %v6986
        %6988 = vmatprep.mubr.f32.mxu0 %v5534
        %6989 = vmatmul.mubr.f32.gmra.mxu0 %v5533
        %v6990 = vpop.f32.mrf.mxu0
        %v6991 = vadd.f32 0.0, %v6990
        %v6992 = vpop.f32.mrf.mxu0
        %v6993 = vadd.f32 0.0, %v6992
        %6994 = vmatprep.mubr.f32.mxu0 %v5536
        %6995 = vmatmul.mubr.f32.gmra.mxu0 %v5535
        %v6996 = vpop.f32.mrf.mxu0
        %v6997 = vadd.f32 0.0, %v6996
        %v6998 = vpop.f32.mrf.mxu0
        %v6999 = vadd.f32 0.0, %v6998
        %7000 = vmatprep.mubr.f32.mxu0 %v5538
        %7001 = vmatmul.mubr.f32.gmra.mxu0 %v5537
        %v7002 = vpop.f32.mrf.mxu0
        %v7003 = vadd.f32 0.0, %v7002
        %v7004 = vpop.f32.mrf.mxu0
        %v7005 = vadd.f32 0.0, %v7004
        %7006 = vmatprep.mubr.f32.mxu0 %v5540
        %7007 = vmatmul.mubr.f32.gmra.mxu0 %v5539
        %v7008 = vpop.f32.mrf.mxu0
        %v7009 = vadd.f32 0.0, %v7008
        %v7010 = vpop.f32.mrf.mxu0
        %v7011 = vadd.f32 0.0, %v7010
        %7012 = vmatprep.mubr.f32.mxu0 %v5542
        %7013 = vmatmul.mubr.f32.gmra.mxu0 %v5541
        %v7014 = vpop.f32.mrf.mxu0
        %v7015 = vadd.f32 0.0, %v7014
        %v7016 = vpop.f32.mrf.mxu0
        %v7017 = vadd.f32 0.0, %v7016
        %7018 = vdwg.mxu0
        %7019 = vmatprep.subr.mxu0 %v6665
        %7020 = vmatpush1.msra.mxu0 %v6664
        %7021 = vmatprep.subr.mxu0 %v6663
        %7022 = vmatpush1.msra.mxu0 %v6662
        %7023 = vmatprep.subr.mxu0 %v6661
        %7024 = vmatpush1.msra.mxu0 %v6660
        %7025 = vmatprep.subr.mxu0 %v6659
        %7026 = vmatpush1.msra.mxu0 %v6658
        %7027 = vmatprep.subr.mxu0 %v6657
        %7028 = vmatpush1.msra.mxu0 %v6656
        %7029 = vmatprep.subr.mxu0 %v6655
        %7030 = vmatpush1.msra.mxu0 %v6654
        %7031 = vmatprep.subr.mxu0 %v6653
        %7032 = vmatpush1.msra.mxu0 %v6652
        %7033 = vmatprep.subr.mxu0 %v6651
        %7034 = vmatpush1.msra.mxu0 %v6650
        %7035 = vmatprep.subr.mxu0 %v6649
        %7036 = vmatpush1.msra.mxu0 %v6648
        %7037 = vmatprep.subr.mxu0 %v6647
        %7038 = vmatpush1.msra.mxu0 %v6646
        %7039 = vmatprep.subr.mxu0 %v6645
        %7040 = vmatpush1.msra.mxu0 %v6644
        %7041 = vmatprep.subr.mxu0 %v6643
        %7042 = vmatpush1.msra.mxu0 %v6642
        %7043 = vmatprep.subr.mxu0 %v6641
        %7044 = vmatpush1.msra.mxu0 %v6640
        %7045 = vmatprep.subr.mxu0 %v6639
        %7046 = vmatpush1.msra.mxu0 %v6638
        %7047 = vmatprep.subr.mxu0 %v6637
        %7048 = vmatpush1.msra.mxu0 %v6636
        %7049 = vmatprep.subr.mxu0 %v6635
        %7050 = vmatpush1.msra.mxu0 %v6634
        %7051 = vmatprep.subr.mxu0 %v6697
        %7052 = vmatpush2.msra.mxu0 %v6696
        %7053 = vmatprep.subr.mxu0 %v6695
        %7054 = vmatpush2.msra.mxu0 %v6694
        %7055 = vmatprep.subr.mxu0 %v6693
        %7056 = vmatpush2.msra.mxu0 %v6692
        %7057 = vmatprep.subr.mxu0 %v6691
        %7058 = vmatpush2.msra.mxu0 %v6690
        %7059 = vmatprep.subr.mxu0 %v6689
        %7060 = vmatpush2.msra.mxu0 %v6688
        %7061 = vmatprep.subr.mxu0 %v6687
        %7062 = vmatpush2.msra.mxu0 %v6686
        %7063 = vmatprep.subr.mxu0 %v6685
        %7064 = vmatpush2.msra.mxu0 %v6684
        %7065 = vmatprep.subr.mxu0 %v6683
        %7066 = vmatpush2.msra.mxu0 %v6682
        %7067 = vmatprep.subr.mxu0 %v6681
        %7068 = vmatpush2.msra.mxu0 %v6680
        %7069 = vmatprep.subr.mxu0 %v6679
        %7070 = vmatpush2.msra.mxu0 %v6678
        %7071 = vmatprep.subr.mxu0 %v6677
        %7072 = vmatpush2.msra.mxu0 %v6676
        %7073 = vmatprep.subr.mxu0 %v6675
        %7074 = vmatpush2.msra.mxu0 %v6674
        %7075 = vmatprep.subr.mxu0 %v6673
        %7076 = vmatpush2.msra.mxu0 %v6672
        %7077 = vmatprep.subr.mxu0 %v6671
        %7078 = vmatpush2.msra.mxu0 %v6670
        %7079 = vmatprep.subr.mxu0 %v6669
        %7080 = vmatpush2.msra.mxu0 %v6668
        %7081 = vmatprep.subr.mxu0 %v6667
        %7082 = vmatpush2.msra.mxu0 %v6666
        %7083 = vmatprep.mubr.f32.mxu0 %v5815
        %7084 = vmatmul.mubr.f32.gmra.mxu0 %v5812
        %v7085 = vpop.f32.mrf.mxu0
        %v7086 = vadd.f32 %v6829, %v7085
        %v7087 = vpop.f32.mrf.mxu0
        %v7088 = vadd.f32 %v6831, %v7087
        %7089 = vmatprep.mubr.f32.mxu0 %v5819
        %7090 = vmatmul.mubr.f32.gmra.mxu0 %v5817
        %v7091 = vpop.f32.mrf.mxu0
        %v7092 = vadd.f32 %v6835, %v7091
        %v7093 = vpop.f32.mrf.mxu0
        %v7094 = vadd.f32 %v6837, %v7093
        %7095 = vmatprep.mubr.f32.mxu0 %v5825
        %7096 = vmatmul.mubr.f32.gmra.mxu0 %v5822
        %v7097 = vpop.f32.mrf.mxu0
        %v7098 = vadd.f32 %v6841, %v7097
        %v7099 = vpop.f32.mrf.mxu0
        %v7100 = vadd.f32 %v6843, %v7099
        %7101 = vmatprep.mubr.f32.mxu0 %v5829
        %7102 = vmatmul.mubr.f32.gmra.mxu0 %v5827
        %v7103 = vpop.f32.mrf.mxu0
        %v7104 = vadd.f32 %v6847, %v7103
        %v7105 = vpop.f32.mrf.mxu0
        %v7106 = vadd.f32 %v6849, %v7105
        %7107 = vmatprep.mubr.f32.mxu0 %v5835
        %7108 = vmatmul.mubr.f32.gmra.mxu0 %v5832
        %v7109 = vpop.f32.mrf.mxu0
        %v7110 = vadd.f32 %v6853, %v7109
        %v7111 = vpop.f32.mrf.mxu0
        %v7112 = vadd.f32 %v6855, %v7111
        %7113 = vmatprep.mubr.f32.mxu0 %v5839
        %7114 = vmatmul.mubr.f32.gmra.mxu0 %v5837
        %v7115 = vpop.f32.mrf.mxu0
        %v7116 = vadd.f32 %v6859, %v7115
        %v7117 = vpop.f32.mrf.mxu0
        %v7118 = vadd.f32 %v6861, %v7117
        %7119 = vmatprep.mubr.f32.mxu0 %v5845
        %7120 = vmatmul.mubr.f32.gmra.mxu0 %v5842
        %v7121 = vpop.f32.mrf.mxu0
        %v7122 = vadd.f32 %v6865, %v7121
        %v7123 = vpop.f32.mrf.mxu0
        %v7124 = vadd.f32 %v6867, %v7123
        %7125 = vmatprep.mubr.f32.mxu0 %v5849
        %7126 = vmatmul.mubr.f32.gmra.mxu0 %v5847
        %v7127 = vpop.f32.mrf.mxu0
        %v7128 = vadd.f32 %v6871, %v7127
        %v7129 = vpop.f32.mrf.mxu0
        %v7130 = vadd.f32 %v6873, %v7129
        %7131 = vmatprep.mubr.f32.mxu0 %v5855
        %7132 = vmatmul.mubr.f32.gmra.mxu0 %v5852
        %v7133 = vpop.f32.mrf.mxu0
        %v7134 = vadd.f32 %v6877, %v7133
        %v7135 = vpop.f32.mrf.mxu0
        %v7136 = vadd.f32 %v6879, %v7135
        %7137 = vmatprep.mubr.f32.mxu0 %v5859
        %7138 = vmatmul.mubr.f32.gmra.mxu0 %v5857
        %v7139 = vpop.f32.mrf.mxu0
        %v7140 = vadd.f32 %v6883, %v7139
        %v7141 = vpop.f32.mrf.mxu0
        %v7142 = vadd.f32 %v6885, %v7141
        %7143 = vmatprep.mubr.f32.mxu0 %v5865
        %7144 = vmatmul.mubr.f32.gmra.mxu0 %v5862
        %v7145 = vpop.f32.mrf.mxu0
        %v7146 = vadd.f32 %v6889, %v7145
        %v7147 = vpop.f32.mrf.mxu0
        %v7148 = vadd.f32 %v6891, %v7147
        %7149 = vmatprep.mubr.f32.mxu0 %v5869
        %7150 = vmatmul.mubr.f32.gmra.mxu0 %v5867
        %v7151 = vpop.f32.mrf.mxu0
        %v7152 = vadd.f32 %v6895, %v7151
        %v7153 = vpop.f32.mrf.mxu0
        %v7154 = vadd.f32 %v6897, %v7153
        %7155 = vmatprep.mubr.f32.mxu0 %v5875
        %7156 = vmatmul.mubr.f32.gmra.mxu0 %v5872
        %v7157 = vpop.f32.mrf.mxu0
        %v7158 = vadd.f32 %v6901, %v7157
        %v7159 = vpop.f32.mrf.mxu0
        %v7160 = vadd.f32 %v6903, %v7159
        %7161 = vmatprep.mubr.f32.mxu0 %v5879
        %7162 = vmatmul.mubr.f32.gmra.mxu0 %v5877
        %v7163 = vpop.f32.mrf.mxu0
        %v7164 = vadd.f32 %v6907, %v7163
        %v7165 = vpop.f32.mrf.mxu0
        %v7166 = vadd.f32 %v6909, %v7165
        %7167 = vmatprep.mubr.f32.mxu0 %v5885
        %7168 = vmatmul.mubr.f32.gmra.mxu0 %v5882
        %v7169 = vpop.f32.mrf.mxu0
        %v7170 = vadd.f32 %v6913, %v7169
        %v7171 = vpop.f32.mrf.mxu0
        %v7172 = vadd.f32 %v6915, %v7171
        %7173 = vmatprep.mubr.f32.mxu0 %v5889
        %7174 = vmatmul.mubr.f32.gmra.mxu0 %v5887
        %v7175 = vpop.f32.mrf.mxu0
        %v7176 = vadd.f32 %v6919, %v7175
        %v7177 = vpop.f32.mrf.mxu0
        %v7178 = vadd.f32 %v6921, %v7177
        %7179 = vmatprep.mubr.f32.mxu0 %v5895
        %7180 = vmatmul.mubr.f32.gmra.mxu0 %v5892
        %v7181 = vpop.f32.mrf.mxu0
        %v7182 = vadd.f32 %v6925, %v7181
        %v7183 = vpop.f32.mrf.mxu0
        %v7184 = vadd.f32 %v6927, %v7183
        %7185 = vmatprep.mubr.f32.mxu0 %v5899
        %7186 = vmatmul.mubr.f32.gmra.mxu0 %v5897
        %v7187 = vpop.f32.mrf.mxu0
        %v7188 = vadd.f32 %v6931, %v7187
        %v7189 = vpop.f32.mrf.mxu0
        %v7190 = vadd.f32 %v6933, %v7189
        %7191 = vmatprep.mubr.f32.mxu0 %v5905
        %7192 = vmatmul.mubr.f32.gmra.mxu0 %v5902
        %v7193 = vpop.f32.mrf.mxu0
        %v7194 = vadd.f32 %v6937, %v7193
        %v7195 = vpop.f32.mrf.mxu0
        %v7196 = vadd.f32 %v6939, %v7195
        %7197 = vmatprep.mubr.f32.mxu0 %v5909
        %7198 = vmatmul.mubr.f32.gmra.mxu0 %v5907
        %v7199 = vpop.f32.mrf.mxu0
        %v7200 = vadd.f32 %v6943, %v7199
        %v7201 = vpop.f32.mrf.mxu0
        %v7202 = vadd.f32 %v6945, %v7201
        %7203 = vmatprep.mubr.f32.mxu0 %v5915
        %7204 = vmatmul.mubr.f32.gmra.mxu0 %v5912
        %v7205 = vpop.f32.mrf.mxu0
        %v7206 = vadd.f32 %v6949, %v7205
        %v7207 = vpop.f32.mrf.mxu0
        %v7208 = vadd.f32 %v6951, %v7207
        %7209 = vmatprep.mubr.f32.mxu0 %v5919
        %7210 = vmatmul.mubr.f32.gmra.mxu0 %v5917
        %v7211 = vpop.f32.mrf.mxu0
        %v7212 = vadd.f32 %v6955, %v7211
        %v7213 = vpop.f32.mrf.mxu0
        %v7214 = vadd.f32 %v6957, %v7213
        %7215 = vmatprep.mubr.f32.mxu0 %v5925
        %7216 = vmatmul.mubr.f32.gmra.mxu0 %v5922
        %v7217 = vpop.f32.mrf.mxu0
        %v7218 = vadd.f32 %v6961, %v7217
        %v7219 = vpop.f32.mrf.mxu0
        %v7220 = vadd.f32 %v6963, %v7219
        %7221 = vmatprep.mubr.f32.mxu0 %v5929
        %7222 = vmatmul.mubr.f32.gmra.mxu0 %v5927
        %v7223 = vpop.f32.mrf.mxu0
        %v7224 = vadd.f32 %v6967, %v7223
        %v7225 = vpop.f32.mrf.mxu0
        %v7226 = vadd.f32 %v6969, %v7225
        %7227 = vmatprep.mubr.f32.mxu0 %v5935
        %7228 = vmatmul.mubr.f32.gmra.mxu0 %v5932
        %v7229 = vpop.f32.mrf.mxu0
        %v7230 = vadd.f32 %v6973, %v7229
        %v7231 = vpop.f32.mrf.mxu0
        %v7232 = vadd.f32 %v6975, %v7231
        %7233 = vmatprep.mubr.f32.mxu0 %v5939
        %7234 = vmatmul.mubr.f32.gmra.mxu0 %v5937
        %v7235 = vpop.f32.mrf.mxu0
        %v7236 = vadd.f32 %v6979, %v7235
        %v7237 = vpop.f32.mrf.mxu0
        %v7238 = vadd.f32 %v6981, %v7237
        %7239 = vmatprep.mubr.f32.mxu0 %v5945
        %7240 = vmatmul.mubr.f32.gmra.mxu0 %v5942
        %v7241 = vpop.f32.mrf.mxu0
        %v7242 = vadd.f32 %v6985, %v7241
        %v7243 = vpop.f32.mrf.mxu0
        %v7244 = vadd.f32 %v6987, %v7243
        %7245 = vmatprep.mubr.f32.mxu0 %v5949
        %7246 = vmatmul.mubr.f32.gmra.mxu0 %v5947
        %v7247 = vpop.f32.mrf.mxu0
        %v7248 = vadd.f32 %v6991, %v7247
        %v7249 = vpop.f32.mrf.mxu0
        %v7250 = vadd.f32 %v6993, %v7249
        %7251 = vmatprep.mubr.f32.mxu0 %v5955
        %7252 = vmatmul.mubr.f32.gmra.mxu0 %v5952
        %v7253 = vpop.f32.mrf.mxu0
        %v7254 = vadd.f32 %v6997, %v7253
        %v7255 = vpop.f32.mrf.mxu0
        %v7256 = vadd.f32 %v6999, %v7255
        %7257 = vmatprep.mubr.f32.mxu0 %v5959
        %7258 = vmatmul.mubr.f32.gmra.mxu0 %v5957
        %v7259 = vpop.f32.mrf.mxu0
        %v7260 = vadd.f32 %v7003, %v7259
        %v7261 = vpop.f32.mrf.mxu0
        %v7262 = vadd.f32 %v7005, %v7261
        %7263 = vmatprep.mubr.f32.mxu0 %v5965
        %7264 = vmatmul.mubr.f32.gmra.mxu0 %v5962
        %v7265 = vpop.f32.mrf.mxu0
        %v7266 = vadd.f32 %v7009, %v7265
        %v7267 = vpop.f32.mrf.mxu0
        %v7268 = vadd.f32 %v7011, %v7267
        %7269 = vmatprep.mubr.f32.mxu0 %v5969
        %7270 = vmatmul.mubr.f32.gmra.mxu0 %v5967
        %v7271 = vpop.f32.mrf.mxu0
        %v7272 = vadd.f32 %v7015, %v7271
        %v7273 = vpop.f32.mrf.mxu0
        %v7274 = vadd.f32 %v7017, %v7273
        %7275 = vdwg.mxu0
        %7276 = vmatprep.subr.mxu0 %v6729
        %7277 = vmatpush1.msra.mxu0 %v6728
        %7278 = vmatprep.subr.mxu0 %v6727
        %7279 = vmatpush1.msra.mxu0 %v6726
        %7280 = vmatprep.subr.mxu0 %v6725
        %7281 = vmatpush1.msra.mxu0 %v6724
        %7282 = vmatprep.subr.mxu0 %v6723
        %7283 = vmatpush1.msra.mxu0 %v6722
        %7284 = vmatprep.subr.mxu0 %v6721
        %7285 = vmatpush1.msra.mxu0 %v6720
        %7286 = vmatprep.subr.mxu0 %v6719
        %7287 = vmatpush1.msra.mxu0 %v6718
        %7288 = vmatprep.subr.mxu0 %v6717
        %7289 = vmatpush1.msra.mxu0 %v6716
        %7290 = vmatprep.subr.mxu0 %v6715
        %7291 = vmatpush1.msra.mxu0 %v6714
        %7292 = vmatprep.subr.mxu0 %v6713
        %7293 = vmatpush1.msra.mxu0 %v6712
        %7294 = vmatprep.subr.mxu0 %v6711
        %7295 = vmatpush1.msra.mxu0 %v6710
        %7296 = vmatprep.subr.mxu0 %v6709
        %7297 = vmatpush1.msra.mxu0 %v6708
        %7298 = vmatprep.subr.mxu0 %v6707
        %7299 = vmatpush1.msra.mxu0 %v6706
        %7300 = vmatprep.subr.mxu0 %v6705
        %7301 = vmatpush1.msra.mxu0 %v6704
        %7302 = vmatprep.subr.mxu0 %v6703
        %7303 = vmatpush1.msra.mxu0 %v6702
        %7304 = vmatprep.subr.mxu0 %v6701
        %7305 = vmatpush1.msra.mxu0 %v6700
        %7306 = vmatprep.subr.mxu0 %v6699
        %7307 = vmatpush1.msra.mxu0 %v6698
        %7308 = vmatprep.subr.mxu0 %v6761
        %7309 = vmatpush2.msra.mxu0 %v6760
        %7310 = vmatprep.subr.mxu0 %v6759
        %7311 = vmatpush2.msra.mxu0 %v6758
        %7312 = vmatprep.subr.mxu0 %v6757
        %7313 = vmatpush2.msra.mxu0 %v6756
        %7314 = vmatprep.subr.mxu0 %v6755
        %7315 = vmatpush2.msra.mxu0 %v6754
        %7316 = vmatprep.subr.mxu0 %v6753
        %7317 = vmatpush2.msra.mxu0 %v6752
        %7318 = vmatprep.subr.mxu0 %v6751
        %7319 = vmatpush2.msra.mxu0 %v6750
        %7320 = vmatprep.subr.mxu0 %v6749
        %7321 = vmatpush2.msra.mxu0 %v6748
        %7322 = vmatprep.subr.mxu0 %v6747
        %7323 = vmatpush2.msra.mxu0 %v6746
        %7324 = vmatprep.subr.mxu0 %v6745
        %7325 = vmatpush2.msra.mxu0 %v6744
        %7326 = vmatprep.subr.mxu0 %v6743
        %7327 = vmatpush2.msra.mxu0 %v6742
        %7328 = vmatprep.subr.mxu0 %v6741
        %7329 = vmatpush2.msra.mxu0 %v6740
        %7330 = vmatprep.subr.mxu0 %v6739
        %7331 = vmatpush2.msra.mxu0 %v6738
        %7332 = vmatprep.subr.mxu0 %v6737
        %7333 = vmatpush2.msra.mxu0 %v6736
        %7334 = vmatprep.subr.mxu0 %v6735
        %7335 = vmatpush2.msra.mxu0 %v6734
        %7336 = vmatprep.subr.mxu0 %v6733
        %7337 = vmatpush2.msra.mxu0 %v6732
        %7338 = vmatprep.subr.mxu0 %v6731
        %7339 = vmatpush2.msra.mxu0 %v6730
        %7340 = vmatprep.mubr.f32.mxu0 %v6140
        %7341 = vmatmul.mubr.f32.gmra.mxu0 %v6137
        %v7342 = vpop.f32.mrf.mxu0
        %v7343 = vadd.f32 %v7086, %v7342
        %v7344 = vpop.f32.mrf.mxu0
        %v7345 = vadd.f32 %v7088, %v7344
        %7346 = vmatprep.mubr.f32.mxu0 %v6144
        %7347 = vmatmul.mubr.f32.gmra.mxu0 %v6142
        %v7348 = vpop.f32.mrf.mxu0
        %v7349 = vadd.f32 %v7092, %v7348
        %v7350 = vpop.f32.mrf.mxu0
        %v7351 = vadd.f32 %v7094, %v7350
        %7352 = vmatprep.mubr.f32.mxu0 %v6150
        %7353 = vmatmul.mubr.f32.gmra.mxu0 %v6147
        %v7354 = vpop.f32.mrf.mxu0
        %v7355 = vadd.f32 %v7098, %v7354
        %v7356 = vpop.f32.mrf.mxu0
        %v7357 = vadd.f32 %v7100, %v7356
        %7358 = vmatprep.mubr.f32.mxu0 %v6154
        %7359 = vmatmul.mubr.f32.gmra.mxu0 %v6152
        %v7360 = vpop.f32.mrf.mxu0
        %v7361 = vadd.f32 %v7104, %v7360
        %v7362 = vpop.f32.mrf.mxu0
        %v7363 = vadd.f32 %v7106, %v7362
        %7364 = vmatprep.mubr.f32.mxu0 %v6160
        %7365 = vmatmul.mubr.f32.gmra.mxu0 %v6157
        %v7366 = vpop.f32.mrf.mxu0
        %v7367 = vadd.f32 %v7110, %v7366
        %v7368 = vpop.f32.mrf.mxu0
        %v7369 = vadd.f32 %v7112, %v7368
        %7370 = vmatprep.mubr.f32.mxu0 %v6164
        %7371 = vmatmul.mubr.f32.gmra.mxu0 %v6162
        %v7372 = vpop.f32.mrf.mxu0
        %v7373 = vadd.f32 %v7116, %v7372
        %v7374 = vpop.f32.mrf.mxu0
        %v7375 = vadd.f32 %v7118, %v7374
        %7376 = vmatprep.mubr.f32.mxu0 %v6170
        %7377 = vmatmul.mubr.f32.gmra.mxu0 %v6167
        %v7378 = vpop.f32.mrf.mxu0
        %v7379 = vadd.f32 %v7122, %v7378
        %v7380 = vpop.f32.mrf.mxu0
        %v7381 = vadd.f32 %v7124, %v7380
        %7382 = vmatprep.mubr.f32.mxu0 %v6174
        %7383 = vmatmul.mubr.f32.gmra.mxu0 %v6172
        %v7384 = vpop.f32.mrf.mxu0
        %v7385 = vadd.f32 %v7128, %v7384
        %v7386 = vpop.f32.mrf.mxu0
        %v7387 = vadd.f32 %v7130, %v7386
        %7388 = vmatprep.mubr.f32.mxu0 %v6180
        %7389 = vmatmul.mubr.f32.gmra.mxu0 %v6177
        %v7390 = vpop.f32.mrf.mxu0
        %v7391 = vadd.f32 %v7134, %v7390
        %v7392 = vpop.f32.mrf.mxu0
        %v7393 = vadd.f32 %v7136, %v7392
        %7394 = vmatprep.mubr.f32.mxu0 %v6184
        %7395 = vmatmul.mubr.f32.gmra.mxu0 %v6182
        %v7396 = vpop.f32.mrf.mxu0
        %v7397 = vadd.f32 %v7140, %v7396
        %v7398 = vpop.f32.mrf.mxu0
        %v7399 = vadd.f32 %v7142, %v7398
        %7400 = vmatprep.mubr.f32.mxu0 %v6190
        %7401 = vmatmul.mubr.f32.gmra.mxu0 %v6187
        %v7402 = vpop.f32.mrf.mxu0
        %v7403 = vadd.f32 %v7146, %v7402
        %v7404 = vpop.f32.mrf.mxu0
        %v7405 = vadd.f32 %v7148, %v7404
        %7406 = vmatprep.mubr.f32.mxu0 %v6194
        %7407 = vmatmul.mubr.f32.gmra.mxu0 %v6192
        %v7408 = vpop.f32.mrf.mxu0
        %v7409 = vadd.f32 %v7152, %v7408
        %v7410 = vpop.f32.mrf.mxu0
        %v7411 = vadd.f32 %v7154, %v7410
        %7412 = vmatprep.mubr.f32.mxu0 %v6200
        %7413 = vmatmul.mubr.f32.gmra.mxu0 %v6197
        %v7414 = vpop.f32.mrf.mxu0
        %v7415 = vadd.f32 %v7158, %v7414
        %v7416 = vpop.f32.mrf.mxu0
        %v7417 = vadd.f32 %v7160, %v7416
        %7418 = vmatprep.mubr.f32.mxu0 %v6204
        %7419 = vmatmul.mubr.f32.gmra.mxu0 %v6202
        %v7420 = vpop.f32.mrf.mxu0
        %v7421 = vadd.f32 %v7164, %v7420
        %v7422 = vpop.f32.mrf.mxu0
        %v7423 = vadd.f32 %v7166, %v7422
        %7424 = vmatprep.mubr.f32.mxu0 %v6210
        %7425 = vmatmul.mubr.f32.gmra.mxu0 %v6207
        %v7426 = vpop.f32.mrf.mxu0
        %v7427 = vadd.f32 %v7170, %v7426
        %v7428 = vpop.f32.mrf.mxu0
        %v7429 = vadd.f32 %v7172, %v7428
        %7430 = vmatprep.mubr.f32.mxu0 %v6214
        %7431 = vmatmul.mubr.f32.gmra.mxu0 %v6212
        %v7432 = vpop.f32.mrf.mxu0
        %v7433 = vadd.f32 %v7176, %v7432
        %v7434 = vpop.f32.mrf.mxu0
        %v7435 = vadd.f32 %v7178, %v7434
        %7436 = vmatprep.mubr.f32.mxu0 %v6220
        %7437 = vmatmul.mubr.f32.gmra.mxu0 %v6217
        %v7438 = vpop.f32.mrf.mxu0
        %v7439 = vadd.f32 %v7182, %v7438
        %v7440 = vpop.f32.mrf.mxu0
        %v7441 = vadd.f32 %v7184, %v7440
        %7442 = vmatprep.mubr.f32.mxu0 %v6224
        %7443 = vmatmul.mubr.f32.gmra.mxu0 %v6222
        %v7444 = vpop.f32.mrf.mxu0
        %v7445 = vadd.f32 %v7188, %v7444
        %v7446 = vpop.f32.mrf.mxu0
        %v7447 = vadd.f32 %v7190, %v7446
        %7448 = vmatprep.mubr.f32.mxu0 %v6230
        %7449 = vmatmul.mubr.f32.gmra.mxu0 %v6227
        %v7450 = vpop.f32.mrf.mxu0
        %v7451 = vadd.f32 %v7194, %v7450
        %v7452 = vpop.f32.mrf.mxu0
        %v7453 = vadd.f32 %v7196, %v7452
        %7454 = vmatprep.mubr.f32.mxu0 %v6234
        %7455 = vmatmul.mubr.f32.gmra.mxu0 %v6232
        %v7456 = vpop.f32.mrf.mxu0
        %v7457 = vadd.f32 %v7200, %v7456
        %v7458 = vpop.f32.mrf.mxu0
        %v7459 = vadd.f32 %v7202, %v7458
        %7460 = vmatprep.mubr.f32.mxu0 %v6240
        %7461 = vmatmul.mubr.f32.gmra.mxu0 %v6237
        %v7462 = vpop.f32.mrf.mxu0
        %v7463 = vadd.f32 %v7206, %v7462
        %v7464 = vpop.f32.mrf.mxu0
        %v7465 = vadd.f32 %v7208, %v7464
        %7466 = vmatprep.mubr.f32.mxu0 %v6244
        %7467 = vmatmul.mubr.f32.gmra.mxu0 %v6242
        %v7468 = vpop.f32.mrf.mxu0
        %v7469 = vadd.f32 %v7212, %v7468
        %v7470 = vpop.f32.mrf.mxu0
        %v7471 = vadd.f32 %v7214, %v7470
        %7472 = vmatprep.mubr.f32.mxu0 %v6250
        %7473 = vmatmul.mubr.f32.gmra.mxu0 %v6247
        %v7474 = vpop.f32.mrf.mxu0
        %v7475 = vadd.f32 %v7218, %v7474
        %v7476 = vpop.f32.mrf.mxu0
        %v7477 = vadd.f32 %v7220, %v7476
        %7478 = vmatprep.mubr.f32.mxu0 %v6254
        %7479 = vmatmul.mubr.f32.gmra.mxu0 %v6252
        %v7480 = vpop.f32.mrf.mxu0
        %v7481 = vadd.f32 %v7224, %v7480
        %v7482 = vpop.f32.mrf.mxu0
        %v7483 = vadd.f32 %v7226, %v7482
        %7484 = vmatprep.mubr.f32.mxu0 %v6260
        %7485 = vmatmul.mubr.f32.gmra.mxu0 %v6257
        %v7486 = vpop.f32.mrf.mxu0
        %v7487 = vadd.f32 %v7230, %v7486
        %v7488 = vpop.f32.mrf.mxu0
        %v7489 = vadd.f32 %v7232, %v7488
        %7490 = vmatprep.mubr.f32.mxu0 %v6264
        %7491 = vmatmul.mubr.f32.gmra.mxu0 %v6262
        %v7492 = vpop.f32.mrf.mxu0
        %v7493 = vadd.f32 %v7236, %v7492
        %v7494 = vpop.f32.mrf.mxu0
        %v7495 = vadd.f32 %v7238, %v7494
        %7496 = vmatprep.mubr.f32.mxu0 %v6270
        %7497 = vmatmul.mubr.f32.gmra.mxu0 %v6267
        %v7498 = vpop.f32.mrf.mxu0
        %v7499 = vadd.f32 %v7242, %v7498
        %v7500 = vpop.f32.mrf.mxu0
        %v7501 = vadd.f32 %v7244, %v7500
        %7502 = vmatprep.mubr.f32.mxu0 %v6274
        %7503 = vmatmul.mubr.f32.gmra.mxu0 %v6272
        %v7504 = vpop.f32.mrf.mxu0
        %v7505 = vadd.f32 %v7248, %v7504
        %v7506 = vpop.f32.mrf.mxu0
        %v7507 = vadd.f32 %v7250, %v7506
        %7508 = vmatprep.mubr.f32.mxu0 %v6280
        %7509 = vmatmul.mubr.f32.gmra.mxu0 %v6277
        %v7510 = vpop.f32.mrf.mxu0
        %v7511 = vadd.f32 %v7254, %v7510
        %v7512 = vpop.f32.mrf.mxu0
        %v7513 = vadd.f32 %v7256, %v7512
        %7514 = vmatprep.mubr.f32.mxu0 %v6284
        %7515 = vmatmul.mubr.f32.gmra.mxu0 %v6282
        %v7516 = vpop.f32.mrf.mxu0
        %v7517 = vadd.f32 %v7260, %v7516
        %v7518 = vpop.f32.mrf.mxu0
        %v7519 = vadd.f32 %v7262, %v7518
        %7520 = vmatprep.mubr.f32.mxu0 %v6290
        %7521 = vmatmul.mubr.f32.gmra.mxu0 %v6287
        %v7522 = vpop.f32.mrf.mxu0
        %v7523 = vadd.f32 %v7266, %v7522
        %v7524 = vpop.f32.mrf.mxu0
        %v7525 = vadd.f32 %v7268, %v7524
        %7526 = vmatprep.mubr.f32.mxu0 %v6294
        %7527 = vmatmul.mubr.f32.gmra.mxu0 %v6292
        %v7528 = vpop.f32.mrf.mxu0
        %v7529 = vadd.f32 %v7272, %v7528
        %v7530 = vpop.f32.mrf.mxu0
        %v7531 = vadd.f32 %v7274, %v7530
        %7532 = vdwg.mxu0
        %7533 = vmatprep.subr.mxu0 %v6408
        %7534 = vmatpush1.msra.mxu0 %v6407
        %7535 = vmatprep.subr.mxu0 %v6406
        %7536 = vmatpush1.msra.mxu0 %v6405
        %7537 = vmatprep.subr.mxu0 %v6404
        %7538 = vmatpush1.msra.mxu0 %v6403
        %7539 = vmatprep.subr.mxu0 %v6402
        %7540 = vmatpush1.msra.mxu0 %v6401
        %7541 = vmatprep.subr.mxu0 %v6400
        %7542 = vmatpush1.msra.mxu0 %v6399
        %7543 = vmatprep.subr.mxu0 %v6398
        %7544 = vmatpush1.msra.mxu0 %v6397
        %7545 = vmatprep.subr.mxu0 %v6396
        %7546 = vmatpush1.msra.mxu0 %v6395
        %7547 = vmatprep.subr.mxu0 %v6394
        %7548 = vmatpush1.msra.mxu0 %v6393
        %7549 = vmatprep.subr.mxu0 %v6392
        %7550 = vmatpush1.msra.mxu0 %v6391
        %7551 = vmatprep.subr.mxu0 %v6390
        %7552 = vmatpush1.msra.mxu0 %v6389
        %7553 = vmatprep.subr.mxu0 %v6388
        %7554 = vmatpush1.msra.mxu0 %v6387
        %7555 = vmatprep.subr.mxu0 %v6386
        %7556 = vmatpush1.msra.mxu0 %v6385
        %7557 = vmatprep.subr.mxu0 %v6384
        %7558 = vmatpush1.msra.mxu0 %v6383
        %7559 = vmatprep.subr.mxu0 %v6382
        %7560 = vmatpush1.msra.mxu0 %v6381
        %7561 = vmatprep.subr.mxu0 %v6380
        %7562 = vmatpush1.msra.mxu0 %v6379
        %7563 = vmatprep.subr.mxu0 %v6378
        %7564 = vmatpush1.msra.mxu0 %v6377
        %7565 = vmatprep.subr.mxu0 %v6440
        %7566 = vmatpush2.msra.mxu0 %v6439
        %7567 = vmatprep.subr.mxu0 %v6438
        %7568 = vmatpush2.msra.mxu0 %v6437
        %7569 = vmatprep.subr.mxu0 %v6436
        %7570 = vmatpush2.msra.mxu0 %v6435
        %7571 = vmatprep.subr.mxu0 %v6434
        %7572 = vmatpush2.msra.mxu0 %v6433
        %7573 = vmatprep.subr.mxu0 %v6432
        %7574 = vmatpush2.msra.mxu0 %v6431
        %7575 = vmatprep.subr.mxu0 %v6430
        %7576 = vmatpush2.msra.mxu0 %v6429
        %7577 = vmatprep.subr.mxu0 %v6428
        %7578 = vmatpush2.msra.mxu0 %v6427
        %7579 = vmatprep.subr.mxu0 %v6426
        %7580 = vmatpush2.msra.mxu0 %v6425
        %7581 = vmatprep.subr.mxu0 %v6424
        %7582 = vmatpush2.msra.mxu0 %v6423
        %7583 = vmatprep.subr.mxu0 %v6422
        %7584 = vmatpush2.msra.mxu0 %v6421
        %7585 = vmatprep.subr.mxu0 %v6420
        %7586 = vmatpush2.msra.mxu0 %v6419
        %7587 = vmatprep.subr.mxu0 %v6418
        %7588 = vmatpush2.msra.mxu0 %v6417
        %7589 = vmatprep.subr.mxu0 %v6416
        %7590 = vmatpush2.msra.mxu0 %v6415
        %7591 = vmatprep.subr.mxu0 %v6414
        %7592 = vmatpush2.msra.mxu0 %v6413
        %7593 = vmatprep.subr.mxu0 %v6412
        %7594 = vmatpush2.msra.mxu0 %v6411
        %7595 = vmatprep.subr.mxu0 %v6410
        %7596 = vmatpush2.msra.mxu0 %v6409
        %7597 = vmatprep.mubr.f32.mxu0 %v5476
        %7598 = vmatmul.mubr.f32.gmra.mxu0 %v5475
        %v7599 = vpop.f32.mrf.mxu0
        %v7600 = vadd.f32 %v7343, %v7599
        %v7601 = vpop.f32.mrf.mxu0
        %v7602 = vadd.f32 %v7345, %v7601
        %7603 = vmatprep.mubr.f32.mxu0 %v5478
        %7604 = vmatmul.mubr.f32.gmra.mxu0 %v5477
        %v7605 = vpop.f32.mrf.mxu0
        %v7606 = vadd.f32 %v7349, %v7605
        %v7607 = vpop.f32.mrf.mxu0
        %v7608 = vadd.f32 %v7351, %v7607
        %7609 = vmatprep.mubr.f32.mxu0 %v5480
        %7610 = vmatmul.mubr.f32.gmra.mxu0 %v5479
        %v7611 = vpop.f32.mrf.mxu0
        %v7612 = vadd.f32 %v7355, %v7611
        %v7613 = vpop.f32.mrf.mxu0
        %v7614 = vadd.f32 %v7357, %v7613
        %7615 = vmatprep.mubr.f32.mxu0 %v5482
        %7616 = vmatmul.mubr.f32.gmra.mxu0 %v5481
        %v7617 = vpop.f32.mrf.mxu0
        %v7618 = vadd.f32 %v7361, %v7617
        %v7619 = vpop.f32.mrf.mxu0
        %v7620 = vadd.f32 %v7363, %v7619
        %7621 = vmatprep.mubr.f32.mxu0 %v5484
        %7622 = vmatmul.mubr.f32.gmra.mxu0 %v5483
        %v7623 = vpop.f32.mrf.mxu0
        %v7624 = vadd.f32 %v7367, %v7623
        %v7625 = vpop.f32.mrf.mxu0
        %v7626 = vadd.f32 %v7369, %v7625
        %7627 = vmatprep.mubr.f32.mxu0 %v5486
        %7628 = vmatmul.mubr.f32.gmra.mxu0 %v5485
        %v7629 = vpop.f32.mrf.mxu0
        %v7630 = vadd.f32 %v7373, %v7629
        %v7631 = vpop.f32.mrf.mxu0
        %v7632 = vadd.f32 %v7375, %v7631
        %7633 = vmatprep.mubr.f32.mxu0 %v5488
        %7634 = vmatmul.mubr.f32.gmra.mxu0 %v5487
        %v7635 = vpop.f32.mrf.mxu0
        %v7636 = vadd.f32 %v7379, %v7635
        %v7637 = vpop.f32.mrf.mxu0
        %v7638 = vadd.f32 %v7381, %v7637
        %7639 = vmatprep.mubr.f32.mxu0 %v5490
        %7640 = vmatmul.mubr.f32.gmra.mxu0 %v5489
        %v7641 = vpop.f32.mrf.mxu0
        %v7642 = vadd.f32 %v7385, %v7641
        %v7643 = vpop.f32.mrf.mxu0
        %v7644 = vadd.f32 %v7387, %v7643
        %7645 = vmatprep.mubr.f32.mxu0 %v5492
        %7646 = vmatmul.mubr.f32.gmra.mxu0 %v5491
        %v7647 = vpop.f32.mrf.mxu0
        %v7648 = vadd.f32 %v7391, %v7647
        %v7649 = vpop.f32.mrf.mxu0
        %v7650 = vadd.f32 %v7393, %v7649
        %7651 = vmatprep.mubr.f32.mxu0 %v5494
        %7652 = vmatmul.mubr.f32.gmra.mxu0 %v5493
        %v7653 = vpop.f32.mrf.mxu0
        %v7654 = vadd.f32 %v7397, %v7653
        %v7655 = vpop.f32.mrf.mxu0
        %v7656 = vadd.f32 %v7399, %v7655
        %7657 = vmatprep.mubr.f32.mxu0 %v5496
        %7658 = vmatmul.mubr.f32.gmra.mxu0 %v5495
        %v7659 = vpop.f32.mrf.mxu0
        %v7660 = vadd.f32 %v7403, %v7659
        %v7661 = vpop.f32.mrf.mxu0
        %v7662 = vadd.f32 %v7405, %v7661
        %7663 = vmatprep.mubr.f32.mxu0 %v5498
        %7664 = vmatmul.mubr.f32.gmra.mxu0 %v5497
        %v7665 = vpop.f32.mrf.mxu0
        %v7666 = vadd.f32 %v7409, %v7665
        %v7667 = vpop.f32.mrf.mxu0
        %v7668 = vadd.f32 %v7411, %v7667
        %7669 = vmatprep.mubr.f32.mxu0 %v5500
        %7670 = vmatmul.mubr.f32.gmra.mxu0 %v5499
        %v7671 = vpop.f32.mrf.mxu0
        %v7672 = vadd.f32 %v7415, %v7671
        %v7673 = vpop.f32.mrf.mxu0
        %v7674 = vadd.f32 %v7417, %v7673
        %7675 = vmatprep.mubr.f32.mxu0 %v5502
        %7676 = vmatmul.mubr.f32.gmra.mxu0 %v5501
        %v7677 = vpop.f32.mrf.mxu0
        %v7678 = vadd.f32 %v7421, %v7677
        %v7679 = vpop.f32.mrf.mxu0
        %v7680 = vadd.f32 %v7423, %v7679
        %7681 = vmatprep.mubr.f32.mxu0 %v5504
        %7682 = vmatmul.mubr.f32.gmra.mxu0 %v5503
        %v7683 = vpop.f32.mrf.mxu0
        %v7684 = vadd.f32 %v7427, %v7683
        %v7685 = vpop.f32.mrf.mxu0
        %v7686 = vadd.f32 %v7429, %v7685
        %7687 = vmatprep.mubr.f32.mxu0 %v5506
        %7688 = vmatmul.mubr.f32.gmra.mxu0 %v5505
        %v7689 = vpop.f32.mrf.mxu0
        %v7690 = vadd.f32 %v7433, %v7689
        %v7691 = vpop.f32.mrf.mxu0
        %v7692 = vadd.f32 %v7435, %v7691
        %7693 = vmatprep.mubr.f32.mxu0 %v5508
        %7694 = vmatmul.mubr.f32.gmra.mxu0 %v5507
        %v7695 = vpop.f32.mrf.mxu0
        %v7696 = vadd.f32 %v7439, %v7695
        %v7697 = vpop.f32.mrf.mxu0
        %v7698 = vadd.f32 %v7441, %v7697
        %7699 = vmatprep.mubr.f32.mxu0 %v5510
        %7700 = vmatmul.mubr.f32.gmra.mxu0 %v5509
        %v7701 = vpop.f32.mrf.mxu0
        %v7702 = vadd.f32 %v7445, %v7701
        %v7703 = vpop.f32.mrf.mxu0
        %v7704 = vadd.f32 %v7447, %v7703
        %7705 = vmatprep.mubr.f32.mxu0 %v5512
        %7706 = vmatmul.mubr.f32.gmra.mxu0 %v5511
        %v7707 = vpop.f32.mrf.mxu0
        %v7708 = vadd.f32 %v7451, %v7707
        %v7709 = vpop.f32.mrf.mxu0
        %v7710 = vadd.f32 %v7453, %v7709
        %7711 = vmatprep.mubr.f32.mxu0 %v5514
        %7712 = vmatmul.mubr.f32.gmra.mxu0 %v5513
        %v7713 = vpop.f32.mrf.mxu0
        %v7714 = vadd.f32 %v7457, %v7713
        %v7715 = vpop.f32.mrf.mxu0
        %v7716 = vadd.f32 %v7459, %v7715
        %7717 = vmatprep.mubr.f32.mxu0 %v5516
        %7718 = vmatmul.mubr.f32.gmra.mxu0 %v5515
        %v7719 = vpop.f32.mrf.mxu0
        %v7720 = vadd.f32 %v7463, %v7719
        %v7721 = vpop.f32.mrf.mxu0
        %v7722 = vadd.f32 %v7465, %v7721
        %7723 = vmatprep.mubr.f32.mxu0 %v5518
        %7724 = vmatmul.mubr.f32.gmra.mxu0 %v5517
        %v7725 = vpop.f32.mrf.mxu0
        %v7726 = vadd.f32 %v7469, %v7725
        %v7727 = vpop.f32.mrf.mxu0
        %v7728 = vadd.f32 %v7471, %v7727
        %7729 = vmatprep.mubr.f32.mxu0 %v5520
        %7730 = vmatmul.mubr.f32.gmra.mxu0 %v5519
        %v7731 = vpop.f32.mrf.mxu0
        %v7732 = vadd.f32 %v7475, %v7731
        %v7733 = vpop.f32.mrf.mxu0
        %v7734 = vadd.f32 %v7477, %v7733
        %7735 = vmatprep.mubr.f32.mxu0 %v5522
        %7736 = vmatmul.mubr.f32.gmra.mxu0 %v5521
        %v7737 = vpop.f32.mrf.mxu0
        %v7738 = vadd.f32 %v7481, %v7737
        %v7739 = vpop.f32.mrf.mxu0
        %v7740 = vadd.f32 %v7483, %v7739
        %7741 = vmatprep.mubr.f32.mxu0 %v5524
        %7742 = vmatmul.mubr.f32.gmra.mxu0 %v5523
        %v7743 = vpop.f32.mrf.mxu0
        %v7744 = vadd.f32 %v7487, %v7743
        %v7745 = vpop.f32.mrf.mxu0
        %v7746 = vadd.f32 %v7489, %v7745
        %7747 = vmatprep.mubr.f32.mxu0 %v5526
        %7748 = vmatmul.mubr.f32.gmra.mxu0 %v5525
        %v7749 = vpop.f32.mrf.mxu0
        %v7750 = vadd.f32 %v7493, %v7749
        %v7751 = vpop.f32.mrf.mxu0
        %v7752 = vadd.f32 %v7495, %v7751
        %7753 = vmatprep.mubr.f32.mxu0 %v5528
        %7754 = vmatmul.mubr.f32.gmra.mxu0 %v5527
        %v7755 = vpop.f32.mrf.mxu0
        %v7756 = vadd.f32 %v7499, %v7755
        %v7757 = vpop.f32.mrf.mxu0
        %v7758 = vadd.f32 %v7501, %v7757
        %7759 = vmatprep.mubr.f32.mxu0 %v5530
        %7760 = vmatmul.mubr.f32.gmra.mxu0 %v5529
        %v7761 = vpop.f32.mrf.mxu0
        %v7762 = vadd.f32 %v7505, %v7761
        %v7763 = vpop.f32.mrf.mxu0
        %v7764 = vadd.f32 %v7507, %v7763
        %7765 = vmatprep.mubr.f32.mxu0 %v5532
        %7766 = vmatmul.mubr.f32.gmra.mxu0 %v5531
        %v7767 = vpop.f32.mrf.mxu0
        %v7768 = vadd.f32 %v7511, %v7767
        %v7769 = vpop.f32.mrf.mxu0
        %v7770 = vadd.f32 %v7513, %v7769
        %7771 = vmatprep.mubr.f32.mxu0 %v5534
        %7772 = vmatmul.mubr.f32.gmra.mxu0 %v5533
        %v7773 = vpop.f32.mrf.mxu0
        %v7774 = vadd.f32 %v7517, %v7773
        %v7775 = vpop.f32.mrf.mxu0
        %v7776 = vadd.f32 %v7519, %v7775
        %7777 = vmatprep.mubr.f32.mxu0 %v5536
        %7778 = vmatmul.mubr.f32.gmra.mxu0 %v5535
        %v7779 = vpop.f32.mrf.mxu0
        %v7780 = vadd.f32 %v7523, %v7779
        %v7781 = vpop.f32.mrf.mxu0
        %v7782 = vadd.f32 %v7525, %v7781
        %7783 = vmatprep.mubr.f32.mxu0 %v5538
        %7784 = vmatmul.mubr.f32.gmra.mxu0 %v5537
        %v7785 = vpop.f32.mrf.mxu0
        %v7786 = vadd.f32 %v7529, %v7785
        %v7787 = vpop.f32.mrf.mxu0
        %v7788 = vadd.f32 %v7531, %v7787
        %7789 = vdwg.mxu0
        %7790 = vmatprep.subr.mxu0 %v6472
        %7791 = vmatpush1.msra.mxu0 %v6471
        %7792 = vmatprep.subr.mxu0 %v6470
        %7793 = vmatpush1.msra.mxu0 %v6469
        %7794 = vmatprep.subr.mxu0 %v6468
        %7795 = vmatpush1.msra.mxu0 %v6467
        %7796 = vmatprep.subr.mxu0 %v6466
        %7797 = vmatpush1.msra.mxu0 %v6465
        %7798 = vmatprep.subr.mxu0 %v6464
        %7799 = vmatpush1.msra.mxu0 %v6463
        %7800 = vmatprep.subr.mxu0 %v6462
        %7801 = vmatpush1.msra.mxu0 %v6461
        %7802 = vmatprep.subr.mxu0 %v6460
        %7803 = vmatpush1.msra.mxu0 %v6459
        %7804 = vmatprep.subr.mxu0 %v6458
        %7805 = vmatpush1.msra.mxu0 %v6457
        %7806 = vmatprep.subr.mxu0 %v6456
        %7807 = vmatpush1.msra.mxu0 %v6455
        %7808 = vmatprep.subr.mxu0 %v6454
        %7809 = vmatpush1.msra.mxu0 %v6453
        %7810 = vmatprep.subr.mxu0 %v6452
        %7811 = vmatpush1.msra.mxu0 %v6451
        %7812 = vmatprep.subr.mxu0 %v6450
        %7813 = vmatpush1.msra.mxu0 %v6449
        %7814 = vmatprep.subr.mxu0 %v6448
        %7815 = vmatpush1.msra.mxu0 %v6447
        %7816 = vmatprep.subr.mxu0 %v6446
        %7817 = vmatpush1.msra.mxu0 %v6445
        %7818 = vmatprep.subr.mxu0 %v6444
        %7819 = vmatpush1.msra.mxu0 %v6443
        %7820 = vmatprep.subr.mxu0 %v6442
        %7821 = vmatpush1.msra.mxu0 %v6441
        %7822 = vmatprep.subr.mxu0 %v6504
        %7823 = vmatpush2.msra.mxu0 %v6503
        %7824 = vmatprep.subr.mxu0 %v6502
        %7825 = vmatpush2.msra.mxu0 %v6501
        %7826 = vmatprep.subr.mxu0 %v6500
        %7827 = vmatpush2.msra.mxu0 %v6499
        %7828 = vmatprep.subr.mxu0 %v6498
        %7829 = vmatpush2.msra.mxu0 %v6497
        %7830 = vmatprep.subr.mxu0 %v6496
        %7831 = vmatpush2.msra.mxu0 %v6495
        %7832 = vmatprep.subr.mxu0 %v6494
        %7833 = vmatpush2.msra.mxu0 %v6493
        %7834 = vmatprep.subr.mxu0 %v6492
        %7835 = vmatpush2.msra.mxu0 %v6491
        %7836 = vmatprep.subr.mxu0 %v6490
        %7837 = vmatpush2.msra.mxu0 %v6489
        %7838 = vmatprep.subr.mxu0 %v6488
        %7839 = vmatpush2.msra.mxu0 %v6487
        %7840 = vmatprep.subr.mxu0 %v6486
        %7841 = vmatpush2.msra.mxu0 %v6485
        %7842 = vmatprep.subr.mxu0 %v6484
        %7843 = vmatpush2.msra.mxu0 %v6483
        %7844 = vmatprep.subr.mxu0 %v6482
        %7845 = vmatpush2.msra.mxu0 %v6481
        %7846 = vmatprep.subr.mxu0 %v6480
        %7847 = vmatpush2.msra.mxu0 %v6479
        %7848 = vmatprep.subr.mxu0 %v6478
        %7849 = vmatpush2.msra.mxu0 %v6477
        %7850 = vmatprep.subr.mxu0 %v6476
        %7851 = vmatpush2.msra.mxu0 %v6475
        %7852 = vmatprep.subr.mxu0 %v6474
        %7853 = vmatpush2.msra.mxu0 %v6473
        %7854 = vmatprep.mubr.f32.mxu0 %v5805
        %7855 = vmatmul.mubr.f32.gmra.mxu0 %v5802
        %v7856 = vpop.f32.mrf.mxu0
        %v7857 = vadd.f32 %v7600, %v7856
        %v7858 = vpop.f32.mrf.mxu0
        %v7859 = vadd.f32 %v7602, %v7858
        %7860 = vmatprep.mubr.f32.mxu0 %v5809
        %7861 = vmatmul.mubr.f32.gmra.mxu0 %v5807
        %v7862 = vpop.f32.mrf.mxu0
        %v7863 = vadd.f32 %v7606, %v7862
        %v7864 = vpop.f32.mrf.mxu0
        %v7865 = vadd.f32 %v7608, %v7864
        %7866 = vmatprep.mubr.f32.mxu0 %v5815
        %7867 = vmatmul.mubr.f32.gmra.mxu0 %v5812
        %v7868 = vpop.f32.mrf.mxu0
        %v7869 = vadd.f32 %v7612, %v7868
        %v7870 = vpop.f32.mrf.mxu0
        %v7871 = vadd.f32 %v7614, %v7870
        %7872 = vmatprep.mubr.f32.mxu0 %v5819
        %7873 = vmatmul.mubr.f32.gmra.mxu0 %v5817
        %v7874 = vpop.f32.mrf.mxu0
        %v7875 = vadd.f32 %v7618, %v7874
        %v7876 = vpop.f32.mrf.mxu0
        %v7877 = vadd.f32 %v7620, %v7876
        %7878 = vmatprep.mubr.f32.mxu0 %v5825
        %7879 = vmatmul.mubr.f32.gmra.mxu0 %v5822
        %v7880 = vpop.f32.mrf.mxu0
        %v7881 = vadd.f32 %v7624, %v7880
        %v7882 = vpop.f32.mrf.mxu0
        %v7883 = vadd.f32 %v7626, %v7882
        %7884 = vmatprep.mubr.f32.mxu0 %v5829
        %7885 = vmatmul.mubr.f32.gmra.mxu0 %v5827
        %v7886 = vpop.f32.mrf.mxu0
        %v7887 = vadd.f32 %v7630, %v7886
        %v7888 = vpop.f32.mrf.mxu0
        %v7889 = vadd.f32 %v7632, %v7888
        %7890 = vmatprep.mubr.f32.mxu0 %v5835
        %7891 = vmatmul.mubr.f32.gmra.mxu0 %v5832
        %v7892 = vpop.f32.mrf.mxu0
        %v7893 = vadd.f32 %v7636, %v7892
        %v7894 = vpop.f32.mrf.mxu0
        %v7895 = vadd.f32 %v7638, %v7894
        %7896 = vmatprep.mubr.f32.mxu0 %v5839
        %7897 = vmatmul.mubr.f32.gmra.mxu0 %v5837
        %v7898 = vpop.f32.mrf.mxu0
        %v7899 = vadd.f32 %v7642, %v7898
        %v7900 = vpop.f32.mrf.mxu0
        %v7901 = vadd.f32 %v7644, %v7900
        %7902 = vmatprep.mubr.f32.mxu0 %v5845
        %7903 = vmatmul.mubr.f32.gmra.mxu0 %v5842
        %v7904 = vpop.f32.mrf.mxu0
        %v7905 = vadd.f32 %v7648, %v7904
        %v7906 = vpop.f32.mrf.mxu0
        %v7907 = vadd.f32 %v7650, %v7906
        %7908 = vmatprep.mubr.f32.mxu0 %v5849
        %7909 = vmatmul.mubr.f32.gmra.mxu0 %v5847
        %v7910 = vpop.f32.mrf.mxu0
        %v7911 = vadd.f32 %v7654, %v7910
        %v7912 = vpop.f32.mrf.mxu0
        %v7913 = vadd.f32 %v7656, %v7912
        %7914 = vmatprep.mubr.f32.mxu0 %v5855
        %7915 = vmatmul.mubr.f32.gmra.mxu0 %v5852
        %v7916 = vpop.f32.mrf.mxu0
        %v7917 = vadd.f32 %v7660, %v7916
        %v7918 = vpop.f32.mrf.mxu0
        %v7919 = vadd.f32 %v7662, %v7918
        %7920 = vmatprep.mubr.f32.mxu0 %v5859
        %7921 = vmatmul.mubr.f32.gmra.mxu0 %v5857
        %v7922 = vpop.f32.mrf.mxu0
        %v7923 = vadd.f32 %v7666, %v7922
        %v7924 = vpop.f32.mrf.mxu0
        %v7925 = vadd.f32 %v7668, %v7924
        %7926 = vmatprep.mubr.f32.mxu0 %v5865
        %7927 = vmatmul.mubr.f32.gmra.mxu0 %v5862
        %v7928 = vpop.f32.mrf.mxu0
        %v7929 = vadd.f32 %v7672, %v7928
        %v7930 = vpop.f32.mrf.mxu0
        %v7931 = vadd.f32 %v7674, %v7930
        %7932 = vmatprep.mubr.f32.mxu0 %v5869
        %7933 = vmatmul.mubr.f32.gmra.mxu0 %v5867
        %v7934 = vpop.f32.mrf.mxu0
        %v7935 = vadd.f32 %v7678, %v7934
        %v7936 = vpop.f32.mrf.mxu0
        %v7937 = vadd.f32 %v7680, %v7936
        %7938 = vmatprep.mubr.f32.mxu0 %v5875
        %7939 = vmatmul.mubr.f32.gmra.mxu0 %v5872
        %v7940 = vpop.f32.mrf.mxu0
        %v7941 = vadd.f32 %v7684, %v7940
        %v7942 = vpop.f32.mrf.mxu0
        %v7943 = vadd.f32 %v7686, %v7942
        %7944 = vmatprep.mubr.f32.mxu0 %v5879
        %7945 = vmatmul.mubr.f32.gmra.mxu0 %v5877
        %v7946 = vpop.f32.mrf.mxu0
        %v7947 = vadd.f32 %v7690, %v7946
        %v7948 = vpop.f32.mrf.mxu0
        %v7949 = vadd.f32 %v7692, %v7948
        %7950 = vmatprep.mubr.f32.mxu0 %v5885
        %7951 = vmatmul.mubr.f32.gmra.mxu0 %v5882
        %v7952 = vpop.f32.mrf.mxu0
        %v7953 = vadd.f32 %v7696, %v7952
        %v7954 = vpop.f32.mrf.mxu0
        %v7955 = vadd.f32 %v7698, %v7954
        %7956 = vmatprep.mubr.f32.mxu0 %v5889
        %7957 = vmatmul.mubr.f32.gmra.mxu0 %v5887
        %v7958 = vpop.f32.mrf.mxu0
        %v7959 = vadd.f32 %v7702, %v7958
        %v7960 = vpop.f32.mrf.mxu0
        %v7961 = vadd.f32 %v7704, %v7960
        %7962 = vmatprep.mubr.f32.mxu0 %v5895
        %7963 = vmatmul.mubr.f32.gmra.mxu0 %v5892
        %v7964 = vpop.f32.mrf.mxu0
        %v7965 = vadd.f32 %v7708, %v7964
        %v7966 = vpop.f32.mrf.mxu0
        %v7967 = vadd.f32 %v7710, %v7966
        %7968 = vmatprep.mubr.f32.mxu0 %v5899
        %7969 = vmatmul.mubr.f32.gmra.mxu0 %v5897
        %v7970 = vpop.f32.mrf.mxu0
        %v7971 = vadd.f32 %v7714, %v7970
        %v7972 = vpop.f32.mrf.mxu0
        %v7973 = vadd.f32 %v7716, %v7972
        %7974 = vmatprep.mubr.f32.mxu0 %v5905
        %7975 = vmatmul.mubr.f32.gmra.mxu0 %v5902
        %v7976 = vpop.f32.mrf.mxu0
        %v7977 = vadd.f32 %v7720, %v7976
        %v7978 = vpop.f32.mrf.mxu0
        %v7979 = vadd.f32 %v7722, %v7978
        %7980 = vmatprep.mubr.f32.mxu0 %v5909
        %7981 = vmatmul.mubr.f32.gmra.mxu0 %v5907
        %v7982 = vpop.f32.mrf.mxu0
        %v7983 = vadd.f32 %v7726, %v7982
        %v7984 = vpop.f32.mrf.mxu0
        %v7985 = vadd.f32 %v7728, %v7984
        %7986 = vmatprep.mubr.f32.mxu0 %v5915
        %7987 = vmatmul.mubr.f32.gmra.mxu0 %v5912
        %v7988 = vpop.f32.mrf.mxu0
        %v7989 = vadd.f32 %v7732, %v7988
        %v7990 = vpop.f32.mrf.mxu0
        %v7991 = vadd.f32 %v7734, %v7990
        %7992 = vmatprep.mubr.f32.mxu0 %v5919
        %7993 = vmatmul.mubr.f32.gmra.mxu0 %v5917
        %v7994 = vpop.f32.mrf.mxu0
        %v7995 = vadd.f32 %v7738, %v7994
        %v7996 = vpop.f32.mrf.mxu0
        %v7997 = vadd.f32 %v7740, %v7996
        %7998 = vmatprep.mubr.f32.mxu0 %v5925
        %7999 = vmatmul.mubr.f32.gmra.mxu0 %v5922
        %v8000 = vpop.f32.mrf.mxu0
        %v8001 = vadd.f32 %v7744, %v8000
        %v8002 = vpop.f32.mrf.mxu0
        %v8003 = vadd.f32 %v7746, %v8002
        %8004 = vmatprep.mubr.f32.mxu0 %v5929
        %8005 = vmatmul.mubr.f32.gmra.mxu0 %v5927
        %v8006 = vpop.f32.mrf.mxu0
        %v8007 = vadd.f32 %v7750, %v8006
        %v8008 = vpop.f32.mrf.mxu0
        %v8009 = vadd.f32 %v7752, %v8008
        %8010 = vmatprep.mubr.f32.mxu0 %v5935
        %8011 = vmatmul.mubr.f32.gmra.mxu0 %v5932
        %v8012 = vpop.f32.mrf.mxu0
        %v8013 = vadd.f32 %v7756, %v8012
        %v8014 = vpop.f32.mrf.mxu0
        %v8015 = vadd.f32 %v7758, %v8014
        %8016 = vmatprep.mubr.f32.mxu0 %v5939
        %8017 = vmatmul.mubr.f32.gmra.mxu0 %v5937
        %v8018 = vpop.f32.mrf.mxu0
        %v8019 = vadd.f32 %v7762, %v8018
        %v8020 = vpop.f32.mrf.mxu0
        %v8021 = vadd.f32 %v7764, %v8020
        %8022 = vmatprep.mubr.f32.mxu0 %v5945
        %8023 = vmatmul.mubr.f32.gmra.mxu0 %v5942
        %v8024 = vpop.f32.mrf.mxu0
        %v8025 = vadd.f32 %v7768, %v8024
        %v8026 = vpop.f32.mrf.mxu0
        %v8027 = vadd.f32 %v7770, %v8026
        %8028 = vmatprep.mubr.f32.mxu0 %v5949
        %8029 = vmatmul.mubr.f32.gmra.mxu0 %v5947
        %v8030 = vpop.f32.mrf.mxu0
        %v8031 = vadd.f32 %v7774, %v8030
        %v8032 = vpop.f32.mrf.mxu0
        %v8033 = vadd.f32 %v7776, %v8032
        %8034 = vmatprep.mubr.f32.mxu0 %v5955
        %8035 = vmatmul.mubr.f32.gmra.mxu0 %v5952
        %v8036 = vpop.f32.mrf.mxu0
        %v8037 = vadd.f32 %v7780, %v8036
        %v8038 = vpop.f32.mrf.mxu0
        %v8039 = vadd.f32 %v7782, %v8038
        %8040 = vmatprep.mubr.f32.mxu0 %v5959
        %8041 = vmatmul.mubr.f32.gmra.mxu0 %v5957
        %v8042 = vpop.f32.mrf.mxu0
        %v8043 = vadd.f32 %v7786, %v8042
        %v8044 = vpop.f32.mrf.mxu0
        %v8045 = vadd.f32 %v7788, %v8044
        %8046 = vdwg.mxu0
        %8047 = vmatprep.subr.mxu0 %v6536
        %8048 = vmatpush1.msra.mxu0 %v6535
        %8049 = vmatprep.subr.mxu0 %v6534
        %8050 = vmatpush1.msra.mxu0 %v6533
        %8051 = vmatprep.subr.mxu0 %v6532
        %8052 = vmatpush1.msra.mxu0 %v6531
        %8053 = vmatprep.subr.mxu0 %v6530
        %8054 = vmatpush1.msra.mxu0 %v6529
        %8055 = vmatprep.subr.mxu0 %v6528
        %8056 = vmatpush1.msra.mxu0 %v6527
        %8057 = vmatprep.subr.mxu0 %v6526
        %8058 = vmatpush1.msra.mxu0 %v6525
        %8059 = vmatprep.subr.mxu0 %v6524
        %8060 = vmatpush1.msra.mxu0 %v6523
        %8061 = vmatprep.subr.mxu0 %v6522
        %8062 = vmatpush1.msra.mxu0 %v6521
        %8063 = vmatprep.subr.mxu0 %v6520
        %8064 = vmatpush1.msra.mxu0 %v6519
        %8065 = vmatprep.subr.mxu0 %v6518
        %8066 = vmatpush1.msra.mxu0 %v6517
        %8067 = vmatprep.subr.mxu0 %v6516
        %8068 = vmatpush1.msra.mxu0 %v6515
        %8069 = vmatprep.subr.mxu0 %v6514
        %8070 = vmatpush1.msra.mxu0 %v6513
        %8071 = vmatprep.subr.mxu0 %v6512
        %8072 = vmatpush1.msra.mxu0 %v6511
        %8073 = vmatprep.subr.mxu0 %v6510
        %8074 = vmatpush1.msra.mxu0 %v6509
        %8075 = vmatprep.subr.mxu0 %v6508
        %8076 = vmatpush1.msra.mxu0 %v6507
        %8077 = vmatprep.subr.mxu0 %v6506
        %8078 = vmatpush1.msra.mxu0 %v6505
        %8079 = vmatprep.subr.mxu0 %v6568
        %8080 = vmatpush2.msra.mxu0 %v6567
        %8081 = vmatprep.subr.mxu0 %v6566
        %8082 = vmatpush2.msra.mxu0 %v6565
        %8083 = vmatprep.subr.mxu0 %v6564
        %8084 = vmatpush2.msra.mxu0 %v6563
        %8085 = vmatprep.subr.mxu0 %v6562
        %8086 = vmatpush2.msra.mxu0 %v6561
        %8087 = vmatprep.subr.mxu0 %v6560
        %8088 = vmatpush2.msra.mxu0 %v6559
        %8089 = vmatprep.subr.mxu0 %v6558
        %8090 = vmatpush2.msra.mxu0 %v6557
        %8091 = vmatprep.subr.mxu0 %v6556
        %8092 = vmatpush2.msra.mxu0 %v6555
        %8093 = vmatprep.subr.mxu0 %v6554
        %8094 = vmatpush2.msra.mxu0 %v6553
        %8095 = vmatprep.subr.mxu0 %v6552
        %8096 = vmatpush2.msra.mxu0 %v6551
        %8097 = vmatprep.subr.mxu0 %v6550
        %8098 = vmatpush2.msra.mxu0 %v6549
        %8099 = vmatprep.subr.mxu0 %v6548
        %8100 = vmatpush2.msra.mxu0 %v6547
        %8101 = vmatprep.subr.mxu0 %v6546
        %8102 = vmatpush2.msra.mxu0 %v6545
        %8103 = vmatprep.subr.mxu0 %v6544
        %8104 = vmatpush2.msra.mxu0 %v6543
        %8105 = vmatprep.subr.mxu0 %v6542
        %8106 = vmatpush2.msra.mxu0 %v6541
        %8107 = vmatprep.subr.mxu0 %v6540
        %8108 = vmatpush2.msra.mxu0 %v6539
        %8109 = vmatprep.subr.mxu0 %v6538
        %8110 = vmatpush2.msra.mxu0 %v6537
        %8111 = vmatprep.mubr.f32.mxu0 %v6130
        %8112 = vmatmul.mubr.f32.gmra.mxu0 %v6127
        %v8113 = vpop.f32.mrf.mxu0
        %v8114 = vadd.f32 %v7857, %v8113
        %v8115 = vpop.f32.mrf.mxu0
        %v8116 = vadd.f32 %v7859, %v8115
        %8117 = vmatprep.mubr.f32.mxu0 %v6134
        %8118 = vmatmul.mubr.f32.gmra.mxu0 %v6132
        %v8119 = vpop.f32.mrf.mxu0
        %v8120 = vadd.f32 %v7863, %v8119
        %v8121 = vpop.f32.mrf.mxu0
        %v8122 = vadd.f32 %v7865, %v8121
        %8123 = vmatprep.mubr.f32.mxu0 %v6140
        %8124 = vmatmul.mubr.f32.gmra.mxu0 %v6137
        %v8125 = vpop.f32.mrf.mxu0
        %v8126 = vadd.f32 %v7869, %v8125
        %v8127 = vpop.f32.mrf.mxu0
        %v8128 = vadd.f32 %v7871, %v8127
        %8129 = vmatprep.mubr.f32.mxu0 %v6144
        %8130 = vmatmul.mubr.f32.gmra.mxu0 %v6142
        %v8131 = vpop.f32.mrf.mxu0
        %v8132 = vadd.f32 %v7875, %v8131
        %v8133 = vpop.f32.mrf.mxu0
        %v8134 = vadd.f32 %v7877, %v8133
        %8135 = vmatprep.mubr.f32.mxu0 %v6150
        %8136 = vmatmul.mubr.f32.gmra.mxu0 %v6147
        %v8137 = vpop.f32.mrf.mxu0
        %v8138 = vadd.f32 %v7881, %v8137
        %v8139 = vpop.f32.mrf.mxu0
        %v8140 = vadd.f32 %v7883, %v8139
        %8141 = vmatprep.mubr.f32.mxu0 %v6154
        %8142 = vmatmul.mubr.f32.gmra.mxu0 %v6152
        %v8143 = vpop.f32.mrf.mxu0
        %v8144 = vadd.f32 %v7887, %v8143
        %v8145 = vpop.f32.mrf.mxu0
        %v8146 = vadd.f32 %v7889, %v8145
        %8147 = vmatprep.mubr.f32.mxu0 %v6160
        %8148 = vmatmul.mubr.f32.gmra.mxu0 %v6157
        %v8149 = vpop.f32.mrf.mxu0
        %v8150 = vadd.f32 %v7893, %v8149
        %v8151 = vpop.f32.mrf.mxu0
        %v8152 = vadd.f32 %v7895, %v8151
        %8153 = vmatprep.mubr.f32.mxu0 %v6164
        %8154 = vmatmul.mubr.f32.gmra.mxu0 %v6162
        %v8155 = vpop.f32.mrf.mxu0
        %v8156 = vadd.f32 %v7899, %v8155
        %v8157 = vpop.f32.mrf.mxu0
        %v8158 = vadd.f32 %v7901, %v8157
        %8159 = vmatprep.mubr.f32.mxu0 %v6170
        %8160 = vmatmul.mubr.f32.gmra.mxu0 %v6167
        %v8161 = vpop.f32.mrf.mxu0
        %v8162 = vadd.f32 %v7905, %v8161
        %v8163 = vpop.f32.mrf.mxu0
        %v8164 = vadd.f32 %v7907, %v8163
        %8165 = vmatprep.mubr.f32.mxu0 %v6174
        %8166 = vmatmul.mubr.f32.gmra.mxu0 %v6172
        %v8167 = vpop.f32.mrf.mxu0
        %v8168 = vadd.f32 %v7911, %v8167
        %v8169 = vpop.f32.mrf.mxu0
        %v8170 = vadd.f32 %v7913, %v8169
        %8171 = vmatprep.mubr.f32.mxu0 %v6180
        %8172 = vmatmul.mubr.f32.gmra.mxu0 %v6177
        %v8173 = vpop.f32.mrf.mxu0
        %v8174 = vadd.f32 %v7917, %v8173
        %v8175 = vpop.f32.mrf.mxu0
        %v8176 = vadd.f32 %v7919, %v8175
        %8177 = vmatprep.mubr.f32.mxu0 %v6184
        %8178 = vmatmul.mubr.f32.gmra.mxu0 %v6182
        %v8179 = vpop.f32.mrf.mxu0
        %v8180 = vadd.f32 %v7923, %v8179
        %v8181 = vpop.f32.mrf.mxu0
        %v8182 = vadd.f32 %v7925, %v8181
        %8183 = vmatprep.mubr.f32.mxu0 %v6190
        %8184 = vmatmul.mubr.f32.gmra.mxu0 %v6187
        %v8185 = vpop.f32.mrf.mxu0
        %v8186 = vadd.f32 %v7929, %v8185
        %v8187 = vpop.f32.mrf.mxu0
        %v8188 = vadd.f32 %v7931, %v8187
        %8189 = vmatprep.mubr.f32.mxu0 %v6194
        %8190 = vmatmul.mubr.f32.gmra.mxu0 %v6192
        %v8191 = vpop.f32.mrf.mxu0
        %v8192 = vadd.f32 %v7935, %v8191
        %v8193 = vpop.f32.mrf.mxu0
        %v8194 = vadd.f32 %v7937, %v8193
        %8195 = vmatprep.mubr.f32.mxu0 %v6200
        %8196 = vmatmul.mubr.f32.gmra.mxu0 %v6197
        %v8197 = vpop.f32.mrf.mxu0
        %v8198 = vadd.f32 %v7941, %v8197
        %v8199 = vpop.f32.mrf.mxu0
        %v8200 = vadd.f32 %v7943, %v8199
        %8201 = vmatprep.mubr.f32.mxu0 %v6204
        %8202 = vmatmul.mubr.f32.gmra.mxu0 %v6202
        %v8203 = vpop.f32.mrf.mxu0
        %v8204 = vadd.f32 %v7947, %v8203
        %v8205 = vpop.f32.mrf.mxu0
        %v8206 = vadd.f32 %v7949, %v8205
        %8207 = vmatprep.mubr.f32.mxu0 %v6210
        %8208 = vmatmul.mubr.f32.gmra.mxu0 %v6207
        %v8209 = vpop.f32.mrf.mxu0
        %v8210 = vadd.f32 %v7953, %v8209
        %v8211 = vpop.f32.mrf.mxu0
        %v8212 = vadd.f32 %v7955, %v8211
        %8213 = vmatprep.mubr.f32.mxu0 %v6214
        %8214 = vmatmul.mubr.f32.gmra.mxu0 %v6212
        %v8215 = vpop.f32.mrf.mxu0
        %v8216 = vadd.f32 %v7959, %v8215
        %v8217 = vpop.f32.mrf.mxu0
        %v8218 = vadd.f32 %v7961, %v8217
        %8219 = vmatprep.mubr.f32.mxu0 %v6220
        %8220 = vmatmul.mubr.f32.gmra.mxu0 %v6217
        %v8221 = vpop.f32.mrf.mxu0
        %v8222 = vadd.f32 %v7965, %v8221
        %v8223 = vpop.f32.mrf.mxu0
        %v8224 = vadd.f32 %v7967, %v8223
        %8225 = vmatprep.mubr.f32.mxu0 %v6224
        %8226 = vmatmul.mubr.f32.gmra.mxu0 %v6222
        %v8227 = vpop.f32.mrf.mxu0
        %v8228 = vadd.f32 %v7971, %v8227
        %v8229 = vpop.f32.mrf.mxu0
        %v8230 = vadd.f32 %v7973, %v8229
        %8231 = vmatprep.mubr.f32.mxu0 %v6230
        %8232 = vmatmul.mubr.f32.gmra.mxu0 %v6227
        %v8233 = vpop.f32.mrf.mxu0
        %v8234 = vadd.f32 %v7977, %v8233
        %v8235 = vpop.f32.mrf.mxu0
        %v8236 = vadd.f32 %v7979, %v8235
        %8237 = vmatprep.mubr.f32.mxu0 %v6234
        %8238 = vmatmul.mubr.f32.gmra.mxu0 %v6232
        %v8239 = vpop.f32.mrf.mxu0
        %v8240 = vadd.f32 %v7983, %v8239
        %v8241 = vpop.f32.mrf.mxu0
        %v8242 = vadd.f32 %v7985, %v8241
        %8243 = vmatprep.mubr.f32.mxu0 %v6240
        %8244 = vmatmul.mubr.f32.gmra.mxu0 %v6237
        %v8245 = vpop.f32.mrf.mxu0
        %v8246 = vadd.f32 %v7989, %v8245
        %v8247 = vpop.f32.mrf.mxu0
        %v8248 = vadd.f32 %v7991, %v8247
        %8249 = vmatprep.mubr.f32.mxu0 %v6244
        %8250 = vmatmul.mubr.f32.gmra.mxu0 %v6242
        %v8251 = vpop.f32.mrf.mxu0
        %v8252 = vadd.f32 %v7995, %v8251
        %v8253 = vpop.f32.mrf.mxu0
        %v8254 = vadd.f32 %v7997, %v8253
        %8255 = vmatprep.mubr.f32.mxu0 %v6250
        %8256 = vmatmul.mubr.f32.gmra.mxu0 %v6247
        %v8257 = vpop.f32.mrf.mxu0
        %v8258 = vadd.f32 %v8001, %v8257
        %v8259 = vpop.f32.mrf.mxu0
        %v8260 = vadd.f32 %v8003, %v8259
        %8261 = vmatprep.mubr.f32.mxu0 %v6254
        %8262 = vmatmul.mubr.f32.gmra.mxu0 %v6252
        %v8263 = vpop.f32.mrf.mxu0
        %v8264 = vadd.f32 %v8007, %v8263
        %v8265 = vpop.f32.mrf.mxu0
        %v8266 = vadd.f32 %v8009, %v8265
        %8267 = vmatprep.mubr.f32.mxu0 %v6260
        %8268 = vmatmul.mubr.f32.gmra.mxu0 %v6257
        %v8269 = vpop.f32.mrf.mxu0
        %v8270 = vadd.f32 %v8013, %v8269
        %v8271 = vpop.f32.mrf.mxu0
        %v8272 = vadd.f32 %v8015, %v8271
        %8273 = vmatprep.mubr.f32.mxu0 %v6264
        %8274 = vmatmul.mubr.f32.gmra.mxu0 %v6262
        %v8275 = vpop.f32.mrf.mxu0
        %v8276 = vadd.f32 %v8019, %v8275
        %v8277 = vpop.f32.mrf.mxu0
        %v8278 = vadd.f32 %v8021, %v8277
        %8279 = vmatprep.mubr.f32.mxu0 %v6270
        %8280 = vmatmul.mubr.f32.gmra.mxu0 %v6267
        %v8281 = vpop.f32.mrf.mxu0
        %v8282 = vadd.f32 %v8025, %v8281
        %v8283 = vpop.f32.mrf.mxu0
        %v8284 = vadd.f32 %v8027, %v8283
        %8285 = vmatprep.mubr.f32.mxu0 %v6274
        %8286 = vmatmul.mubr.f32.gmra.mxu0 %v6272
        %v8287 = vpop.f32.mrf.mxu0
        %v8288 = vadd.f32 %v8031, %v8287
        %v8289 = vpop.f32.mrf.mxu0
        %v8290 = vadd.f32 %v8033, %v8289
        %8291 = vmatprep.mubr.f32.mxu0 %v6280
        %8292 = vmatmul.mubr.f32.gmra.mxu0 %v6277
        %v8293 = vpop.f32.mrf.mxu0
        %v8294 = vadd.f32 %v8037, %v8293
        %v8295 = vpop.f32.mrf.mxu0
        %v8296 = vadd.f32 %v8039, %v8295
        %8297 = vmatprep.mubr.f32.mxu0 %v6284
        %8298 = vmatmul.mubr.f32.gmra.mxu0 %v6282
        %v8299 = vpop.f32.mrf.mxu0
        %v8300 = vadd.f32 %v8043, %v8299
        %v8301 = vpop.f32.mrf.mxu0
        %v8302 = vadd.f32 %v8045, %v8301
        %8303 = vdwg.mxu0
        %s8304 = scalar_lea.vmem [#allocation15], 3072
        %v8305 = vld [vmem:[%s8304] sm:$0xff]
        %v8306 = vld [vmem:[%s8304 + $0x8] sm:$0xff]
        %v8307 = vld [vmem:[%s8304 + $0x10] sm:$0xff]
        %v8308 = vld [vmem:[%s8304 + $0x18] sm:$0xff]
        %v8309 = vld [vmem:[%s8304 + $0x20] sm:$0xff]
        %v8310 = vld [vmem:[%s8304 + $0x28] sm:$0xff]
        %v8311 = vld [vmem:[%s8304 + $0x30] sm:$0xff]
        %v8312 = vld [vmem:[%s8304 + $0x38] sm:$0xff]
        %v8313 = vld [vmem:[%s8304 + $0x40] sm:$0xff]
        %v8314 = vld [vmem:[%s8304 + $0x48] sm:$0xff]
        %v8315 = vld [vmem:[%s8304 + $0x50] sm:$0xff]
        %v8316 = vld [vmem:[%s8304 + $0x58] sm:$0xff]
        %v8317 = vld [vmem:[%s8304 + $0x60] sm:$0xff]
        %v8318 = vld [vmem:[%s8304 + $0x68] sm:$0xff]
        %v8319 = vld [vmem:[%s8304 + $0x70] sm:$0xff]
        %v8320 = vld [vmem:[%s8304 + $0x78] sm:$0xff]
        %v8321 = vld [vmem:[%s8304 + $0x80] sm:$0xff]
        %v8322 = vld [vmem:[%s8304 + $0x88] sm:$0xff]
        %v8323 = vld [vmem:[%s8304 + $0x90] sm:$0xff]
        %v8324 = vld [vmem:[%s8304 + $0x98] sm:$0xff]
        %v8325 = vld [vmem:[%s8304 + $0xa0] sm:$0xff]
        %v8326 = vld [vmem:[%s8304 + $0xa8] sm:$0xff]
        %v8327 = vld [vmem:[%s8304 + $0xb0] sm:$0xff]
        %v8328 = vld [vmem:[%s8304 + $0xb8] sm:$0xff]
        %v8329 = vld [vmem:[%s8304 + $0xc0] sm:$0xff]
        %v8330 = vld [vmem:[%s8304 + $0xc8] sm:$0xff]
        %v8331 = vld [vmem:[%s8304 + $0xd0] sm:$0xff]
        %v8332 = vld [vmem:[%s8304 + $0xd8] sm:$0xff]
        %v8333 = vld [vmem:[%s8304 + $0xe0] sm:$0xff]
        %v8334 = vld [vmem:[%s8304 + $0xe8] sm:$0xff]
        %v8335 = vld [vmem:[%s8304 + $0xf0] sm:$0xff]
        %v8336 = vld [vmem:[%s8304 + $0xf8] sm:$0xff]
        %v8337 = vld [vmem:[%s8304 + $0x100] sm:$0xff]
        %v8338 = vld [vmem:[%s8304 + $0x108] sm:$0xff]
        %v8339 = vld [vmem:[%s8304 + $0x110] sm:$0xff]
        %v8340 = vld [vmem:[%s8304 + $0x118] sm:$0xff]
        %v8341 = vld [vmem:[%s8304 + $0x120] sm:$0xff]
        %v8342 = vld [vmem:[%s8304 + $0x128] sm:$0xff]
        %v8343 = vld [vmem:[%s8304 + $0x130] sm:$0xff]
        %v8344 = vld [vmem:[%s8304 + $0x138] sm:$0xff]
        %v8345 = vld [vmem:[%s8304 + $0x140] sm:$0xff]
        %v8346 = vld [vmem:[%s8304 + $0x148] sm:$0xff]
        %v8347 = vld [vmem:[%s8304 + $0x150] sm:$0xff]
        %v8348 = vld [vmem:[%s8304 + $0x158] sm:$0xff]
        %v8349 = vld [vmem:[%s8304 + $0x160] sm:$0xff]
        %v8350 = vld [vmem:[%s8304 + $0x168] sm:$0xff]
        %v8351 = vld [vmem:[%s8304 + $0x170] sm:$0xff]
        %v8352 = vld [vmem:[%s8304 + $0x178] sm:$0xff]
        %v8353 = vld [vmem:[%s8304 + $0x180] sm:$0xff]
        %v8354 = vld [vmem:[%s8304 + $0x188] sm:$0xff]
        %v8355 = vld [vmem:[%s8304 + $0x190] sm:$0xff]
        %v8356 = vld [vmem:[%s8304 + $0x198] sm:$0xff]
        %v8357 = vld [vmem:[%s8304 + $0x1a0] sm:$0xff]
        %v8358 = vld [vmem:[%s8304 + $0x1a8] sm:$0xff]
        %v8359 = vld [vmem:[%s8304 + $0x1b0] sm:$0xff]
        %v8360 = vld [vmem:[%s8304 + $0x1b8] sm:$0xff]
        %v8361 = vld [vmem:[%s8304 + $0x1c0] sm:$0xff]
        %v8362 = vld [vmem:[%s8304 + $0x1c8] sm:$0xff]
        %v8363 = vld [vmem:[%s8304 + $0x1d0] sm:$0xff]
        %v8364 = vld [vmem:[%s8304 + $0x1d8] sm:$0xff]
        %v8365 = vld [vmem:[%s8304 + $0x1e0] sm:$0xff]
        %v8366 = vld [vmem:[%s8304 + $0x1e8] sm:$0xff]
        %v8367 = vld [vmem:[%s8304 + $0x1f0] sm:$0xff]
        %v8368 = vld [vmem:[%s8304 + $0x1f8] sm:$0xff]
        %v8369 = vld [vmem:[%s8304 + $0x200] sm:$0xff]
        %v8370 = vld [vmem:[%s8304 + $0x208] sm:$0xff]
        %v8371 = vld [vmem:[%s8304 + $0x210] sm:$0xff]
        %v8372 = vld [vmem:[%s8304 + $0x218] sm:$0xff]
        %v8373 = vld [vmem:[%s8304 + $0x220] sm:$0xff]
        %v8374 = vld [vmem:[%s8304 + $0x228] sm:$0xff]
        %v8375 = vld [vmem:[%s8304 + $0x230] sm:$0xff]
        %v8376 = vld [vmem:[%s8304 + $0x238] sm:$0xff]
        %v8377 = vld [vmem:[%s8304 + $0x240] sm:$0xff]
        %v8378 = vld [vmem:[%s8304 + $0x248] sm:$0xff]
        %v8379 = vld [vmem:[%s8304 + $0x250] sm:$0xff]
        %v8380 = vld [vmem:[%s8304 + $0x258] sm:$0xff]
        %v8381 = vld [vmem:[%s8304 + $0x260] sm:$0xff]
        %v8382 = vld [vmem:[%s8304 + $0x268] sm:$0xff]
        %v8383 = vld [vmem:[%s8304 + $0x270] sm:$0xff]
        %v8384 = vld [vmem:[%s8304 + $0x278] sm:$0xff]
        %v8385 = vld [vmem:[%s8304 + $0x280] sm:$0xff]
        %v8386 = vld [vmem:[%s8304 + $0x288] sm:$0xff]
        %v8387 = vld [vmem:[%s8304 + $0x290] sm:$0xff]
        %v8388 = vld [vmem:[%s8304 + $0x298] sm:$0xff]
        %v8389 = vld [vmem:[%s8304 + $0x2a0] sm:$0xff]
        %v8390 = vld [vmem:[%s8304 + $0x2a8] sm:$0xff]
        %v8391 = vld [vmem:[%s8304 + $0x2b0] sm:$0xff]
        %v8392 = vld [vmem:[%s8304 + $0x2b8] sm:$0xff]
        %v8393 = vld [vmem:[%s8304 + $0x2c0] sm:$0xff]
        %v8394 = vld [vmem:[%s8304 + $0x2c8] sm:$0xff]
        %v8395 = vld [vmem:[%s8304 + $0x2d0] sm:$0xff]
        %v8396 = vld [vmem:[%s8304 + $0x2d8] sm:$0xff]
        %v8397 = vld [vmem:[%s8304 + $0x2e0] sm:$0xff]
        %v8398 = vld [vmem:[%s8304 + $0x2e8] sm:$0xff]
        %v8399 = vld [vmem:[%s8304 + $0x2f0] sm:$0xff]
        %v8400 = vld [vmem:[%s8304 + $0x2f8] sm:$0xff]
        %v8401 = vld [vmem:[%s8304 + $0x300] sm:$0xff]
        %v8402 = vld [vmem:[%s8304 + $0x308] sm:$0xff]
        %v8403 = vld [vmem:[%s8304 + $0x310] sm:$0xff]
        %v8404 = vld [vmem:[%s8304 + $0x318] sm:$0xff]
        %v8405 = vld [vmem:[%s8304 + $0x320] sm:$0xff]
        %v8406 = vld [vmem:[%s8304 + $0x328] sm:$0xff]
        %v8407 = vld [vmem:[%s8304 + $0x330] sm:$0xff]
        %v8408 = vld [vmem:[%s8304 + $0x338] sm:$0xff]
        %v8409 = vld [vmem:[%s8304 + $0x340] sm:$0xff]
        %v8410 = vld [vmem:[%s8304 + $0x348] sm:$0xff]
        %v8411 = vld [vmem:[%s8304 + $0x350] sm:$0xff]
        %v8412 = vld [vmem:[%s8304 + $0x358] sm:$0xff]
        %v8413 = vld [vmem:[%s8304 + $0x360] sm:$0xff]
        %v8414 = vld [vmem:[%s8304 + $0x368] sm:$0xff]
        %v8415 = vld [vmem:[%s8304 + $0x370] sm:$0xff]
        %v8416 = vld [vmem:[%s8304 + $0x378] sm:$0xff]
        %v8417 = vld [vmem:[%s8304 + $0x380] sm:$0xff]
        %v8418 = vld [vmem:[%s8304 + $0x388] sm:$0xff]
        %v8419 = vld [vmem:[%s8304 + $0x390] sm:$0xff]
        %v8420 = vld [vmem:[%s8304 + $0x398] sm:$0xff]
        %v8421 = vld [vmem:[%s8304 + $0x3a0] sm:$0xff]
        %v8422 = vld [vmem:[%s8304 + $0x3a8] sm:$0xff]
        %v8423 = vld [vmem:[%s8304 + $0x3b0] sm:$0xff]
        %v8424 = vld [vmem:[%s8304 + $0x3b8] sm:$0xff]
        %v8425 = vld [vmem:[%s8304 + $0x3c0] sm:$0xff]
        %v8426 = vld [vmem:[%s8304 + $0x3c8] sm:$0xff]
        %v8427 = vld [vmem:[%s8304 + $0x3d0] sm:$0xff]
        %v8428 = vld [vmem:[%s8304 + $0x3d8] sm:$0xff]
        %v8429 = vld [vmem:[%s8304 + $0x3e0] sm:$0xff]
        %v8430 = vld [vmem:[%s8304 + $0x3e8] sm:$0xff]
        %v8431 = vld [vmem:[%s8304 + $0x3f0] sm:$0xff]
        %v8432 = vld [vmem:[%s8304 + $0x3f8] sm:$0xff]
        %v8433 = vld [vmem:[%s8304 + $0x400] sm:$0xff]
        %v8434 = vld [vmem:[%s8304 + $0x408] sm:$0xff]
        %v8435 = vld [vmem:[%s8304 + $0x410] sm:$0xff]
        %v8436 = vld [vmem:[%s8304 + $0x418] sm:$0xff]
        %v8437 = vld [vmem:[%s8304 + $0x420] sm:$0xff]
        %v8438 = vld [vmem:[%s8304 + $0x428] sm:$0xff]
        %v8439 = vld [vmem:[%s8304 + $0x430] sm:$0xff]
        %v8440 = vld [vmem:[%s8304 + $0x438] sm:$0xff]
        %v8441 = vld [vmem:[%s8304 + $0x440] sm:$0xff]
        %v8442 = vld [vmem:[%s8304 + $0x448] sm:$0xff]
        %v8443 = vld [vmem:[%s8304 + $0x450] sm:$0xff]
        %v8444 = vld [vmem:[%s8304 + $0x458] sm:$0xff]
        %v8445 = vld [vmem:[%s8304 + $0x460] sm:$0xff]
        %v8446 = vld [vmem:[%s8304 + $0x468] sm:$0xff]
        %v8447 = vld [vmem:[%s8304 + $0x470] sm:$0xff]
        %v8448 = vld [vmem:[%s8304 + $0x478] sm:$0xff]
        %v8449 = vld [vmem:[%s8304 + $0x480] sm:$0xff]
        %v8450 = vld [vmem:[%s8304 + $0x488] sm:$0xff]
        %v8451 = vld [vmem:[%s8304 + $0x490] sm:$0xff]
        %v8452 = vld [vmem:[%s8304 + $0x498] sm:$0xff]
        %v8453 = vld [vmem:[%s8304 + $0x4a0] sm:$0xff]
        %v8454 = vld [vmem:[%s8304 + $0x4a8] sm:$0xff]
        %v8455 = vld [vmem:[%s8304 + $0x4b0] sm:$0xff]
        %v8456 = vld [vmem:[%s8304 + $0x4b8] sm:$0xff]
        %v8457 = vld [vmem:[%s8304 + $0x4c0] sm:$0xff]
        %v8458 = vld [vmem:[%s8304 + $0x4c8] sm:$0xff]
        %v8459 = vld [vmem:[%s8304 + $0x4d0] sm:$0xff]
        %v8460 = vld [vmem:[%s8304 + $0x4d8] sm:$0xff]
        %v8461 = vld [vmem:[%s8304 + $0x4e0] sm:$0xff]
        %v8462 = vld [vmem:[%s8304 + $0x4e8] sm:$0xff]
        %v8463 = vld [vmem:[%s8304 + $0x4f0] sm:$0xff]
        %v8464 = vld [vmem:[%s8304 + $0x4f8] sm:$0xff]
        %v8465 = vld [vmem:[%s8304 + $0x500] sm:$0xff]
        %v8466 = vld [vmem:[%s8304 + $0x508] sm:$0xff]
        %v8467 = vld [vmem:[%s8304 + $0x510] sm:$0xff]
        %v8468 = vld [vmem:[%s8304 + $0x518] sm:$0xff]
        %v8469 = vld [vmem:[%s8304 + $0x520] sm:$0xff]
        %v8470 = vld [vmem:[%s8304 + $0x528] sm:$0xff]
        %v8471 = vld [vmem:[%s8304 + $0x530] sm:$0xff]
        %v8472 = vld [vmem:[%s8304 + $0x538] sm:$0xff]
        %v8473 = vld [vmem:[%s8304 + $0x540] sm:$0xff]
        %v8474 = vld [vmem:[%s8304 + $0x548] sm:$0xff]
        %v8475 = vld [vmem:[%s8304 + $0x550] sm:$0xff]
        %v8476 = vld [vmem:[%s8304 + $0x558] sm:$0xff]
        %v8477 = vld [vmem:[%s8304 + $0x560] sm:$0xff]
        %v8478 = vld [vmem:[%s8304 + $0x568] sm:$0xff]
        %v8479 = vld [vmem:[%s8304 + $0x570] sm:$0xff]
        %v8480 = vld [vmem:[%s8304 + $0x578] sm:$0xff]
        %v8481 = vld [vmem:[%s8304 + $0x580] sm:$0xff]
        %v8482 = vld [vmem:[%s8304 + $0x588] sm:$0xff]
        %v8483 = vld [vmem:[%s8304 + $0x590] sm:$0xff]
        %v8484 = vld [vmem:[%s8304 + $0x598] sm:$0xff]
        %v8485 = vld [vmem:[%s8304 + $0x5a0] sm:$0xff]
        %v8486 = vld [vmem:[%s8304 + $0x5a8] sm:$0xff]
        %v8487 = vld [vmem:[%s8304 + $0x5b0] sm:$0xff]
        %v8488 = vld [vmem:[%s8304 + $0x5b8] sm:$0xff]
        %v8489 = vld [vmem:[%s8304 + $0x5c0] sm:$0xff]
        %v8490 = vld [vmem:[%s8304 + $0x5c8] sm:$0xff]
        %v8491 = vld [vmem:[%s8304 + $0x5d0] sm:$0xff]
        %v8492 = vld [vmem:[%s8304 + $0x5d8] sm:$0xff]
        %v8493 = vld [vmem:[%s8304 + $0x5e0] sm:$0xff]
        %v8494 = vld [vmem:[%s8304 + $0x5e8] sm:$0xff]
        %v8495 = vld [vmem:[%s8304 + $0x5f0] sm:$0xff]
        %v8496 = vld [vmem:[%s8304 + $0x5f8] sm:$0xff]
        %8497 = vmatprep.subr.mxu0 %v8336
        %8498 = vmatpush1.msra.mxu0 %v8335
        %8499 = vmatprep.subr.mxu0 %v8334
        %8500 = vmatpush1.msra.mxu0 %v8333
        %8501 = vmatprep.subr.mxu0 %v8332
        %8502 = vmatpush1.msra.mxu0 %v8331
        %8503 = vmatprep.subr.mxu0 %v8330
        %8504 = vmatpush1.msra.mxu0 %v8329
        %8505 = vmatprep.subr.mxu0 %v8328
        %8506 = vmatpush1.msra.mxu0 %v8327
        %8507 = vmatprep.subr.mxu0 %v8326
        %8508 = vmatpush1.msra.mxu0 %v8325
        %8509 = vmatprep.subr.mxu0 %v8324
        %8510 = vmatpush1.msra.mxu0 %v8323
        %8511 = vmatprep.subr.mxu0 %v8322
        %8512 = vmatpush1.msra.mxu0 %v8321
        %8513 = vmatprep.subr.mxu0 %v8320
        %8514 = vmatpush1.msra.mxu0 %v8319
        %8515 = vmatprep.subr.mxu0 %v8318
        %8516 = vmatpush1.msra.mxu0 %v8317
        %8517 = vmatprep.subr.mxu0 %v8316
        %8518 = vmatpush1.msra.mxu0 %v8315
        %8519 = vmatprep.subr.mxu0 %v8314
        %8520 = vmatpush1.msra.mxu0 %v8313
        %8521 = vmatprep.subr.mxu0 %v8312
        %8522 = vmatpush1.msra.mxu0 %v8311
        %8523 = vmatprep.subr.mxu0 %v8310
        %8524 = vmatpush1.msra.mxu0 %v8309
        %8525 = vmatprep.subr.mxu0 %v8308
        %8526 = vmatpush1.msra.mxu0 %v8307
        %8527 = vmatprep.subr.mxu0 %v8306
        %8528 = vmatpush1.msra.mxu0 %v8305
        %8529 = vmatprep.subr.mxu0 %v8368
        %8530 = vmatpush2.msra.mxu0 %v8367
        %8531 = vmatprep.subr.mxu0 %v8366
        %8532 = vmatpush2.msra.mxu0 %v8365
        %8533 = vmatprep.subr.mxu0 %v8364
        %8534 = vmatpush2.msra.mxu0 %v8363
        %8535 = vmatprep.subr.mxu0 %v8362
        %8536 = vmatpush2.msra.mxu0 %v8361
        %8537 = vmatprep.subr.mxu0 %v8360
        %8538 = vmatpush2.msra.mxu0 %v8359
        %8539 = vmatprep.subr.mxu0 %v8358
        %8540 = vmatpush2.msra.mxu0 %v8357
        %8541 = vmatprep.subr.mxu0 %v8356
        %8542 = vmatpush2.msra.mxu0 %v8355
        %8543 = vmatprep.subr.mxu0 %v8354
        %8544 = vmatpush2.msra.mxu0 %v8353
        %8545 = vmatprep.subr.mxu0 %v8352
        %8546 = vmatpush2.msra.mxu0 %v8351
        %8547 = vmatprep.subr.mxu0 %v8350
        %8548 = vmatpush2.msra.mxu0 %v8349
        %8549 = vmatprep.subr.mxu0 %v8348
        %8550 = vmatpush2.msra.mxu0 %v8347
        %8551 = vmatprep.subr.mxu0 %v8346
        %8552 = vmatpush2.msra.mxu0 %v8345
        %8553 = vmatprep.subr.mxu0 %v8344
        %8554 = vmatpush2.msra.mxu0 %v8343
        %8555 = vmatprep.subr.mxu0 %v8342
        %8556 = vmatpush2.msra.mxu0 %v8341
        %8557 = vmatprep.subr.mxu0 %v8340
        %8558 = vmatpush2.msra.mxu0 %v8339
        %8559 = vmatprep.subr.mxu0 %v8338
        %8560 = vmatpush2.msra.mxu0 %v8337
        %8561 = vmatprep.mubr.f32.mxu0 %v5484
        %8562 = vmatmul.mubr.f32.gmra.mxu0 %v5483
        %v8563 = vpop.f32.mrf.mxu0
        %v8564 = vadd.f32 0.0, %v8563
        %v8565 = vpop.f32.mrf.mxu0
        %v8566 = vadd.f32 0.0, %v8565
        %8567 = vmatprep.mubr.f32.mxu0 %v5486
        %8568 = vmatmul.mubr.f32.gmra.mxu0 %v5485
        %v8569 = vpop.f32.mrf.mxu0
        %v8570 = vadd.f32 0.0, %v8569
        %v8571 = vpop.f32.mrf.mxu0
        %v8572 = vadd.f32 0.0, %v8571
        %8573 = vmatprep.mubr.f32.mxu0 %v5488
        %8574 = vmatmul.mubr.f32.gmra.mxu0 %v5487
        %v8575 = vpop.f32.mrf.mxu0
        %v8576 = vadd.f32 0.0, %v8575
        %v8577 = vpop.f32.mrf.mxu0
        %v8578 = vadd.f32 0.0, %v8577
        %8579 = vmatprep.mubr.f32.mxu0 %v5490
        %8580 = vmatmul.mubr.f32.gmra.mxu0 %v5489
        %v8581 = vpop.f32.mrf.mxu0
        %v8582 = vadd.f32 0.0, %v8581
        %v8583 = vpop.f32.mrf.mxu0
        %v8584 = vadd.f32 0.0, %v8583
        %8585 = vmatprep.mubr.f32.mxu0 %v5492
        %8586 = vmatmul.mubr.f32.gmra.mxu0 %v5491
        %v8587 = vpop.f32.mrf.mxu0
        %v8588 = vadd.f32 0.0, %v8587
        %v8589 = vpop.f32.mrf.mxu0
        %v8590 = vadd.f32 0.0, %v8589
        %8591 = vmatprep.mubr.f32.mxu0 %v5494
        %8592 = vmatmul.mubr.f32.gmra.mxu0 %v5493
        %v8593 = vpop.f32.mrf.mxu0
        %v8594 = vadd.f32 0.0, %v8593
        %v8595 = vpop.f32.mrf.mxu0
        %v8596 = vadd.f32 0.0, %v8595
        %8597 = vmatprep.mubr.f32.mxu0 %v5496
        %8598 = vmatmul.mubr.f32.gmra.mxu0 %v5495
        %v8599 = vpop.f32.mrf.mxu0
        %v8600 = vadd.f32 0.0, %v8599
        %v8601 = vpop.f32.mrf.mxu0
        %v8602 = vadd.f32 0.0, %v8601
        %8603 = vmatprep.mubr.f32.mxu0 %v5498
        %8604 = vmatmul.mubr.f32.gmra.mxu0 %v5497
        %v8605 = vpop.f32.mrf.mxu0
        %v8606 = vadd.f32 0.0, %v8605
        %v8607 = vpop.f32.mrf.mxu0
        %v8608 = vadd.f32 0.0, %v8607
        %8609 = vmatprep.mubr.f32.mxu0 %v5500
        %8610 = vmatmul.mubr.f32.gmra.mxu0 %v5499
        %v8611 = vpop.f32.mrf.mxu0
        %v8612 = vadd.f32 0.0, %v8611
        %v8613 = vpop.f32.mrf.mxu0
        %v8614 = vadd.f32 0.0, %v8613
        %8615 = vmatprep.mubr.f32.mxu0 %v5502
        %8616 = vmatmul.mubr.f32.gmra.mxu0 %v5501
        %v8617 = vpop.f32.mrf.mxu0
        %v8618 = vadd.f32 0.0, %v8617
        %v8619 = vpop.f32.mrf.mxu0
        %v8620 = vadd.f32 0.0, %v8619
        %8621 = vmatprep.mubr.f32.mxu0 %v5504
        %8622 = vmatmul.mubr.f32.gmra.mxu0 %v5503
        %v8623 = vpop.f32.mrf.mxu0
        %v8624 = vadd.f32 0.0, %v8623
        %v8625 = vpop.f32.mrf.mxu0
        %v8626 = vadd.f32 0.0, %v8625
        %8627 = vmatprep.mubr.f32.mxu0 %v5506
        %8628 = vmatmul.mubr.f32.gmra.mxu0 %v5505
        %v8629 = vpop.f32.mrf.mxu0
        %v8630 = vadd.f32 0.0, %v8629
        %v8631 = vpop.f32.mrf.mxu0
        %v8632 = vadd.f32 0.0, %v8631
        %8633 = vmatprep.mubr.f32.mxu0 %v5508
        %8634 = vmatmul.mubr.f32.gmra.mxu0 %v5507
        %v8635 = vpop.f32.mrf.mxu0
        %v8636 = vadd.f32 0.0, %v8635
        %v8637 = vpop.f32.mrf.mxu0
        %v8638 = vadd.f32 0.0, %v8637
        %8639 = vmatprep.mubr.f32.mxu0 %v5510
        %8640 = vmatmul.mubr.f32.gmra.mxu0 %v5509
        %v8641 = vpop.f32.mrf.mxu0
        %v8642 = vadd.f32 0.0, %v8641
        %v8643 = vpop.f32.mrf.mxu0
        %v8644 = vadd.f32 0.0, %v8643
        %8645 = vmatprep.mubr.f32.mxu0 %v5512
        %8646 = vmatmul.mubr.f32.gmra.mxu0 %v5511
        %v8647 = vpop.f32.mrf.mxu0
        %v8648 = vadd.f32 0.0, %v8647
        %v8649 = vpop.f32.mrf.mxu0
        %v8650 = vadd.f32 0.0, %v8649
        %8651 = vmatprep.mubr.f32.mxu0 %v5514
        %8652 = vmatmul.mubr.f32.gmra.mxu0 %v5513
        %v8653 = vpop.f32.mrf.mxu0
        %v8654 = vadd.f32 0.0, %v8653
        %v8655 = vpop.f32.mrf.mxu0
        %v8656 = vadd.f32 0.0, %v8655
        %8657 = vmatprep.mubr.f32.mxu0 %v5516
        %8658 = vmatmul.mubr.f32.gmra.mxu0 %v5515
        %v8659 = vpop.f32.mrf.mxu0
        %v8660 = vadd.f32 0.0, %v8659
        %v8661 = vpop.f32.mrf.mxu0
        %v8662 = vadd.f32 0.0, %v8661
        %8663 = vmatprep.mubr.f32.mxu0 %v5518
        %8664 = vmatmul.mubr.f32.gmra.mxu0 %v5517
        %v8665 = vpop.f32.mrf.mxu0
        %v8666 = vadd.f32 0.0, %v8665
        %v8667 = vpop.f32.mrf.mxu0
        %v8668 = vadd.f32 0.0, %v8667
        %8669 = vmatprep.mubr.f32.mxu0 %v5520
        %8670 = vmatmul.mubr.f32.gmra.mxu0 %v5519
        %v8671 = vpop.f32.mrf.mxu0
        %v8672 = vadd.f32 0.0, %v8671
        %v8673 = vpop.f32.mrf.mxu0
        %v8674 = vadd.f32 0.0, %v8673
        %8675 = vmatprep.mubr.f32.mxu0 %v5522
        %8676 = vmatmul.mubr.f32.gmra.mxu0 %v5521
        %v8677 = vpop.f32.mrf.mxu0
        %v8678 = vadd.f32 0.0, %v8677
        %v8679 = vpop.f32.mrf.mxu0
        %v8680 = vadd.f32 0.0, %v8679
        %8681 = vmatprep.mubr.f32.mxu0 %v5524
        %8682 = vmatmul.mubr.f32.gmra.mxu0 %v5523
        %v8683 = vpop.f32.mrf.mxu0
        %v8684 = vadd.f32 0.0, %v8683
        %v8685 = vpop.f32.mrf.mxu0
        %v8686 = vadd.f32 0.0, %v8685
        %8687 = vmatprep.mubr.f32.mxu0 %v5526
        %8688 = vmatmul.mubr.f32.gmra.mxu0 %v5525
        %v8689 = vpop.f32.mrf.mxu0
        %v8690 = vadd.f32 0.0, %v8689
        %v8691 = vpop.f32.mrf.mxu0
        %v8692 = vadd.f32 0.0, %v8691
        %8693 = vmatprep.mubr.f32.mxu0 %v5528
        %8694 = vmatmul.mubr.f32.gmra.mxu0 %v5527
        %v8695 = vpop.f32.mrf.mxu0
        %v8696 = vadd.f32 0.0, %v8695
        %v8697 = vpop.f32.mrf.mxu0
        %v8698 = vadd.f32 0.0, %v8697
        %8699 = vmatprep.mubr.f32.mxu0 %v5530
        %8700 = vmatmul.mubr.f32.gmra.mxu0 %v5529
        %v8701 = vpop.f32.mrf.mxu0
        %v8702 = vadd.f32 0.0, %v8701
        %v8703 = vpop.f32.mrf.mxu0
        %v8704 = vadd.f32 0.0, %v8703
        %8705 = vmatprep.mubr.f32.mxu0 %v5532
        %8706 = vmatmul.mubr.f32.gmra.mxu0 %v5531
        %v8707 = vpop.f32.mrf.mxu0
        %v8708 = vadd.f32 0.0, %v8707
        %v8709 = vpop.f32.mrf.mxu0
        %v8710 = vadd.f32 0.0, %v8709
        %8711 = vmatprep.mubr.f32.mxu0 %v5534
        %8712 = vmatmul.mubr.f32.gmra.mxu0 %v5533
        %v8713 = vpop.f32.mrf.mxu0
        %v8714 = vadd.f32 0.0, %v8713
        %v8715 = vpop.f32.mrf.mxu0
        %v8716 = vadd.f32 0.0, %v8715
        %8717 = vmatprep.mubr.f32.mxu0 %v5536
        %8718 = vmatmul.mubr.f32.gmra.mxu0 %v5535
        %v8719 = vpop.f32.mrf.mxu0
        %v8720 = vadd.f32 0.0, %v8719
        %v8721 = vpop.f32.mrf.mxu0
        %v8722 = vadd.f32 0.0, %v8721
        %8723 = vmatprep.mubr.f32.mxu0 %v5538
        %8724 = vmatmul.mubr.f32.gmra.mxu0 %v5537
        %v8725 = vpop.f32.mrf.mxu0
        %v8726 = vadd.f32 0.0, %v8725
        %v8727 = vpop.f32.mrf.mxu0
        %v8728 = vadd.f32 0.0, %v8727
        %8729 = vmatprep.mubr.f32.mxu0 %v5540
        %8730 = vmatmul.mubr.f32.gmra.mxu0 %v5539
        %v8731 = vpop.f32.mrf.mxu0
        %v8732 = vadd.f32 0.0, %v8731
        %v8733 = vpop.f32.mrf.mxu0
        %v8734 = vadd.f32 0.0, %v8733
        %8735 = vmatprep.mubr.f32.mxu0 %v5542
        %8736 = vmatmul.mubr.f32.gmra.mxu0 %v5541
        %v8737 = vpop.f32.mrf.mxu0
        %v8738 = vadd.f32 0.0, %v8737
        %v8739 = vpop.f32.mrf.mxu0
        %v8740 = vadd.f32 0.0, %v8739
        %8741 = vmatprep.mubr.f32.mxu0 %v5544
        %8742 = vmatmul.mubr.f32.gmra.mxu0 %v5543
        %v8743 = vpop.f32.mrf.mxu0
        %v8744 = vadd.f32 0.0, %v8743
        %v8745 = vpop.f32.mrf.mxu0
        %v8746 = vadd.f32 0.0, %v8745
        %8747 = vmatprep.mubr.f32.mxu0 %v5546
        %8748 = vmatmul.mubr.f32.gmra.mxu0 %v5545
        %v8749 = vpop.f32.mrf.mxu0
        %v8750 = vadd.f32 0.0, %v8749
        %v8751 = vpop.f32.mrf.mxu0
        %v8752 = vadd.f32 0.0, %v8751
        %8753 = vdwg.mxu0
        %8754 = vmatprep.subr.mxu0 %v8400
        %8755 = vmatpush1.msra.mxu0 %v8399
        %8756 = vmatprep.subr.mxu0 %v8398
        %8757 = vmatpush1.msra.mxu0 %v8397
        %8758 = vmatprep.subr.mxu0 %v8396
        %8759 = vmatpush1.msra.mxu0 %v8395
        %8760 = vmatprep.subr.mxu0 %v8394
        %8761 = vmatpush1.msra.mxu0 %v8393
        %8762 = vmatprep.subr.mxu0 %v8392
        %8763 = vmatpush1.msra.mxu0 %v8391
        %8764 = vmatprep.subr.mxu0 %v8390
        %8765 = vmatpush1.msra.mxu0 %v8389
        %8766 = vmatprep.subr.mxu0 %v8388
        %8767 = vmatpush1.msra.mxu0 %v8387
        %8768 = vmatprep.subr.mxu0 %v8386
        %8769 = vmatpush1.msra.mxu0 %v8385
        %8770 = vmatprep.subr.mxu0 %v8384
        %8771 = vmatpush1.msra.mxu0 %v8383
        %8772 = vmatprep.subr.mxu0 %v8382
        %8773 = vmatpush1.msra.mxu0 %v8381
        %8774 = vmatprep.subr.mxu0 %v8380
        %8775 = vmatpush1.msra.mxu0 %v8379
        %8776 = vmatprep.subr.mxu0 %v8378
        %8777 = vmatpush1.msra.mxu0 %v8377
        %8778 = vmatprep.subr.mxu0 %v8376
        %8779 = vmatpush1.msra.mxu0 %v8375
        %8780 = vmatprep.subr.mxu0 %v8374
        %8781 = vmatpush1.msra.mxu0 %v8373
        %8782 = vmatprep.subr.mxu0 %v8372
        %8783 = vmatpush1.msra.mxu0 %v8371
        %8784 = vmatprep.subr.mxu0 %v8370
        %8785 = vmatpush1.msra.mxu0 %v8369
        %8786 = vmatprep.subr.mxu0 %v8432
        %8787 = vmatpush2.msra.mxu0 %v8431
        %8788 = vmatprep.subr.mxu0 %v8430
        %8789 = vmatpush2.msra.mxu0 %v8429
        %8790 = vmatprep.subr.mxu0 %v8428
        %8791 = vmatpush2.msra.mxu0 %v8427
        %8792 = vmatprep.subr.mxu0 %v8426
        %8793 = vmatpush2.msra.mxu0 %v8425
        %8794 = vmatprep.subr.mxu0 %v8424
        %8795 = vmatpush2.msra.mxu0 %v8423
        %8796 = vmatprep.subr.mxu0 %v8422
        %8797 = vmatpush2.msra.mxu0 %v8421
        %8798 = vmatprep.subr.mxu0 %v8420
        %8799 = vmatpush2.msra.mxu0 %v8419
        %8800 = vmatprep.subr.mxu0 %v8418
        %8801 = vmatpush2.msra.mxu0 %v8417
        %8802 = vmatprep.subr.mxu0 %v8416
        %8803 = vmatpush2.msra.mxu0 %v8415
        %8804 = vmatprep.subr.mxu0 %v8414
        %8805 = vmatpush2.msra.mxu0 %v8413
        %8806 = vmatprep.subr.mxu0 %v8412
        %8807 = vmatpush2.msra.mxu0 %v8411
        %8808 = vmatprep.subr.mxu0 %v8410
        %8809 = vmatpush2.msra.mxu0 %v8409
        %8810 = vmatprep.subr.mxu0 %v8408
        %8811 = vmatpush2.msra.mxu0 %v8407
        %8812 = vmatprep.subr.mxu0 %v8406
        %8813 = vmatpush2.msra.mxu0 %v8405
        %8814 = vmatprep.subr.mxu0 %v8404
        %8815 = vmatpush2.msra.mxu0 %v8403
        %8816 = vmatprep.subr.mxu0 %v8402
        %8817 = vmatpush2.msra.mxu0 %v8401
        %8818 = vmatprep.mubr.f32.mxu0 %v5825
        %8819 = vmatmul.mubr.f32.gmra.mxu0 %v5822
        %v8820 = vpop.f32.mrf.mxu0
        %v8821 = vadd.f32 %v8564, %v8820
        %v8822 = vpop.f32.mrf.mxu0
        %v8823 = vadd.f32 %v8566, %v8822
        %8824 = vmatprep.mubr.f32.mxu0 %v5829
        %8825 = vmatmul.mubr.f32.gmra.mxu0 %v5827
        %v8826 = vpop.f32.mrf.mxu0
        %v8827 = vadd.f32 %v8570, %v8826
        %v8828 = vpop.f32.mrf.mxu0
        %v8829 = vadd.f32 %v8572, %v8828
        %8830 = vmatprep.mubr.f32.mxu0 %v5835
        %8831 = vmatmul.mubr.f32.gmra.mxu0 %v5832
        %v8832 = vpop.f32.mrf.mxu0
        %v8833 = vadd.f32 %v8576, %v8832
        %v8834 = vpop.f32.mrf.mxu0
        %v8835 = vadd.f32 %v8578, %v8834
        %8836 = vmatprep.mubr.f32.mxu0 %v5839
        %8837 = vmatmul.mubr.f32.gmra.mxu0 %v5837
        %v8838 = vpop.f32.mrf.mxu0
        %v8839 = vadd.f32 %v8582, %v8838
        %v8840 = vpop.f32.mrf.mxu0
        %v8841 = vadd.f32 %v8584, %v8840
        %8842 = vmatprep.mubr.f32.mxu0 %v5845
        %8843 = vmatmul.mubr.f32.gmra.mxu0 %v5842
        %v8844 = vpop.f32.mrf.mxu0
        %v8845 = vadd.f32 %v8588, %v8844
        %v8846 = vpop.f32.mrf.mxu0
        %v8847 = vadd.f32 %v8590, %v8846
        %8848 = vmatprep.mubr.f32.mxu0 %v5849
        %8849 = vmatmul.mubr.f32.gmra.mxu0 %v5847
        %v8850 = vpop.f32.mrf.mxu0
        %v8851 = vadd.f32 %v8594, %v8850
        %v8852 = vpop.f32.mrf.mxu0
        %v8853 = vadd.f32 %v8596, %v8852
        %8854 = vmatprep.mubr.f32.mxu0 %v5855
        %8855 = vmatmul.mubr.f32.gmra.mxu0 %v5852
        %v8856 = vpop.f32.mrf.mxu0
        %v8857 = vadd.f32 %v8600, %v8856
        %v8858 = vpop.f32.mrf.mxu0
        %v8859 = vadd.f32 %v8602, %v8858
        %8860 = vmatprep.mubr.f32.mxu0 %v5859
        %8861 = vmatmul.mubr.f32.gmra.mxu0 %v5857
        %v8862 = vpop.f32.mrf.mxu0
        %v8863 = vadd.f32 %v8606, %v8862
        %v8864 = vpop.f32.mrf.mxu0
        %v8865 = vadd.f32 %v8608, %v8864
        %8866 = vmatprep.mubr.f32.mxu0 %v5865
        %8867 = vmatmul.mubr.f32.gmra.mxu0 %v5862
        %v8868 = vpop.f32.mrf.mxu0
        %v8869 = vadd.f32 %v8612, %v8868
        %v8870 = vpop.f32.mrf.mxu0
        %v8871 = vadd.f32 %v8614, %v8870
        %8872 = vmatprep.mubr.f32.mxu0 %v5869
        %8873 = vmatmul.mubr.f32.gmra.mxu0 %v5867
        %v8874 = vpop.f32.mrf.mxu0
        %v8875 = vadd.f32 %v8618, %v8874
        %v8876 = vpop.f32.mrf.mxu0
        %v8877 = vadd.f32 %v8620, %v8876
        %8878 = vmatprep.mubr.f32.mxu0 %v5875
        %8879 = vmatmul.mubr.f32.gmra.mxu0 %v5872
        %v8880 = vpop.f32.mrf.mxu0
        %v8881 = vadd.f32 %v8624, %v8880
        %v8882 = vpop.f32.mrf.mxu0
        %v8883 = vadd.f32 %v8626, %v8882
        %8884 = vmatprep.mubr.f32.mxu0 %v5879
        %8885 = vmatmul.mubr.f32.gmra.mxu0 %v5877
        %v8886 = vpop.f32.mrf.mxu0
        %v8887 = vadd.f32 %v8630, %v8886
        %v8888 = vpop.f32.mrf.mxu0
        %v8889 = vadd.f32 %v8632, %v8888
        %8890 = vmatprep.mubr.f32.mxu0 %v5885
        %8891 = vmatmul.mubr.f32.gmra.mxu0 %v5882
        %v8892 = vpop.f32.mrf.mxu0
        %v8893 = vadd.f32 %v8636, %v8892
        %v8894 = vpop.f32.mrf.mxu0
        %v8895 = vadd.f32 %v8638, %v8894
        %8896 = vmatprep.mubr.f32.mxu0 %v5889
        %8897 = vmatmul.mubr.f32.gmra.mxu0 %v5887
        %v8898 = vpop.f32.mrf.mxu0
        %v8899 = vadd.f32 %v8642, %v8898
        %v8900 = vpop.f32.mrf.mxu0
        %v8901 = vadd.f32 %v8644, %v8900
        %8902 = vmatprep.mubr.f32.mxu0 %v5895
        %8903 = vmatmul.mubr.f32.gmra.mxu0 %v5892
        %v8904 = vpop.f32.mrf.mxu0
        %v8905 = vadd.f32 %v8648, %v8904
        %v8906 = vpop.f32.mrf.mxu0
        %v8907 = vadd.f32 %v8650, %v8906
        %8908 = vmatprep.mubr.f32.mxu0 %v5899
        %8909 = vmatmul.mubr.f32.gmra.mxu0 %v5897
        %v8910 = vpop.f32.mrf.mxu0
        %v8911 = vadd.f32 %v8654, %v8910
        %v8912 = vpop.f32.mrf.mxu0
        %v8913 = vadd.f32 %v8656, %v8912
        %8914 = vmatprep.mubr.f32.mxu0 %v5905
        %8915 = vmatmul.mubr.f32.gmra.mxu0 %v5902
        %v8916 = vpop.f32.mrf.mxu0
        %v8917 = vadd.f32 %v8660, %v8916
        %v8918 = vpop.f32.mrf.mxu0
        %v8919 = vadd.f32 %v8662, %v8918
        %8920 = vmatprep.mubr.f32.mxu0 %v5909
        %8921 = vmatmul.mubr.f32.gmra.mxu0 %v5907
        %v8922 = vpop.f32.mrf.mxu0
        %v8923 = vadd.f32 %v8666, %v8922
        %v8924 = vpop.f32.mrf.mxu0
        %v8925 = vadd.f32 %v8668, %v8924
        %8926 = vmatprep.mubr.f32.mxu0 %v5915
        %8927 = vmatmul.mubr.f32.gmra.mxu0 %v5912
        %v8928 = vpop.f32.mrf.mxu0
        %v8929 = vadd.f32 %v8672, %v8928
        %v8930 = vpop.f32.mrf.mxu0
        %v8931 = vadd.f32 %v8674, %v8930
        %8932 = vmatprep.mubr.f32.mxu0 %v5919
        %8933 = vmatmul.mubr.f32.gmra.mxu0 %v5917
        %v8934 = vpop.f32.mrf.mxu0
        %v8935 = vadd.f32 %v8678, %v8934
        %v8936 = vpop.f32.mrf.mxu0
        %v8937 = vadd.f32 %v8680, %v8936
        %8938 = vmatprep.mubr.f32.mxu0 %v5925
        %8939 = vmatmul.mubr.f32.gmra.mxu0 %v5922
        %v8940 = vpop.f32.mrf.mxu0
        %v8941 = vadd.f32 %v8684, %v8940
        %v8942 = vpop.f32.mrf.mxu0
        %v8943 = vadd.f32 %v8686, %v8942
        %8944 = vmatprep.mubr.f32.mxu0 %v5929
        %8945 = vmatmul.mubr.f32.gmra.mxu0 %v5927
        %v8946 = vpop.f32.mrf.mxu0
        %v8947 = vadd.f32 %v8690, %v8946
        %v8948 = vpop.f32.mrf.mxu0
        %v8949 = vadd.f32 %v8692, %v8948
        %8950 = vmatprep.mubr.f32.mxu0 %v5935
        %8951 = vmatmul.mubr.f32.gmra.mxu0 %v5932
        %v8952 = vpop.f32.mrf.mxu0
        %v8953 = vadd.f32 %v8696, %v8952
        %v8954 = vpop.f32.mrf.mxu0
        %v8955 = vadd.f32 %v8698, %v8954
        %8956 = vmatprep.mubr.f32.mxu0 %v5939
        %8957 = vmatmul.mubr.f32.gmra.mxu0 %v5937
        %v8958 = vpop.f32.mrf.mxu0
        %v8959 = vadd.f32 %v8702, %v8958
        %v8960 = vpop.f32.mrf.mxu0
        %v8961 = vadd.f32 %v8704, %v8960
        %8962 = vmatprep.mubr.f32.mxu0 %v5945
        %8963 = vmatmul.mubr.f32.gmra.mxu0 %v5942
        %v8964 = vpop.f32.mrf.mxu0
        %v8965 = vadd.f32 %v8708, %v8964
        %v8966 = vpop.f32.mrf.mxu0
        %v8967 = vadd.f32 %v8710, %v8966
        %8968 = vmatprep.mubr.f32.mxu0 %v5949
        %8969 = vmatmul.mubr.f32.gmra.mxu0 %v5947
        %v8970 = vpop.f32.mrf.mxu0
        %v8971 = vadd.f32 %v8714, %v8970
        %v8972 = vpop.f32.mrf.mxu0
        %v8973 = vadd.f32 %v8716, %v8972
        %8974 = vmatprep.mubr.f32.mxu0 %v5955
        %8975 = vmatmul.mubr.f32.gmra.mxu0 %v5952
        %v8976 = vpop.f32.mrf.mxu0
        %v8977 = vadd.f32 %v8720, %v8976
        %v8978 = vpop.f32.mrf.mxu0
        %v8979 = vadd.f32 %v8722, %v8978
        %8980 = vmatprep.mubr.f32.mxu0 %v5959
        %8981 = vmatmul.mubr.f32.gmra.mxu0 %v5957
        %v8982 = vpop.f32.mrf.mxu0
        %v8983 = vadd.f32 %v8726, %v8982
        %v8984 = vpop.f32.mrf.mxu0
        %v8985 = vadd.f32 %v8728, %v8984
        %8986 = vmatprep.mubr.f32.mxu0 %v5965
        %8987 = vmatmul.mubr.f32.gmra.mxu0 %v5962
        %v8988 = vpop.f32.mrf.mxu0
        %v8989 = vadd.f32 %v8732, %v8988
        %v8990 = vpop.f32.mrf.mxu0
        %v8991 = vadd.f32 %v8734, %v8990
        %8992 = vmatprep.mubr.f32.mxu0 %v5969
        %8993 = vmatmul.mubr.f32.gmra.mxu0 %v5967
        %v8994 = vpop.f32.mrf.mxu0
        %v8995 = vadd.f32 %v8738, %v8994
        %v8996 = vpop.f32.mrf.mxu0
        %v8997 = vadd.f32 %v8740, %v8996
        %8998 = vmatprep.mubr.f32.mxu0 %v5975
        %8999 = vmatmul.mubr.f32.gmra.mxu0 %v5972
        %v9000 = vpop.f32.mrf.mxu0
        %v9001 = vadd.f32 %v8744, %v9000
        %v9002 = vpop.f32.mrf.mxu0
        %v9003 = vadd.f32 %v8746, %v9002
        %9004 = vmatprep.mubr.f32.mxu0 %v5979
        %9005 = vmatmul.mubr.f32.gmra.mxu0 %v5977
        %v9006 = vpop.f32.mrf.mxu0
        %v9007 = vadd.f32 %v8750, %v9006
        %v9008 = vpop.f32.mrf.mxu0
        %v9009 = vadd.f32 %v8752, %v9008
        %9010 = vdwg.mxu0
        %9011 = vmatprep.subr.mxu0 %v8464
        %9012 = vmatpush1.msra.mxu0 %v8463
        %9013 = vmatprep.subr.mxu0 %v8462
        %9014 = vmatpush1.msra.mxu0 %v8461
        %9015 = vmatprep.subr.mxu0 %v8460
        %9016 = vmatpush1.msra.mxu0 %v8459
        %9017 = vmatprep.subr.mxu0 %v8458
        %9018 = vmatpush1.msra.mxu0 %v8457
        %9019 = vmatprep.subr.mxu0 %v8456
        %9020 = vmatpush1.msra.mxu0 %v8455
        %9021 = vmatprep.subr.mxu0 %v8454
        %9022 = vmatpush1.msra.mxu0 %v8453
        %9023 = vmatprep.subr.mxu0 %v8452
        %9024 = vmatpush1.msra.mxu0 %v8451
        %9025 = vmatprep.subr.mxu0 %v8450
        %9026 = vmatpush1.msra.mxu0 %v8449
        %9027 = vmatprep.subr.mxu0 %v8448
        %9028 = vmatpush1.msra.mxu0 %v8447
        %9029 = vmatprep.subr.mxu0 %v8446
        %9030 = vmatpush1.msra.mxu0 %v8445
        %9031 = vmatprep.subr.mxu0 %v8444
        %9032 = vmatpush1.msra.mxu0 %v8443
        %9033 = vmatprep.subr.mxu0 %v8442
        %9034 = vmatpush1.msra.mxu0 %v8441
        %9035 = vmatprep.subr.mxu0 %v8440
        %9036 = vmatpush1.msra.mxu0 %v8439
        %9037 = vmatprep.subr.mxu0 %v8438
        %9038 = vmatpush1.msra.mxu0 %v8437
        %9039 = vmatprep.subr.mxu0 %v8436
        %9040 = vmatpush1.msra.mxu0 %v8435
        %9041 = vmatprep.subr.mxu0 %v8434
        %9042 = vmatpush1.msra.mxu0 %v8433
        %9043 = vmatprep.subr.mxu0 %v8496
        %9044 = vmatpush2.msra.mxu0 %v8495
        %9045 = vmatprep.subr.mxu0 %v8494
        %9046 = vmatpush2.msra.mxu0 %v8493
        %9047 = vmatprep.subr.mxu0 %v8492
        %9048 = vmatpush2.msra.mxu0 %v8491
        %9049 = vmatprep.subr.mxu0 %v8490
        %9050 = vmatpush2.msra.mxu0 %v8489
        %9051 = vmatprep.subr.mxu0 %v8488
        %9052 = vmatpush2.msra.mxu0 %v8487
        %9053 = vmatprep.subr.mxu0 %v8486
        %9054 = vmatpush2.msra.mxu0 %v8485
        %9055 = vmatprep.subr.mxu0 %v8484
        %9056 = vmatpush2.msra.mxu0 %v8483
        %9057 = vmatprep.subr.mxu0 %v8482
        %9058 = vmatpush2.msra.mxu0 %v8481
        %9059 = vmatprep.subr.mxu0 %v8480
        %9060 = vmatpush2.msra.mxu0 %v8479
        %9061 = vmatprep.subr.mxu0 %v8478
        %9062 = vmatpush2.msra.mxu0 %v8477
        %9063 = vmatprep.subr.mxu0 %v8476
        %9064 = vmatpush2.msra.mxu0 %v8475
        %9065 = vmatprep.subr.mxu0 %v8474
        %9066 = vmatpush2.msra.mxu0 %v8473
        %9067 = vmatprep.subr.mxu0 %v8472
        %9068 = vmatpush2.msra.mxu0 %v8471
        %9069 = vmatprep.subr.mxu0 %v8470
        %9070 = vmatpush2.msra.mxu0 %v8469
        %9071 = vmatprep.subr.mxu0 %v8468
        %9072 = vmatpush2.msra.mxu0 %v8467
        %9073 = vmatprep.subr.mxu0 %v8466
        %9074 = vmatpush2.msra.mxu0 %v8465
        %9075 = vmatprep.mubr.f32.mxu0 %v6150
        %9076 = vmatmul.mubr.f32.gmra.mxu0 %v6147
        %v9077 = vpop.f32.mrf.mxu0
        %v9078 = vadd.f32 %v8821, %v9077
        %v9079 = vpop.f32.mrf.mxu0
        %v9080 = vadd.f32 %v8823, %v9079
        %9081 = vmatprep.mubr.f32.mxu0 %v6154
        %9082 = vmatmul.mubr.f32.gmra.mxu0 %v6152
        %v9083 = vpop.f32.mrf.mxu0
        %v9084 = vadd.f32 %v8827, %v9083
        %v9085 = vpop.f32.mrf.mxu0
        %v9086 = vadd.f32 %v8829, %v9085
        %9087 = vmatprep.mubr.f32.mxu0 %v6160
        %9088 = vmatmul.mubr.f32.gmra.mxu0 %v6157
        %v9089 = vpop.f32.mrf.mxu0
        %v9090 = vadd.f32 %v8833, %v9089
        %v9091 = vpop.f32.mrf.mxu0
        %v9092 = vadd.f32 %v8835, %v9091
        %9093 = vmatprep.mubr.f32.mxu0 %v6164
        %9094 = vmatmul.mubr.f32.gmra.mxu0 %v6162
        %v9095 = vpop.f32.mrf.mxu0
        %v9096 = vadd.f32 %v8839, %v9095
        %v9097 = vpop.f32.mrf.mxu0
        %v9098 = vadd.f32 %v8841, %v9097
        %9099 = vmatprep.mubr.f32.mxu0 %v6170
        %9100 = vmatmul.mubr.f32.gmra.mxu0 %v6167
        %v9101 = vpop.f32.mrf.mxu0
        %v9102 = vadd.f32 %v8845, %v9101
        %v9103 = vpop.f32.mrf.mxu0
        %v9104 = vadd.f32 %v8847, %v9103
        %9105 = vmatprep.mubr.f32.mxu0 %v6174
        %9106 = vmatmul.mubr.f32.gmra.mxu0 %v6172
        %v9107 = vpop.f32.mrf.mxu0
        %v9108 = vadd.f32 %v8851, %v9107
        %v9109 = vpop.f32.mrf.mxu0
        %v9110 = vadd.f32 %v8853, %v9109
        %9111 = vmatprep.mubr.f32.mxu0 %v6180
        %9112 = vmatmul.mubr.f32.gmra.mxu0 %v6177
        %v9113 = vpop.f32.mrf.mxu0
        %v9114 = vadd.f32 %v8857, %v9113
        %v9115 = vpop.f32.mrf.mxu0
        %v9116 = vadd.f32 %v8859, %v9115
        %9117 = vmatprep.mubr.f32.mxu0 %v6184
        %9118 = vmatmul.mubr.f32.gmra.mxu0 %v6182
        %v9119 = vpop.f32.mrf.mxu0
        %v9120 = vadd.f32 %v8863, %v9119
        %v9121 = vpop.f32.mrf.mxu0
        %v9122 = vadd.f32 %v8865, %v9121
        %9123 = vmatprep.mubr.f32.mxu0 %v6190
        %9124 = vmatmul.mubr.f32.gmra.mxu0 %v6187
        %v9125 = vpop.f32.mrf.mxu0
        %v9126 = vadd.f32 %v8869, %v9125
        %v9127 = vpop.f32.mrf.mxu0
        %v9128 = vadd.f32 %v8871, %v9127
        %9129 = vmatprep.mubr.f32.mxu0 %v6194
        %9130 = vmatmul.mubr.f32.gmra.mxu0 %v6192
        %v9131 = vpop.f32.mrf.mxu0
        %v9132 = vadd.f32 %v8875, %v9131
        %v9133 = vpop.f32.mrf.mxu0
        %v9134 = vadd.f32 %v8877, %v9133
        %9135 = vmatprep.mubr.f32.mxu0 %v6200
        %9136 = vmatmul.mubr.f32.gmra.mxu0 %v6197
        %v9137 = vpop.f32.mrf.mxu0
        %v9138 = vadd.f32 %v8881, %v9137
        %v9139 = vpop.f32.mrf.mxu0
        %v9140 = vadd.f32 %v8883, %v9139
        %9141 = vmatprep.mubr.f32.mxu0 %v6204
        %9142 = vmatmul.mubr.f32.gmra.mxu0 %v6202
        %v9143 = vpop.f32.mrf.mxu0
        %v9144 = vadd.f32 %v8887, %v9143
        %v9145 = vpop.f32.mrf.mxu0
        %v9146 = vadd.f32 %v8889, %v9145
        %9147 = vmatprep.mubr.f32.mxu0 %v6210
        %9148 = vmatmul.mubr.f32.gmra.mxu0 %v6207
        %v9149 = vpop.f32.mrf.mxu0
        %v9150 = vadd.f32 %v8893, %v9149
        %v9151 = vpop.f32.mrf.mxu0
        %v9152 = vadd.f32 %v8895, %v9151
        %9153 = vmatprep.mubr.f32.mxu0 %v6214
        %9154 = vmatmul.mubr.f32.gmra.mxu0 %v6212
        %v9155 = vpop.f32.mrf.mxu0
        %v9156 = vadd.f32 %v8899, %v9155
        %v9157 = vpop.f32.mrf.mxu0
        %v9158 = vadd.f32 %v8901, %v9157
        %9159 = vmatprep.mubr.f32.mxu0 %v6220
        %9160 = vmatmul.mubr.f32.gmra.mxu0 %v6217
        %v9161 = vpop.f32.mrf.mxu0
        %v9162 = vadd.f32 %v8905, %v9161
        %v9163 = vpop.f32.mrf.mxu0
        %v9164 = vadd.f32 %v8907, %v9163
        %9165 = vmatprep.mubr.f32.mxu0 %v6224
        %9166 = vmatmul.mubr.f32.gmra.mxu0 %v6222
        %v9167 = vpop.f32.mrf.mxu0
        %v9168 = vadd.f32 %v8911, %v9167
        %v9169 = vpop.f32.mrf.mxu0
        %v9170 = vadd.f32 %v8913, %v9169
        %9171 = vmatprep.mubr.f32.mxu0 %v6230
        %9172 = vmatmul.mubr.f32.gmra.mxu0 %v6227
        %v9173 = vpop.f32.mrf.mxu0
        %v9174 = vadd.f32 %v8917, %v9173
        %v9175 = vpop.f32.mrf.mxu0
        %v9176 = vadd.f32 %v8919, %v9175
        %9177 = vmatprep.mubr.f32.mxu0 %v6234
        %9178 = vmatmul.mubr.f32.gmra.mxu0 %v6232
        %v9179 = vpop.f32.mrf.mxu0
        %v9180 = vadd.f32 %v8923, %v9179
        %v9181 = vpop.f32.mrf.mxu0
        %v9182 = vadd.f32 %v8925, %v9181
        %9183 = vmatprep.mubr.f32.mxu0 %v6240
        %9184 = vmatmul.mubr.f32.gmra.mxu0 %v6237
        %v9185 = vpop.f32.mrf.mxu0
        %v9186 = vadd.f32 %v8929, %v9185
        %v9187 = vpop.f32.mrf.mxu0
        %v9188 = vadd.f32 %v8931, %v9187
        %9189 = vmatprep.mubr.f32.mxu0 %v6244
        %9190 = vmatmul.mubr.f32.gmra.mxu0 %v6242
        %v9191 = vpop.f32.mrf.mxu0
        %v9192 = vadd.f32 %v8935, %v9191
        %v9193 = vpop.f32.mrf.mxu0
        %v9194 = vadd.f32 %v8937, %v9193
        %9195 = vmatprep.mubr.f32.mxu0 %v6250
        %9196 = vmatmul.mubr.f32.gmra.mxu0 %v6247
        %v9197 = vpop.f32.mrf.mxu0
        %v9198 = vadd.f32 %v8941, %v9197
        %v9199 = vpop.f32.mrf.mxu0
        %v9200 = vadd.f32 %v8943, %v9199
        %9201 = vmatprep.mubr.f32.mxu0 %v6254
        %9202 = vmatmul.mubr.f32.gmra.mxu0 %v6252
        %v9203 = vpop.f32.mrf.mxu0
        %v9204 = vadd.f32 %v8947, %v9203
        %v9205 = vpop.f32.mrf.mxu0
        %v9206 = vadd.f32 %v8949, %v9205
        %9207 = vmatprep.mubr.f32.mxu0 %v6260
        %9208 = vmatmul.mubr.f32.gmra.mxu0 %v6257
        %v9209 = vpop.f32.mrf.mxu0
        %v9210 = vadd.f32 %v8953, %v9209
        %v9211 = vpop.f32.mrf.mxu0
        %v9212 = vadd.f32 %v8955, %v9211
        %9213 = vmatprep.mubr.f32.mxu0 %v6264
        %9214 = vmatmul.mubr.f32.gmra.mxu0 %v6262
        %v9215 = vpop.f32.mrf.mxu0
        %v9216 = vadd.f32 %v8959, %v9215
        %v9217 = vpop.f32.mrf.mxu0
        %v9218 = vadd.f32 %v8961, %v9217
        %9219 = vmatprep.mubr.f32.mxu0 %v6270
        %9220 = vmatmul.mubr.f32.gmra.mxu0 %v6267
        %v9221 = vpop.f32.mrf.mxu0
        %v9222 = vadd.f32 %v8965, %v9221
        %v9223 = vpop.f32.mrf.mxu0
        %v9224 = vadd.f32 %v8967, %v9223
        %9225 = vmatprep.mubr.f32.mxu0 %v6274
        %9226 = vmatmul.mubr.f32.gmra.mxu0 %v6272
        %v9227 = vpop.f32.mrf.mxu0
        %v9228 = vadd.f32 %v8971, %v9227
        %v9229 = vpop.f32.mrf.mxu0
        %v9230 = vadd.f32 %v8973, %v9229
        %9231 = vmatprep.mubr.f32.mxu0 %v6280
        %9232 = vmatmul.mubr.f32.gmra.mxu0 %v6277
        %v9233 = vpop.f32.mrf.mxu0
        %v9234 = vadd.f32 %v8977, %v9233
        %v9235 = vpop.f32.mrf.mxu0
        %v9236 = vadd.f32 %v8979, %v9235
        %9237 = vmatprep.mubr.f32.mxu0 %v6284
        %9238 = vmatmul.mubr.f32.gmra.mxu0 %v6282
        %v9239 = vpop.f32.mrf.mxu0
        %v9240 = vadd.f32 %v8983, %v9239
        %v9241 = vpop.f32.mrf.mxu0
        %v9242 = vadd.f32 %v8985, %v9241
        %9243 = vmatprep.mubr.f32.mxu0 %v6290
        %9244 = vmatmul.mubr.f32.gmra.mxu0 %v6287
        %v9245 = vpop.f32.mrf.mxu0
        %v9246 = vadd.f32 %v8989, %v9245
        %v9247 = vpop.f32.mrf.mxu0
        %v9248 = vadd.f32 %v8991, %v9247
        %9249 = vmatprep.mubr.f32.mxu0 %v6294
        %9250 = vmatmul.mubr.f32.gmra.mxu0 %v6292
        %v9251 = vpop.f32.mrf.mxu0
        %v9252 = vadd.f32 %v8995, %v9251
        %v9253 = vpop.f32.mrf.mxu0
        %v9254 = vadd.f32 %v8997, %v9253
        %9255 = vmatprep.mubr.f32.mxu0 %v6300
        %9256 = vmatmul.mubr.f32.gmra.mxu0 %v6297
        %v9257 = vpop.f32.mrf.mxu0
        %v9258 = vadd.f32 %v9001, %v9257
        %v9259 = vpop.f32.mrf.mxu0
        %v9260 = vadd.f32 %v9003, %v9259
        %9261 = vmatprep.mubr.f32.mxu0 %v6304
        %9262 = vmatmul.mubr.f32.gmra.mxu0 %v6302
        %v9263 = vpop.f32.mrf.mxu0
        %v9264 = vadd.f32 %v9007, %v9263
        %v9265 = vpop.f32.mrf.mxu0
        %v9266 = vadd.f32 %v9009, %v9265
        %9267 = vdwg.mxu0
        %v9268 = vadd.f32 %v8114, %v9078
        %v9269 = vadd.f32 %v8116, %v9080
        %v9270 = vadd.f32 %v8120, %v9084
        %v9271 = vadd.f32 %v8122, %v9086
        %v9272 = vadd.f32 %v8126, %v9090
        %v9273 = vadd.f32 %v8128, %v9092
        %v9274 = vadd.f32 %v8132, %v9096
        %v9275 = vadd.f32 %v8134, %v9098
        %v9276 = vadd.f32 %v8138, %v9102
        %v9277 = vadd.f32 %v8140, %v9104
        %v9278 = vadd.f32 %v8144, %v9108
        %v9279 = vadd.f32 %v8146, %v9110
        %v9280 = vadd.f32 %v8150, %v9114
        %v9281 = vadd.f32 %v8152, %v9116
        %v9282 = vadd.f32 %v8156, %v9120
        %v9283 = vadd.f32 %v8158, %v9122
        %v9284 = vadd.f32 %v8162, %v9126
        %v9285 = vadd.f32 %v8164, %v9128
        %v9286 = vadd.f32 %v8168, %v9132
        %v9287 = vadd.f32 %v8170, %v9134
        %v9288 = vadd.f32 %v8174, %v9138
        %v9289 = vadd.f32 %v8176, %v9140
        %v9290 = vadd.f32 %v8180, %v9144
        %v9291 = vadd.f32 %v8182, %v9146
        %v9292 = vadd.f32 %v8186, %v9150
        %v9293 = vadd.f32 %v8188, %v9152
        %v9294 = vadd.f32 %v8192, %v9156
        %v9295 = vadd.f32 %v8194, %v9158
        %v9296 = vadd.f32 %v8198, %v9162
        %v9297 = vadd.f32 %v8200, %v9164
        %v9298 = vadd.f32 %v8204, %v9168
        %v9299 = vadd.f32 %v8206, %v9170
        %v9300 = vadd.f32 %v8210, %v9174
        %v9301 = vadd.f32 %v8212, %v9176
        %v9302 = vadd.f32 %v8216, %v9180
        %v9303 = vadd.f32 %v8218, %v9182
        %v9304 = vadd.f32 %v8222, %v9186
        %v9305 = vadd.f32 %v8224, %v9188
        %v9306 = vadd.f32 %v8228, %v9192
        %v9307 = vadd.f32 %v8230, %v9194
        %v9308 = vadd.f32 %v8234, %v9198
        %v9309 = vadd.f32 %v8236, %v9200
        %v9310 = vadd.f32 %v8240, %v9204
        %v9311 = vadd.f32 %v8242, %v9206
        %v9312 = vadd.f32 %v8246, %v9210
        %v9313 = vadd.f32 %v8248, %v9212
        %v9314 = vadd.f32 %v8252, %v9216
        %v9315 = vadd.f32 %v8254, %v9218
        %v9316 = vadd.f32 %v8258, %v9222
        %v9317 = vadd.f32 %v8260, %v9224
        %v9318 = vadd.f32 %v8264, %v9228
        %v9319 = vadd.f32 %v8266, %v9230
        %v9320 = vadd.f32 %v8270, %v9234
        %v9321 = vadd.f32 %v8272, %v9236
        %v9322 = vadd.f32 %v8276, %v9240
        %v9323 = vadd.f32 %v8278, %v9242
        %v9324 = vadd.f32 %v8282, %v9246
        %v9325 = vadd.f32 %v8284, %v9248
        %v9326 = vadd.f32 %v8288, %v9252
        %v9327 = vadd.f32 %v8290, %v9254
        %v9328 = vadd.f32 %v8294, %v9258
        %v9329 = vadd.f32 %v8296, %v9260
        %v9330 = vadd.f32 %v8300, %v9264
        %v9331 = vadd.f32 %v8302, %v9266
        %v9332 = vld [vmem:[#allocation16] sm:$0x3]
        %v9334 = vlaneseq
        %v9335 = vshrl.u32 %v9334, 7
        %v9336 = vsub.s32 0, %v9335
        %v9337 = vrot.slane %v9332, %v9336
        %v9338 = vlaneseq
        %v9339 = vshrl.u32 %v9338, 7
        %v9340 = vsub.s32 1, %v9339
        %v9341 = vrot.slane %v9332, %v9340
        %v9344 = vadd.f32 %v9268, %v9337
        %v9345 = vadd.f32 %v9269, %v9341
        %v9346 = vadd.f32 %v9270, %v9337
        %v9347 = vadd.f32 %v9271, %v9341
        %v9348 = vadd.f32 %v9272, %v9337
        %v9349 = vadd.f32 %v9273, %v9341
        %v9350 = vadd.f32 %v9274, %v9337
        %v9351 = vadd.f32 %v9275, %v9341
        %v9352 = vadd.f32 %v9276, %v9337
        %v9353 = vadd.f32 %v9277, %v9341
        %v9354 = vadd.f32 %v9278, %v9337
        %v9355 = vadd.f32 %v9279, %v9341
        %v9356 = vadd.f32 %v9280, %v9337
        %v9357 = vadd.f32 %v9281, %v9341
        %v9358 = vadd.f32 %v9282, %v9337
        %v9359 = vadd.f32 %v9283, %v9341
        %v9360 = vadd.f32 %v9284, %v9337
        %v9361 = vadd.f32 %v9285, %v9341
        %v9362 = vadd.f32 %v9286, %v9337
        %v9363 = vadd.f32 %v9287, %v9341
        %v9364 = vadd.f32 %v9288, %v9337
        %v9365 = vadd.f32 %v9289, %v9341
        %v9366 = vadd.f32 %v9290, %v9337
        %v9367 = vadd.f32 %v9291, %v9341
        %v9368 = vadd.f32 %v9292, %v9337
        %v9369 = vadd.f32 %v9293, %v9341
        %v9370 = vadd.f32 %v9294, %v9337
        %v9371 = vadd.f32 %v9295, %v9341
        %v9372 = vadd.f32 %v9296, %v9337
        %v9373 = vadd.f32 %v9297, %v9341
        %v9374 = vadd.f32 %v9298, %v9337
        %v9375 = vadd.f32 %v9299, %v9341
        %v9376 = vadd.f32 %v9300, %v9337
        %v9377 = vadd.f32 %v9301, %v9341
        %v9378 = vadd.f32 %v9302, %v9337
        %v9379 = vadd.f32 %v9303, %v9341
        %v9380 = vadd.f32 %v9304, %v9337
        %v9381 = vadd.f32 %v9305, %v9341
        %v9382 = vadd.f32 %v9306, %v9337
        %v9383 = vadd.f32 %v9307, %v9341
        %v9384 = vadd.f32 %v9308, %v9337
        %v9385 = vadd.f32 %v9309, %v9341
        %v9386 = vadd.f32 %v9310, %v9337
        %v9387 = vadd.f32 %v9311, %v9341
        %v9388 = vadd.f32 %v9312, %v9337
        %v9389 = vadd.f32 %v9313, %v9341
        %v9390 = vadd.f32 %v9314, %v9337
        %v9391 = vadd.f32 %v9315, %v9341
        %v9392 = vadd.f32 %v9316, %v9337
        %v9393 = vadd.f32 %v9317, %v9341
        %v9394 = vadd.f32 %v9318, %v9337
        %v9395 = vadd.f32 %v9319, %v9341
        %v9396 = vadd.f32 %v9320, %v9337
        %v9397 = vadd.f32 %v9321, %v9341
        %v9398 = vadd.f32 %v9322, %v9337
        %v9399 = vadd.f32 %v9323, %v9341
        %v9400 = vadd.f32 %v9324, %v9337
        %v9401 = vadd.f32 %v9325, %v9341
        %v9402 = vadd.f32 %v9326, %v9337
        %v9403 = vadd.f32 %v9327, %v9341
        %v9404 = vadd.f32 %v9328, %v9337
        %v9405 = vadd.f32 %v9329, %v9341
        %v9406 = vadd.f32 %v9330, %v9337
        %v9407 = vadd.f32 %v9331, %v9341
        %v9408 = vmax.f32 %v9344, 0.0
        %v9409 = vmax.f32 %v9345, 0.0
        %v9410 = vmax.f32 %v9346, 0.0
        %v9411 = vmax.f32 %v9347, 0.0
        %v9412 = vmax.f32 %v9348, 0.0
        %v9413 = vmax.f32 %v9349, 0.0
        %v9414 = vmax.f32 %v9350, 0.0
        %v9415 = vmax.f32 %v9351, 0.0
        %v9416 = vmax.f32 %v9352, 0.0
        %v9417 = vmax.f32 %v9353, 0.0
        %v9418 = vmax.f32 %v9354, 0.0
        %v9419 = vmax.f32 %v9355, 0.0
        %v9420 = vmax.f32 %v9356, 0.0
        %v9421 = vmax.f32 %v9357, 0.0
        %v9422 = vmax.f32 %v9358, 0.0
        %v9423 = vmax.f32 %v9359, 0.0
        %v9424 = vmax.f32 %v9360, 0.0
        %v9425 = vmax.f32 %v9361, 0.0
        %v9426 = vmax.f32 %v9362, 0.0
        %v9427 = vmax.f32 %v9363, 0.0
        %v9428 = vmax.f32 %v9364, 0.0
        %v9429 = vmax.f32 %v9365, 0.0
        %v9430 = vmax.f32 %v9366, 0.0
        %v9431 = vmax.f32 %v9367, 0.0
        %v9432 = vmax.f32 %v9368, 0.0
        %v9433 = vmax.f32 %v9369, 0.0
        %v9434 = vmax.f32 %v9370, 0.0
        %v9435 = vmax.f32 %v9371, 0.0
        %v9436 = vmax.f32 %v9372, 0.0
        %v9437 = vmax.f32 %v9373, 0.0
        %v9438 = vmax.f32 %v9374, 0.0
        %v9439 = vmax.f32 %v9375, 0.0
        %v9440 = vmax.f32 %v9376, 0.0
        %v9441 = vmax.f32 %v9377, 0.0
        %v9442 = vmax.f32 %v9378, 0.0
        %v9443 = vmax.f32 %v9379, 0.0
        %v9444 = vmax.f32 %v9380, 0.0
        %v9445 = vmax.f32 %v9381, 0.0
        %v9446 = vmax.f32 %v9382, 0.0
        %v9447 = vmax.f32 %v9383, 0.0
        %v9448 = vmax.f32 %v9384, 0.0
        %v9449 = vmax.f32 %v9385, 0.0
        %v9450 = vmax.f32 %v9386, 0.0
        %v9451 = vmax.f32 %v9387, 0.0
        %v9452 = vmax.f32 %v9388, 0.0
        %v9453 = vmax.f32 %v9389, 0.0
        %v9454 = vmax.f32 %v9390, 0.0
        %v9455 = vmax.f32 %v9391, 0.0
        %v9456 = vmax.f32 %v9392, 0.0
        %v9457 = vmax.f32 %v9393, 0.0
        %v9458 = vmax.f32 %v9394, 0.0
        %v9459 = vmax.f32 %v9395, 0.0
        %v9460 = vmax.f32 %v9396, 0.0
        %v9461 = vmax.f32 %v9397, 0.0
        %v9462 = vmax.f32 %v9398, 0.0
        %v9463 = vmax.f32 %v9399, 0.0
        %v9464 = vmax.f32 %v9400, 0.0
        %v9465 = vmax.f32 %v9401, 0.0
        %v9466 = vmax.f32 %v9402, 0.0
        %v9467 = vmax.f32 %v9403, 0.0
        %v9468 = vmax.f32 %v9404, 0.0
        %v9469 = vmax.f32 %v9405, 0.0
        %v9470 = vmax.f32 %v9406, 0.0
        %v9471 = vmax.f32 %v9407, 0.0
        %v9472 = vld [vmem:[#allocation18] sm:$0xff]
        %v9473 = vld [vmem:[#allocation18 + $0x8] sm:$0xff]
        %v9474 = vld [vmem:[#allocation18 + $0x10] sm:$0xff]
        %v9475 = vld [vmem:[#allocation18 + $0x18] sm:$0xff]
        %v9476 = vld [vmem:[#allocation18 + $0x20] sm:$0xff]
        %v9477 = vld [vmem:[#allocation18 + $0x28] sm:$0xff]
        %v9478 = vld [vmem:[#allocation18 + $0x30] sm:$0xff]
        %v9479 = vld [vmem:[#allocation18 + $0x38] sm:$0xff]
        %v9480 = vld [vmem:[#allocation18 + $0x40] sm:$0xff]
        %v9481 = vld [vmem:[#allocation18 + $0x48] sm:$0xff]
        %v9482 = vld [vmem:[#allocation18 + $0x50] sm:$0xff]
        %v9483 = vld [vmem:[#allocation18 + $0x58] sm:$0xff]
        %v9484 = vld [vmem:[#allocation18 + $0x60] sm:$0xff]
        %v9485 = vld [vmem:[#allocation18 + $0x68] sm:$0xff]
        %v9486 = vld [vmem:[#allocation18 + $0x70] sm:$0xff]
        %v9487 = vld [vmem:[#allocation18 + $0x78] sm:$0xff]
        %v9488 = vld [vmem:[#allocation18 + $0x80] sm:$0xff]
        %v9489 = vld [vmem:[#allocation18 + $0x88] sm:$0xff]
        %v9490 = vld [vmem:[#allocation18 + $0x90] sm:$0xff]
        %v9491 = vld [vmem:[#allocation18 + $0x98] sm:$0xff]
        %v9492 = vld [vmem:[#allocation18 + $0xa0] sm:$0xff]
        %v9493 = vld [vmem:[#allocation18 + $0xa8] sm:$0xff]
        %v9494 = vld [vmem:[#allocation18 + $0xb0] sm:$0xff]
        %v9495 = vld [vmem:[#allocation18 + $0xb8] sm:$0xff]
        %v9496 = vld [vmem:[#allocation18 + $0xc0] sm:$0xff]
        %v9497 = vld [vmem:[#allocation18 + $0xc8] sm:$0xff]
        %v9498 = vld [vmem:[#allocation18 + $0xd0] sm:$0xff]
        %v9499 = vld [vmem:[#allocation18 + $0xd8] sm:$0xff]
        %v9500 = vld [vmem:[#allocation18 + $0xe0] sm:$0xff]
        %v9501 = vld [vmem:[#allocation18 + $0xe8] sm:$0xff]
        %v9502 = vld [vmem:[#allocation18 + $0xf0] sm:$0xff]
        %v9503 = vld [vmem:[#allocation18 + $0xf8] sm:$0xff]
        %v9504 = vld [vmem:[#allocation19] sm:$0x1]
        %v9506 = vlaneseq
        %v9507 = vshrl.u32 %v9506, 7
        %v9508 = vsub.s32 0, %v9507
        %v9509 = vrot.slane %v9504, %v9508
        %9511 = vmatprep.subr.mxu0 0.0
        %9512 = vmatpush1.msra.mxu0 %v9487
        %9513 = vmatprep.subr.mxu0 0.0
        %9514 = vmatpush1.msra.mxu0 %v9486
        %9515 = vmatprep.subr.mxu0 0.0
        %9516 = vmatpush1.msra.mxu0 %v9485
        %9517 = vmatprep.subr.mxu0 0.0
        %9518 = vmatpush1.msra.mxu0 %v9484
        %9519 = vmatprep.subr.mxu0 0.0
        %9520 = vmatpush1.msra.mxu0 %v9483
        %9521 = vmatprep.subr.mxu0 0.0
        %9522 = vmatpush1.msra.mxu0 %v9482
        %9523 = vmatprep.subr.mxu0 0.0
        %9524 = vmatpush1.msra.mxu0 %v9481
        %9525 = vmatprep.subr.mxu0 0.0
        %9526 = vmatpush1.msra.mxu0 %v9480
        %9527 = vmatprep.subr.mxu0 0.0
        %9528 = vmatpush1.msra.mxu0 %v9479
        %9529 = vmatprep.subr.mxu0 0.0
        %9530 = vmatpush1.msra.mxu0 %v9478
        %9531 = vmatprep.subr.mxu0 0.0
        %9532 = vmatpush1.msra.mxu0 %v9477
        %9533 = vmatprep.subr.mxu0 0.0
        %9534 = vmatpush1.msra.mxu0 %v9476
        %9535 = vmatprep.subr.mxu0 0.0
        %9536 = vmatpush1.msra.mxu0 %v9475
        %9537 = vmatprep.subr.mxu0 0.0
        %9538 = vmatpush1.msra.mxu0 %v9474
        %9539 = vmatprep.subr.mxu0 0.0
        %9540 = vmatpush1.msra.mxu0 %v9473
        %9541 = vmatprep.subr.mxu0 0.0
        %9542 = vmatpush1.msra.mxu0 %v9472
        %9543 = vmatprep.subr.mxu0 0.0
        %9544 = vmatpush2.msra.mxu0 %v9503
        %9545 = vmatprep.subr.mxu0 0.0
        %9546 = vmatpush2.msra.mxu0 %v9502
        %9547 = vmatprep.subr.mxu0 0.0
        %9548 = vmatpush2.msra.mxu0 %v9501
        %9549 = vmatprep.subr.mxu0 0.0
        %9550 = vmatpush2.msra.mxu0 %v9500
        %9551 = vmatprep.subr.mxu0 0.0
        %9552 = vmatpush2.msra.mxu0 %v9499
        %9553 = vmatprep.subr.mxu0 0.0
        %9554 = vmatpush2.msra.mxu0 %v9498
        %9555 = vmatprep.subr.mxu0 0.0
        %9556 = vmatpush2.msra.mxu0 %v9497
        %9557 = vmatprep.subr.mxu0 0.0
        %9558 = vmatpush2.msra.mxu0 %v9496
        %9559 = vmatprep.subr.mxu0 0.0
        %9560 = vmatpush2.msra.mxu0 %v9495
        %9561 = vmatprep.subr.mxu0 0.0
        %9562 = vmatpush2.msra.mxu0 %v9494
        %9563 = vmatprep.subr.mxu0 0.0
        %9564 = vmatpush2.msra.mxu0 %v9493
        %9565 = vmatprep.subr.mxu0 0.0
        %9566 = vmatpush2.msra.mxu0 %v9492
        %9567 = vmatprep.subr.mxu0 0.0
        %9568 = vmatpush2.msra.mxu0 %v9491
        %9569 = vmatprep.subr.mxu0 0.0
        %9570 = vmatpush2.msra.mxu0 %v9490
        %9571 = vmatprep.subr.mxu0 0.0
        %9572 = vmatpush2.msra.mxu0 %v9489
        %9573 = vmatprep.subr.mxu0 0.0
        %9574 = vmatpush2.msra.mxu0 %v9488
        %9575 = vmatprep.mubr.f32.mxu0 %v9409
        %9576 = vmatmul.mubr.f32.gmra.mxu0 %v9408
        %v9577 = vpop.f32.mrf.mxu0
        %v9578 = vadd.f32 %v9509, %v9577
        %v9579 = vpop.f32.mrf.mxu0
        %9580 = vmatprep.mubr.f32.mxu0 %v9411
        %9581 = vmatmul.mubr.f32.gmra.mxu0 %v9410
        %v9582 = vpop.f32.mrf.mxu0
        %v9583 = vadd.f32 %v9509, %v9582
        %v9584 = vpop.f32.mrf.mxu0
        %9585 = vmatprep.mubr.f32.mxu0 %v9413
        %9586 = vmatmul.mubr.f32.gmra.mxu0 %v9412
        %v9587 = vpop.f32.mrf.mxu0
        %v9588 = vadd.f32 %v9509, %v9587
        %v9589 = vpop.f32.mrf.mxu0
        %9590 = vmatprep.mubr.f32.mxu0 %v9415
        %9591 = vmatmul.mubr.f32.gmra.mxu0 %v9414
        %v9592 = vpop.f32.mrf.mxu0
        %v9593 = vadd.f32 %v9509, %v9592
        %v9594 = vpop.f32.mrf.mxu0
        %9595 = vmatprep.mubr.f32.mxu0 %v9417
        %9596 = vmatmul.mubr.f32.gmra.mxu0 %v9416
        %v9597 = vpop.f32.mrf.mxu0
        %v9598 = vadd.f32 %v9509, %v9597
        %v9599 = vpop.f32.mrf.mxu0
        %9600 = vmatprep.mubr.f32.mxu0 %v9419
        %9601 = vmatmul.mubr.f32.gmra.mxu0 %v9418
        %v9602 = vpop.f32.mrf.mxu0
        %v9603 = vadd.f32 %v9509, %v9602
        %v9604 = vpop.f32.mrf.mxu0
        %9605 = vmatprep.mubr.f32.mxu0 %v9421
        %9606 = vmatmul.mubr.f32.gmra.mxu0 %v9420
        %v9607 = vpop.f32.mrf.mxu0
        %v9608 = vadd.f32 %v9509, %v9607
        %v9609 = vpop.f32.mrf.mxu0
        %9610 = vmatprep.mubr.f32.mxu0 %v9423
        %9611 = vmatmul.mubr.f32.gmra.mxu0 %v9422
        %v9612 = vpop.f32.mrf.mxu0
        %v9613 = vadd.f32 %v9509, %v9612
        %v9614 = vpop.f32.mrf.mxu0
        %9615 = vmatprep.mubr.f32.mxu0 %v9425
        %9616 = vmatmul.mubr.f32.gmra.mxu0 %v9424
        %v9617 = vpop.f32.mrf.mxu0
        %v9618 = vadd.f32 %v9509, %v9617
        %v9619 = vpop.f32.mrf.mxu0
        %9620 = vmatprep.mubr.f32.mxu0 %v9427
        %9621 = vmatmul.mubr.f32.gmra.mxu0 %v9426
        %v9622 = vpop.f32.mrf.mxu0
        %v9623 = vadd.f32 %v9509, %v9622
        %v9624 = vpop.f32.mrf.mxu0
        %9625 = vmatprep.mubr.f32.mxu0 %v9429
        %9626 = vmatmul.mubr.f32.gmra.mxu0 %v9428
        %v9627 = vpop.f32.mrf.mxu0
        %v9628 = vadd.f32 %v9509, %v9627
        %v9629 = vpop.f32.mrf.mxu0
        %9630 = vmatprep.mubr.f32.mxu0 %v9431
        %9631 = vmatmul.mubr.f32.gmra.mxu0 %v9430
        %v9632 = vpop.f32.mrf.mxu0
        %v9633 = vadd.f32 %v9509, %v9632
        %v9634 = vpop.f32.mrf.mxu0
        %9635 = vmatprep.mubr.f32.mxu0 %v9433
        %9636 = vmatmul.mubr.f32.gmra.mxu0 %v9432
        %v9637 = vpop.f32.mrf.mxu0
        %v9638 = vadd.f32 %v9509, %v9637
        %v9639 = vpop.f32.mrf.mxu0
        %9640 = vmatprep.mubr.f32.mxu0 %v9435
        %9641 = vmatmul.mubr.f32.gmra.mxu0 %v9434
        %v9642 = vpop.f32.mrf.mxu0
        %v9643 = vadd.f32 %v9509, %v9642
        %v9644 = vpop.f32.mrf.mxu0
        %9645 = vmatprep.mubr.f32.mxu0 %v9437
        %9646 = vmatmul.mubr.f32.gmra.mxu0 %v9436
        %v9647 = vpop.f32.mrf.mxu0
        %v9648 = vadd.f32 %v9509, %v9647
        %v9649 = vpop.f32.mrf.mxu0
        %9650 = vmatprep.mubr.f32.mxu0 %v9439
        %9651 = vmatmul.mubr.f32.gmra.mxu0 %v9438
        %v9652 = vpop.f32.mrf.mxu0
        %v9653 = vadd.f32 %v9509, %v9652
        %v9654 = vpop.f32.mrf.mxu0
        %9655 = vmatprep.mubr.f32.mxu0 %v9441
        %9656 = vmatmul.mubr.f32.gmra.mxu0 %v9440
        %v9657 = vpop.f32.mrf.mxu0
        %v9658 = vadd.f32 %v9509, %v9657
        %v9659 = vpop.f32.mrf.mxu0
        %9660 = vmatprep.mubr.f32.mxu0 %v9443
        %9661 = vmatmul.mubr.f32.gmra.mxu0 %v9442
        %v9662 = vpop.f32.mrf.mxu0
        %v9663 = vadd.f32 %v9509, %v9662
        %v9664 = vpop.f32.mrf.mxu0
        %9665 = vmatprep.mubr.f32.mxu0 %v9445
        %9666 = vmatmul.mubr.f32.gmra.mxu0 %v9444
        %v9667 = vpop.f32.mrf.mxu0
        %v9668 = vadd.f32 %v9509, %v9667
        %v9669 = vpop.f32.mrf.mxu0
        %9670 = vmatprep.mubr.f32.mxu0 %v9447
        %9671 = vmatmul.mubr.f32.gmra.mxu0 %v9446
        %v9672 = vpop.f32.mrf.mxu0
        %v9673 = vadd.f32 %v9509, %v9672
        %v9674 = vpop.f32.mrf.mxu0
        %9675 = vmatprep.mubr.f32.mxu0 %v9449
        %9676 = vmatmul.mubr.f32.gmra.mxu0 %v9448
        %v9677 = vpop.f32.mrf.mxu0
        %v9678 = vadd.f32 %v9509, %v9677
        %v9679 = vpop.f32.mrf.mxu0
        %9680 = vmatprep.mubr.f32.mxu0 %v9451
        %9681 = vmatmul.mubr.f32.gmra.mxu0 %v9450
        %v9682 = vpop.f32.mrf.mxu0
        %v9683 = vadd.f32 %v9509, %v9682
        %v9684 = vpop.f32.mrf.mxu0
        %9685 = vmatprep.mubr.f32.mxu0 %v9453
        %9686 = vmatmul.mubr.f32.gmra.mxu0 %v9452
        %v9687 = vpop.f32.mrf.mxu0
        %v9688 = vadd.f32 %v9509, %v9687
        %v9689 = vpop.f32.mrf.mxu0
        %9690 = vmatprep.mubr.f32.mxu0 %v9455
        %9691 = vmatmul.mubr.f32.gmra.mxu0 %v9454
        %v9692 = vpop.f32.mrf.mxu0
        %v9693 = vadd.f32 %v9509, %v9692
        %v9694 = vpop.f32.mrf.mxu0
        %9695 = vmatprep.mubr.f32.mxu0 %v9457
        %9696 = vmatmul.mubr.f32.gmra.mxu0 %v9456
        %v9697 = vpop.f32.mrf.mxu0
        %v9698 = vadd.f32 %v9509, %v9697
        %v9699 = vpop.f32.mrf.mxu0
        %9700 = vmatprep.mubr.f32.mxu0 %v9459
        %9701 = vmatmul.mubr.f32.gmra.mxu0 %v9458
        %v9702 = vpop.f32.mrf.mxu0
        %v9703 = vadd.f32 %v9509, %v9702
        %v9704 = vpop.f32.mrf.mxu0
        %9705 = vmatprep.mubr.f32.mxu0 %v9461
        %9706 = vmatmul.mubr.f32.gmra.mxu0 %v9460
        %v9707 = vpop.f32.mrf.mxu0
        %v9708 = vadd.f32 %v9509, %v9707
        %v9709 = vpop.f32.mrf.mxu0
        %9710 = vmatprep.mubr.f32.mxu0 %v9463
        %9711 = vmatmul.mubr.f32.gmra.mxu0 %v9462
        %v9712 = vpop.f32.mrf.mxu0
        %v9713 = vadd.f32 %v9509, %v9712
        %v9714 = vpop.f32.mrf.mxu0
        %9715 = vmatprep.mubr.f32.mxu0 %v9465
        %9716 = vmatmul.mubr.f32.gmra.mxu0 %v9464
        %v9717 = vpop.f32.mrf.mxu0
        %v9718 = vadd.f32 %v9509, %v9717
        %v9719 = vpop.f32.mrf.mxu0
        %9720 = vmatprep.mubr.f32.mxu0 %v9467
        %9721 = vmatmul.mubr.f32.gmra.mxu0 %v9466
        %v9722 = vpop.f32.mrf.mxu0
        %v9723 = vadd.f32 %v9509, %v9722
        %v9724 = vpop.f32.mrf.mxu0
        %9725 = vmatprep.mubr.f32.mxu0 %v9469
        %9726 = vmatmul.mubr.f32.gmra.mxu0 %v9468
        %v9727 = vpop.f32.mrf.mxu0
        %v9728 = vadd.f32 %v9509, %v9727
        %v9729 = vpop.f32.mrf.mxu0
        %9730 = vmatprep.mubr.f32.mxu0 %v9471
        %9731 = vmatmul.mubr.f32.gmra.mxu0 %v9470
        %v9732 = vpop.f32.mrf.mxu0
        %v9733 = vadd.f32 %v9509, %v9732
        %v9734 = vpop.f32.mrf.mxu0
        %9735 = vdwg.mxu0
        %9736 = vst [vmem:[%s577] sm:$0xff] %v9578
        %9737 = vst [vmem:[%s577 + $0x8] sm:$0xff] %v9583
        %9738 = vst [vmem:[%s577 + $0x10] sm:$0xff] %v9588
        %9739 = vst [vmem:[%s577 + $0x18] sm:$0xff] %v9593
        %9740 = vst [vmem:[%s577 + $0x20] sm:$0xff] %v9598
        %9741 = vst [vmem:[%s577 + $0x28] sm:$0xff] %v9603
        %9742 = vst [vmem:[%s577 + $0x30] sm:$0xff] %v9608
        %9743 = vst [vmem:[%s577 + $0x38] sm:$0xff] %v9613
        %9744 = vst [vmem:[%s577 + $0x40] sm:$0xff] %v9618
        %9745 = vst [vmem:[%s577 + $0x48] sm:$0xff] %v9623
        %9746 = vst [vmem:[%s577 + $0x50] sm:$0xff] %v9628
        %9747 = vst [vmem:[%s577 + $0x58] sm:$0xff] %v9633
        %9748 = vst [vmem:[%s577 + $0x60] sm:$0xff] %v9638
        %9749 = vst [vmem:[%s577 + $0x68] sm:$0xff] %v9643
        %9750 = vst [vmem:[%s577 + $0x70] sm:$0xff] %v9648
        %9751 = vst [vmem:[%s577 + $0x78] sm:$0xff] %v9653
        %9752 = vst [vmem:[%s577 + $0x80] sm:$0xff] %v9658
        %9753 = vst [vmem:[%s577 + $0x88] sm:$0xff] %v9663
        %9754 = vst [vmem:[%s577 + $0x90] sm:$0xff] %v9668
        %9755 = vst [vmem:[%s577 + $0x98] sm:$0xff] %v9673
        %9756 = vst [vmem:[%s577 + $0xa0] sm:$0xff] %v9678
        %9757 = vst [vmem:[%s577 + $0xa8] sm:$0xff] %v9683
        %9758 = vst [vmem:[%s577 + $0xb0] sm:$0xff] %v9688
        %9759 = vst [vmem:[%s577 + $0xb8] sm:$0xff] %v9693
        %9760 = vst [vmem:[%s577 + $0xc0] sm:$0xff] %v9698
        %9761 = vst [vmem:[%s577 + $0xc8] sm:$0xff] %v9703
        %9762 = vst [vmem:[%s577 + $0xd0] sm:$0xff] %v9708
        %9763 = vst [vmem:[%s577 + $0xd8] sm:$0xff] %v9713
        %9764 = vst [vmem:[%s577 + $0xe0] sm:$0xff] %v9718
        %9765 = vst [vmem:[%s577 + $0xe8] sm:$0xff] %v9723
        %9766 = vst [vmem:[%s577 + $0xf0] sm:$0xff] %v9728
        %9767 = vst [vmem:[%s577 + $0xf8] sm:$0xff] %v9733
        %s9768 = sand.u32 %s306, 1
        %s9769 = scalar_lea.sflag [#allocation6], %s9768
        %s9770 = sand.u32 %s306, 1
        %s9771 = smul.addr %s9770, 256
        %s9772 = scalar_lea.vmem [#allocation21], %s9771
        // Predicated region
        $region109: #{tpu_custom_call.1} parent=67 // pred_check
          %p9773 = pneg %p316
        $region110: #{tpu_custom_call.1} parent=67 // pred_check_branch
          %9775 = sbr.rel (%p9773) target = $region112
        $region111: #{tpu_custom_call.1} parent=67 // pred_region
          %s9777 = ssub.s32 4096, 4096
          %9778 = vsyncadd %s9769, %s9777
          %s9779 = smul.addr %s36, 32
          %s9780 = smul.addr %s9779, 128
          %s9781 = scalar_lea.hbm %s12, %s9780
          %s9782 = sshll.u32 %s9772, 4
          %s9783 = int_to_ptr.vmem [resolvable:$true] %s9782
          %9788 = dma.vmem_to_hbm [thread:$0]  %s9783, 4096, %s9781, %s9769, 128, 128, 8
        $region112: #{tpu_custom_call.1} parent=67 // pred_fallthru
          _
      $region68: #{tpu_custom_call.1} parent=5 // pred_fallthru
        _
      %p9789 = scmp.le.s32.totalorder 2, %s31
      // Predicated region
      $region113: #{tpu_custom_call.1} parent=5 // pred_check
        %p9790 = pneg %p9789
      $region114: #{tpu_custom_call.1} parent=5 // pred_check_branch
        %9792 = sbr.rel (%p9790) target = $region116
      $region115: #{tpu_custom_call.1} parent=5 // pred_region
        %s9793 = ssub.s32 %s31, 2
        // Predicated region
        $region117: #{tpu_custom_call.1} parent=115 // pred_check
          %p9794 = pneg %p322
        $region118: #{tpu_custom_call.1} parent=115 // pred_check_branch
          %9796 = sbr.rel (%p9794) target = $region120
        $region119: #{tpu_custom_call.1} parent=115 // pred_region
          %s9797 = sand.u32 %s307, 1
          %s9798 = scalar_lea.sflag [#allocation6], %s9797
          %s9799 = sand.u32 %s307, 1
          %s9800 = smul.addr %s9799, 256
          %s9801 = scalar_lea.vmem [#allocation21], %s9800
          %9802 = dma.done %s9798, 4096
        $region120: #{tpu_custom_call.1} parent=115 // pred_fallthru
          _
      $region116: #{tpu_custom_call.1} parent=5 // pred_fallthru
        _
    $region6: #{tpu_custom_call.1} parent=1 // loop_footer
      %s35 = sadd.s32 1, %s31
    $region7: #{tpu_custom_call.1} parent=1 // loop_footer_branch
      %30 = sbr.rel target = $region3
    $region8: #{tpu_custom_call.1} parent=1 // loop_exit
      _
    %9803 = vsyncpa [#allocation5], 1
    %s9804 = scalar_lea.sflag [#allocation5], 1
    %9805 = vsyncpa %s9804, 1
    %9806 = vsyncpa [#allocation8], 1
    %s9807 = scalar_lea.sflag [#allocation8], 1
    %9808 = vsyncpa %s9807, 1
    %9809 = vsyncpa [#allocation11], 1
    %9810 = vsyncpa [#allocation14], 1
    %9811 = vsyncpa [#allocation17], 1
    %9812 = vsyncpa [#allocation20], 1
    %9813 = vsyncpa [#allocation6], 1
    %s9814 = scalar_lea.sflag [#allocation6], 1
    %9815 = vsyncpa %s9814, 1

</llo_original>
